<compile_context>
chip_gen: v7x
topology: tpu7x:2x2x1
jax: 0.10.0
libtpu: 0.0.40
codegen_flags: <defaults>
</compile_context>

<pallas_src>
from functools import partial

import jax
import jax.numpy as jnp
from jax.experimental import pallas as pl
from jax.experimental.pallas import tpu as pltpu


# ---------------------------------------------------------------------------
# small helpers
# ---------------------------------------------------------------------------
def _gelu(x):
    # tanh-approx GELU (matches nn.GELU to ~1e-3); tanh runs on the EUP slot.
    return 0.5 * x * (1.0 + jnp.tanh(0.7978845608028654 * (x + 0.044715 * x * x * x)))


def _row_tile(M, tm_max=512):
    """Largest sublane-aligned row tile (pl.cdiv grid handles any remainder)."""
    tm = min(tm_max, ((M + 7) // 8) * 8)
    return tm, pl.cdiv(M, tm)


# ---------------------------------------------------------------------------
# Pallas kernels
# ---------------------------------------------------------------------------
def _fused_matmul_kernel(*refs, ln, eps, has_residual, activation, has_final_ln):
    """[LN(x)] @ W (bf16 MXU, f32 acc) + bias [+ GELU] [+ residual] [+ final LN]."""
    refs = list(refs)
    x_ref = refs.pop(0)
    w_ref = refs.pop(0)
    b_ref = refs.pop(0)
    r_ref = refs.pop(0) if has_residual else None
    if has_final_ln:
        g_ref = refs.pop(0)
        beta_ref = refs.pop(0)
    o_ref = refs.pop(0)

    x = x_ref[...]
    if ln:
        xf = x.astype(jnp.float32)
        mu = jnp.mean(xf, axis=-1, keepdims=True)
        xc = xf - mu
        var = jnp.mean(xc * xc, axis=-1, keepdims=True)
        x = xc * jax.lax.rsqrt(var + eps)      # gamma/beta folded into W / bias

    acc = jnp.dot(x.astype(jnp.bfloat16), w_ref[...],
                  preferred_element_type=jnp.float32)
    acc = acc + b_ref[...]
    if activation == "gelu":
        acc = _gelu(acc)
    if has_residual:
        acc = acc + r_ref[...].astype(jnp.float32)
    if has_final_ln:
        mu = jnp.mean(acc, axis=-1, keepdims=True)
        xc = acc - mu
        var = jnp.mean(xc * xc, axis=-1, keepdims=True)
        acc = xc * jax.lax.rsqrt(var + eps) * g_ref[...] + beta_ref[...]
    o_ref[...] = acc.astype(o_ref.dtype)


def _attn_wo_kernel(qkv_ref, wo_ref, bo_ref, r_ref, o_ref, *, heads, dim_head, scale):
    """Per-batch-element attention, fused with the Wo projection + residual.

    qkv_ref: (S, 3*inner) bf16 rows of one batch element, columns laid out
             [q_h0..q_h{H-1} | k_h0.. | v_h0..], each head block dim_head wide.
    Output:  (S, D) = softmax(QK^T) V @ Wo + bo + residual, row-major so it
             directly continues the (B*S, D) residual stream (no relayout).
    """
    inner = heads * dim_head
    qkv = qkv_ref[...]                                      # (S, 3*inner) bf16
    head_outs = []
    for h in range(heads):                                  # static unroll
        q = qkv[:, h * dim_head:(h + 1) * dim_head]
        k = qkv[:, inner + h * dim_head: inner + (h + 1) * dim_head]
        v = qkv[:, 2 * inner + h * dim_head: 2 * inner + (h + 1) * dim_head]
        s = jax.lax.dot_general(q, k, (((1,), (1,)), ((), ())),
                                preferred_element_type=jnp.float32) * scale
        m = jnp.max(s, axis=-1, keepdims=True)
        p = jnp.exp(s - m)                                  # unnormalized probs
        l = jnp.sum(p, axis=-1, keepdims=True)
        o_h = jnp.dot(p.astype(qkv.dtype), v, preferred_element_type=jnp.float32)
        head_outs.append(o_h * pl.reciprocal(l, approx=True))
    attn = jnp.concatenate(head_outs, axis=1)               # (S, inner) f32

    acc = jnp.dot(attn.astype(jnp.bfloat16), wo_ref[...],
                  preferred_element_type=jnp.float32)
    acc = acc + bo_ref[...] + r_ref[...].astype(jnp.float32)
    o_ref[...] = acc.astype(o_ref.dtype)


# ---------------------------------------------------------------------------
# pallas_call wrappers
# ---------------------------------------------------------------------------
def fused_matmul(x, w, bias, *, ln=False, eps=1e-5, residual=None,
                 activation=None, final_ln=None, out_dtype=jnp.bfloat16,
                 tm_max=512):
    """x: (M, K) bf16, w: (K, N) bf16, bias: (1, N) f32, residual: (M, N) bf16,
    final_ln: optional (gamma, beta) each (1, N) f32 applied after residual."""
    M, K = x.shape
    N = w.shape[1]
    tm, steps = _row_tile(M, tm_max)

    in_specs = [pl.BlockSpec((tm, K), lambda i: (i, 0)),
                pl.BlockSpec((K, N), lambda i: (0, 0)),
                pl.BlockSpec((1, N), lambda i: (0, 0))]
    args = [x, w, bias]
    if residual is not None:
        in_specs.append(pl.BlockSpec((tm, N), lambda i: (i, 0)))
        args.append(residual)
    if final_ln is not None:
        g, b = final_ln
        in_specs += [pl.BlockSpec((1, N), lambda i: (0, 0)),
                     pl.BlockSpec((1, N), lambda i: (0, 0))]
        args += [g, b]

    kernel = partial(_fused_matmul_kernel, ln=ln, eps=eps,
                     has_residual=residual is not None,
                     activation=activation,
                     has_final_ln=final_ln is not None)
    return pl.pallas_call(
        kernel,
        out_shape=jax.ShapeDtypeStruct((M, N), out_dtype),
        grid_spec=pltpu.PrefetchScalarGridSpec(
            num_scalar_prefetch=0,
            grid=(steps,),
            in_specs=in_specs,
            out_specs=pl.BlockSpec((tm, N), lambda i: (i, 0)),
        ),
        compiler_params=pltpu.CompilerParams(
            dimension_semantics=("parallel",)),
    )(*args)


def attention_out_proj(qkv, wo, bo, residual, *, batch, seq, heads, dim_head,
                       scale, out_dtype=jnp.bfloat16):
    """qkv: (B*S, 3*inner) bf16, wo: (inner, D) bf16, bo: (1, D) f32,
    residual: (B*S, D) bf16  ->  (B*S, D) out_dtype."""
    M, three_inner = qkv.shape
    inner = heads * dim_head
    D = wo.shape[1]
    kernel = partial(_attn_wo_kernel, heads=heads, dim_head=dim_head, scale=scale)
    return pl.pallas_call(
        kernel,
        out_shape=jax.ShapeDtypeStruct((M, D), out_dtype),
        grid_spec=pltpu.PrefetchScalarGridSpec(
            num_scalar_prefetch=0,
            grid=(batch,),
            in_specs=[
                pl.BlockSpec((seq, three_inner), lambda b: (b, 0)),
                pl.BlockSpec((inner, D), lambda b: (0, 0)),
                pl.BlockSpec((1, D), lambda b: (0, 0)),
                pl.BlockSpec((seq, D), lambda b: (b, 0)),
            ],
            out_specs=pl.BlockSpec((seq, D), lambda b: (b, 0)),
        ),
        compiler_params=pltpu.CompilerParams(
            dimension_semantics=("parallel",)),
    )(qkv, wo, bo, residual)


# ---------------------------------------------------------------------------
# parameters: raw (module-style) and prepared (LN folded into bf16 weights)
# ---------------------------------------------------------------------------
def make_params(key, cfg):
    D, H, dh = cfg["dim"], cfg["heads"], cfg["dim_head"]
    inner = H * dh
    F = cfg["ff_mult"] * D
    V, L, Smax = cfg["vocab"], cfg["depth"], cfg["max_seq_len"]
    ks = iter(jax.random.split(key, 4 + 13 * L))

    def nrm(shape, std):
        return std * jax.random.normal(next(ks), shape, jnp.float32)

    layers = []
    for _ in range(L):
        layers.append(dict(
            ln1_g=1.0 + 0.1 * nrm((D,), 1.0), ln1_b=0.1 * nrm((D,), 1.0),
            wq=nrm((D, inner), D ** -0.5), wk=nrm((D, inner), D ** -0.5),
            wv=nrm((D, inner), D ** -0.5),
            wo=nrm((inner, D), inner ** -0.5), bo=0.02 * nrm((D,), 1.0),
            ln2_g=1.0 + 0.1 * nrm((D,), 1.0), ln2_b=0.1 * nrm((D,), 1.0),
            w1=nrm((D, F), D ** -0.5), b1=0.02 * nrm((F,), 1.0),
            w2=nrm((F, D), F ** -0.5), b2=0.02 * nrm((D,), 1.0),
        ))
    return dict(
        tok_emb=nrm((V, D), 0.02), pos_emb=nrm((Smax, D), 0.02),
        lnf_g=1.0 + 0.1 * nrm((D,), 1.0), lnf_b=0.1 * nrm((D,), 1.0),
        layers=layers,
    )


def prepare_params(raw):
    """Fold each pre-norm block's LayerNorm gamma/beta into the following
    projection weights (bf16) / biases (f32, pre-shaped (1, N))."""
    bf = jnp.bfloat16
    layers = []
    for lyr in raw["layers"]:
        w_qkv = jnp.concatenate([lyr["wq"], lyr["wk"], lyr["wv"]], axis=1)
        layers.append(dict(
            w_qkv=(lyr["ln1_g"][:, None] * w_qkv).astype(bf),
            b_qkv=(lyr["ln1_b"] @ w_qkv).reshape(1, -1).astype(jnp.float32),
            wo=lyr["wo"].astype(bf),
            bo=lyr["bo"].reshape(1, -1).astype(jnp.float32),
            w1=(lyr["ln2_g"][:, None] * lyr["w1"]).astype(bf),
            b1=(lyr["b1"] + lyr["ln2_b"] @ lyr["w1"]).reshape(1, -1).astype(jnp.float32),
            w2=lyr["w2"].astype(bf),
            b2=lyr["b2"].reshape(1, -1).astype(jnp.float32),
        ))
    return dict(tok_emb=raw["tok_emb"], pos_emb=raw["pos_emb"],
                lnf_g=raw["lnf_g"].reshape(1, -1).astype(jnp.float32),
                lnf_b=raw["lnf_b"].reshape(1, -1).astype(jnp.float32),
                layers=layers)


# ---------------------------------------------------------------------------
# BERTEmbedder forward (Pallas) — tokens are pre-tokenized int32 ids
# ---------------------------------------------------------------------------
def bert_embedder_forward(tokens, params, *, cfg):
    B, S = tokens.shape
    D, H, dh = cfg["dim"], cfg["heads"], cfg["dim_head"]
    scale = dh ** -0.5
    M = B * S

    # TODO(synk): HF BERTTokenizer has no Pallas equivalent; embedding gather
    # and emb_dropout (p=0.0, eval => identity) stay as plain XLA ops.
    x = params["tok_emb"][tokens] + params["pos_emb"][None, :S, :]
    x = x.reshape(M, D).astype(jnp.bfloat16)           # bf16 residual stream

    n_layers = len(params["layers"])
    for li, lyr in enumerate(params["layers"]):
        last = li == n_layers - 1
        # --- attention block:  x = x + Wo @ attn(LN1(x)) -------------------
        qkv = fused_matmul(x, lyr["w_qkv"], lyr["b_qkv"], ln=True,
                           out_dtype=jnp.bfloat16)                 # (M, 3*inner)
        x = attention_out_proj(qkv, lyr["wo"], lyr["bo"], x,
                               batch=B, seq=S, heads=H, dim_head=dh,
                               scale=scale, out_dtype=jnp.bfloat16)
        # --- feed-forward block:  x = x + W2 @ gelu(W1 @ LN2(x)) -----------
        h = fused_matmul(x, lyr["w1"], lyr["b1"], ln=True,
                         activation="gelu", out_dtype=jnp.bfloat16)
        x = fused_matmul(
            h, lyr["w2"], lyr["b2"], residual=x,
            final_ln=(params["lnf_g"], params["lnf_b"]) if last else None,
            out_dtype=jnp.float32 if last else jnp.bfloat16)
    return x.reshape(B, S, D)


# ---------------------------------------------------------------------------
# Pure-JAX reference (f32 residual, unfolded LN params, exact softmax)
# ---------------------------------------------------------------------------
def reference_forward(tokens, raw, *, cfg, eps=1e-5):
    bf = jnp.bfloat16
    B, S = tokens.shape
    D, H, dh = cfg["dim"], cfg["heads"], cfg["dim_head"]
    inner = H * dh
    scale = dh ** -0.5

    def mm(a, w):
        return jnp.dot(a.astype(bf), w.astype(bf),
                       preferred_element_type=jnp.float32)

    def ln(x, g, b):
        mu = jnp.mean(x, -1, keepdims=True)
        xc = x - mu
        var = jnp.mean(xc * xc, -1, keepdims=True)
        return xc * jax.lax.rsqrt(var + eps) * g + b

    x = raw["tok_emb"][tokens] + raw["pos_emb"][None, :S, :]
    x = x.reshape(B * S, D).astype(jnp.float32)
    for lyr in raw["layers"]:
        h = ln(x, lyr["ln1_g"], lyr["ln1_b"])
        q = mm(h, lyr["wq"]).astype(bf).reshape(B, S, H, dh).transpose(0, 2, 1, 3)
        k = mm(h, lyr["wk"]).astype(bf).reshape(B, S, H, dh).transpose(0, 2, 1, 3)
        v = mm(h, lyr["wv"]).astype(bf).reshape(B, S, H, dh).transpose(0, 2, 1, 3)
        s = jnp.einsum("bhqd,bhkd->bhqk", q, k,
                       preferred_element_type=jnp.float32) * scale
        p = jax.nn.softmax(s, axis=-1)
        o = jnp.einsum("bhqk,bhkd->bhqd", p.astype(bf), v,
                       preferred_element_type=jnp.float32)
        o = o.astype(bf).transpose(0, 2, 1, 3).reshape(B * S, inner)
        x = mm(o, lyr["wo"]) + lyr["bo"] + x
        h = ln(x, lyr["ln2_g"], lyr["ln2_b"])
        hh = _gelu(mm(h, lyr["w1"]) + lyr["b1"]).astype(bf)
        x = mm(hh, lyr["w2"]) + lyr["b2"] + x
    x = ln(x, raw["lnf_g"], raw["lnf_b"])
    return x.reshape(B, S, D)


# ---------------------------------------------------------------------------
if __name__ == "__main__":
    # Small config consistent with BERTEmbedder(n_embed, n_layer):
    # n_embed=256 (lane-dense), n_layer=2, default heads=8 / dim_head=64,
    # max_seq_len=64 (multiple of 8), small vocab for a fast demo.
    cfg = dict(vocab=1024, max_seq_len=64, dim=256, depth=2,
               heads=8, dim_head=64, ff_mult=4)

    key = jax.random.PRNGKey(0)
    k_p, k_t = jax.random.split(key)
    raw = make_params(k_p, cfg)
    prep = prepare_params(raw)

    tokens = jax.random.randint(k_t, (2, cfg["max_seq_len"]), 0, cfg["vocab"],
                                dtype=jnp.int32)

    fwd = jax.jit(partial(bert_embedder_forward, cfg=cfg))
    out = jax.block_until_ready(fwd(tokens, prep))
    assert out.shape == (2, cfg["max_seq_len"], cfg["dim"])

    ref = reference_forward(tokens, raw, cfg=cfg)
    err = float(jnp.max(jnp.abs(out - ref)))
    assert err == err and err < 5e-2, err   # finite and close

    print("KERNEL_OK")
</pallas_src>

<mosaic_0001>
module attributes {stable_mosaic.version = 11 : i64} {
  func.func @_fused_matmul_kernel(%arg0: i32, %arg1: memref<128x256xbf16, #tpu.memory_space<vmem>>, %arg2: memref<256x1536xbf16, #tpu.memory_space<vmem>>, %arg3: memref<1x1536xf32, #tpu.memory_space<vmem>>, %arg4: memref<128x1536xbf16, #tpu.memory_space<vmem>>) attributes {dimension_semantics = [#tpu.dimension_semantics<parallel>], iteration_bounds = array<i64: 1>, scalar_prefetch = 0 : i64, scratch_operands = 0 : i64, tpu.core_type = #tpu.core_type<tc>, window_params = [{transform_indices = @transform_0, window_bounds = array<i64: 128, 256>}, {pipeline_mode = #tpu.pipeline_mode<synchronous>, transform_indices = @transform_1, window_bounds = array<i64: 256, 1536>}, {pipeline_mode = #tpu.pipeline_mode<synchronous>, transform_indices = @transform_2, window_bounds = array<i64: 1, 1536>}, {transform_indices = @transform_3, window_bounds = array<i64: 128, 1536>}]} {
    %c0 = arith.constant 0 : index
    %c0_0 = arith.constant 0 : index
    %0 = vector.load %arg1[%c0, %c0_0] : memref<128x256xbf16, #tpu.memory_space<vmem>>, vector<128x256xbf16>
    %1 = arith.extf %0 : vector<128x256xbf16> to vector<128x256xf32>
    %cst = arith.constant dense<0.000000e+00> : vector<128xf32>
    %2 = vector.multi_reduction <add>, %1, %cst [1] : vector<128x256xf32> to vector<128xf32>
    %3 = vector.shape_cast %2 : vector<128xf32> to vector<128x1xf32>
    %cst_1 = arith.constant 2.560000e+02 : f32
    %4 = vector.broadcast %cst_1 : f32 to vector<128x1xf32>
    %5 = arith.divf %3, %4 : vector<128x1xf32>
    %6 = vector.broadcast %5 : vector<128x1xf32> to vector<128x256xf32>
    %7 = arith.subf %1, %6 : vector<128x256xf32>
    %8 = arith.mulf %7, %7 : vector<128x256xf32>
    %cst_2 = arith.constant dense<0.000000e+00> : vector<128xf32>
    %9 = vector.multi_reduction <add>, %8, %cst_2 [1] : vector<128x256xf32> to vector<128xf32>
    %10 = vector.shape_cast %9 : vector<128xf32> to vector<128x1xf32>
    %cst_3 = arith.constant 2.560000e+02 : f32
    %11 = vector.broadcast %cst_3 : f32 to vector<128x1xf32>
    %12 = arith.divf %10, %11 : vector<128x1xf32>
    %cst_4 = arith.constant 9.99999974E-6 : f32
    %13 = vector.broadcast %cst_4 : f32 to vector<128x1xf32>
    %14 = arith.addf %12, %13 : vector<128x1xf32>
    %15 = math.rsqrt %14 : vector<128x1xf32>
    %16 = vector.broadcast %15 : vector<128x1xf32> to vector<128x256xf32>
    %17 = arith.mulf %7, %16 : vector<128x256xf32>
    %18 = arith.truncf %17 : vector<128x256xf32> to vector<128x256xbf16>
    %c0_5 = arith.constant 0 : index
    %c0_6 = arith.constant 0 : index
    %19 = vector.load %arg2[%c0_5, %c0_6] : memref<256x1536xbf16, #tpu.memory_space<vmem>>, vector<256x1536xbf16>
    %cst_7 = arith.constant dense<0.000000e+00> : vector<128x1536xf32>
    %20 = tpu.matmul %18, %19, %cst_7 {dimension_numbers = #tpu.dot_dimension_numbers<[1], [0], [0], [1], [0, 0, 1, 1], [], []>} : vector<128x256xbf16>, vector<256x1536xbf16>, vector<128x1536xf32> -> vector<128x1536xf32>
    %c0_8 = arith.constant 0 : index
    %c0_9 = arith.constant 0 : index
    %21 = vector.load %arg3[%c0_8, %c0_9] : memref<1x1536xf32, #tpu.memory_space<vmem>>, vector<1x1536xf32>
    %22 = vector.broadcast %21 : vector<1x1536xf32> to vector<128x1536xf32>
    %23 = arith.addf %20, %22 : vector<128x1536xf32>
    %24 = arith.truncf %23 : vector<128x1536xf32> to vector<128x1536xbf16>
    %c0_10 = arith.constant 0 : index
    %c0_11 = arith.constant 0 : index
    %25 = vector.load %arg4[%c0_10, %c0_11] : memref<128x1536xbf16, #tpu.memory_space<vmem>>, vector<128x1536xbf16>
    tpu.vector_store %arg4[%c0_10, %c0_11], %24 {strides = array<i32>} : memref<128x1536xbf16, #tpu.memory_space<vmem>>, vector<128x1536xbf16>,
    return
  }
  func.func @transform_0(%arg0: i32) -> (i32, i32) {
    %c0_i32 = arith.constant 0 : i32
    %c0_i32_0 = arith.constant 0 : i32
    return %arg0, %c0_i32 : i32, i32
  }
  func.func @transform_1(%arg0: i32) -> (i32, i32) {
    %c0_i32 = arith.constant 0 : i32
    %c0_i32_0 = arith.constant 0 : i32
    %c0_i32_1 = arith.constant 0 : i32
    return %c0_i32, %c0_i32_0 : i32, i32
  }
  func.func @transform_2(%arg0: i32) -> (i32, i32) {
    %c0_i32 = arith.constant 0 : i32
    %c0_i32_0 = arith.constant 0 : i32
    %c0_i32_1 = arith.constant 0 : i32
    return %c0_i32, %c0_i32_0 : i32, i32
  }
  func.func @transform_3(%arg0: i32) -> (i32, i32) {
    %c0_i32 = arith.constant 0 : i32
    %c0_i32_0 = arith.constant 0 : i32
    return %arg0, %c0_i32 : i32, i32
  }
}

module attributes {stable_mosaic.version = 11 : i64} {
  func.func @_attn_wo_kernel(%arg0: i32, %arg1: memref<64x1536xbf16, #tpu.memory_space<vmem>>, %arg2: memref<512x256xbf16, #tpu.memory_space<vmem>>, %arg3: memref<1x256xf32, #tpu.memory_space<vmem>>, %arg4: memref<64x256xbf16, #tpu.memory_space<vmem>>, %arg5: memref<64x256xbf16, #tpu.memory_space<vmem>>) attributes {dimension_semantics = [#tpu.dimension_semantics<parallel>], iteration_bounds = array<i64: 2>, scalar_prefetch = 0 : i64, scratch_operands = 0 : i64, tpu.core_type = #tpu.core_type<tc>, window_params = [{transform_indices = @transform_0, window_bounds = array<i64: 64, 1536>}, {pipeline_mode = #tpu.pipeline_mode<synchronous>, transform_indices = @transform_1, window_bounds = array<i64: 512, 256>}, {pipeline_mode = #tpu.pipeline_mode<synchronous>, transform_indices = @transform_2, window_bounds = array<i64: 1, 256>}, {transform_indices = @transform_3, window_bounds = array<i64: 64, 256>}, {transform_indices = @transform_4, window_bounds = array<i64: 64, 256>}]} {
    %c0 = arith.constant 0 : index
    %c0_0 = arith.constant 0 : index
    %0 = vector.load %arg1[%c0, %c0_0] : memref<64x1536xbf16, #tpu.memory_space<vmem>>, vector<64x1536xbf16>
    %1 = vector.extract_strided_slice %0 {offsets = [0, 0], sizes = [64, 64], strides = [1, 1]} : vector<64x1536xbf16> to vector<64x64xbf16>
    %2 = vector.extract_strided_slice %0 {offsets = [0, 512], sizes = [64, 64], strides = [1, 1]} : vector<64x1536xbf16> to vector<64x64xbf16>
    %3 = vector.extract_strided_slice %0 {offsets = [0, 1024], sizes = [64, 64], strides = [1, 1]} : vector<64x1536xbf16> to vector<64x64xbf16>
    %cst = arith.constant dense<0.000000e+00> : vector<64x64xf32>
    %4 = tpu.matmul %1, %2, %cst {dimension_numbers = #tpu.dot_dimension_numbers<[1], [1], [0], [0], [0, 0, 1, 0], [], []>} : vector<64x64xbf16>, vector<64x64xbf16>, vector<64x64xf32> -> vector<64x64xf32>
    %cst_1 = arith.constant 1.250000e-01 : f32
    %5 = vector.broadcast %cst_1 : f32 to vector<64x64xf32>
    %6 = arith.mulf %4, %5 : vector<64x64xf32>
    %cst_2 = arith.constant dense<0xFF800000> : vector<64xf32>
    %7 = vector.multi_reduction <maximumf>, %6, %cst_2 [1] : vector<64x64xf32> to vector<64xf32>
    %8 = vector.shape_cast %7 : vector<64xf32> to vector<64x1xf32>
    %9 = vector.broadcast %8 : vector<64x1xf32> to vector<64x64xf32>
    %10 = arith.subf %6, %9 : vector<64x64xf32>
    %11 = math.exp %10 : vector<64x64xf32>
    %cst_3 = arith.constant dense<0.000000e+00> : vector<64xf32>
    %12 = vector.multi_reduction <add>, %11, %cst_3 [1] : vector<64x64xf32> to vector<64xf32>
    %13 = vector.shape_cast %12 : vector<64xf32> to vector<64x1xf32>
    %14 = arith.truncf %11 : vector<64x64xf32> to vector<64x64xbf16>
    %cst_4 = arith.constant dense<0.000000e+00> : vector<64x64xf32>
    %15 = tpu.matmul %14, %3, %cst_4 {dimension_numbers = #tpu.dot_dimension_numbers<[1], [0], [0], [1], [0, 0, 1, 1], [], []>} : vector<64x64xbf16>, vector<64x64xbf16>, vector<64x64xf32> -> vector<64x64xf32>
    %16 = tpu.reciprocal %13 {approx = true} : vector<64x1xf32> -> vector<64x1xf32>
    %17 = vector.broadcast %16 : vector<64x1xf32> to vector<64x64xf32>
    %18 = arith.mulf %15, %17 : vector<64x64xf32>
    %19 = vector.extract_strided_slice %0 {offsets = [0, 64], sizes = [64, 64], strides = [1, 1]} : vector<64x1536xbf16> to vector<64x64xbf16>
    %20 = vector.extract_strided_slice %0 {offsets = [0, 576], sizes = [64, 64], strides = [1, 1]} : vector<64x1536xbf16> to vector<64x64xbf16>
    %21 = vector.extract_strided_slice %0 {offsets = [0, 1088], sizes = [64, 64], strides = [1, 1]} : vector<64x1536xbf16> to vector<64x64xbf16>
    %cst_5 = arith.constant dense<0.000000e+00> : vector<64x64xf32>
    %22 = tpu.matmul %19, %20, %cst_5 {dimension_numbers = #tpu.dot_dimension_numbers<[1], [1], [0], [0], [0, 0, 1, 0], [], []>} : vector<64x64xbf16>, vector<64x64xbf16>, vector<64x64xf32> -> vector<64x64xf32>
    %cst_6 = arith.constant 1.250000e-01 : f32
    %23 = vector.broadcast %cst_6 : f32 to vector<64x64xf32>
    %24 = arith.mulf %22, %23 : vector<64x64xf32>
    %cst_7 = arith.constant dense<0xFF800000> : vector<64xf32>
    %25 = vector.multi_reduction <maximumf>, %24, %cst_7 [1] : vector<64x64xf32> to vector<64xf32>
    %26 = vector.shape_cast %25 : vector<64xf32> to vector<64x1xf32>
    %27 = vector.broadcast %26 : vector<64x1xf32> to vector<64x64xf32>
    %28 = arith.subf %24, %27 : vector<64x64xf32>
    %29 = math.exp %28 : vector<64x64xf32>
    %cst_8 = arith.constant dense<0.000000e+00> : vector<64xf32>
    %30 = vector.multi_reduction <add>, %29, %cst_8 [1] : vector<64x64xf32> to vector<64xf32>
    %31 = vector.shape_cast %30 : vector<64xf32> to vector<64x1xf32>
    %32 = arith.truncf %29 : vector<64x64xf32> to vector<64x64xbf16>
    %cst_9 = arith.constant dense<0.000000e+00> : vector<64x64xf32>
    %33 = tpu.matmul %32, %21, %cst_9 {dimension_numbers = #tpu.dot_dimension_numbers<[1], [0], [0], [1], [0, 0, 1, 1], [], []>} : vector<64x64xbf16>, vector<64x64xbf16>, vector<64x64xf32> -> vector<64x64xf32>
    %34 = tpu.reciprocal %31 {approx = true} : vector<64x1xf32> -> vector<64x1xf32>
    %35 = vector.broadcast %34 : vector<64x1xf32> to vector<64x64xf32>
    %36 = arith.mulf %33, %35 : vector<64x64xf32>
    %37 = vector.extract_strided_slice %0 {offsets = [0, 128], sizes = [64, 64], strides = [1, 1]} : vector<64x1536xbf16> to vector<64x64xbf16>
    %38 = vector.extract_strided_slice %0 {offsets = [0, 640], sizes = [64, 64], strides = [1, 1]} : vector<64x1536xbf16> to vector<64x64xbf16>
    %39 = vector.extract_strided_slice %0 {offsets = [0, 1152], sizes = [64, 64], strides = [1, 1]} : vector<64x1536xbf16> to vector<64x64xbf16>
    %cst_10 = arith.constant dense<0.000000e+00> : vector<64x64xf32>
    %40 = tpu.matmul %37, %38, %cst_10 {dimension_numbers = #tpu.dot_dimension_numbers<[1], [1], [0], [0], [0, 0, 1, 0], [], []>} : vector<64x64xbf16>, vector<64x64xbf16>, vector<64x64xf32> -> vector<64x64xf32>
    %cst_11 = arith.constant 1.250000e-01 : f32
    %41 = vector.broadcast %cst_11 : f32 to vector<64x64xf32>
    %42 = arith.mulf %40, %41 : vector<64x64xf32>
    %cst_12 = arith.constant dense<0xFF800000> : vector<64xf32>
    %43 = vector.multi_reduction <maximumf>, %42, %cst_12 [1] : vector<64x64xf32> to vector<64xf32>
    %44 = vector.shape_cast %43 : vector<64xf32> to vector<64x1xf32>
    %45 = vector.broadcast %44 : vector<64x1xf32> to vector<64x64xf32>
    %46 = arith.subf %42, %45 : vector<64x64xf32>
    %47 = math.exp %46 : vector<64x64xf32>
    %cst_13 = arith.constant dense<0.000000e+00> : vector<64xf32>
    %48 = vector.multi_reduction <add>, %47, %cst_13 [1] : vector<64x64xf32> to vector<64xf32>
    %49 = vector.shape_cast %48 : vector<64xf32> to vector<64x1xf32>
    %50 = arith.truncf %47 : vector<64x64xf32> to vector<64x64xbf16>
    %cst_14 = arith.constant dense<0.000000e+00> : vector<64x64xf32>
    %51 = tpu.matmul %50, %39, %cst_14 {dimension_numbers = #tpu.dot_dimension_numbers<[1], [0], [0], [1], [0, 0, 1, 1], [], []>} : vector<64x64xbf16>, vector<64x64xbf16>, vector<64x64xf32> -> vector<64x64xf32>
    %52 = tpu.reciprocal %49 {approx = true} : vector<64x1xf32> -> vector<64x1xf32>
    %53 = vector.broadcast %52 : vector<64x1xf32> to vector<64x64xf32>
    %54 = arith.mulf %51, %53 : vector<64x64xf32>
    %55 = vector.extract_strided_slice %0 {offsets = [0, 192], sizes = [64, 64], strides = [1, 1]} : vector<64x1536xbf16> to vector<64x64xbf16>
    %56 = vector.extract_strided_slice %0 {offsets = [0, 704], sizes = [64, 64], strides = [1, 1]} : vector<64x1536xbf16> to vector<64x64xbf16>
    %57 = vector.extract_strided_slice %0 {offsets = [0, 1216], sizes = [64, 64], strides = [1, 1]} : vector<64x1536xbf16> to vector<64x64xbf16>
    %cst_15 = arith.constant dense<0.000000e+00> : vector<64x64xf32>
    %58 = tpu.matmul %55, %56, %cst_15 {dimension_numbers = #tpu.dot_dimension_numbers<[1], [1], [0], [0], [0, 0, 1, 0], [], []>} : vector<64x64xbf16>, vector<64x64xbf16>, vector<64x64xf32> -> vector<64x64xf32>
    %cst_16 = arith.constant 1.250000e-01 : f32
    %59 = vector.broadcast %cst_16 : f32 to vector<64x64xf32>
    %60 = arith.mulf %58, %59 : vector<64x64xf32>
    %cst_17 = arith.constant dense<0xFF800000> : vector<64xf32>
    %61 = vector.multi_reduction <maximumf>, %60, %cst_17 [1] : vector<64x64xf32> to vector<64xf32>
    %62 = vector.shape_cast %61 : vector<64xf32> to vector<64x1xf32>
    %63 = vector.broadcast %62 : vector<64x1xf32> to vector<64x64xf32>
    %64 = arith.subf %60, %63 : vector<64x64xf32>
    %65 = math.exp %64 : vector<64x64xf32>
    %cst_18 = arith.constant dense<0.000000e+00> : vector<64xf32>
    %66 = vector.multi_reduction <add>, %65, %cst_18 [1] : vector<64x64xf32> to vector<64xf32>
    %67 = vector.shape_cast %66 : vector<64xf32> to vector<64x1xf32>
    %68 = arith.truncf %65 : vector<64x64xf32> to vector<64x64xbf16>
    %cst_19 = arith.constant dense<0.000000e+00> : vector<64x64xf32>
    %69 = tpu.matmul %68, %57, %cst_19 {dimension_numbers = #tpu.dot_dimension_numbers<[1], [0], [0], [1], [0, 0, 1, 1], [], []>} : vector<64x64xbf16>, vector<64x64xbf16>, vector<64x64xf32> -> vector<64x64xf32>
    %70 = tpu.reciprocal %67 {approx = true} : vector<64x1xf32> -> vector<64x1xf32>
    %71 = vector.broadcast %70 : vector<64x1xf32> to vector<64x64xf32>
    %72 = arith.mulf %69, %71 : vector<64x64xf32>
    %73 = vector.extract_strided_slice %0 {offsets = [0, 256], sizes = [64, 64], strides = [1, 1]} : vector<64x1536xbf16> to vector<64x64xbf16>
    %74 = vector.extract_strided_slice %0 {offsets = [0, 768], sizes = [64, 64], strides = [1, 1]} : vector<64x1536xbf16> to vector<64x64xbf16>
    %75 = vector.extract_strided_slice %0 {offsets = [0, 1280], sizes = [64, 64], strides = [1, 1]} : vector<64x1536xbf16> to vector<64x64xbf16>
    %cst_20 = arith.constant dense<0.000000e+00> : vector<64x64xf32>
    %76 = tpu.matmul %73, %74, %cst_20 {dimension_numbers = #tpu.dot_dimension_numbers<[1], [1], [0], [0], [0, 0, 1, 0], [], []>} : vector<64x64xbf16>, vector<64x64xbf16>, vector<64x64xf32> -> vector<64x64xf32>
    %cst_21 = arith.constant 1.250000e-01 : f32
    %77 = vector.broadcast %cst_21 : f32 to vector<64x64xf32>
    %78 = arith.mulf %76, %77 : vector<64x64xf32>
    %cst_22 = arith.constant dense<0xFF800000> : vector<64xf32>
    %79 = vector.multi_reduction <maximumf>, %78, %cst_22 [1] : vector<64x64xf32> to vector<64xf32>
    %80 = vector.shape_cast %79 : vector<64xf32> to vector<64x1xf32>
    %81 = vector.broadcast %80 : vector<64x1xf32> to vector<64x64xf32>
    %82 = arith.subf %78, %81 : vector<64x64xf32>
    %83 = math.exp %82 : vector<64x64xf32>
    %cst_23 = arith.constant dense<0.000000e+00> : vector<64xf32>
    %84 = vector.multi_reduction <add>, %83, %cst_23 [1] : vector<64x64xf32> to vector<64xf32>
    %85 = vector.shape_cast %84 : vector<64xf32> to vector<64x1xf32>
    %86 = arith.truncf %83 : vector<64x64xf32> to vector<64x64xbf16>
    %cst_24 = arith.constant dense<0.000000e+00> : vector<64x64xf32>
    %87 = tpu.matmul %86, %75, %cst_24 {dimension_numbers = #tpu.dot_dimension_numbers<[1], [0], [0], [1], [0, 0, 1, 1], [], []>} : vector<64x64xbf16>, vector<64x64xbf16>, vector<64x64xf32> -> vector<64x64xf32>
    %88 = tpu.reciprocal %85 {approx = true} : vector<64x1xf32> -> vector<64x1xf32>
    %89 = vector.broadcast %88 : vector<64x1xf32> to vector<64x64xf32>
    %90 = arith.mulf %87, %89 : vector<64x64xf32>
    %91 = vector.extract_strided_slice %0 {offsets = [0, 320], sizes = [64, 64], strides = [1, 1]} : vector<64x1536xbf16> to vector<64x64xbf16>
    %92 = vector.extract_strided_slice %0 {offsets = [0, 832], sizes = [64, 64], strides = [1, 1]} : vector<64x1536xbf16> to vector<64x64xbf16>
    %93 = vector.extract_strided_slice %0 {offsets = [0, 1344], sizes = [64, 64], strides = [1, 1]} : vector<64x1536xbf16> to vector<64x64xbf16>
    %cst_25 = arith.constant dense<0.000000e+00> : vector<64x64xf32>
    %94 = tpu.matmul %91, %92, %cst_25 {dimension_numbers = #tpu.dot_dimension_numbers<[1], [1], [0], [0], [0, 0, 1, 0], [], []>} : vector<64x64xbf16>, vector<64x64xbf16>, vector<64x64xf32> -> vector<64x64xf32>
    %cst_26 = arith.constant 1.250000e-01 : f32
    %95 = vector.broadcast %cst_26 : f32 to vector<64x64xf32>
    %96 = arith.mulf %94, %95 : vector<64x64xf32>
    %cst_27 = arith.constant dense<0xFF800000> : vector<64xf32>
    %97 = vector.multi_reduction <maximumf>, %96, %cst_27 [1] : vector<64x64xf32> to vector<64xf32>
    %98 = vector.shape_cast %97 : vector<64xf32> to vector<64x1xf32>
    %99 = vector.broadcast %98 : vector<64x1xf32> to vector<64x64xf32>
    %100 = arith.subf %96, %99 : vector<64x64xf32>
    %101 = math.exp %100 : vector<64x64xf32>
    %cst_28 = arith.constant dense<0.000000e+00> : vector<64xf32>
    %102 = vector.multi_reduction <add>, %101, %cst_28 [1] : vector<64x64xf32> to vector<64xf32>
    %103 = vector.shape_cast %102 : vector<64xf32> to vector<64x1xf32>
    %104 = arith.truncf %101 : vector<64x64xf32> to vector<64x64xbf16>
    %cst_29 = arith.constant dense<0.000000e+00> : vector<64x64xf32>
    %105 = tpu.matmul %104, %93, %cst_29 {dimension_numbers = #tpu.dot_dimension_numbers<[1], [0], [0], [1], [0, 0, 1, 1], [], []>} : vector<64x64xbf16>, vector<64x64xbf16>, vector<64x64xf32> -> vector<64x64xf32>
    %106 = tpu.reciprocal %103 {approx = true} : vector<64x1xf32> -> vector<64x1xf32>
    %107 = vector.broadcast %106 : vector<64x1xf32> to vector<64x64xf32>
    %108 = arith.mulf %105, %107 : vector<64x64xf32>
    %109 = vector.extract_strided_slice %0 {offsets = [0, 384], sizes = [64, 64], strides = [1, 1]} : vector<64x1536xbf16> to vector<64x64xbf16>
    %110 = vector.extract_strided_slice %0 {offsets = [0, 896], sizes = [64, 64], strides = [1, 1]} : vector<64x1536xbf16> to vector<64x64xbf16>
    %111 = vector.extract_strided_slice %0 {offsets = [0, 1408], sizes = [64, 64], strides = [1, 1]} : vector<64x1536xbf16> to vector<64x64xbf16>
    %cst_30 = arith.constant dense<0.000000e+00> : vector<64x64xf32>
    %112 = tpu.matmul %109, %110, %cst_30 {dimension_numbers = #tpu.dot_dimension_numbers<[1], [1], [0], [0], [0, 0, 1, 0], [], []>} : vector<64x64xbf16>, vector<64x64xbf16>, vector<64x64xf32> -> vector<64x64xf32>
    %cst_31 = arith.constant 1.250000e-01 : f32
    %113 = vector.broadcast %cst_31 : f32 to vector<64x64xf32>
    %114 = arith.mulf %112, %113 : vector<64x64xf32>
    %cst_32 = arith.constant dense<0xFF800000> : vector<64xf32>
    %115 = vector.multi_reduction <maximumf>, %114, %cst_32 [1] : vector<64x64xf32> to vector<64xf32>
    %116 = vector.shape_cast %115 : vector<64xf32> to vector<64x1xf32>
    %117 = vector.broadcast %116 : vector<64x1xf32> to vector<64x64xf32>
    %118 = arith.subf %114, %117 : vector<64x64xf32>
    %119 = math.exp %118 : vector<64x64xf32>
    %cst_33 = arith.constant dense<0.000000e+00> : vector<64xf32>
    %120 = vector.multi_reduction <add>, %119, %cst_33 [1] : vector<64x64xf32> to vector<64xf32>
    %121 = vector.shape_cast %120 : vector<64xf32> to vector<64x1xf32>
    %122 = arith.truncf %119 : vector<64x64xf32> to vector<64x64xbf16>
    %cst_34 = arith.constant dense<0.000000e+00> : vector<64x64xf32>
    %123 = tpu.matmul %122, %111, %cst_34 {dimension_numbers = #tpu.dot_dimension_numbers<[1], [0], [0], [1], [0, 0, 1, 1], [], []>} : vector<64x64xbf16>, vector<64x64xbf16>, vector<64x64xf32> -> vector<64x64xf32>
    %124 = tpu.reciprocal %121 {approx = true} : vector<64x1xf32> -> vector<64x1xf32>
    %125 = vector.broadcast %124 : vector<64x1xf32> to vector<64x64xf32>
    %126 = arith.mulf %123, %125 : vector<64x64xf32>
    %127 = vector.extract_strided_slice %0 {offsets = [0, 448], sizes = [64, 64], strides = [1, 1]} : vector<64x1536xbf16> to vector<64x64xbf16>
    %128 = vector.extract_strided_slice %0 {offsets = [0, 960], sizes = [64, 64], strides = [1, 1]} : vector<64x1536xbf16> to vector<64x64xbf16>
    %129 = vector.extract_strided_slice %0 {offsets = [0, 1472], sizes = [64, 64], strides = [1, 1]} : vector<64x1536xbf16> to vector<64x64xbf16>
    %cst_35 = arith.constant dense<0.000000e+00> : vector<64x64xf32>
    %130 = tpu.matmul %127, %128, %cst_35 {dimension_numbers = #tpu.dot_dimension_numbers<[1], [1], [0], [0], [0, 0, 1, 0], [], []>} : vector<64x64xbf16>, vector<64x64xbf16>, vector<64x64xf32> -> vector<64x64xf32>
    %cst_36 = arith.constant 1.250000e-01 : f32
    %131 = vector.broadcast %cst_36 : f32 to vector<64x64xf32>
    %132 = arith.mulf %130, %131 : vector<64x64xf32>
    %cst_37 = arith.constant dense<0xFF800000> : vector<64xf32>
    %133 = vector.multi_reduction <maximumf>, %132, %cst_37 [1] : vector<64x64xf32> to vector<64xf32>
    %134 = vector.shape_cast %133 : vector<64xf32> to vector<64x1xf32>
    %135 = vector.broadcast %134 : vector<64x1xf32> to vector<64x64xf32>
    %136 = arith.subf %132, %135 : vector<64x64xf32>
    %137 = math.exp %136 : vector<64x64xf32>
    %cst_38 = arith.constant dense<0.000000e+00> : vector<64xf32>
    %138 = vector.multi_reduction <add>, %137, %cst_38 [1] : vector<64x64xf32> to vector<64xf32>
    %139 = vector.shape_cast %138 : vector<64xf32> to vector<64x1xf32>
    %140 = arith.truncf %137 : vector<64x64xf32> to vector<64x64xbf16>
    %cst_39 = arith.constant dense<0.000000e+00> : vector<64x64xf32>
    %141 = tpu.matmul %140, %129, %cst_39 {dimension_numbers = #tpu.dot_dimension_numbers<[1], [0], [0], [1], [0, 0, 1, 1], [], []>} : vector<64x64xbf16>, vector<64x64xbf16>, vector<64x64xf32> -> vector<64x64xf32>
    %142 = tpu.reciprocal %139 {approx = true} : vector<64x1xf32> -> vector<64x1xf32>
    %143 = vector.broadcast %142 : vector<64x1xf32> to vector<64x64xf32>
    %144 = arith.mulf %141, %143 : vector<64x64xf32>
    %145 = tpu.concatenate %18, %36, %54, %72, %90, %108, %126, %144 in 1 : vector<64x64xf32>, vector<64x64xf32>, vector<64x64xf32>, vector<64x64xf32>, vector<64x64xf32>, vector<64x64xf32>, vector<64x64xf32>, vector<64x64xf32> -> vector<64x512xf32>
    %146 = arith.truncf %145 : vector<64x512xf32> to vector<64x512xbf16>
    %c0_40 = arith.constant 0 : index
    %c0_41 = arith.constant 0 : index
    %147 = vector.load %arg2[%c0_40, %c0_41] : memref<512x256xbf16, #tpu.memory_space<vmem>>, vector<512x256xbf16>
    %cst_42 = arith.constant dense<0.000000e+00> : vector<64x256xf32>
    %148 = tpu.matmul %146, %147, %cst_42 {dimension_numbers = #tpu.dot_dimension_numbers<[1], [0], [0], [1], [0, 0, 1, 1], [], []>} : vector<64x512xbf16>, vector<512x256xbf16>, vector<64x256xf32> -> vector<64x256xf32>
    %c0_43 = arith.constant 0 : index
    %c0_44 = arith.constant 0 : index
    %149 = vector.load %arg3[%c0_43, %c0_44] : memref<1x256xf32, #tpu.memory_space<vmem>>, vector<1x256xf32>
    %150 = vector.broadcast %149 : vector<1x256xf32> to vector<64x256xf32>
    %151 = arith.addf %148, %150 : vector<64x256xf32>
    %c0_45 = arith.constant 0 : index
    %c0_46 = arith.constant 0 : index
    %152 = vector.load %arg4[%c0_45, %c0_46] : memref<64x256xbf16, #tpu.memory_space<vmem>>, vector<64x256xbf16>
    %153 = arith.extf %152 : vector<64x256xbf16> to vector<64x256xf32>
    %154 = arith.addf %151, %153 : vector<64x256xf32>
    %155 = arith.truncf %154 : vector<64x256xf32> to vector<64x256xbf16>
    %c0_47 = arith.constant 0 : index
    %c0_48 = arith.constant 0 : index
    %156 = vector.load %arg5[%c0_47, %c0_48] : memref<64x256xbf16, #tpu.memory_space<vmem>>, vector<64x256xbf16>
    tpu.vector_store %arg5[%c0_47, %c0_48], %155 {strides = array<i32>} : memref<64x256xbf16, #tpu.memory_space<vmem>>, vector<64x256xbf16>,
    return
  }
  func.func @transform_0(%arg0: i32) -> (i32, i32) {
    %c0_i32 = arith.constant 0 : i32
    %c0_i32_0 = arith.constant 0 : i32
    return %arg0, %c0_i32 : i32, i32
  }
  func.func @transform_1(%arg0: i32) -> (i32, i32) {
    %c0_i32 = arith.constant 0 : i32
    %c0_i32_0 = arith.constant 0 : i32
    %c0_i32_1 = arith.constant 0 : i32
    return %c0_i32, %c0_i32_0 : i32, i32
  }
  func.func @transform_2(%arg0: i32) -> (i32, i32) {
    %c0_i32 = arith.constant 0 : i32
    %c0_i32_0 = arith.constant 0 : i32
    %c0_i32_1 = arith.constant 0 : i32
    return %c0_i32, %c0_i32_0 : i32, i32
  }
  func.func @transform_3(%arg0: i32) -> (i32, i32) {
    %c0_i32 = arith.constant 0 : i32
    %c0_i32_0 = arith.constant 0 : i32
    return %arg0, %c0_i32 : i32, i32
  }
  func.func @transform_4(%arg0: i32) -> (i32, i32) {
    %c0_i32 = arith.constant 0 : i32
    %c0_i32_0 = arith.constant 0 : i32
    return %arg0, %c0_i32 : i32, i32
  }
}

module attributes {stable_mosaic.version = 11 : i64} {
  func.func @_fused_matmul_kernel(%arg0: i32, %arg1: memref<128x256xbf16, #tpu.memory_space<vmem>>, %arg2: memref<256x1024xbf16, #tpu.memory_space<vmem>>, %arg3: memref<1x1024xf32, #tpu.memory_space<vmem>>, %arg4: memref<128x1024xbf16, #tpu.memory_space<vmem>>) attributes {dimension_semantics = [#tpu.dimension_semantics<parallel>], iteration_bounds = array<i64: 1>, scalar_prefetch = 0 : i64, scratch_operands = 0 : i64, tpu.core_type = #tpu.core_type<tc>, window_params = [{transform_indices = @transform_0, window_bounds = array<i64: 128, 256>}, {pipeline_mode = #tpu.pipeline_mode<synchronous>, transform_indices = @transform_1, window_bounds = array<i64: 256, 1024>}, {pipeline_mode = #tpu.pipeline_mode<synchronous>, transform_indices = @transform_2, window_bounds = array<i64: 1, 1024>}, {transform_indices = @transform_3, window_bounds = array<i64: 128, 1024>}]} {
    %c0 = arith.constant 0 : index
    %c0_0 = arith.constant 0 : index
    %0 = vector.load %arg1[%c0, %c0_0] : memref<128x256xbf16, #tpu.memory_space<vmem>>, vector<128x256xbf16>
    %1 = arith.extf %0 : vector<128x256xbf16> to vector<128x256xf32>
    %cst = arith.constant dense<0.000000e+00> : vector<128xf32>
    %2 = vector.multi_reduction <add>, %1, %cst [1] : vector<128x256xf32> to vector<128xf32>
    %3 = vector.shape_cast %2 : vector<128xf32> to vector<128x1xf32>
    %cst_1 = arith.constant 2.560000e+02 : f32
    %4 = vector.broadcast %cst_1 : f32 to vector<128x1xf32>
    %5 = arith.divf %3, %4 : vector<128x1xf32>
    %6 = vector.broadcast %5 : vector<128x1xf32> to vector<128x256xf32>
    %7 = arith.subf %1, %6 : vector<128x256xf32>
    %8 = arith.mulf %7, %7 : vector<128x256xf32>
    %cst_2 = arith.constant dense<0.000000e+00> : vector<128xf32>
    %9 = vector.multi_reduction <add>, %8, %cst_2 [1] : vector<128x256xf32> to vector<128xf32>
    %10 = vector.shape_cast %9 : vector<128xf32> to vector<128x1xf32>
    %cst_3 = arith.constant 2.560000e+02 : f32
    %11 = vector.broadcast %cst_3 : f32 to vector<128x1xf32>
    %12 = arith.divf %10, %11 : vector<128x1xf32>
    %cst_4 = arith.constant 9.99999974E-6 : f32
    %13 = vector.broadcast %cst_4 : f32 to vector<128x1xf32>
    %14 = arith.addf %12, %13 : vector<128x1xf32>
    %15 = math.rsqrt %14 : vector<128x1xf32>
    %16 = vector.broadcast %15 : vector<128x1xf32> to vector<128x256xf32>
    %17 = arith.mulf %7, %16 : vector<128x256xf32>
    %18 = arith.truncf %17 : vector<128x256xf32> to vector<128x256xbf16>
    %c0_5 = arith.constant 0 : index
    %c0_6 = arith.constant 0 : index
    %19 = vector.load %arg2[%c0_5, %c0_6] : memref<256x1024xbf16, #tpu.memory_space<vmem>>, vector<256x1024xbf16>
    %cst_7 = arith.constant dense<0.000000e+00> : vector<128x1024xf32>
    %20 = tpu.matmul %18, %19, %cst_7 {dimension_numbers = #tpu.dot_dimension_numbers<[1], [0], [0], [1], [0, 0, 1, 1], [], []>} : vector<128x256xbf16>, vector<256x1024xbf16>, vector<128x1024xf32> -> vector<128x1024xf32>
    %c0_8 = arith.constant 0 : index
    %c0_9 = arith.constant 0 : index
    %21 = vector.load %arg3[%c0_8, %c0_9] : memref<1x1024xf32, #tpu.memory_space<vmem>>, vector<1x1024xf32>
    %22 = vector.broadcast %21 : vector<1x1024xf32> to vector<128x1024xf32>
    %23 = arith.addf %20, %22 : vector<128x1024xf32>
    %cst_10 = arith.constant 5.000000e-01 : f32
    %24 = vector.broadcast %cst_10 : f32 to vector<128x1024xf32>
    %25 = arith.mulf %24, %23 : vector<128x1024xf32>
    %cst_11 = arith.constant 4.471500e-02 : f32
    %26 = vector.broadcast %cst_11 : f32 to vector<128x1024xf32>
    %27 = arith.mulf %26, %23 : vector<128x1024xf32>
    %28 = arith.mulf %27, %23 : vector<128x1024xf32>
    %29 = arith.mulf %28, %23 : vector<128x1024xf32>
    %30 = arith.addf %23, %29 : vector<128x1024xf32>
    %cst_12 = arith.constant 0.797884583 : f32
    %31 = vector.broadcast %cst_12 : f32 to vector<128x1024xf32>
    %32 = arith.mulf %31, %30 : vector<128x1024xf32>
    %33 = math.tanh %32 : vector<128x1024xf32>
    %cst_13 = arith.constant 1.000000e+00 : f32
    %34 = vector.broadcast %cst_13 : f32 to vector<128x1024xf32>
    %35 = arith.addf %34, %33 : vector<128x1024xf32>
    %36 = arith.mulf %25, %35 : vector<128x1024xf32>
    %37 = arith.truncf %36 : vector<128x1024xf32> to vector<128x1024xbf16>
    %c0_14 = arith.constant 0 : index
    %c0_15 = arith.constant 0 : index
    %38 = vector.load %arg4[%c0_14, %c0_15] : memref<128x1024xbf16, #tpu.memory_space<vmem>>, vector<128x1024xbf16>
    tpu.vector_store %arg4[%c0_14, %c0_15], %37 {strides = array<i32>} : memref<128x1024xbf16, #tpu.memory_space<vmem>>, vector<128x1024xbf16>,
    return
  }
  func.func @transform_0(%arg0: i32) -> (i32, i32) {
    %c0_i32 = arith.constant 0 : i32
    %c0_i32_0 = arith.constant 0 : i32
    return %arg0, %c0_i32 : i32, i32
  }
  func.func @transform_1(%arg0: i32) -> (i32, i32) {
    %c0_i32 = arith.constant 0 : i32
    %c0_i32_0 = arith.constant 0 : i32
    %c0_i32_1 = arith.constant 0 : i32
    return %c0_i32, %c0_i32_0 : i32, i32
  }
  func.func @transform_2(%arg0: i32) -> (i32, i32) {
    %c0_i32 = arith.constant 0 : i32
    %c0_i32_0 = arith.constant 0 : i32
    %c0_i32_1 = arith.constant 0 : i32
    return %c0_i32, %c0_i32_0 : i32, i32
  }
  func.func @transform_3(%arg0: i32) -> (i32, i32) {
    %c0_i32 = arith.constant 0 : i32
    %c0_i32_0 = arith.constant 0 : i32
    return %arg0, %c0_i32 : i32, i32
  }
}

module attributes {stable_mosaic.version = 11 : i64} {
  func.func @_fused_matmul_kernel(%arg0: i32, %arg1: memref<128x1024xbf16, #tpu.memory_space<vmem>>, %arg2: memref<1024x256xbf16, #tpu.memory_space<vmem>>, %arg3: memref<1x256xf32, #tpu.memory_space<vmem>>, %arg4: memref<128x256xbf16, #tpu.memory_space<vmem>>, %arg5: memref<128x256xbf16, #tpu.memory_space<vmem>>) attributes {dimension_semantics = [#tpu.dimension_semantics<parallel>], iteration_bounds = array<i64: 1>, scalar_prefetch = 0 : i64, scratch_operands = 0 : i64, tpu.core_type = #tpu.core_type<tc>, window_params = [{transform_indices = @transform_0, window_bounds = array<i64: 128, 1024>}, {pipeline_mode = #tpu.pipeline_mode<synchronous>, transform_indices = @transform_1, window_bounds = array<i64: 1024, 256>}, {pipeline_mode = #tpu.pipeline_mode<synchronous>, transform_indices = @transform_2, window_bounds = array<i64: 1, 256>}, {transform_indices = @transform_3, window_bounds = array<i64: 128, 256>}, {transform_indices = @transform_4, window_bounds = array<i64: 128, 256>}]} {
    %c0 = arith.constant 0 : index
    %c0_0 = arith.constant 0 : index
    %0 = vector.load %arg1[%c0, %c0_0] : memref<128x1024xbf16, #tpu.memory_space<vmem>>, vector<128x1024xbf16>
    %c0_1 = arith.constant 0 : index
    %c0_2 = arith.constant 0 : index
    %1 = vector.load %arg2[%c0_1, %c0_2] : memref<1024x256xbf16, #tpu.memory_space<vmem>>, vector<1024x256xbf16>
    %cst = arith.constant dense<0.000000e+00> : vector<128x256xf32>
    %2 = tpu.matmul %0, %1, %cst {dimension_numbers = #tpu.dot_dimension_numbers<[1], [0], [0], [1], [0, 0, 1, 1], [], []>} : vector<128x1024xbf16>, vector<1024x256xbf16>, vector<128x256xf32> -> vector<128x256xf32>
    %c0_3 = arith.constant 0 : index
    %c0_4 = arith.constant 0 : index
    %3 = vector.load %arg3[%c0_3, %c0_4] : memref<1x256xf32, #tpu.memory_space<vmem>>, vector<1x256xf32>
    %4 = vector.broadcast %3 : vector<1x256xf32> to vector<128x256xf32>
    %5 = arith.addf %2, %4 : vector<128x256xf32>
    %c0_5 = arith.constant 0 : index
    %c0_6 = arith.constant 0 : index
    %6 = vector.load %arg4[%c0_5, %c0_6] : memref<128x256xbf16, #tpu.memory_space<vmem>>, vector<128x256xbf16>
    %7 = arith.extf %6 : vector<128x256xbf16> to vector<128x256xf32>
    %8 = arith.addf %5, %7 : vector<128x256xf32>
    %9 = arith.truncf %8 : vector<128x256xf32> to vector<128x256xbf16>
    %c0_7 = arith.constant 0 : index
    %c0_8 = arith.constant 0 : index
    %10 = vector.load %arg5[%c0_7, %c0_8] : memref<128x256xbf16, #tpu.memory_space<vmem>>, vector<128x256xbf16>
    tpu.vector_store %arg5[%c0_7, %c0_8], %9 {strides = array<i32>} : memref<128x256xbf16, #tpu.memory_space<vmem>>, vector<128x256xbf16>,
    return
  }
  func.func @transform_0(%arg0: i32) -> (i32, i32) {
    %c0_i32 = arith.constant 0 : i32
    %c0_i32_0 = arith.constant 0 : i32
    return %arg0, %c0_i32 : i32, i32
  }
  func.func @transform_1(%arg0: i32) -> (i32, i32) {
    %c0_i32 = arith.constant 0 : i32
    %c0_i32_0 = arith.constant 0 : i32
    %c0_i32_1 = arith.constant 0 : i32
    return %c0_i32, %c0_i32_0 : i32, i32
  }
  func.func @transform_2(%arg0: i32) -> (i32, i32) {
    %c0_i32 = arith.constant 0 : i32
    %c0_i32_0 = arith.constant 0 : i32
    %c0_i32_1 = arith.constant 0 : i32
    return %c0_i32, %c0_i32_0 : i32, i32
  }
  func.func @transform_3(%arg0: i32) -> (i32, i32) {
    %c0_i32 = arith.constant 0 : i32
    %c0_i32_0 = arith.constant 0 : i32
    return %arg0, %c0_i32 : i32, i32
  }
  func.func @transform_4(%arg0: i32) -> (i32, i32) {
    %c0_i32 = arith.constant 0 : i32
    %c0_i32_0 = arith.constant 0 : i32
    return %arg0, %c0_i32 : i32, i32
  }
}

module attributes {stable_mosaic.version = 11 : i64} {
  func.func @_fused_matmul_kernel(%arg0: i32, %arg1: memref<128x1024xbf16, #tpu.memory_space<vmem>>, %arg2: memref<1024x256xbf16, #tpu.memory_space<vmem>>, %arg3: memref<1x256xf32, #tpu.memory_space<vmem>>, %arg4: memref<128x256xbf16, #tpu.memory_space<vmem>>, %arg5: memref<1x256xf32, #tpu.memory_space<vmem>>, %arg6: memref<1x256xf32, #tpu.memory_space<vmem>>, %arg7: memref<128x256xf32, #tpu.memory_space<vmem>>) attributes {dimension_semantics = [#tpu.dimension_semantics<parallel>], iteration_bounds = array<i64: 1>, scalar_prefetch = 0 : i64, scratch_operands = 0 : i64, tpu.core_type = #tpu.core_type<tc>, window_params = [{transform_indices = @transform_0, window_bounds = array<i64: 128, 1024>}, {pipeline_mode = #tpu.pipeline_mode<synchronous>, transform_indices = @transform_1, window_bounds = array<i64: 1024, 256>}, {pipeline_mode = #tpu.pipeline_mode<synchronous>, transform_indices = @transform_2, window_bounds = array<i64: 1, 256>}, {transform_indices = @transform_3, window_bounds = array<i64: 128, 256>}, {pipeline_mode = #tpu.pipeline_mode<synchronous>, transform_indices = @transform_4, window_bounds = array<i64: 1, 256>}, {pipeline_mode = #tpu.pipeline_mode<synchronous>, transform_indices = @transform_5, window_bounds = array<i64: 1, 256>}, {transform_indices = @transform_6, window_bounds = array<i64: 128, 256>}]} {
    %c0 = arith.constant 0 : index
    %c0_0 = arith.constant 0 : index
    %0 = vector.load %arg1[%c0, %c0_0] : memref<128x1024xbf16, #tpu.memory_space<vmem>>, vector<128x1024xbf16>
    %c0_1 = arith.constant 0 : index
    %c0_2 = arith.constant 0 : index
    %1 = vector.load %arg2[%c0_1, %c0_2] : memref<1024x256xbf16, #tpu.memory_space<vmem>>, vector<1024x256xbf16>
    %cst = arith.constant dense<0.000000e+00> : vector<128x256xf32>
    %2 = tpu.matmul %0, %1, %cst {dimension_numbers = #tpu.dot_dimension_numbers<[1], [0], [0], [1], [0, 0, 1, 1], [], []>} : vector<128x1024xbf16>, vector<1024x256xbf16>, vector<128x256xf32> -> vector<128x256xf32>
    %c0_3 = arith.constant 0 : index
    %c0_4 = arith.constant 0 : index
    %3 = vector.load %arg3[%c0_3, %c0_4] : memref<1x256xf32, #tpu.memory_space<vmem>>, vector<1x256xf32>
    %4 = vector.broadcast %3 : vector<1x256xf32> to vector<128x256xf32>
    %5 = arith.addf %2, %4 : vector<128x256xf32>
    %c0_5 = arith.constant 0 : index
    %c0_6 = arith.constant 0 : index
    %6 = vector.load %arg4[%c0_5, %c0_6] : memref<128x256xbf16, #tpu.memory_space<vmem>>, vector<128x256xbf16>
    %7 = arith.extf %6 : vector<128x256xbf16> to vector<128x256xf32>
    %8 = arith.addf %5, %7 : vector<128x256xf32>
    %cst_7 = arith.constant dense<0.000000e+00> : vector<128xf32>
    %9 = vector.multi_reduction <add>, %8, %cst_7 [1] : vector<128x256xf32> to vector<128xf32>
    %10 = vector.shape_cast %9 : vector<128xf32> to vector<128x1xf32>
    %cst_8 = arith.constant 2.560000e+02 : f32
    %11 = vector.broadcast %cst_8 : f32 to vector<128x1xf32>
    %12 = arith.divf %10, %11 : vector<128x1xf32>
    %13 = vector.broadcast %12 : vector<128x1xf32> to vector<128x256xf32>
    %14 = arith.subf %8, %13 : vector<128x256xf32>
    %15 = arith.mulf %14, %14 : vector<128x256xf32>
    %cst_9 = arith.constant dense<0.000000e+00> : vector<128xf32>
    %16 = vector.multi_reduction <add>, %15, %cst_9 [1] : vector<128x256xf32> to vector<128xf32>
    %17 = vector.shape_cast %16 : vector<128xf32> to vector<128x1xf32>
    %cst_10 = arith.constant 2.560000e+02 : f32
    %18 = vector.broadcast %cst_10 : f32 to vector<128x1xf32>
    %19 = arith.divf %17, %18 : vector<128x1xf32>
    %cst_11 = arith.constant 9.99999974E-6 : f32
    %20 = vector.broadcast %cst_11 : f32 to vector<128x1xf32>
    %21 = arith.addf %19, %20 : vector<128x1xf32>
    %22 = math.rsqrt %21 : vector<128x1xf32>
    %23 = vector.broadcast %22 : vector<128x1xf32> to vector<128x256xf32>
    %24 = arith.mulf %14, %23 : vector<128x256xf32>
    %c0_12 = arith.constant 0 : index
    %c0_13 = arith.constant 0 : index
    %25 = vector.load %arg5[%c0_12, %c0_13] : memref<1x256xf32, #tpu.memory_space<vmem>>, vector<1x256xf32>
    %26 = vector.broadcast %25 : vector<1x256xf32> to vector<128x256xf32>
    %27 = arith.mulf %24, %26 : vector<128x256xf32>
    %c0_14 = arith.constant 0 : index
    %c0_15 = arith.constant 0 : index
    %28 = vector.load %arg6[%c0_14, %c0_15] : memref<1x256xf32, #tpu.memory_space<vmem>>, vector<1x256xf32>
    %29 = vector.broadcast %28 : vector<1x256xf32> to vector<128x256xf32>
    %30 = arith.addf %27, %29 : vector<128x256xf32>
    %c0_16 = arith.constant 0 : index
    %c0_17 = arith.constant 0 : index
    %31 = vector.load %arg7[%c0_16, %c0_17] : memref<128x256xf32, #tpu.memory_space<vmem>>, vector<128x256xf32>
    tpu.vector_store %arg7[%c0_16, %c0_17], %30 {strides = array<i32>} : memref<128x256xf32, #tpu.memory_space<vmem>>, vector<128x256xf32>,
    return
  }
  func.func @transform_0(%arg0: i32) -> (i32, i32) {
    %c0_i32 = arith.constant 0 : i32
    %c0_i32_0 = arith.constant 0 : i32
    return %arg0, %c0_i32 : i32, i32
  }
  func.func @transform_1(%arg0: i32) -> (i32, i32) {
    %c0_i32 = arith.constant 0 : i32
    %c0_i32_0 = arith.constant 0 : i32
    %c0_i32_1 = arith.constant 0 : i32
    return %c0_i32, %c0_i32_0 : i32, i32
  }
  func.func @transform_2(%arg0: i32) -> (i32, i32) {
    %c0_i32 = arith.constant 0 : i32
    %c0_i32_0 = arith.constant 0 : i32
    %c0_i32_1 = arith.constant 0 : i32
    return %c0_i32, %c0_i32_0 : i32, i32
  }
  func.func @transform_3(%arg0: i32) -> (i32, i32) {
    %c0_i32 = arith.constant 0 : i32
    %c0_i32_0 = arith.constant 0 : i32
    return %arg0, %c0_i32 : i32, i32
  }
  func.func @transform_4(%arg0: i32) -> (i32, i32) {
    %c0_i32 = arith.constant 0 : i32
    %c0_i32_0 = arith.constant 0 : i32
    %c0_i32_1 = arith.constant 0 : i32
    return %c0_i32, %c0_i32_0 : i32, i32
  }
  func.func @transform_5(%arg0: i32) -> (i32, i32) {
    %c0_i32 = arith.constant 0 : i32
    %c0_i32_0 = arith.constant 0 : i32
    %c0_i32_1 = arith.constant 0 : i32
    return %c0_i32, %c0_i32_0 : i32, i32
  }
  func.func @transform_6(%arg0: i32) -> (i32, i32) {
    %c0_i32 = arith.constant 0 : i32
    %c0_i32_0 = arith.constant 0 : i32
    return %arg0, %c0_i32 : i32, i32
  }
}

</mosaic_0001>

<llo_original>
// kernel: bert_embedder_forward.11
$region0: #{bert_embedder_forward.11}
  #allocation0 [shape = 'u32[]', space=smem, size = 0x4, offset = 0x4, fixed_abs, tag = 'smem constant byte address 0x4 - core index']
  #allocation1 [shape = 'u32[144,128]{1,0:T(1,128)}', space=vmem, size = 0x12000, scoped, tag = 'internal scratch']
  %s0 = inlined_call_operand.vmem [shape: bf16[128,1024], index: 0, kind: input, shape index: {}]
  %s1 = inlined_call_operand.vmem [shape: bf16[1024,256], index: 1, kind: input, shape index: {}]
  %s2 = inlined_call_operand.vmem [shape: f32[1,256], index: 2, kind: input, shape index: {}]
  %s3 = inlined_call_operand.vmem [shape: bf16[128,256], index: 3, kind: input, shape index: {}]
  %s4 = inlined_call_operand.vmem [shape: bf16[128,256], index: 4, kind: output, shape index: {}]
  %s5 = sld [smem:[#allocation0]]
  $region26: #{bert_embedder_forward.11} parent=0
    _
  %s7 = ssub.s32 1, %s5
  %s8 = scalar_select 0, %s7, %s5
  // Predicated region
  $region2: #{bert_embedder_forward.11} parent=0 // pred_check
    _
  $region3: #{bert_embedder_forward.11} parent=0 // pred_check_branch
    %10 = sbr.rel (0) target = $region5
  $region4: #{bert_embedder_forward.11} parent=0 // pred_region
    _
  $region5: #{bert_embedder_forward.11} parent=0 // pred_fallthru
    _
  // Predicated region
  $region6: #{bert_embedder_forward.11} parent=0 // pred_check
    _
  $region7: #{bert_embedder_forward.11} parent=0 // pred_check_branch
    %12 = sbr.rel (0) target = $region9
  $region8: #{bert_embedder_forward.11} parent=0 // pred_region
    _
  $region9: #{bert_embedder_forward.11} parent=0 // pred_fallthru
    _
  // Predicated region
  $region10: #{bert_embedder_forward.11} parent=0 // pred_check
    _
  $region11: #{bert_embedder_forward.11} parent=0 // pred_check_branch
    %14 = sbr.rel (0) target = $region13
  $region12: #{bert_embedder_forward.11} parent=0 // pred_region
    _
  $region13: #{bert_embedder_forward.11} parent=0 // pred_fallthru
    _
  // Predicated region
  $region14: #{bert_embedder_forward.11} parent=0 // pred_check
    _
  $region15: #{bert_embedder_forward.11} parent=0 // pred_check_branch
    %16 = sbr.rel (0) target = $region17
  $region16: #{bert_embedder_forward.11} parent=0 // pred_region
    _
  $region17: #{bert_embedder_forward.11} parent=0 // pred_fallthru
    _
  %v17 = vld [vmem:[%s0] sm:$0xff]
  %v18 = vld [vmem:[%s0 + $0x8] sm:$0xff]
  %v19 = vld [vmem:[%s0 + $0x10] sm:$0xff]
  %v20 = vld [vmem:[%s0 + $0x18] sm:$0xff]
  %v21 = vld [vmem:[%s0 + $0x20] sm:$0xff]
  %v22 = vld [vmem:[%s0 + $0x28] sm:$0xff]
  %v23 = vld [vmem:[%s0 + $0x30] sm:$0xff]
  %v24 = vld [vmem:[%s0 + $0x38] sm:$0xff]
  %v25 = vld [vmem:[%s0 + $0x40] sm:$0xff]
  %v26 = vld [vmem:[%s0 + $0x48] sm:$0xff]
  %v27 = vld [vmem:[%s0 + $0x50] sm:$0xff]
  %v28 = vld [vmem:[%s0 + $0x58] sm:$0xff]
  %v29 = vld [vmem:[%s0 + $0x60] sm:$0xff]
  %v30 = vld [vmem:[%s0 + $0x68] sm:$0xff]
  %v31 = vld [vmem:[%s0 + $0x70] sm:$0xff]
  %v32 = vld [vmem:[%s0 + $0x78] sm:$0xff]
  %v33 = vld [vmem:[%s0 + $0x80] sm:$0xff]
  %v34 = vld [vmem:[%s0 + $0x88] sm:$0xff]
  %v35 = vld [vmem:[%s0 + $0x90] sm:$0xff]
  %v36 = vld [vmem:[%s0 + $0x98] sm:$0xff]
  %v37 = vld [vmem:[%s0 + $0xa0] sm:$0xff]
  %v38 = vld [vmem:[%s0 + $0xa8] sm:$0xff]
  %v39 = vld [vmem:[%s0 + $0xb0] sm:$0xff]
  %v40 = vld [vmem:[%s0 + $0xb8] sm:$0xff]
  %v41 = vld [vmem:[%s0 + $0xc0] sm:$0xff]
  %v42 = vld [vmem:[%s0 + $0xc8] sm:$0xff]
  %v43 = vld [vmem:[%s0 + $0xd0] sm:$0xff]
  %v44 = vld [vmem:[%s0 + $0xd8] sm:$0xff]
  %v45 = vld [vmem:[%s0 + $0xe0] sm:$0xff]
  %v46 = vld [vmem:[%s0 + $0xe8] sm:$0xff]
  %v47 = vld [vmem:[%s0 + $0xf0] sm:$0xff]
  %v48 = vld [vmem:[%s0 + $0xf8] sm:$0xff]
  %v49 = vld [vmem:[%s0 + $0x100] sm:$0xff]
  %v50 = vld [vmem:[%s0 + $0x108] sm:$0xff]
  %v51 = vld [vmem:[%s0 + $0x110] sm:$0xff]
  %v52 = vld [vmem:[%s0 + $0x118] sm:$0xff]
  %v53 = vld [vmem:[%s0 + $0x120] sm:$0xff]
  %v54 = vld [vmem:[%s0 + $0x128] sm:$0xff]
  %v55 = vld [vmem:[%s0 + $0x130] sm:$0xff]
  %v56 = vld [vmem:[%s0 + $0x138] sm:$0xff]
  %v57 = vld [vmem:[%s0 + $0x140] sm:$0xff]
  %v58 = vld [vmem:[%s0 + $0x148] sm:$0xff]
  %v59 = vld [vmem:[%s0 + $0x150] sm:$0xff]
  %v60 = vld [vmem:[%s0 + $0x158] sm:$0xff]
  %v61 = vld [vmem:[%s0 + $0x160] sm:$0xff]
  %v62 = vld [vmem:[%s0 + $0x168] sm:$0xff]
  %v63 = vld [vmem:[%s0 + $0x170] sm:$0xff]
  %v64 = vld [vmem:[%s0 + $0x178] sm:$0xff]
  %v65 = vld [vmem:[%s0 + $0x180] sm:$0xff]
  %v66 = vld [vmem:[%s0 + $0x188] sm:$0xff]
  %v67 = vld [vmem:[%s0 + $0x190] sm:$0xff]
  %v68 = vld [vmem:[%s0 + $0x198] sm:$0xff]
  %v69 = vld [vmem:[%s0 + $0x1a0] sm:$0xff]
  %v70 = vld [vmem:[%s0 + $0x1a8] sm:$0xff]
  %v71 = vld [vmem:[%s0 + $0x1b0] sm:$0xff]
  %v72 = vld [vmem:[%s0 + $0x1b8] sm:$0xff]
  %v73 = vld [vmem:[%s0 + $0x1c0] sm:$0xff]
  %v74 = vld [vmem:[%s0 + $0x1c8] sm:$0xff]
  %v75 = vld [vmem:[%s0 + $0x1d0] sm:$0xff]
  %v76 = vld [vmem:[%s0 + $0x1d8] sm:$0xff]
  %v77 = vld [vmem:[%s0 + $0x1e0] sm:$0xff]
  %v78 = vld [vmem:[%s0 + $0x1e8] sm:$0xff]
  %v79 = vld [vmem:[%s0 + $0x1f0] sm:$0xff]
  %v80 = vld [vmem:[%s0 + $0x1f8] sm:$0xff]
  %v81 = vld [vmem:[%s1] sm:$0xff]
  %v82 = vld [vmem:[%s1 + $0x8] sm:$0xff]
  %v83 = vld [vmem:[%s1 + $0x10] sm:$0xff]
  %v84 = vld [vmem:[%s1 + $0x18] sm:$0xff]
  %v85 = vld [vmem:[%s1 + $0x20] sm:$0xff]
  %v86 = vld [vmem:[%s1 + $0x28] sm:$0xff]
  %v87 = vld [vmem:[%s1 + $0x30] sm:$0xff]
  %v88 = vld [vmem:[%s1 + $0x38] sm:$0xff]
  %v89 = vld [vmem:[%s1 + $0x40] sm:$0xff]
  %v90 = vld [vmem:[%s1 + $0x48] sm:$0xff]
  %v91 = vld [vmem:[%s1 + $0x50] sm:$0xff]
  %v92 = vld [vmem:[%s1 + $0x58] sm:$0xff]
  %v93 = vld [vmem:[%s1 + $0x60] sm:$0xff]
  %v94 = vld [vmem:[%s1 + $0x68] sm:$0xff]
  %v95 = vld [vmem:[%s1 + $0x70] sm:$0xff]
  %v96 = vld [vmem:[%s1 + $0x78] sm:$0xff]
  %v97 = vld [vmem:[%s1 + $0x80] sm:$0xff]
  %v98 = vld [vmem:[%s1 + $0x88] sm:$0xff]
  %v99 = vld [vmem:[%s1 + $0x90] sm:$0xff]
  %v100 = vld [vmem:[%s1 + $0x98] sm:$0xff]
  %v101 = vld [vmem:[%s1 + $0xa0] sm:$0xff]
  %v102 = vld [vmem:[%s1 + $0xa8] sm:$0xff]
  %v103 = vld [vmem:[%s1 + $0xb0] sm:$0xff]
  %v104 = vld [vmem:[%s1 + $0xb8] sm:$0xff]
  %v105 = vld [vmem:[%s1 + $0xc0] sm:$0xff]
  %v106 = vld [vmem:[%s1 + $0xc8] sm:$0xff]
  %v107 = vld [vmem:[%s1 + $0xd0] sm:$0xff]
  %v108 = vld [vmem:[%s1 + $0xd8] sm:$0xff]
  %v109 = vld [vmem:[%s1 + $0xe0] sm:$0xff]
  %v110 = vld [vmem:[%s1 + $0xe8] sm:$0xff]
  %v111 = vld [vmem:[%s1 + $0xf0] sm:$0xff]
  %v112 = vld [vmem:[%s1 + $0xf8] sm:$0xff]
  %v113 = vld [vmem:[%s1 + $0x100] sm:$0xff]
  %v114 = vld [vmem:[%s1 + $0x108] sm:$0xff]
  %v115 = vld [vmem:[%s1 + $0x110] sm:$0xff]
  %v116 = vld [vmem:[%s1 + $0x118] sm:$0xff]
  %v117 = vld [vmem:[%s1 + $0x120] sm:$0xff]
  %v118 = vld [vmem:[%s1 + $0x128] sm:$0xff]
  %v119 = vld [vmem:[%s1 + $0x130] sm:$0xff]
  %v120 = vld [vmem:[%s1 + $0x138] sm:$0xff]
  %v121 = vld [vmem:[%s1 + $0x140] sm:$0xff]
  %v122 = vld [vmem:[%s1 + $0x148] sm:$0xff]
  %v123 = vld [vmem:[%s1 + $0x150] sm:$0xff]
  %v124 = vld [vmem:[%s1 + $0x158] sm:$0xff]
  %v125 = vld [vmem:[%s1 + $0x160] sm:$0xff]
  %v126 = vld [vmem:[%s1 + $0x168] sm:$0xff]
  %v127 = vld [vmem:[%s1 + $0x170] sm:$0xff]
  %v128 = vld [vmem:[%s1 + $0x178] sm:$0xff]
  %v129 = vld [vmem:[%s1 + $0x180] sm:$0xff]
  %v130 = vld [vmem:[%s1 + $0x188] sm:$0xff]
  %v131 = vld [vmem:[%s1 + $0x190] sm:$0xff]
  %v132 = vld [vmem:[%s1 + $0x198] sm:$0xff]
  %v133 = vld [vmem:[%s1 + $0x1a0] sm:$0xff]
  %v134 = vld [vmem:[%s1 + $0x1a8] sm:$0xff]
  %v135 = vld [vmem:[%s1 + $0x1b0] sm:$0xff]
  %v136 = vld [vmem:[%s1 + $0x1b8] sm:$0xff]
  %v137 = vld [vmem:[%s1 + $0x1c0] sm:$0xff]
  %v138 = vld [vmem:[%s1 + $0x1c8] sm:$0xff]
  %v139 = vld [vmem:[%s1 + $0x1d0] sm:$0xff]
  %v140 = vld [vmem:[%s1 + $0x1d8] sm:$0xff]
  %v141 = vld [vmem:[%s1 + $0x1e0] sm:$0xff]
  %v142 = vld [vmem:[%s1 + $0x1e8] sm:$0xff]
  %v143 = vld [vmem:[%s1 + $0x1f0] sm:$0xff]
  %v144 = vld [vmem:[%s1 + $0x1f8] sm:$0xff]
  %v145 = vld [vmem:[%s1 + $0x200] sm:$0xff]
  %v146 = vld [vmem:[%s1 + $0x208] sm:$0xff]
  %v147 = vld [vmem:[%s1 + $0x210] sm:$0xff]
  %v148 = vld [vmem:[%s1 + $0x218] sm:$0xff]
  %v149 = vld [vmem:[%s1 + $0x220] sm:$0xff]
  %v150 = vld [vmem:[%s1 + $0x228] sm:$0xff]
  %v151 = vld [vmem:[%s1 + $0x230] sm:$0xff]
  %v152 = vld [vmem:[%s1 + $0x238] sm:$0xff]
  %v153 = vld [vmem:[%s1 + $0x240] sm:$0xff]
  %v154 = vld [vmem:[%s1 + $0x248] sm:$0xff]
  %v155 = vld [vmem:[%s1 + $0x250] sm:$0xff]
  %v156 = vld [vmem:[%s1 + $0x258] sm:$0xff]
  %v157 = vld [vmem:[%s1 + $0x260] sm:$0xff]
  %v158 = vld [vmem:[%s1 + $0x268] sm:$0xff]
  %v159 = vld [vmem:[%s1 + $0x270] sm:$0xff]
  %v160 = vld [vmem:[%s1 + $0x278] sm:$0xff]
  %v161 = vld [vmem:[%s1 + $0x280] sm:$0xff]
  %v162 = vld [vmem:[%s1 + $0x288] sm:$0xff]
  %v163 = vld [vmem:[%s1 + $0x290] sm:$0xff]
  %v164 = vld [vmem:[%s1 + $0x298] sm:$0xff]
  %v165 = vld [vmem:[%s1 + $0x2a0] sm:$0xff]
  %v166 = vld [vmem:[%s1 + $0x2a8] sm:$0xff]
  %v167 = vld [vmem:[%s1 + $0x2b0] sm:$0xff]
  %v168 = vld [vmem:[%s1 + $0x2b8] sm:$0xff]
  %v169 = vld [vmem:[%s1 + $0x2c0] sm:$0xff]
  %v170 = vld [vmem:[%s1 + $0x2c8] sm:$0xff]
  %v171 = vld [vmem:[%s1 + $0x2d0] sm:$0xff]
  %v172 = vld [vmem:[%s1 + $0x2d8] sm:$0xff]
  %v173 = vld [vmem:[%s1 + $0x2e0] sm:$0xff]
  %v174 = vld [vmem:[%s1 + $0x2e8] sm:$0xff]
  %v175 = vld [vmem:[%s1 + $0x2f0] sm:$0xff]
  %v176 = vld [vmem:[%s1 + $0x2f8] sm:$0xff]
  %v177 = vld [vmem:[%s1 + $0x300] sm:$0xff]
  %v178 = vld [vmem:[%s1 + $0x308] sm:$0xff]
  %v179 = vld [vmem:[%s1 + $0x310] sm:$0xff]
  %v180 = vld [vmem:[%s1 + $0x318] sm:$0xff]
  %v181 = vld [vmem:[%s1 + $0x320] sm:$0xff]
  %v182 = vld [vmem:[%s1 + $0x328] sm:$0xff]
  %v183 = vld [vmem:[%s1 + $0x330] sm:$0xff]
  %v184 = vld [vmem:[%s1 + $0x338] sm:$0xff]
  %v185 = vld [vmem:[%s1 + $0x340] sm:$0xff]
  %v186 = vld [vmem:[%s1 + $0x348] sm:$0xff]
  %v187 = vld [vmem:[%s1 + $0x350] sm:$0xff]
  %v188 = vld [vmem:[%s1 + $0x358] sm:$0xff]
  %v189 = vld [vmem:[%s1 + $0x360] sm:$0xff]
  %v190 = vld [vmem:[%s1 + $0x368] sm:$0xff]
  %v191 = vld [vmem:[%s1 + $0x370] sm:$0xff]
  %v192 = vld [vmem:[%s1 + $0x378] sm:$0xff]
  %v193 = vld [vmem:[%s1 + $0x380] sm:$0xff]
  %v194 = vld [vmem:[%s1 + $0x388] sm:$0xff]
  %v195 = vld [vmem:[%s1 + $0x390] sm:$0xff]
  %v196 = vld [vmem:[%s1 + $0x398] sm:$0xff]
  %v197 = vld [vmem:[%s1 + $0x3a0] sm:$0xff]
  %v198 = vld [vmem:[%s1 + $0x3a8] sm:$0xff]
  %v199 = vld [vmem:[%s1 + $0x3b0] sm:$0xff]
  %v200 = vld [vmem:[%s1 + $0x3b8] sm:$0xff]
  %v201 = vld [vmem:[%s1 + $0x3c0] sm:$0xff]
  %v202 = vld [vmem:[%s1 + $0x3c8] sm:$0xff]
  %v203 = vld [vmem:[%s1 + $0x3d0] sm:$0xff]
  %v204 = vld [vmem:[%s1 + $0x3d8] sm:$0xff]
  %v205 = vld [vmem:[%s1 + $0x3e0] sm:$0xff]
  %v206 = vld [vmem:[%s1 + $0x3e8] sm:$0xff]
  %v207 = vld [vmem:[%s1 + $0x3f0] sm:$0xff]
  %v208 = vld [vmem:[%s1 + $0x3f8] sm:$0xff]
  %v209 = vld [vmem:[%s2] sm:$0x3]
  %v211 = vlaneseq
  %v212 = vshrl.u32 %v211, 7
  %v213 = vsub.s32 0, %v212
  %v214 = vrot.slane %v209, %v213
  %v215 = vlaneseq
  %v216 = vshrl.u32 %v215, 7
  %v217 = vsub.s32 1, %v216
  %v218 = vrot.slane %v209, %v217
  %v285 = vunpack.c.l.b16 %v17
  %v286 = vunpack.c.h.b16 %v17
  %v287 = vunpack.c.l.b16 %v18
  %v288 = vunpack.c.h.b16 %v18
  %v289 = vunpack.c.l.b16 %v19
  %v290 = vunpack.c.h.b16 %v19
  %v291 = vunpack.c.l.b16 %v20
  %v292 = vunpack.c.h.b16 %v20
  %v293 = vunpack.c.l.b16 %v21
  %v294 = vunpack.c.h.b16 %v21
  %v295 = vunpack.c.l.b16 %v22
  %v296 = vunpack.c.h.b16 %v22
  %v297 = vunpack.c.l.b16 %v23
  %v298 = vunpack.c.h.b16 %v23
  %v299 = vunpack.c.l.b16 %v24
  %v300 = vunpack.c.h.b16 %v24
  %v301 = vunpack.c.l.b16 %v25
  %v302 = vunpack.c.h.b16 %v25
  %v303 = vunpack.c.l.b16 %v26
  %v304 = vunpack.c.h.b16 %v26
  %v305 = vunpack.c.l.b16 %v27
  %v306 = vunpack.c.h.b16 %v27
  %v307 = vunpack.c.l.b16 %v28
  %v308 = vunpack.c.h.b16 %v28
  %v309 = vunpack.c.l.b16 %v29
  %v310 = vunpack.c.h.b16 %v29
  %v311 = vunpack.c.l.b16 %v30
  %v312 = vunpack.c.h.b16 %v30
  %v313 = vunpack.c.l.b16 %v31
  %v314 = vunpack.c.h.b16 %v31
  %v315 = vunpack.c.l.b16 %v32
  %v316 = vunpack.c.h.b16 %v32
  %v317 = vunpack.c.l.b16 %v33
  %v318 = vunpack.c.h.b16 %v33
  %v319 = vunpack.c.l.b16 %v34
  %v320 = vunpack.c.h.b16 %v34
  %v321 = vunpack.c.l.b16 %v35
  %v322 = vunpack.c.h.b16 %v35
  %v323 = vunpack.c.l.b16 %v36
  %v324 = vunpack.c.h.b16 %v36
  %v325 = vunpack.c.l.b16 %v37
  %v326 = vunpack.c.h.b16 %v37
  %v327 = vunpack.c.l.b16 %v38
  %v328 = vunpack.c.h.b16 %v38
  %v329 = vunpack.c.l.b16 %v39
  %v330 = vunpack.c.h.b16 %v39
  %v331 = vunpack.c.l.b16 %v40
  %v332 = vunpack.c.h.b16 %v40
  %v333 = vunpack.c.l.b16 %v41
  %v334 = vunpack.c.h.b16 %v41
  %v335 = vunpack.c.l.b16 %v42
  %v336 = vunpack.c.h.b16 %v42
  %v337 = vunpack.c.l.b16 %v43
  %v338 = vunpack.c.h.b16 %v43
  %v339 = vunpack.c.l.b16 %v44
  %v340 = vunpack.c.h.b16 %v44
  %v341 = vunpack.c.l.b16 %v45
  %v342 = vunpack.c.h.b16 %v45
  %v343 = vunpack.c.l.b16 %v46
  %v344 = vunpack.c.h.b16 %v46
  %v345 = vunpack.c.l.b16 %v47
  %v346 = vunpack.c.h.b16 %v47
  %v347 = vunpack.c.l.b16 %v48
  %v348 = vunpack.c.h.b16 %v48
  %v349 = vunpack.c.l.b16 %v49
  %v350 = vunpack.c.h.b16 %v49
  %v351 = vunpack.c.l.b16 %v50
  %v352 = vunpack.c.h.b16 %v50
  %v353 = vunpack.c.l.b16 %v51
  %v354 = vunpack.c.h.b16 %v51
  %v355 = vunpack.c.l.b16 %v52
  %v356 = vunpack.c.h.b16 %v52
  %v357 = vunpack.c.l.b16 %v53
  %v358 = vunpack.c.h.b16 %v53
  %v359 = vunpack.c.l.b16 %v54
  %v360 = vunpack.c.h.b16 %v54
  %v361 = vunpack.c.l.b16 %v55
  %v362 = vunpack.c.h.b16 %v55
  %v363 = vunpack.c.l.b16 %v56
  %v364 = vunpack.c.h.b16 %v56
  %v365 = vunpack.c.l.b16 %v57
  %v366 = vunpack.c.h.b16 %v57
  %v367 = vunpack.c.l.b16 %v58
  %v368 = vunpack.c.h.b16 %v58
  %v369 = vunpack.c.l.b16 %v59
  %v370 = vunpack.c.h.b16 %v59
  %v371 = vunpack.c.l.b16 %v60
  %v372 = vunpack.c.h.b16 %v60
  %v373 = vunpack.c.l.b16 %v61
  %v374 = vunpack.c.h.b16 %v61
  %v375 = vunpack.c.l.b16 %v62
  %v376 = vunpack.c.h.b16 %v62
  %v377 = vunpack.c.l.b16 %v63
  %v378 = vunpack.c.h.b16 %v63
  %v379 = vunpack.c.l.b16 %v64
  %v380 = vunpack.c.h.b16 %v64
  %v381 = vunpack.c.l.b16 %v65
  %v382 = vunpack.c.h.b16 %v65
  %v383 = vunpack.c.l.b16 %v66
  %v384 = vunpack.c.h.b16 %v66
  %v385 = vunpack.c.l.b16 %v67
  %v386 = vunpack.c.h.b16 %v67
  %v387 = vunpack.c.l.b16 %v68
  %v388 = vunpack.c.h.b16 %v68
  %v389 = vunpack.c.l.b16 %v69
  %v390 = vunpack.c.h.b16 %v69
  %v391 = vunpack.c.l.b16 %v70
  %v392 = vunpack.c.h.b16 %v70
  %v393 = vunpack.c.l.b16 %v71
  %v394 = vunpack.c.h.b16 %v71
  %v395 = vunpack.c.l.b16 %v72
  %v396 = vunpack.c.h.b16 %v72
  %v397 = vunpack.c.l.b16 %v73
  %v398 = vunpack.c.h.b16 %v73
  %v399 = vunpack.c.l.b16 %v74
  %v400 = vunpack.c.h.b16 %v74
  %v401 = vunpack.c.l.b16 %v75
  %v402 = vunpack.c.h.b16 %v75
  %v403 = vunpack.c.l.b16 %v76
  %v404 = vunpack.c.h.b16 %v76
  %v405 = vunpack.c.l.b16 %v77
  %v406 = vunpack.c.h.b16 %v77
  %v407 = vunpack.c.l.b16 %v78
  %v408 = vunpack.c.h.b16 %v78
  %v409 = vunpack.c.l.b16 %v79
  %v410 = vunpack.c.h.b16 %v79
  %v411 = vunpack.c.l.b16 %v80
  %v412 = vunpack.c.h.b16 %v80
  %v413 = vpack.c.b16 %v293, %v285
  %v414 = vpack.c.b16 %v294, %v286
  %v415 = vpack.c.b16 %v295, %v287
  %v416 = vpack.c.b16 %v296, %v288
  %v417 = vpack.c.b16 %v297, %v289
  %v418 = vpack.c.b16 %v298, %v290
  %v419 = vpack.c.b16 %v299, %v291
  %v420 = vpack.c.b16 %v300, %v292
  %v421 = vpack.c.b16 %v309, %v301
  %v422 = vpack.c.b16 %v310, %v302
  %v423 = vpack.c.b16 %v311, %v303
  %v424 = vpack.c.b16 %v312, %v304
  %v425 = vpack.c.b16 %v313, %v305
  %v426 = vpack.c.b16 %v314, %v306
  %v427 = vpack.c.b16 %v315, %v307
  %v428 = vpack.c.b16 %v316, %v308
  %v429 = vpack.c.b16 %v325, %v317
  %v430 = vpack.c.b16 %v326, %v318
  %v431 = vpack.c.b16 %v327, %v319
  %v432 = vpack.c.b16 %v328, %v320
  %v433 = vpack.c.b16 %v329, %v321
  %v434 = vpack.c.b16 %v330, %v322
  %v435 = vpack.c.b16 %v331, %v323
  %v436 = vpack.c.b16 %v332, %v324
  %v437 = vpack.c.b16 %v341, %v333
  %v438 = vpack.c.b16 %v342, %v334
  %v439 = vpack.c.b16 %v343, %v335
  %v440 = vpack.c.b16 %v344, %v336
  %v441 = vpack.c.b16 %v345, %v337
  %v442 = vpack.c.b16 %v346, %v338
  %v443 = vpack.c.b16 %v347, %v339
  %v444 = vpack.c.b16 %v348, %v340
  %v445 = vpack.c.b16 %v357, %v349
  %v446 = vpack.c.b16 %v358, %v350
  %v447 = vpack.c.b16 %v359, %v351
  %v448 = vpack.c.b16 %v360, %v352
  %v449 = vpack.c.b16 %v361, %v353
  %v450 = vpack.c.b16 %v362, %v354
  %v451 = vpack.c.b16 %v363, %v355
  %v452 = vpack.c.b16 %v364, %v356
  %v453 = vpack.c.b16 %v373, %v365
  %v454 = vpack.c.b16 %v374, %v366
  %v455 = vpack.c.b16 %v375, %v367
  %v456 = vpack.c.b16 %v376, %v368
  %v457 = vpack.c.b16 %v377, %v369
  %v458 = vpack.c.b16 %v378, %v370
  %v459 = vpack.c.b16 %v379, %v371
  %v460 = vpack.c.b16 %v380, %v372
  %v461 = vpack.c.b16 %v389, %v381
  %v462 = vpack.c.b16 %v390, %v382
  %v463 = vpack.c.b16 %v391, %v383
  %v464 = vpack.c.b16 %v392, %v384
  %v465 = vpack.c.b16 %v393, %v385
  %v466 = vpack.c.b16 %v394, %v386
  %v467 = vpack.c.b16 %v395, %v387
  %v468 = vpack.c.b16 %v396, %v388
  %v469 = vpack.c.b16 %v405, %v397
  %v470 = vpack.c.b16 %v406, %v398
  %v471 = vpack.c.b16 %v407, %v399
  %v472 = vpack.c.b16 %v408, %v400
  %v473 = vpack.c.b16 %v409, %v401
  %v474 = vpack.c.b16 %v410, %v402
  %v475 = vpack.c.b16 %v411, %v403
  %v476 = vpack.c.b16 %v412, %v404
  %v669 = vunpack.c.l.b16 %v81
  %v670 = vunpack.c.h.b16 %v81
  %v671 = vunpack.c.l.b16 %v82
  %v672 = vunpack.c.h.b16 %v82
  %v673 = vunpack.c.l.b16 %v83
  %v674 = vunpack.c.h.b16 %v83
  %v675 = vunpack.c.l.b16 %v84
  %v676 = vunpack.c.h.b16 %v84
  %v677 = vunpack.c.l.b16 %v85
  %v678 = vunpack.c.h.b16 %v85
  %v679 = vunpack.c.l.b16 %v86
  %v680 = vunpack.c.h.b16 %v86
  %v681 = vunpack.c.l.b16 %v87
  %v682 = vunpack.c.h.b16 %v87
  %v683 = vunpack.c.l.b16 %v88
  %v684 = vunpack.c.h.b16 %v88
  %v685 = vunpack.c.l.b16 %v89
  %v686 = vunpack.c.h.b16 %v89
  %v687 = vunpack.c.l.b16 %v90
  %v688 = vunpack.c.h.b16 %v90
  %v689 = vunpack.c.l.b16 %v91
  %v690 = vunpack.c.h.b16 %v91
  %v691 = vunpack.c.l.b16 %v92
  %v692 = vunpack.c.h.b16 %v92
  %v693 = vunpack.c.l.b16 %v93
  %v694 = vunpack.c.h.b16 %v93
  %v695 = vunpack.c.l.b16 %v94
  %v696 = vunpack.c.h.b16 %v94
  %v697 = vunpack.c.l.b16 %v95
  %v698 = vunpack.c.h.b16 %v95
  %v699 = vunpack.c.l.b16 %v96
  %v700 = vunpack.c.h.b16 %v96
  %v701 = vunpack.c.l.b16 %v97
  %v702 = vunpack.c.h.b16 %v97
  %v703 = vunpack.c.l.b16 %v98
  %v704 = vunpack.c.h.b16 %v98
  %v705 = vunpack.c.l.b16 %v99
  %v706 = vunpack.c.h.b16 %v99
  %v707 = vunpack.c.l.b16 %v100
  %v708 = vunpack.c.h.b16 %v100
  %v709 = vunpack.c.l.b16 %v101
  %v710 = vunpack.c.h.b16 %v101
  %v711 = vunpack.c.l.b16 %v102
  %v712 = vunpack.c.h.b16 %v102
  %v713 = vunpack.c.l.b16 %v103
  %v714 = vunpack.c.h.b16 %v103
  %v715 = vunpack.c.l.b16 %v104
  %v716 = vunpack.c.h.b16 %v104
  %v717 = vunpack.c.l.b16 %v105
  %v718 = vunpack.c.h.b16 %v105
  %v719 = vunpack.c.l.b16 %v106
  %v720 = vunpack.c.h.b16 %v106
  %v721 = vunpack.c.l.b16 %v107
  %v722 = vunpack.c.h.b16 %v107
  %v723 = vunpack.c.l.b16 %v108
  %v724 = vunpack.c.h.b16 %v108
  %v725 = vunpack.c.l.b16 %v109
  %v726 = vunpack.c.h.b16 %v109
  %v727 = vunpack.c.l.b16 %v110
  %v728 = vunpack.c.h.b16 %v110
  %v729 = vunpack.c.l.b16 %v111
  %v730 = vunpack.c.h.b16 %v111
  %v731 = vunpack.c.l.b16 %v112
  %v732 = vunpack.c.h.b16 %v112
  %v733 = vunpack.c.l.b16 %v113
  %v734 = vunpack.c.h.b16 %v113
  %v735 = vunpack.c.l.b16 %v114
  %v736 = vunpack.c.h.b16 %v114
  %v737 = vunpack.c.l.b16 %v115
  %v738 = vunpack.c.h.b16 %v115
  %v739 = vunpack.c.l.b16 %v116
  %v740 = vunpack.c.h.b16 %v116
  %v741 = vunpack.c.l.b16 %v117
  %v742 = vunpack.c.h.b16 %v117
  %v743 = vunpack.c.l.b16 %v118
  %v744 = vunpack.c.h.b16 %v118
  %v745 = vunpack.c.l.b16 %v119
  %v746 = vunpack.c.h.b16 %v119
  %v747 = vunpack.c.l.b16 %v120
  %v748 = vunpack.c.h.b16 %v120
  %v749 = vunpack.c.l.b16 %v121
  %v750 = vunpack.c.h.b16 %v121
  %v751 = vunpack.c.l.b16 %v122
  %v752 = vunpack.c.h.b16 %v122
  %v753 = vunpack.c.l.b16 %v123
  %v754 = vunpack.c.h.b16 %v123
  %v755 = vunpack.c.l.b16 %v124
  %v756 = vunpack.c.h.b16 %v124
  %v757 = vunpack.c.l.b16 %v125
  %v758 = vunpack.c.h.b16 %v125
  %v759 = vunpack.c.l.b16 %v126
  %v760 = vunpack.c.h.b16 %v126
  %v761 = vunpack.c.l.b16 %v127
  %v762 = vunpack.c.h.b16 %v127
  %v763 = vunpack.c.l.b16 %v128
  %v764 = vunpack.c.h.b16 %v128
  %v765 = vunpack.c.l.b16 %v129
  %v766 = vunpack.c.h.b16 %v129
  %v767 = vunpack.c.l.b16 %v130
  %v768 = vunpack.c.h.b16 %v130
  %v769 = vunpack.c.l.b16 %v131
  %v770 = vunpack.c.h.b16 %v131
  %v771 = vunpack.c.l.b16 %v132
  %v772 = vunpack.c.h.b16 %v132
  %v773 = vunpack.c.l.b16 %v133
  %v774 = vunpack.c.h.b16 %v133
  %v775 = vunpack.c.l.b16 %v134
  %v776 = vunpack.c.h.b16 %v134
  %v777 = vunpack.c.l.b16 %v135
  %v778 = vunpack.c.h.b16 %v135
  %v779 = vunpack.c.l.b16 %v136
  %v780 = vunpack.c.h.b16 %v136
  %v781 = vunpack.c.l.b16 %v137
  %v782 = vunpack.c.h.b16 %v137
  %v783 = vunpack.c.l.b16 %v138
  %v784 = vunpack.c.h.b16 %v138
  %v785 = vunpack.c.l.b16 %v139
  %v786 = vunpack.c.h.b16 %v139
  %v787 = vunpack.c.l.b16 %v140
  %v788 = vunpack.c.h.b16 %v140
  %v789 = vunpack.c.l.b16 %v141
  %v790 = vunpack.c.h.b16 %v141
  %v791 = vunpack.c.l.b16 %v142
  %v792 = vunpack.c.h.b16 %v142
  %v793 = vunpack.c.l.b16 %v143
  %v794 = vunpack.c.h.b16 %v143
  %v795 = vunpack.c.l.b16 %v144
  %v796 = vunpack.c.h.b16 %v144
  %v797 = vunpack.c.l.b16 %v145
  %v798 = vunpack.c.h.b16 %v145
  %v799 = vunpack.c.l.b16 %v146
  %v800 = vunpack.c.h.b16 %v146
  %v801 = vunpack.c.l.b16 %v147
  %v802 = vunpack.c.h.b16 %v147
  %v803 = vunpack.c.l.b16 %v148
  %v804 = vunpack.c.h.b16 %v148
  %v805 = vunpack.c.l.b16 %v149
  %v806 = vunpack.c.h.b16 %v149
  %v807 = vunpack.c.l.b16 %v150
  %v808 = vunpack.c.h.b16 %v150
  %v809 = vunpack.c.l.b16 %v151
  %v810 = vunpack.c.h.b16 %v151
  %v811 = vunpack.c.l.b16 %v152
  %v812 = vunpack.c.h.b16 %v152
  %v813 = vunpack.c.l.b16 %v153
  %v814 = vunpack.c.h.b16 %v153
  %v815 = vunpack.c.l.b16 %v154
  %v816 = vunpack.c.h.b16 %v154
  %v817 = vunpack.c.l.b16 %v155
  %v818 = vunpack.c.h.b16 %v155
  %v819 = vunpack.c.l.b16 %v156
  %v820 = vunpack.c.h.b16 %v156
  %v821 = vunpack.c.l.b16 %v157
  %v822 = vunpack.c.h.b16 %v157
  %v823 = vunpack.c.l.b16 %v158
  %v824 = vunpack.c.h.b16 %v158
  %v825 = vunpack.c.l.b16 %v159
  %v826 = vunpack.c.h.b16 %v159
  %v827 = vunpack.c.l.b16 %v160
  %v828 = vunpack.c.h.b16 %v160
  %v829 = vunpack.c.l.b16 %v161
  %v830 = vunpack.c.h.b16 %v161
  %v831 = vunpack.c.l.b16 %v162
  %v832 = vunpack.c.h.b16 %v162
  %v833 = vunpack.c.l.b16 %v163
  %v834 = vunpack.c.h.b16 %v163
  %v835 = vunpack.c.l.b16 %v164
  %v836 = vunpack.c.h.b16 %v164
  %v837 = vunpack.c.l.b16 %v165
  %v838 = vunpack.c.h.b16 %v165
  %v839 = vunpack.c.l.b16 %v166
  %v840 = vunpack.c.h.b16 %v166
  %v841 = vunpack.c.l.b16 %v167
  %v842 = vunpack.c.h.b16 %v167
  %v843 = vunpack.c.l.b16 %v168
  %v844 = vunpack.c.h.b16 %v168
  %v845 = vunpack.c.l.b16 %v169
  %v846 = vunpack.c.h.b16 %v169
  %v847 = vunpack.c.l.b16 %v170
  %v848 = vunpack.c.h.b16 %v170
  %v849 = vunpack.c.l.b16 %v171
  %v850 = vunpack.c.h.b16 %v171
  %v851 = vunpack.c.l.b16 %v172
  %v852 = vunpack.c.h.b16 %v172
  %v853 = vunpack.c.l.b16 %v173
  %v854 = vunpack.c.h.b16 %v173
  %v855 = vunpack.c.l.b16 %v174
  %v856 = vunpack.c.h.b16 %v174
  %v857 = vunpack.c.l.b16 %v175
  %v858 = vunpack.c.h.b16 %v175
  %v859 = vunpack.c.l.b16 %v176
  %v860 = vunpack.c.h.b16 %v176
  %v861 = vunpack.c.l.b16 %v177
  %v862 = vunpack.c.h.b16 %v177
  %v863 = vunpack.c.l.b16 %v178
  %v864 = vunpack.c.h.b16 %v178
  %v865 = vunpack.c.l.b16 %v179
  %v866 = vunpack.c.h.b16 %v179
  %v867 = vunpack.c.l.b16 %v180
  %v868 = vunpack.c.h.b16 %v180
  %v869 = vunpack.c.l.b16 %v181
  %v870 = vunpack.c.h.b16 %v181
  %v871 = vunpack.c.l.b16 %v182
  %v872 = vunpack.c.h.b16 %v182
  %v873 = vunpack.c.l.b16 %v183
  %v874 = vunpack.c.h.b16 %v183
  %v875 = vunpack.c.l.b16 %v184
  %v876 = vunpack.c.h.b16 %v184
  %v877 = vunpack.c.l.b16 %v185
  %v878 = vunpack.c.h.b16 %v185
  %v879 = vunpack.c.l.b16 %v186
  %v880 = vunpack.c.h.b16 %v186
  %v881 = vunpack.c.l.b16 %v187
  %v882 = vunpack.c.h.b16 %v187
  %v883 = vunpack.c.l.b16 %v188
  %v884 = vunpack.c.h.b16 %v188
  %v885 = vunpack.c.l.b16 %v189
  %v886 = vunpack.c.h.b16 %v189
  %v887 = vunpack.c.l.b16 %v190
  %v888 = vunpack.c.h.b16 %v190
  %v889 = vunpack.c.l.b16 %v191
  %v890 = vunpack.c.h.b16 %v191
  %v891 = vunpack.c.l.b16 %v192
  %v892 = vunpack.c.h.b16 %v192
  %v893 = vunpack.c.l.b16 %v193
  %v894 = vunpack.c.h.b16 %v193
  %v895 = vunpack.c.l.b16 %v194
  %v896 = vunpack.c.h.b16 %v194
  %v897 = vunpack.c.l.b16 %v195
  %v898 = vunpack.c.h.b16 %v195
  %v899 = vunpack.c.l.b16 %v196
  %v900 = vunpack.c.h.b16 %v196
  %v901 = vunpack.c.l.b16 %v197
  %v902 = vunpack.c.h.b16 %v197
  %v903 = vunpack.c.l.b16 %v198
  %v904 = vunpack.c.h.b16 %v198
  %v905 = vunpack.c.l.b16 %v199
  %v906 = vunpack.c.h.b16 %v199
  %v907 = vunpack.c.l.b16 %v200
  %v908 = vunpack.c.h.b16 %v200
  %v909 = vunpack.c.l.b16 %v201
  %v910 = vunpack.c.h.b16 %v201
  %v911 = vunpack.c.l.b16 %v202
  %v912 = vunpack.c.h.b16 %v202
  %v913 = vunpack.c.l.b16 %v203
  %v914 = vunpack.c.h.b16 %v203
  %v915 = vunpack.c.l.b16 %v204
  %v916 = vunpack.c.h.b16 %v204
  %v917 = vunpack.c.l.b16 %v205
  %v918 = vunpack.c.h.b16 %v205
  %v919 = vunpack.c.l.b16 %v206
  %v920 = vunpack.c.h.b16 %v206
  %v921 = vunpack.c.l.b16 %v207
  %v922 = vunpack.c.h.b16 %v207
  %v923 = vunpack.c.l.b16 %v208
  %v924 = vunpack.c.h.b16 %v208
  %v925 = vpack.c.b16 %v671, %v669
  %v926 = vpack.c.b16 %v672, %v670
  %v927 = vpack.c.b16 %v675, %v673
  %v928 = vpack.c.b16 %v676, %v674
  %v929 = vpack.c.b16 %v679, %v677
  %v930 = vpack.c.b16 %v680, %v678
  %v931 = vpack.c.b16 %v683, %v681
  %v932 = vpack.c.b16 %v684, %v682
  %v933 = vpack.c.b16 %v687, %v685
  %v934 = vpack.c.b16 %v688, %v686
  %v935 = vpack.c.b16 %v691, %v689
  %v936 = vpack.c.b16 %v692, %v690
  %v937 = vpack.c.b16 %v695, %v693
  %v938 = vpack.c.b16 %v696, %v694
  %v939 = vpack.c.b16 %v699, %v697
  %v940 = vpack.c.b16 %v700, %v698
  %v941 = vpack.c.b16 %v703, %v701
  %v942 = vpack.c.b16 %v704, %v702
  %v943 = vpack.c.b16 %v707, %v705
  %v944 = vpack.c.b16 %v708, %v706
  %v945 = vpack.c.b16 %v711, %v709
  %v946 = vpack.c.b16 %v712, %v710
  %v947 = vpack.c.b16 %v715, %v713
  %v948 = vpack.c.b16 %v716, %v714
  %v949 = vpack.c.b16 %v719, %v717
  %v950 = vpack.c.b16 %v720, %v718
  %v951 = vpack.c.b16 %v723, %v721
  %v952 = vpack.c.b16 %v724, %v722
  %v953 = vpack.c.b16 %v727, %v725
  %v954 = vpack.c.b16 %v728, %v726
  %v955 = vpack.c.b16 %v731, %v729
  %v956 = vpack.c.b16 %v732, %v730
  %v957 = vpack.c.b16 %v735, %v733
  %v958 = vpack.c.b16 %v736, %v734
  %v959 = vpack.c.b16 %v739, %v737
  %v960 = vpack.c.b16 %v740, %v738
  %v961 = vpack.c.b16 %v743, %v741
  %v962 = vpack.c.b16 %v744, %v742
  %v963 = vpack.c.b16 %v747, %v745
  %v964 = vpack.c.b16 %v748, %v746
  %v965 = vpack.c.b16 %v751, %v749
  %v966 = vpack.c.b16 %v752, %v750
  %v967 = vpack.c.b16 %v755, %v753
  %v968 = vpack.c.b16 %v756, %v754
  %v969 = vpack.c.b16 %v759, %v757
  %v970 = vpack.c.b16 %v760, %v758
  %v971 = vpack.c.b16 %v763, %v761
  %v972 = vpack.c.b16 %v764, %v762
  %v973 = vpack.c.b16 %v767, %v765
  %v974 = vpack.c.b16 %v768, %v766
  %v975 = vpack.c.b16 %v771, %v769
  %v976 = vpack.c.b16 %v772, %v770
  %v977 = vpack.c.b16 %v775, %v773
  %v978 = vpack.c.b16 %v776, %v774
  %v979 = vpack.c.b16 %v779, %v777
  %v980 = vpack.c.b16 %v780, %v778
  %v981 = vpack.c.b16 %v783, %v781
  %v982 = vpack.c.b16 %v784, %v782
  %v983 = vpack.c.b16 %v787, %v785
  %v984 = vpack.c.b16 %v788, %v786
  %v985 = vpack.c.b16 %v791, %v789
  %v986 = vpack.c.b16 %v792, %v790
  %v987 = vpack.c.b16 %v795, %v793
  %v988 = vpack.c.b16 %v796, %v794
  %v989 = vpack.c.b16 %v799, %v797
  %v990 = vpack.c.b16 %v800, %v798
  %v991 = vpack.c.b16 %v803, %v801
  %v992 = vpack.c.b16 %v804, %v802
  %v993 = vpack.c.b16 %v807, %v805
  %v994 = vpack.c.b16 %v808, %v806
  %v995 = vpack.c.b16 %v811, %v809
  %v996 = vpack.c.b16 %v812, %v810
  %v997 = vpack.c.b16 %v815, %v813
  %v998 = vpack.c.b16 %v816, %v814
  %v999 = vpack.c.b16 %v819, %v817
  %v1000 = vpack.c.b16 %v820, %v818
  %v1001 = vpack.c.b16 %v823, %v821
  %v1002 = vpack.c.b16 %v824, %v822
  %v1003 = vpack.c.b16 %v827, %v825
  %v1004 = vpack.c.b16 %v828, %v826
  %v1005 = vpack.c.b16 %v831, %v829
  %v1006 = vpack.c.b16 %v832, %v830
  %v1007 = vpack.c.b16 %v835, %v833
  %v1008 = vpack.c.b16 %v836, %v834
  %v1009 = vpack.c.b16 %v839, %v837
  %v1010 = vpack.c.b16 %v840, %v838
  %v1011 = vpack.c.b16 %v843, %v841
  %v1012 = vpack.c.b16 %v844, %v842
  %v1013 = vpack.c.b16 %v847, %v845
  %v1014 = vpack.c.b16 %v848, %v846
  %v1015 = vpack.c.b16 %v851, %v849
  %v1016 = vpack.c.b16 %v852, %v850
  %v1017 = vpack.c.b16 %v855, %v853
  %v1018 = vpack.c.b16 %v856, %v854
  %v1019 = vpack.c.b16 %v859, %v857
  %v1020 = vpack.c.b16 %v860, %v858
  %v1021 = vpack.c.b16 %v863, %v861
  %v1022 = vpack.c.b16 %v864, %v862
  %v1023 = vpack.c.b16 %v867, %v865
  %v1024 = vpack.c.b16 %v868, %v866
  %v1025 = vpack.c.b16 %v871, %v869
  %v1026 = vpack.c.b16 %v872, %v870
  %v1027 = vpack.c.b16 %v875, %v873
  %v1028 = vpack.c.b16 %v876, %v874
  %v1029 = vpack.c.b16 %v879, %v877
  %v1030 = vpack.c.b16 %v880, %v878
  %v1031 = vpack.c.b16 %v883, %v881
  %v1032 = vpack.c.b16 %v884, %v882
  %v1033 = vpack.c.b16 %v887, %v885
  %v1034 = vpack.c.b16 %v888, %v886
  %v1035 = vpack.c.b16 %v891, %v889
  %v1036 = vpack.c.b16 %v892, %v890
  %v1037 = vpack.c.b16 %v895, %v893
  %v1038 = vpack.c.b16 %v896, %v894
  %v1039 = vpack.c.b16 %v899, %v897
  %v1040 = vpack.c.b16 %v900, %v898
  %v1041 = vpack.c.b16 %v903, %v901
  %v1042 = vpack.c.b16 %v904, %v902
  %v1043 = vpack.c.b16 %v907, %v905
  %v1044 = vpack.c.b16 %v908, %v906
  %v1045 = vpack.c.b16 %v911, %v909
  %v1046 = vpack.c.b16 %v912, %v910
  %v1047 = vpack.c.b16 %v915, %v913
  %v1048 = vpack.c.b16 %v916, %v914
  %v1049 = vpack.c.b16 %v919, %v917
  %v1050 = vpack.c.b16 %v920, %v918
  %v1051 = vpack.c.b16 %v923, %v921
  %v1052 = vpack.c.b16 %v924, %v922
  %1181 = vmatprep.subr.bf16.mxu0 %v926
  %1182 = vmatpush1.bf16.msra.mxu0 %v925
  %1183 = vmatprep.subr.bf16.mxu0 %v928
  %1184 = vmatpush1.bf16.msra.mxu0 %v927
  %1185 = vmatprep.subr.bf16.mxu0 %v930
  %1186 = vmatpush1.bf16.msra.mxu0 %v929
  %1187 = vmatprep.subr.bf16.mxu0 %v932
  %1188 = vmatpush1.bf16.msra.mxu0 %v931
  %1189 = vmatprep.subr.bf16.mxu0 %v934
  %1190 = vmatpush1.bf16.msra.mxu0 %v933
  %1191 = vmatprep.subr.bf16.mxu0 %v936
  %1192 = vmatpush1.bf16.msra.mxu0 %v935
  %1193 = vmatprep.subr.bf16.mxu0 %v938
  %1194 = vmatpush1.bf16.msra.mxu0 %v937
  %1195 = vmatprep.subr.bf16.mxu0 %v940
  %1196 = vmatpush1.bf16.msra.mxu0 %v939
  %1197 = vmatprep.subr.bf16.mxu0 %v942
  %1198 = vmatpush1.bf16.msra.mxu0 %v941
  %1199 = vmatprep.subr.bf16.mxu0 %v944
  %1200 = vmatpush1.bf16.msra.mxu0 %v943
  %1201 = vmatprep.subr.bf16.mxu0 %v946
  %1202 = vmatpush1.bf16.msra.mxu0 %v945
  %1203 = vmatprep.subr.bf16.mxu0 %v948
  %1204 = vmatpush1.bf16.msra.mxu0 %v947
  %1205 = vmatprep.subr.bf16.mxu0 %v950
  %1206 = vmatpush1.bf16.msra.mxu0 %v949
  %1207 = vmatprep.subr.bf16.mxu0 %v952
  %1208 = vmatpush1.bf16.msra.mxu0 %v951
  %1209 = vmatprep.subr.bf16.mxu0 %v954
  %1210 = vmatpush1.bf16.msra.mxu0 %v953
  %1211 = vmatprep.subr.bf16.mxu0 %v956
  %1212 = vmatpush1.bf16.msra.mxu0 %v955
  %1213 = vmatprep.mubr.bf16.mxu0 %v414
  %1214 = vmatmul.mubr.bf16.gmra.mrb[0].mxu0 %v413
  %v1215 = vpop.f32.mrb[0].mxu0
  %v1216 = vadd.f32 %v214, %v1215
  %v1217 = vpop.f32.mrb[0].mxu0
  %v1218 = vadd.f32 %v218, %v1217
  %v1219 = vpop.f32.mrb[0].mxu0
  %v1220 = vadd.f32 %v214, %v1219
  %v1221 = vpop.f32.mrb[0].mxu0
  %v1222 = vadd.f32 %v218, %v1221
  %1223 = vmatprep.mubr.bf16.mxu0 %v422
  %1224 = vmatmul.mubr.bf16.gmra.mrb[0].mxu0 %v421
  %v1225 = vpop.f32.mrb[0].mxu0
  %v1226 = vadd.f32 %v214, %v1225
  %v1227 = vpop.f32.mrb[0].mxu0
  %v1228 = vadd.f32 %v218, %v1227
  %v1229 = vpop.f32.mrb[0].mxu0
  %v1230 = vadd.f32 %v214, %v1229
  %v1231 = vpop.f32.mrb[0].mxu0
  %v1232 = vadd.f32 %v218, %v1231
  %1233 = vmatprep.mubr.bf16.mxu0 %v430
  %1234 = vmatmul.mubr.bf16.gmra.mrb[0].mxu0 %v429
  %v1235 = vpop.f32.mrb[0].mxu0
  %v1236 = vadd.f32 %v214, %v1235
  %v1237 = vpop.f32.mrb[0].mxu0
  %v1238 = vadd.f32 %v218, %v1237
  %v1239 = vpop.f32.mrb[0].mxu0
  %v1240 = vadd.f32 %v214, %v1239
  %v1241 = vpop.f32.mrb[0].mxu0
  %v1242 = vadd.f32 %v218, %v1241
  %1243 = vmatprep.mubr.bf16.mxu0 %v438
  %1244 = vmatmul.mubr.bf16.gmra.mrb[0].mxu0 %v437
  %v1245 = vpop.f32.mrb[0].mxu0
  %v1246 = vadd.f32 %v214, %v1245
  %v1247 = vpop.f32.mrb[0].mxu0
  %v1248 = vadd.f32 %v218, %v1247
  %v1249 = vpop.f32.mrb[0].mxu0
  %v1250 = vadd.f32 %v214, %v1249
  %v1251 = vpop.f32.mrb[0].mxu0
  %v1252 = vadd.f32 %v218, %v1251
  %1253 = vmatprep.mubr.bf16.mxu0 %v446
  %1254 = vmatmul.mubr.bf16.gmra.mrb[0].mxu0 %v445
  %v1255 = vpop.f32.mrb[0].mxu0
  %v1256 = vadd.f32 %v214, %v1255
  %v1257 = vpop.f32.mrb[0].mxu0
  %v1258 = vadd.f32 %v218, %v1257
  %v1259 = vpop.f32.mrb[0].mxu0
  %v1260 = vadd.f32 %v214, %v1259
  %v1261 = vpop.f32.mrb[0].mxu0
  %v1262 = vadd.f32 %v218, %v1261
  %1263 = vmatprep.mubr.bf16.mxu0 %v454
  %1264 = vmatmul.mubr.bf16.gmra.mrb[0].mxu0 %v453
  %v1265 = vpop.f32.mrb[0].mxu0
  %v1266 = vadd.f32 %v214, %v1265
  %v1267 = vpop.f32.mrb[0].mxu0
  %v1268 = vadd.f32 %v218, %v1267
  %v1269 = vpop.f32.mrb[0].mxu0
  %v1270 = vadd.f32 %v214, %v1269
  %v1271 = vpop.f32.mrb[0].mxu0
  %v1272 = vadd.f32 %v218, %v1271
  %1273 = vmatprep.mubr.bf16.mxu0 %v462
  %1274 = vmatmul.mubr.bf16.gmra.mrb[0].mxu0 %v461
  %v1275 = vpop.f32.mrb[0].mxu0
  %v1276 = vadd.f32 %v214, %v1275
  %v1277 = vpop.f32.mrb[0].mxu0
  %v1278 = vadd.f32 %v218, %v1277
  %v1279 = vpop.f32.mrb[0].mxu0
  %v1280 = vadd.f32 %v214, %v1279
  %v1281 = vpop.f32.mrb[0].mxu0
  %v1282 = vadd.f32 %v218, %v1281
  %1283 = vmatprep.mubr.bf16.mxu0 %v470
  %1284 = vmatmul.mubr.bf16.gmra.mrb[0].mxu0 %v469
  %v1285 = vpop.f32.mrb[0].mxu0
  %v1286 = vadd.f32 %v214, %v1285
  %v1287 = vpop.f32.mrb[0].mxu0
  %v1288 = vadd.f32 %v218, %v1287
  %v1289 = vpop.f32.mrb[0].mxu0
  %v1290 = vadd.f32 %v214, %v1289
  %v1291 = vpop.f32.mrb[0].mxu0
  %v1292 = vadd.f32 %v218, %v1291
  %1293 = vdwg.mxu0
  %1294 = vmatprep.subr.bf16.mxu0 %v958
  %1295 = vmatpush1.bf16.msra.mxu0 %v957
  %1296 = vmatprep.subr.bf16.mxu0 %v960
  %1297 = vmatpush1.bf16.msra.mxu0 %v959
  %1298 = vmatprep.subr.bf16.mxu0 %v962
  %1299 = vmatpush1.bf16.msra.mxu0 %v961
  %1300 = vmatprep.subr.bf16.mxu0 %v964
  %1301 = vmatpush1.bf16.msra.mxu0 %v963
  %1302 = vmatprep.subr.bf16.mxu0 %v966
  %1303 = vmatpush1.bf16.msra.mxu0 %v965
  %1304 = vmatprep.subr.bf16.mxu0 %v968
  %1305 = vmatpush1.bf16.msra.mxu0 %v967
  %1306 = vmatprep.subr.bf16.mxu0 %v970
  %1307 = vmatpush1.bf16.msra.mxu0 %v969
  %1308 = vmatprep.subr.bf16.mxu0 %v972
  %1309 = vmatpush1.bf16.msra.mxu0 %v971
  %1310 = vmatprep.subr.bf16.mxu0 %v974
  %1311 = vmatpush1.bf16.msra.mxu0 %v973
  %1312 = vmatprep.subr.bf16.mxu0 %v976
  %1313 = vmatpush1.bf16.msra.mxu0 %v975
  %1314 = vmatprep.subr.bf16.mxu0 %v978
  %1315 = vmatpush1.bf16.msra.mxu0 %v977
  %1316 = vmatprep.subr.bf16.mxu0 %v980
  %1317 = vmatpush1.bf16.msra.mxu0 %v979
  %1318 = vmatprep.subr.bf16.mxu0 %v982
  %1319 = vmatpush1.bf16.msra.mxu0 %v981
  %1320 = vmatprep.subr.bf16.mxu0 %v984
  %1321 = vmatpush1.bf16.msra.mxu0 %v983
  %1322 = vmatprep.subr.bf16.mxu0 %v986
  %1323 = vmatpush1.bf16.msra.mxu0 %v985
  %1324 = vmatprep.subr.bf16.mxu0 %v988
  %1325 = vmatpush1.bf16.msra.mxu0 %v987
  %1326 = vmatprep.mubr.bf16.mxu0 %v416
  %1327 = vmatmul.mubr.bf16.gmra.mrb[0].mxu0 %v415
  %v1328 = vpop.f32.mrb[0].mxu0
  %v1329 = vadd.f32 %v1216, %v1328
  %v1330 = vpop.f32.mrb[0].mxu0
  %v1331 = vadd.f32 %v1218, %v1330
  %v1332 = vpop.f32.mrb[0].mxu0
  %v1333 = vadd.f32 %v1220, %v1332
  %v1334 = vpop.f32.mrb[0].mxu0
  %v1335 = vadd.f32 %v1222, %v1334
  %1336 = vmatprep.mubr.bf16.mxu0 %v424
  %1337 = vmatmul.mubr.bf16.gmra.mrb[0].mxu0 %v423
  %v1338 = vpop.f32.mrb[0].mxu0
  %v1339 = vadd.f32 %v1226, %v1338
  %v1340 = vpop.f32.mrb[0].mxu0
  %v1341 = vadd.f32 %v1228, %v1340
  %v1342 = vpop.f32.mrb[0].mxu0
  %v1343 = vadd.f32 %v1230, %v1342
  %v1344 = vpop.f32.mrb[0].mxu0
  %v1345 = vadd.f32 %v1232, %v1344
  %1346 = vmatprep.mubr.bf16.mxu0 %v432
  %1347 = vmatmul.mubr.bf16.gmra.mrb[0].mxu0 %v431
  %v1348 = vpop.f32.mrb[0].mxu0
  %v1349 = vadd.f32 %v1236, %v1348
  %v1350 = vpop.f32.mrb[0].mxu0
  %v1351 = vadd.f32 %v1238, %v1350
  %v1352 = vpop.f32.mrb[0].mxu0
  %v1353 = vadd.f32 %v1240, %v1352
  %v1354 = vpop.f32.mrb[0].mxu0
  %v1355 = vadd.f32 %v1242, %v1354
  %1356 = vmatprep.mubr.bf16.mxu0 %v440
  %1357 = vmatmul.mubr.bf16.gmra.mrb[0].mxu0 %v439
  %v1358 = vpop.f32.mrb[0].mxu0
  %v1359 = vadd.f32 %v1246, %v1358
  %v1360 = vpop.f32.mrb[0].mxu0
  %v1361 = vadd.f32 %v1248, %v1360
  %v1362 = vpop.f32.mrb[0].mxu0
  %v1363 = vadd.f32 %v1250, %v1362
  %v1364 = vpop.f32.mrb[0].mxu0
  %v1365 = vadd.f32 %v1252, %v1364
  %1366 = vmatprep.mubr.bf16.mxu0 %v448
  %1367 = vmatmul.mubr.bf16.gmra.mrb[0].mxu0 %v447
  %v1368 = vpop.f32.mrb[0].mxu0
  %v1369 = vadd.f32 %v1256, %v1368
  %v1370 = vpop.f32.mrb[0].mxu0
  %v1371 = vadd.f32 %v1258, %v1370
  %v1372 = vpop.f32.mrb[0].mxu0
  %v1373 = vadd.f32 %v1260, %v1372
  %v1374 = vpop.f32.mrb[0].mxu0
  %v1375 = vadd.f32 %v1262, %v1374
  %1376 = vmatprep.mubr.bf16.mxu0 %v456
  %1377 = vmatmul.mubr.bf16.gmra.mrb[0].mxu0 %v455
  %v1378 = vpop.f32.mrb[0].mxu0
  %v1379 = vadd.f32 %v1266, %v1378
  %v1380 = vpop.f32.mrb[0].mxu0
  %v1381 = vadd.f32 %v1268, %v1380
  %v1382 = vpop.f32.mrb[0].mxu0
  %v1383 = vadd.f32 %v1270, %v1382
  %v1384 = vpop.f32.mrb[0].mxu0
  %v1385 = vadd.f32 %v1272, %v1384
  %1386 = vmatprep.mubr.bf16.mxu0 %v464
  %1387 = vmatmul.mubr.bf16.gmra.mrb[0].mxu0 %v463
  %v1388 = vpop.f32.mrb[0].mxu0
  %v1389 = vadd.f32 %v1276, %v1388
  %v1390 = vpop.f32.mrb[0].mxu0
  %v1391 = vadd.f32 %v1278, %v1390
  %v1392 = vpop.f32.mrb[0].mxu0
  %v1393 = vadd.f32 %v1280, %v1392
  %v1394 = vpop.f32.mrb[0].mxu0
  %v1395 = vadd.f32 %v1282, %v1394
  %1396 = vmatprep.mubr.bf16.mxu0 %v472
  %1397 = vmatmul.mubr.bf16.gmra.mrb[0].mxu0 %v471
  %v1398 = vpop.f32.mrb[0].mxu0
  %v1399 = vadd.f32 %v1286, %v1398
  %v1400 = vpop.f32.mrb[0].mxu0
  %v1401 = vadd.f32 %v1288, %v1400
  %v1402 = vpop.f32.mrb[0].mxu0
  %v1403 = vadd.f32 %v1290, %v1402
  %v1404 = vpop.f32.mrb[0].mxu0
  %v1405 = vadd.f32 %v1292, %v1404
  %1406 = vdwg.mxu0
  %1407 = vmatprep.subr.bf16.mxu0 %v990
  %1408 = vmatpush1.bf16.msra.mxu0 %v989
  %1409 = vmatprep.subr.bf16.mxu0 %v992
  %1410 = vmatpush1.bf16.msra.mxu0 %v991
  %1411 = vmatprep.subr.bf16.mxu0 %v994
  %1412 = vmatpush1.bf16.msra.mxu0 %v993
  %1413 = vmatprep.subr.bf16.mxu0 %v996
  %1414 = vmatpush1.bf16.msra.mxu0 %v995
  %1415 = vmatprep.subr.bf16.mxu0 %v998
  %1416 = vmatpush1.bf16.msra.mxu0 %v997
  %1417 = vmatprep.subr.bf16.mxu0 %v1000
  %1418 = vmatpush1.bf16.msra.mxu0 %v999
  %1419 = vmatprep.subr.bf16.mxu0 %v1002
  %1420 = vmatpush1.bf16.msra.mxu0 %v1001
  %1421 = vmatprep.subr.bf16.mxu0 %v1004
  %1422 = vmatpush1.bf16.msra.mxu0 %v1003
  %1423 = vmatprep.subr.bf16.mxu0 %v1006
  %1424 = vmatpush1.bf16.msra.mxu0 %v1005
  %1425 = vmatprep.subr.bf16.mxu0 %v1008
  %1426 = vmatpush1.bf16.msra.mxu0 %v1007
  %1427 = vmatprep.subr.bf16.mxu0 %v1010
  %1428 = vmatpush1.bf16.msra.mxu0 %v1009
  %1429 = vmatprep.subr.bf16.mxu0 %v1012
  %1430 = vmatpush1.bf16.msra.mxu0 %v1011
  %1431 = vmatprep.subr.bf16.mxu0 %v1014
  %1432 = vmatpush1.bf16.msra.mxu0 %v1013
  %1433 = vmatprep.subr.bf16.mxu0 %v1016
  %1434 = vmatpush1.bf16.msra.mxu0 %v1015
  %1435 = vmatprep.subr.bf16.mxu0 %v1018
  %1436 = vmatpush1.bf16.msra.mxu0 %v1017
  %1437 = vmatprep.subr.bf16.mxu0 %v1020
  %1438 = vmatpush1.bf16.msra.mxu0 %v1019
  %1439 = vmatprep.mubr.bf16.mxu0 %v418
  %1440 = vmatmul.mubr.bf16.gmra.mrb[0].mxu0 %v417
  %v1441 = vpop.f32.mrb[0].mxu0
  %v1442 = vadd.f32 %v1329, %v1441
  %v1443 = vpop.f32.mrb[0].mxu0
  %v1444 = vadd.f32 %v1331, %v1443
  %v1445 = vpop.f32.mrb[0].mxu0
  %v1446 = vadd.f32 %v1333, %v1445
  %v1447 = vpop.f32.mrb[0].mxu0
  %v1448 = vadd.f32 %v1335, %v1447
  %1449 = vmatprep.mubr.bf16.mxu0 %v426
  %1450 = vmatmul.mubr.bf16.gmra.mrb[0].mxu0 %v425
  %v1451 = vpop.f32.mrb[0].mxu0
  %v1452 = vadd.f32 %v1339, %v1451
  %v1453 = vpop.f32.mrb[0].mxu0
  %v1454 = vadd.f32 %v1341, %v1453
  %v1455 = vpop.f32.mrb[0].mxu0
  %v1456 = vadd.f32 %v1343, %v1455
  %v1457 = vpop.f32.mrb[0].mxu0
  %v1458 = vadd.f32 %v1345, %v1457
  %1459 = vmatprep.mubr.bf16.mxu0 %v434
  %1460 = vmatmul.mubr.bf16.gmra.mrb[0].mxu0 %v433
  %v1461 = vpop.f32.mrb[0].mxu0
  %v1462 = vadd.f32 %v1349, %v1461
  %v1463 = vpop.f32.mrb[0].mxu0
  %v1464 = vadd.f32 %v1351, %v1463
  %v1465 = vpop.f32.mrb[0].mxu0
  %v1466 = vadd.f32 %v1353, %v1465
  %v1467 = vpop.f32.mrb[0].mxu0
  %v1468 = vadd.f32 %v1355, %v1467
  %1469 = vmatprep.mubr.bf16.mxu0 %v442
  %1470 = vmatmul.mubr.bf16.gmra.mrb[0].mxu0 %v441
  %v1471 = vpop.f32.mrb[0].mxu0
  %v1472 = vadd.f32 %v1359, %v1471
  %v1473 = vpop.f32.mrb[0].mxu0
  %v1474 = vadd.f32 %v1361, %v1473
  %v1475 = vpop.f32.mrb[0].mxu0
  %v1476 = vadd.f32 %v1363, %v1475
  %v1477 = vpop.f32.mrb[0].mxu0
  %v1478 = vadd.f32 %v1365, %v1477
  %1479 = vmatprep.mubr.bf16.mxu0 %v450
  %1480 = vmatmul.mubr.bf16.gmra.mrb[0].mxu0 %v449
  %v1481 = vpop.f32.mrb[0].mxu0
  %v1482 = vadd.f32 %v1369, %v1481
  %v1483 = vpop.f32.mrb[0].mxu0
  %v1484 = vadd.f32 %v1371, %v1483
  %v1485 = vpop.f32.mrb[0].mxu0
  %v1486 = vadd.f32 %v1373, %v1485
  %v1487 = vpop.f32.mrb[0].mxu0
  %v1488 = vadd.f32 %v1375, %v1487
  %1489 = vmatprep.mubr.bf16.mxu0 %v458
  %1490 = vmatmul.mubr.bf16.gmra.mrb[0].mxu0 %v457
  %v1491 = vpop.f32.mrb[0].mxu0
  %v1492 = vadd.f32 %v1379, %v1491
  %v1493 = vpop.f32.mrb[0].mxu0
  %v1494 = vadd.f32 %v1381, %v1493
  %v1495 = vpop.f32.mrb[0].mxu0
  %v1496 = vadd.f32 %v1383, %v1495
  %v1497 = vpop.f32.mrb[0].mxu0
  %v1498 = vadd.f32 %v1385, %v1497
  %1499 = vmatprep.mubr.bf16.mxu0 %v466
  %1500 = vmatmul.mubr.bf16.gmra.mrb[0].mxu0 %v465
  %v1501 = vpop.f32.mrb[0].mxu0
  %v1502 = vadd.f32 %v1389, %v1501
  %v1503 = vpop.f32.mrb[0].mxu0
  %v1504 = vadd.f32 %v1391, %v1503
  %v1505 = vpop.f32.mrb[0].mxu0
  %v1506 = vadd.f32 %v1393, %v1505
  %v1507 = vpop.f32.mrb[0].mxu0
  %v1508 = vadd.f32 %v1395, %v1507
  %1509 = vmatprep.mubr.bf16.mxu0 %v474
  %1510 = vmatmul.mubr.bf16.gmra.mrb[0].mxu0 %v473
  %v1511 = vpop.f32.mrb[0].mxu0
  %v1512 = vadd.f32 %v1399, %v1511
  %v1513 = vpop.f32.mrb[0].mxu0
  %v1514 = vadd.f32 %v1401, %v1513
  %v1515 = vpop.f32.mrb[0].mxu0
  %v1516 = vadd.f32 %v1403, %v1515
  %v1517 = vpop.f32.mrb[0].mxu0
  %v1518 = vadd.f32 %v1405, %v1517
  %1519 = vdwg.mxu0
  %1520 = vmatprep.subr.bf16.mxu0 %v1022
  %1521 = vmatpush1.bf16.msra.mxu0 %v1021
  %1522 = vmatprep.subr.bf16.mxu0 %v1024
  %1523 = vmatpush1.bf16.msra.mxu0 %v1023
  %1524 = vmatprep.subr.bf16.mxu0 %v1026
  %1525 = vmatpush1.bf16.msra.mxu0 %v1025
  %1526 = vmatprep.subr.bf16.mxu0 %v1028
  %1527 = vmatpush1.bf16.msra.mxu0 %v1027
  %1528 = vmatprep.subr.bf16.mxu0 %v1030
  %1529 = vmatpush1.bf16.msra.mxu0 %v1029
  %1530 = vmatprep.subr.bf16.mxu0 %v1032
  %1531 = vmatpush1.bf16.msra.mxu0 %v1031
  %1532 = vmatprep.subr.bf16.mxu0 %v1034
  %1533 = vmatpush1.bf16.msra.mxu0 %v1033
  %1534 = vmatprep.subr.bf16.mxu0 %v1036
  %1535 = vmatpush1.bf16.msra.mxu0 %v1035
  %1536 = vmatprep.subr.bf16.mxu0 %v1038
  %1537 = vmatpush1.bf16.msra.mxu0 %v1037
  %1538 = vmatprep.subr.bf16.mxu0 %v1040
  %1539 = vmatpush1.bf16.msra.mxu0 %v1039
  %1540 = vmatprep.subr.bf16.mxu0 %v1042
  %1541 = vmatpush1.bf16.msra.mxu0 %v1041
  %1542 = vmatprep.subr.bf16.mxu0 %v1044
  %1543 = vmatpush1.bf16.msra.mxu0 %v1043
  %1544 = vmatprep.subr.bf16.mxu0 %v1046
  %1545 = vmatpush1.bf16.msra.mxu0 %v1045
  %1546 = vmatprep.subr.bf16.mxu0 %v1048
  %1547 = vmatpush1.bf16.msra.mxu0 %v1047
  %1548 = vmatprep.subr.bf16.mxu0 %v1050
  %1549 = vmatpush1.bf16.msra.mxu0 %v1049
  %1550 = vmatprep.subr.bf16.mxu0 %v1052
  %1551 = vmatpush1.bf16.msra.mxu0 %v1051
  %1552 = vmatprep.mubr.bf16.mxu0 %v420
  %1553 = vmatmul.mubr.bf16.gmra.mrb[0].mxu0 %v419
  %v1554 = vpop.f32.mrb[0].mxu0
  %v1555 = vadd.f32 %v1442, %v1554
  %v1556 = vpop.f32.mrb[0].mxu0
  %v1557 = vadd.f32 %v1444, %v1556
  %v1558 = vpop.f32.mrb[0].mxu0
  %v1559 = vadd.f32 %v1446, %v1558
  %v1560 = vpop.f32.mrb[0].mxu0
  %v1561 = vadd.f32 %v1448, %v1560
  %1562 = vmatprep.mubr.bf16.mxu0 %v428
  %1563 = vmatmul.mubr.bf16.gmra.mrb[0].mxu0 %v427
  %v1564 = vpop.f32.mrb[0].mxu0
  %v1565 = vadd.f32 %v1452, %v1564
  %v1566 = vpop.f32.mrb[0].mxu0
  %v1567 = vadd.f32 %v1454, %v1566
  %v1568 = vpop.f32.mrb[0].mxu0
  %v1569 = vadd.f32 %v1456, %v1568
  %v1570 = vpop.f32.mrb[0].mxu0
  %v1571 = vadd.f32 %v1458, %v1570
  %1572 = vmatprep.mubr.bf16.mxu0 %v436
  %1573 = vmatmul.mubr.bf16.gmra.mrb[0].mxu0 %v435
  %v1574 = vpop.f32.mrb[0].mxu0
  %v1575 = vadd.f32 %v1462, %v1574
  %v1576 = vpop.f32.mrb[0].mxu0
  %v1577 = vadd.f32 %v1464, %v1576
  %v1578 = vpop.f32.mrb[0].mxu0
  %v1579 = vadd.f32 %v1466, %v1578
  %v1580 = vpop.f32.mrb[0].mxu0
  %v1581 = vadd.f32 %v1468, %v1580
  %1582 = vmatprep.mubr.bf16.mxu0 %v444
  %1583 = vmatmul.mubr.bf16.gmra.mrb[0].mxu0 %v443
  %v1584 = vpop.f32.mrb[0].mxu0
  %v1585 = vadd.f32 %v1472, %v1584
  %v1586 = vpop.f32.mrb[0].mxu0
  %v1587 = vadd.f32 %v1474, %v1586
  %v1588 = vpop.f32.mrb[0].mxu0
  %v1589 = vadd.f32 %v1476, %v1588
  %v1590 = vpop.f32.mrb[0].mxu0
  %v1591 = vadd.f32 %v1478, %v1590
  %1592 = vmatprep.mubr.bf16.mxu0 %v452
  %1593 = vmatmul.mubr.bf16.gmra.mrb[0].mxu0 %v451
  %v1594 = vpop.f32.mrb[0].mxu0
  %v1595 = vadd.f32 %v1482, %v1594
  %v1596 = vpop.f32.mrb[0].mxu0
  %v1597 = vadd.f32 %v1484, %v1596
  %v1598 = vpop.f32.mrb[0].mxu0
  %v1599 = vadd.f32 %v1486, %v1598
  %v1600 = vpop.f32.mrb[0].mxu0
  %v1601 = vadd.f32 %v1488, %v1600
  %1602 = vmatprep.mubr.bf16.mxu0 %v460
  %1603 = vmatmul.mubr.bf16.gmra.mrb[0].mxu0 %v459
  %v1604 = vpop.f32.mrb[0].mxu0
  %v1605 = vadd.f32 %v1492, %v1604
  %v1606 = vpop.f32.mrb[0].mxu0
  %v1607 = vadd.f32 %v1494, %v1606
  %v1608 = vpop.f32.mrb[0].mxu0
  %v1609 = vadd.f32 %v1496, %v1608
  %v1610 = vpop.f32.mrb[0].mxu0
  %v1611 = vadd.f32 %v1498, %v1610
  %1612 = vmatprep.mubr.bf16.mxu0 %v468
  %1613 = vmatmul.mubr.bf16.gmra.mrb[0].mxu0 %v467
  %v1614 = vpop.f32.mrb[0].mxu0
  %v1615 = vadd.f32 %v1502, %v1614
  %v1616 = vpop.f32.mrb[0].mxu0
  %v1617 = vadd.f32 %v1504, %v1616
  %v1618 = vpop.f32.mrb[0].mxu0
  %v1619 = vadd.f32 %v1506, %v1618
  %v1620 = vpop.f32.mrb[0].mxu0
  %v1621 = vadd.f32 %v1508, %v1620
  %1622 = vmatprep.mubr.bf16.mxu0 %v476
  %1623 = vmatmul.mubr.bf16.gmra.mrb[0].mxu0 %v475
  %v1624 = vpop.f32.mrb[0].mxu0
  %v1625 = vadd.f32 %v1512, %v1624
  %v1626 = vpop.f32.mrb[0].mxu0
  %v1627 = vadd.f32 %v1514, %v1626
  %v1628 = vpop.f32.mrb[0].mxu0
  %v1629 = vadd.f32 %v1516, %v1628
  %v1630 = vpop.f32.mrb[0].mxu0
  %v1631 = vadd.f32 %v1518, %v1630
  %1632 = vdwg.mxu0
  %v1633 = vld [vmem:[%s3] sm:$0xff]
  %v1634 = vld [vmem:[%s3 + $0x8] sm:$0xff]
  %v1635 = vld [vmem:[%s3 + $0x10] sm:$0xff]
  %v1636 = vld [vmem:[%s3 + $0x18] sm:$0xff]
  %v1637 = vld [vmem:[%s3 + $0x20] sm:$0xff]
  %v1638 = vld [vmem:[%s3 + $0x28] sm:$0xff]
  %v1639 = vld [vmem:[%s3 + $0x30] sm:$0xff]
  %v1640 = vld [vmem:[%s3 + $0x38] sm:$0xff]
  %v1641 = vld [vmem:[%s3 + $0x40] sm:$0xff]
  %v1642 = vld [vmem:[%s3 + $0x48] sm:$0xff]
  %v1643 = vld [vmem:[%s3 + $0x50] sm:$0xff]
  %v1644 = vld [vmem:[%s3 + $0x58] sm:$0xff]
  %v1645 = vld [vmem:[%s3 + $0x60] sm:$0xff]
  %v1646 = vld [vmem:[%s3 + $0x68] sm:$0xff]
  %v1647 = vld [vmem:[%s3 + $0x70] sm:$0xff]
  %v1648 = vld [vmem:[%s3 + $0x78] sm:$0xff]
  %v1649 = vunpack.c.l.bf16 %v1633
  %v1650 = vunpack.c.h.bf16 %v1633
  %v1651 = vunpack.c.l.bf16 %v1634
  %v1652 = vunpack.c.h.bf16 %v1634
  %v1653 = vunpack.c.l.bf16 %v1635
  %v1654 = vunpack.c.h.bf16 %v1635
  %v1655 = vunpack.c.l.bf16 %v1636
  %v1656 = vunpack.c.h.bf16 %v1636
  %v1657 = vunpack.c.l.bf16 %v1637
  %v1658 = vunpack.c.h.bf16 %v1637
  %v1659 = vunpack.c.l.bf16 %v1638
  %v1660 = vunpack.c.h.bf16 %v1638
  %v1661 = vunpack.c.l.bf16 %v1639
  %v1662 = vunpack.c.h.bf16 %v1639
  %v1663 = vunpack.c.l.bf16 %v1640
  %v1664 = vunpack.c.h.bf16 %v1640
  %v1665 = vunpack.c.l.bf16 %v1641
  %v1666 = vunpack.c.h.bf16 %v1641
  %v1667 = vunpack.c.l.bf16 %v1642
  %v1668 = vunpack.c.h.bf16 %v1642
  %v1669 = vunpack.c.l.bf16 %v1643
  %v1670 = vunpack.c.h.bf16 %v1643
  %v1671 = vunpack.c.l.bf16 %v1644
  %v1672 = vunpack.c.h.bf16 %v1644
  %v1673 = vunpack.c.l.bf16 %v1645
  %v1674 = vunpack.c.h.bf16 %v1645
  %v1675 = vunpack.c.l.bf16 %v1646
  %v1676 = vunpack.c.h.bf16 %v1646
  %v1677 = vunpack.c.l.bf16 %v1647
  %v1678 = vunpack.c.h.bf16 %v1647
  %v1679 = vunpack.c.l.bf16 %v1648
  %v1680 = vunpack.c.h.bf16 %v1648
  %v1681 = vadd.f32 %v1555, %v1649
  %v1682 = vadd.f32 %v1557, %v1650
  %v1683 = vadd.f32 %v1559, %v1651
  %v1684 = vadd.f32 %v1561, %v1652
  %v1685 = vadd.f32 %v1565, %v1653
  %v1686 = vadd.f32 %v1567, %v1654
  %v1687 = vadd.f32 %v1569, %v1655
  %v1688 = vadd.f32 %v1571, %v1656
  %v1689 = vadd.f32 %v1575, %v1657
  %v1690 = vadd.f32 %v1577, %v1658
  %v1691 = vadd.f32 %v1579, %v1659
  %v1692 = vadd.f32 %v1581, %v1660
  %v1693 = vadd.f32 %v1585, %v1661
  %v1694 = vadd.f32 %v1587, %v1662
  %v1695 = vadd.f32 %v1589, %v1663
  %v1696 = vadd.f32 %v1591, %v1664
  %v1697 = vadd.f32 %v1595, %v1665
  %v1698 = vadd.f32 %v1597, %v1666
  %v1699 = vadd.f32 %v1599, %v1667
  %v1700 = vadd.f32 %v1601, %v1668
  %v1701 = vadd.f32 %v1605, %v1669
  %v1702 = vadd.f32 %v1607, %v1670
  %v1703 = vadd.f32 %v1609, %v1671
  %v1704 = vadd.f32 %v1611, %v1672
  %v1705 = vadd.f32 %v1615, %v1673
  %v1706 = vadd.f32 %v1617, %v1674
  %v1707 = vadd.f32 %v1619, %v1675
  %v1708 = vadd.f32 %v1621, %v1676
  %v1709 = vadd.f32 %v1625, %v1677
  %v1710 = vadd.f32 %v1627, %v1678
  %v1711 = vadd.f32 %v1629, %v1679
  %v1712 = vadd.f32 %v1631, %v1680
  %v1713 = vpack.c.bf16 %v1683, %v1681
  %v1714 = vpack.c.bf16 %v1684, %v1682
  %v1715 = vpack.c.bf16 %v1687, %v1685
  %v1716 = vpack.c.bf16 %v1688, %v1686
  %v1717 = vpack.c.bf16 %v1691, %v1689
  %v1718 = vpack.c.bf16 %v1692, %v1690
  %v1719 = vpack.c.bf16 %v1695, %v1693
  %v1720 = vpack.c.bf16 %v1696, %v1694
  %v1721 = vpack.c.bf16 %v1699, %v1697
  %v1722 = vpack.c.bf16 %v1700, %v1698
  %v1723 = vpack.c.bf16 %v1703, %v1701
  %v1724 = vpack.c.bf16 %v1704, %v1702
  %v1725 = vpack.c.bf16 %v1707, %v1705
  %v1726 = vpack.c.bf16 %v1708, %v1706
  %v1727 = vpack.c.bf16 %v1711, %v1709
  %v1728 = vpack.c.bf16 %v1712, %v1710
  %v1745 = vunpack.c.l.b16 %v1713
  %v1746 = vunpack.c.l.b16 %v1714
  %v1747 = vunpack.c.h.b16 %v1713
  %v1748 = vunpack.c.h.b16 %v1714
  %v1749 = vunpack.c.l.b16 %v1715
  %v1750 = vunpack.c.l.b16 %v1716
  %v1751 = vunpack.c.h.b16 %v1715
  %v1752 = vunpack.c.h.b16 %v1716
  %v1753 = vunpack.c.l.b16 %v1717
  %v1754 = vunpack.c.l.b16 %v1718
  %v1755 = vunpack.c.h.b16 %v1717
  %v1756 = vunpack.c.h.b16 %v1718
  %v1757 = vunpack.c.l.b16 %v1719
  %v1758 = vunpack.c.l.b16 %v1720
  %v1759 = vunpack.c.h.b16 %v1719
  %v1760 = vunpack.c.h.b16 %v1720
  %v1761 = vunpack.c.l.b16 %v1721
  %v1762 = vunpack.c.l.b16 %v1722
  %v1763 = vunpack.c.h.b16 %v1721
  %v1764 = vunpack.c.h.b16 %v1722
  %v1765 = vunpack.c.l.b16 %v1723
  %v1766 = vunpack.c.l.b16 %v1724
  %v1767 = vunpack.c.h.b16 %v1723
  %v1768 = vunpack.c.h.b16 %v1724
  %v1769 = vunpack.c.l.b16 %v1725
  %v1770 = vunpack.c.l.b16 %v1726
  %v1771 = vunpack.c.h.b16 %v1725
  %v1772 = vunpack.c.h.b16 %v1726
  %v1773 = vunpack.c.l.b16 %v1727
  %v1774 = vunpack.c.l.b16 %v1728
  %v1775 = vunpack.c.h.b16 %v1727
  %v1776 = vunpack.c.h.b16 %v1728
  %v1777 = vpack.c.b16 %v1746, %v1745
  %v1778 = vpack.c.b16 %v1748, %v1747
  %v1779 = vpack.c.b16 %v1750, %v1749
  %v1780 = vpack.c.b16 %v1752, %v1751
  %v1781 = vpack.c.b16 %v1754, %v1753
  %v1782 = vpack.c.b16 %v1756, %v1755
  %v1783 = vpack.c.b16 %v1758, %v1757
  %v1784 = vpack.c.b16 %v1760, %v1759
  %v1785 = vpack.c.b16 %v1762, %v1761
  %v1786 = vpack.c.b16 %v1764, %v1763
  %v1787 = vpack.c.b16 %v1766, %v1765
  %v1788 = vpack.c.b16 %v1768, %v1767
  %v1789 = vpack.c.b16 %v1770, %v1769
  %v1790 = vpack.c.b16 %v1772, %v1771
  %v1791 = vpack.c.b16 %v1774, %v1773
  %v1792 = vpack.c.b16 %v1776, %v1775
  %1809 = vst [vmem:[%s4] sm:$0xff] %v1777
  %1810 = vst [vmem:[%s4 + $0x8] sm:$0xff] %v1778
  %1811 = vst [vmem:[%s4 + $0x10] sm:$0xff] %v1779
  %1812 = vst [vmem:[%s4 + $0x18] sm:$0xff] %v1780
  %1813 = vst [vmem:[%s4 + $0x20] sm:$0xff] %v1781
  %1814 = vst [vmem:[%s4 + $0x28] sm:$0xff] %v1782
  %1815 = vst [vmem:[%s4 + $0x30] sm:$0xff] %v1783
  %1816 = vst [vmem:[%s4 + $0x38] sm:$0xff] %v1784
  %1817 = vst [vmem:[%s4 + $0x40] sm:$0xff] %v1785
  %1818 = vst [vmem:[%s4 + $0x48] sm:$0xff] %v1786
  %1819 = vst [vmem:[%s4 + $0x50] sm:$0xff] %v1787
  %1820 = vst [vmem:[%s4 + $0x58] sm:$0xff] %v1788
  %1821 = vst [vmem:[%s4 + $0x60] sm:$0xff] %v1789
  %1822 = vst [vmem:[%s4 + $0x68] sm:$0xff] %v1790
  %1823 = vst [vmem:[%s4 + $0x70] sm:$0xff] %v1791
  %1824 = vst [vmem:[%s4 + $0x78] sm:$0xff] %v1792
  // Predicated region
  $region18: #{bert_embedder_forward.11} parent=0 // pred_check
    _
  $region19: #{bert_embedder_forward.11} parent=0 // pred_check_branch
    %1826 = sbr.rel (0) target = $region21
  $region20: #{bert_embedder_forward.11} parent=0 // pred_region
    _
  $region21: #{bert_embedder_forward.11} parent=0 // pred_fallthru
    _
  // Predicated region
  $region22: #{bert_embedder_forward.11} parent=0 // pred_check
    _
  $region23: #{bert_embedder_forward.11} parent=0 // pred_check_branch
    %1828 = sbr.rel (0) target = $region25
  $region24: #{bert_embedder_forward.11} parent=0 // pred_region
    _
  $region25: #{bert_embedder_forward.11} parent=0 // pred_fallthru
    _

// kernel: bert_embedder_forward.8
$region0: #{bert_embedder_forward.8}
  #allocation0 [shape = 'u32[]', space=smem, size = 0x4, offset = 0x4, fixed_abs, tag = 'smem constant byte address 0x4 - core index']
  #allocation1 [shape = 'u32[144,128]{1,0:T(1,128)}', space=vmem, size = 0x12000, scoped, tag = 'internal scratch']
  %s0 = inlined_call_operand.vmem [shape: bf16[128,256], index: 0, kind: input, shape index: {}]
  %s1 = inlined_call_operand.vmem [shape: bf16[256,1536], index: 1, kind: input, shape index: {}]
  %s2 = inlined_call_operand.vmem [shape: f32[1,1536], index: 2, kind: input, shape index: {}]
  %s3 = inlined_call_operand.vmem [shape: bf16[128,1536], index: 3, kind: output, shape index: {}]
  %s4 = sld [smem:[#allocation0]]
  $region22: #{bert_embedder_forward.8} parent=0
    _
  %s6 = ssub.s32 1, %s4
  %s7 = scalar_select 0, %s6, %s4
  // Predicated region
  $region2: #{bert_embedder_forward.8} parent=0 // pred_check
    _
  $region3: #{bert_embedder_forward.8} parent=0 // pred_check_branch
    %9 = sbr.rel (0) target = $region5
  $region4: #{bert_embedder_forward.8} parent=0 // pred_region
    _
  $region5: #{bert_embedder_forward.8} parent=0 // pred_fallthru
    _
  // Predicated region
  $region6: #{bert_embedder_forward.8} parent=0 // pred_check
    _
  $region7: #{bert_embedder_forward.8} parent=0 // pred_check_branch
    %11 = sbr.rel (0) target = $region9
  $region8: #{bert_embedder_forward.8} parent=0 // pred_region
    _
  $region9: #{bert_embedder_forward.8} parent=0 // pred_fallthru
    _
  // Predicated region
  $region10: #{bert_embedder_forward.8} parent=0 // pred_check
    _
  $region11: #{bert_embedder_forward.8} parent=0 // pred_check_branch
    %13 = sbr.rel (0) target = $region13
  $region12: #{bert_embedder_forward.8} parent=0 // pred_region
    _
  $region13: #{bert_embedder_forward.8} parent=0 // pred_fallthru
    _
  %v14 = vld [vmem:[%s0] sm:$0xff]
  %v15 = vld [vmem:[%s0 + $0x8] sm:$0xff]
  %v16 = vld [vmem:[%s0 + $0x10] sm:$0xff]
  %v17 = vld [vmem:[%s0 + $0x18] sm:$0xff]
  %v18 = vld [vmem:[%s0 + $0x20] sm:$0xff]
  %v19 = vld [vmem:[%s0 + $0x28] sm:$0xff]
  %v20 = vld [vmem:[%s0 + $0x30] sm:$0xff]
  %v21 = vld [vmem:[%s0 + $0x38] sm:$0xff]
  %v22 = vld [vmem:[%s0 + $0x40] sm:$0xff]
  %v23 = vld [vmem:[%s0 + $0x48] sm:$0xff]
  %v24 = vld [vmem:[%s0 + $0x50] sm:$0xff]
  %v25 = vld [vmem:[%s0 + $0x58] sm:$0xff]
  %v26 = vld [vmem:[%s0 + $0x60] sm:$0xff]
  %v27 = vld [vmem:[%s0 + $0x68] sm:$0xff]
  %v28 = vld [vmem:[%s0 + $0x70] sm:$0xff]
  %v29 = vld [vmem:[%s0 + $0x78] sm:$0xff]
  %v30 = vunpack.c.l.bf16 %v14
  %v31 = vunpack.c.h.bf16 %v14
  %v32 = vunpack.c.l.bf16 %v15
  %v33 = vunpack.c.h.bf16 %v15
  %v34 = vunpack.c.l.bf16 %v16
  %v35 = vunpack.c.h.bf16 %v16
  %v36 = vunpack.c.l.bf16 %v17
  %v37 = vunpack.c.h.bf16 %v17
  %v38 = vunpack.c.l.bf16 %v18
  %v39 = vunpack.c.h.bf16 %v18
  %v40 = vunpack.c.l.bf16 %v19
  %v41 = vunpack.c.h.bf16 %v19
  %v42 = vunpack.c.l.bf16 %v20
  %v43 = vunpack.c.h.bf16 %v20
  %v44 = vunpack.c.l.bf16 %v21
  %v45 = vunpack.c.h.bf16 %v21
  %v46 = vunpack.c.l.bf16 %v22
  %v47 = vunpack.c.h.bf16 %v22
  %v48 = vunpack.c.l.bf16 %v23
  %v49 = vunpack.c.h.bf16 %v23
  %v50 = vunpack.c.l.bf16 %v24
  %v51 = vunpack.c.h.bf16 %v24
  %v52 = vunpack.c.l.bf16 %v25
  %v53 = vunpack.c.h.bf16 %v25
  %v54 = vunpack.c.l.bf16 %v26
  %v55 = vunpack.c.h.bf16 %v26
  %v56 = vunpack.c.l.bf16 %v27
  %v57 = vunpack.c.h.bf16 %v27
  %v58 = vunpack.c.l.bf16 %v28
  %v59 = vunpack.c.h.bf16 %v28
  %v60 = vunpack.c.l.bf16 %v29
  %v61 = vunpack.c.h.bf16 %v29
  %v62 = vadd.f32 %v30, %v31
  %63 = vadd.xlane.f32.xlu0 %v62
  %v64 = vpop.xlane.xlu0 %63
  %v65 = vadd.f32 %v32, %v33
  %66 = vadd.xlane.f32.xlu0 %v65
  %v67 = vpop.xlane.xlu0 %66
  %v68 = vadd.f32 %v34, %v35
  %69 = vadd.xlane.f32.xlu0 %v68
  %v70 = vpop.xlane.xlu0 %69
  %v71 = vadd.f32 %v36, %v37
  %72 = vadd.xlane.f32.xlu0 %v71
  %v73 = vpop.xlane.xlu0 %72
  %v74 = vadd.f32 %v38, %v39
  %75 = vadd.xlane.f32.xlu0 %v74
  %v76 = vpop.xlane.xlu0 %75
  %v77 = vadd.f32 %v40, %v41
  %78 = vadd.xlane.f32.xlu0 %v77
  %v79 = vpop.xlane.xlu0 %78
  %v80 = vadd.f32 %v42, %v43
  %81 = vadd.xlane.f32.xlu0 %v80
  %v82 = vpop.xlane.xlu0 %81
  %v83 = vadd.f32 %v44, %v45
  %84 = vadd.xlane.f32.xlu0 %v83
  %v85 = vpop.xlane.xlu0 %84
  %v86 = vadd.f32 %v46, %v47
  %87 = vadd.xlane.f32.xlu0 %v86
  %v88 = vpop.xlane.xlu0 %87
  %v89 = vadd.f32 %v48, %v49
  %90 = vadd.xlane.f32.xlu0 %v89
  %v91 = vpop.xlane.xlu0 %90
  %v92 = vadd.f32 %v50, %v51
  %93 = vadd.xlane.f32.xlu0 %v92
  %v94 = vpop.xlane.xlu0 %93
  %v95 = vadd.f32 %v52, %v53
  %96 = vadd.xlane.f32.xlu0 %v95
  %v97 = vpop.xlane.xlu0 %96
  %v98 = vadd.f32 %v54, %v55
  %99 = vadd.xlane.f32.xlu0 %v98
  %v100 = vpop.xlane.xlu0 %99
  %v101 = vadd.f32 %v56, %v57
  %102 = vadd.xlane.f32.xlu0 %v101
  %v103 = vpop.xlane.xlu0 %102
  %v104 = vadd.f32 %v58, %v59
  %105 = vadd.xlane.f32.xlu0 %v104
  %v106 = vpop.xlane.xlu0 %105
  %v107 = vadd.f32 %v60, %v61
  %108 = vadd.xlane.f32.xlu0 %v107
  %v109 = vpop.xlane.xlu0 %108
  %v110 = vrcp.pop 256.0
  %v111 = vmul.f32 %v64, %v110
  %v112 = vmul.f32 %v67, %v110
  %v113 = vmul.f32 %v70, %v110
  %v114 = vmul.f32 %v73, %v110
  %v115 = vmul.f32 %v76, %v110
  %v116 = vmul.f32 %v79, %v110
  %v117 = vmul.f32 %v82, %v110
  %v118 = vmul.f32 %v85, %v110
  %v119 = vmul.f32 %v88, %v110
  %v120 = vmul.f32 %v91, %v110
  %v121 = vmul.f32 %v94, %v110
  %v122 = vmul.f32 %v97, %v110
  %v123 = vmul.f32 %v100, %v110
  %v124 = vmul.f32 %v103, %v110
  %v125 = vmul.f32 %v106, %v110
  %v126 = vmul.f32 %v109, %v110
  %v127 = vsub.f32 %v30, %v111
  %v128 = vsub.f32 %v31, %v111
  %v129 = vsub.f32 %v32, %v112
  %v130 = vsub.f32 %v33, %v112
  %v131 = vsub.f32 %v34, %v113
  %v132 = vsub.f32 %v35, %v113
  %v133 = vsub.f32 %v36, %v114
  %v134 = vsub.f32 %v37, %v114
  %v135 = vsub.f32 %v38, %v115
  %v136 = vsub.f32 %v39, %v115
  %v137 = vsub.f32 %v40, %v116
  %v138 = vsub.f32 %v41, %v116
  %v139 = vsub.f32 %v42, %v117
  %v140 = vsub.f32 %v43, %v117
  %v141 = vsub.f32 %v44, %v118
  %v142 = vsub.f32 %v45, %v118
  %v143 = vsub.f32 %v46, %v119
  %v144 = vsub.f32 %v47, %v119
  %v145 = vsub.f32 %v48, %v120
  %v146 = vsub.f32 %v49, %v120
  %v147 = vsub.f32 %v50, %v121
  %v148 = vsub.f32 %v51, %v121
  %v149 = vsub.f32 %v52, %v122
  %v150 = vsub.f32 %v53, %v122
  %v151 = vsub.f32 %v54, %v123
  %v152 = vsub.f32 %v55, %v123
  %v153 = vsub.f32 %v56, %v124
  %v154 = vsub.f32 %v57, %v124
  %v155 = vsub.f32 %v58, %v125
  %v156 = vsub.f32 %v59, %v125
  %v157 = vsub.f32 %v60, %v126
  %v158 = vsub.f32 %v61, %v126
  %v159 = vmul.f32 %v127, %v127
  %v160 = vmul.f32 %v128, %v128
  %v161 = vmul.f32 %v129, %v129
  %v162 = vmul.f32 %v130, %v130
  %v163 = vmul.f32 %v131, %v131
  %v164 = vmul.f32 %v132, %v132
  %v165 = vmul.f32 %v133, %v133
  %v166 = vmul.f32 %v134, %v134
  %v167 = vmul.f32 %v135, %v135
  %v168 = vmul.f32 %v136, %v136
  %v169 = vmul.f32 %v137, %v137
  %v170 = vmul.f32 %v138, %v138
  %v171 = vmul.f32 %v139, %v139
  %v172 = vmul.f32 %v140, %v140
  %v173 = vmul.f32 %v141, %v141
  %v174 = vmul.f32 %v142, %v142
  %v175 = vmul.f32 %v143, %v143
  %v176 = vmul.f32 %v144, %v144
  %v177 = vmul.f32 %v145, %v145
  %v178 = vmul.f32 %v146, %v146
  %v179 = vmul.f32 %v147, %v147
  %v180 = vmul.f32 %v148, %v148
  %v181 = vmul.f32 %v149, %v149
  %v182 = vmul.f32 %v150, %v150
  %v183 = vmul.f32 %v151, %v151
  %v184 = vmul.f32 %v152, %v152
  %v185 = vmul.f32 %v153, %v153
  %v186 = vmul.f32 %v154, %v154
  %v187 = vmul.f32 %v155, %v155
  %v188 = vmul.f32 %v156, %v156
  %v189 = vmul.f32 %v157, %v157
  %v190 = vmul.f32 %v158, %v158
  %v191 = vadd.f32 %v159, %v160
  %192 = vadd.xlane.f32.xlu0 %v191
  %v193 = vpop.xlane.xlu0 %192
  %v194 = vadd.f32 %v161, %v162
  %195 = vadd.xlane.f32.xlu0 %v194
  %v196 = vpop.xlane.xlu0 %195
  %v197 = vadd.f32 %v163, %v164
  %198 = vadd.xlane.f32.xlu0 %v197
  %v199 = vpop.xlane.xlu0 %198
  %v200 = vadd.f32 %v165, %v166
  %201 = vadd.xlane.f32.xlu0 %v200
  %v202 = vpop.xlane.xlu0 %201
  %v203 = vadd.f32 %v167, %v168
  %204 = vadd.xlane.f32.xlu0 %v203
  %v205 = vpop.xlane.xlu0 %204
  %v206 = vadd.f32 %v169, %v170
  %207 = vadd.xlane.f32.xlu0 %v206
  %v208 = vpop.xlane.xlu0 %207
  %v209 = vadd.f32 %v171, %v172
  %210 = vadd.xlane.f32.xlu0 %v209
  %v211 = vpop.xlane.xlu0 %210
  %v212 = vadd.f32 %v173, %v174
  %213 = vadd.xlane.f32.xlu0 %v212
  %v214 = vpop.xlane.xlu0 %213
  %v215 = vadd.f32 %v175, %v176
  %216 = vadd.xlane.f32.xlu0 %v215
  %v217 = vpop.xlane.xlu0 %216
  %v218 = vadd.f32 %v177, %v178
  %219 = vadd.xlane.f32.xlu0 %v218
  %v220 = vpop.xlane.xlu0 %219
  %v221 = vadd.f32 %v179, %v180
  %222 = vadd.xlane.f32.xlu0 %v221
  %v223 = vpop.xlane.xlu0 %222
  %v224 = vadd.f32 %v181, %v182
  %225 = vadd.xlane.f32.xlu0 %v224
  %v226 = vpop.xlane.xlu0 %225
  %v227 = vadd.f32 %v183, %v184
  %228 = vadd.xlane.f32.xlu0 %v227
  %v229 = vpop.xlane.xlu0 %228
  %v230 = vadd.f32 %v185, %v186
  %231 = vadd.xlane.f32.xlu0 %v230
  %v232 = vpop.xlane.xlu0 %231
  %v233 = vadd.f32 %v187, %v188
  %234 = vadd.xlane.f32.xlu0 %v233
  %v235 = vpop.xlane.xlu0 %234
  %v236 = vadd.f32 %v189, %v190
  %237 = vadd.xlane.f32.xlu0 %v236
  %v238 = vpop.xlane.xlu0 %237
  %v239 = vmul.f32 %v193, %v110
  %v240 = vmul.f32 %v196, %v110
  %v241 = vmul.f32 %v199, %v110
  %v242 = vmul.f32 %v202, %v110
  %v243 = vmul.f32 %v205, %v110
  %v244 = vmul.f32 %v208, %v110
  %v245 = vmul.f32 %v211, %v110
  %v246 = vmul.f32 %v214, %v110
  %v247 = vmul.f32 %v217, %v110
  %v248 = vmul.f32 %v220, %v110
  %v249 = vmul.f32 %v223, %v110
  %v250 = vmul.f32 %v226, %v110
  %v251 = vmul.f32 %v229, %v110
  %v252 = vmul.f32 %v232, %v110
  %v253 = vmul.f32 %v235, %v110
  %v254 = vmul.f32 %v238, %v110
  %v255 = vadd.f32 %v239, 1e-05
  %v256 = vadd.f32 %v240, 1e-05
  %v257 = vadd.f32 %v241, 1e-05
  %v258 = vadd.f32 %v242, 1e-05
  %v259 = vadd.f32 %v243, 1e-05
  %v260 = vadd.f32 %v244, 1e-05
  %v261 = vadd.f32 %v245, 1e-05
  %v262 = vadd.f32 %v246, 1e-05
  %v263 = vadd.f32 %v247, 1e-05
  %v264 = vadd.f32 %v248, 1e-05
  %v265 = vadd.f32 %v249, 1e-05
  %v266 = vadd.f32 %v250, 1e-05
  %v267 = vadd.f32 %v251, 1e-05
  %v268 = vadd.f32 %v252, 1e-05
  %v269 = vadd.f32 %v253, 1e-05
  %v270 = vadd.f32 %v254, 1e-05
  %v271 = vrsqrt.pop %v255
  %v272 = vrsqrt.pop %v256
  %v273 = vrsqrt.pop %v257
  %v274 = vrsqrt.pop %v258
  %v275 = vrsqrt.pop %v259
  %v276 = vrsqrt.pop %v260
  %v277 = vrsqrt.pop %v261
  %v278 = vrsqrt.pop %v262
  %v279 = vrsqrt.pop %v263
  %v280 = vrsqrt.pop %v264
  %v281 = vrsqrt.pop %v265
  %v282 = vrsqrt.pop %v266
  %v283 = vrsqrt.pop %v267
  %v284 = vrsqrt.pop %v268
  %v285 = vrsqrt.pop %v269
  %v286 = vrsqrt.pop %v270
  %v287 = vmul.f32 %v127, %v271
  %v288 = vmul.f32 %v128, %v271
  %v289 = vmul.f32 %v129, %v272
  %v290 = vmul.f32 %v130, %v272
  %v291 = vmul.f32 %v131, %v273
  %v292 = vmul.f32 %v132, %v273
  %v293 = vmul.f32 %v133, %v274
  %v294 = vmul.f32 %v134, %v274
  %v295 = vmul.f32 %v135, %v275
  %v296 = vmul.f32 %v136, %v275
  %v297 = vmul.f32 %v137, %v276
  %v298 = vmul.f32 %v138, %v276
  %v299 = vmul.f32 %v139, %v277
  %v300 = vmul.f32 %v140, %v277
  %v301 = vmul.f32 %v141, %v278
  %v302 = vmul.f32 %v142, %v278
  %v303 = vmul.f32 %v143, %v279
  %v304 = vmul.f32 %v144, %v279
  %v305 = vmul.f32 %v145, %v280
  %v306 = vmul.f32 %v146, %v280
  %v307 = vmul.f32 %v147, %v281
  %v308 = vmul.f32 %v148, %v281
  %v309 = vmul.f32 %v149, %v282
  %v310 = vmul.f32 %v150, %v282
  %v311 = vmul.f32 %v151, %v283
  %v312 = vmul.f32 %v152, %v283
  %v313 = vmul.f32 %v153, %v284
  %v314 = vmul.f32 %v154, %v284
  %v315 = vmul.f32 %v155, %v285
  %v316 = vmul.f32 %v156, %v285
  %v317 = vmul.f32 %v157, %v286
  %v318 = vmul.f32 %v158, %v286
  %v319 = vpack.c.bf16 %v289, %v287
  %v320 = vpack.c.bf16 %v290, %v288
  %v321 = vpack.c.bf16 %v293, %v291
  %v322 = vpack.c.bf16 %v294, %v292
  %v323 = vpack.c.bf16 %v297, %v295
  %v324 = vpack.c.bf16 %v298, %v296
  %v325 = vpack.c.bf16 %v301, %v299
  %v326 = vpack.c.bf16 %v302, %v300
  %v327 = vpack.c.bf16 %v305, %v303
  %v328 = vpack.c.bf16 %v306, %v304
  %v329 = vpack.c.bf16 %v309, %v307
  %v330 = vpack.c.bf16 %v310, %v308
  %v331 = vpack.c.bf16 %v313, %v311
  %v332 = vpack.c.bf16 %v314, %v312
  %v333 = vpack.c.bf16 %v317, %v315
  %v334 = vpack.c.bf16 %v318, %v316
  %v335 = vld [vmem:[%s1] sm:$0xff]
  %v336 = vld [vmem:[%s1 + $0x8] sm:$0xff]
  %v337 = vld [vmem:[%s1 + $0x10] sm:$0xff]
  %v338 = vld [vmem:[%s1 + $0x18] sm:$0xff]
  %v339 = vld [vmem:[%s1 + $0x20] sm:$0xff]
  %v340 = vld [vmem:[%s1 + $0x28] sm:$0xff]
  %v341 = vld [vmem:[%s1 + $0x30] sm:$0xff]
  %v342 = vld [vmem:[%s1 + $0x38] sm:$0xff]
  %v343 = vld [vmem:[%s1 + $0x40] sm:$0xff]
  %v344 = vld [vmem:[%s1 + $0x48] sm:$0xff]
  %v345 = vld [vmem:[%s1 + $0x50] sm:$0xff]
  %v346 = vld [vmem:[%s1 + $0x58] sm:$0xff]
  %v347 = vld [vmem:[%s1 + $0x60] sm:$0xff]
  %v348 = vld [vmem:[%s1 + $0x68] sm:$0xff]
  %v349 = vld [vmem:[%s1 + $0x70] sm:$0xff]
  %v350 = vld [vmem:[%s1 + $0x78] sm:$0xff]
  %v351 = vld [vmem:[%s1 + $0x80] sm:$0xff]
  %v352 = vld [vmem:[%s1 + $0x88] sm:$0xff]
  %v353 = vld [vmem:[%s1 + $0x90] sm:$0xff]
  %v354 = vld [vmem:[%s1 + $0x98] sm:$0xff]
  %v355 = vld [vmem:[%s1 + $0xa0] sm:$0xff]
  %v356 = vld [vmem:[%s1 + $0xa8] sm:$0xff]
  %v357 = vld [vmem:[%s1 + $0xb0] sm:$0xff]
  %v358 = vld [vmem:[%s1 + $0xb8] sm:$0xff]
  %v359 = vld [vmem:[%s1 + $0xc0] sm:$0xff]
  %v360 = vld [vmem:[%s1 + $0xc8] sm:$0xff]
  %v361 = vld [vmem:[%s1 + $0xd0] sm:$0xff]
  %v362 = vld [vmem:[%s1 + $0xd8] sm:$0xff]
  %v363 = vld [vmem:[%s1 + $0xe0] sm:$0xff]
  %v364 = vld [vmem:[%s1 + $0xe8] sm:$0xff]
  %v365 = vld [vmem:[%s1 + $0xf0] sm:$0xff]
  %v366 = vld [vmem:[%s1 + $0xf8] sm:$0xff]
  %v367 = vld [vmem:[%s1 + $0x100] sm:$0xff]
  %v368 = vld [vmem:[%s1 + $0x108] sm:$0xff]
  %v369 = vld [vmem:[%s1 + $0x110] sm:$0xff]
  %v370 = vld [vmem:[%s1 + $0x118] sm:$0xff]
  %v371 = vld [vmem:[%s1 + $0x120] sm:$0xff]
  %v372 = vld [vmem:[%s1 + $0x128] sm:$0xff]
  %v373 = vld [vmem:[%s1 + $0x130] sm:$0xff]
  %v374 = vld [vmem:[%s1 + $0x138] sm:$0xff]
  %v375 = vld [vmem:[%s1 + $0x140] sm:$0xff]
  %v376 = vld [vmem:[%s1 + $0x148] sm:$0xff]
  %v377 = vld [vmem:[%s1 + $0x150] sm:$0xff]
  %v378 = vld [vmem:[%s1 + $0x158] sm:$0xff]
  %v379 = vld [vmem:[%s1 + $0x160] sm:$0xff]
  %v380 = vld [vmem:[%s1 + $0x168] sm:$0xff]
  %v381 = vld [vmem:[%s1 + $0x170] sm:$0xff]
  %v382 = vld [vmem:[%s1 + $0x178] sm:$0xff]
  %v383 = vld [vmem:[%s1 + $0x180] sm:$0xff]
  %v384 = vld [vmem:[%s1 + $0x188] sm:$0xff]
  %v385 = vld [vmem:[%s1 + $0x190] sm:$0xff]
  %v386 = vld [vmem:[%s1 + $0x198] sm:$0xff]
  %v387 = vld [vmem:[%s1 + $0x1a0] sm:$0xff]
  %v388 = vld [vmem:[%s1 + $0x1a8] sm:$0xff]
  %v389 = vld [vmem:[%s1 + $0x1b0] sm:$0xff]
  %v390 = vld [vmem:[%s1 + $0x1b8] sm:$0xff]
  %v391 = vld [vmem:[%s1 + $0x1c0] sm:$0xff]
  %v392 = vld [vmem:[%s1 + $0x1c8] sm:$0xff]
  %v393 = vld [vmem:[%s1 + $0x1d0] sm:$0xff]
  %v394 = vld [vmem:[%s1 + $0x1d8] sm:$0xff]
  %v395 = vld [vmem:[%s1 + $0x1e0] sm:$0xff]
  %v396 = vld [vmem:[%s1 + $0x1e8] sm:$0xff]
  %v397 = vld [vmem:[%s1 + $0x1f0] sm:$0xff]
  %v398 = vld [vmem:[%s1 + $0x1f8] sm:$0xff]
  %v399 = vld [vmem:[%s1 + $0x200] sm:$0xff]
  %v400 = vld [vmem:[%s1 + $0x208] sm:$0xff]
  %v401 = vld [vmem:[%s1 + $0x210] sm:$0xff]
  %v402 = vld [vmem:[%s1 + $0x218] sm:$0xff]
  %v403 = vld [vmem:[%s1 + $0x220] sm:$0xff]
  %v404 = vld [vmem:[%s1 + $0x228] sm:$0xff]
  %v405 = vld [vmem:[%s1 + $0x230] sm:$0xff]
  %v406 = vld [vmem:[%s1 + $0x238] sm:$0xff]
  %v407 = vld [vmem:[%s1 + $0x240] sm:$0xff]
  %v408 = vld [vmem:[%s1 + $0x248] sm:$0xff]
  %v409 = vld [vmem:[%s1 + $0x250] sm:$0xff]
  %v410 = vld [vmem:[%s1 + $0x258] sm:$0xff]
  %v411 = vld [vmem:[%s1 + $0x260] sm:$0xff]
  %v412 = vld [vmem:[%s1 + $0x268] sm:$0xff]
  %v413 = vld [vmem:[%s1 + $0x270] sm:$0xff]
  %v414 = vld [vmem:[%s1 + $0x278] sm:$0xff]
  %v415 = vld [vmem:[%s1 + $0x280] sm:$0xff]
  %v416 = vld [vmem:[%s1 + $0x288] sm:$0xff]
  %v417 = vld [vmem:[%s1 + $0x290] sm:$0xff]
  %v418 = vld [vmem:[%s1 + $0x298] sm:$0xff]
  %v419 = vld [vmem:[%s1 + $0x2a0] sm:$0xff]
  %v420 = vld [vmem:[%s1 + $0x2a8] sm:$0xff]
  %v421 = vld [vmem:[%s1 + $0x2b0] sm:$0xff]
  %v422 = vld [vmem:[%s1 + $0x2b8] sm:$0xff]
  %v423 = vld [vmem:[%s1 + $0x2c0] sm:$0xff]
  %v424 = vld [vmem:[%s1 + $0x2c8] sm:$0xff]
  %v425 = vld [vmem:[%s1 + $0x2d0] sm:$0xff]
  %v426 = vld [vmem:[%s1 + $0x2d8] sm:$0xff]
  %v427 = vld [vmem:[%s1 + $0x2e0] sm:$0xff]
  %v428 = vld [vmem:[%s1 + $0x2e8] sm:$0xff]
  %v429 = vld [vmem:[%s1 + $0x2f0] sm:$0xff]
  %v430 = vld [vmem:[%s1 + $0x2f8] sm:$0xff]
  %v431 = vld [vmem:[%s1 + $0x300] sm:$0xff]
  %v432 = vld [vmem:[%s1 + $0x308] sm:$0xff]
  %v433 = vld [vmem:[%s1 + $0x310] sm:$0xff]
  %v434 = vld [vmem:[%s1 + $0x318] sm:$0xff]
  %v435 = vld [vmem:[%s1 + $0x320] sm:$0xff]
  %v436 = vld [vmem:[%s1 + $0x328] sm:$0xff]
  %v437 = vld [vmem:[%s1 + $0x330] sm:$0xff]
  %v438 = vld [vmem:[%s1 + $0x338] sm:$0xff]
  %v439 = vld [vmem:[%s1 + $0x340] sm:$0xff]
  %v440 = vld [vmem:[%s1 + $0x348] sm:$0xff]
  %v441 = vld [vmem:[%s1 + $0x350] sm:$0xff]
  %v442 = vld [vmem:[%s1 + $0x358] sm:$0xff]
  %v443 = vld [vmem:[%s1 + $0x360] sm:$0xff]
  %v444 = vld [vmem:[%s1 + $0x368] sm:$0xff]
  %v445 = vld [vmem:[%s1 + $0x370] sm:$0xff]
  %v446 = vld [vmem:[%s1 + $0x378] sm:$0xff]
  %v447 = vld [vmem:[%s1 + $0x380] sm:$0xff]
  %v448 = vld [vmem:[%s1 + $0x388] sm:$0xff]
  %v449 = vld [vmem:[%s1 + $0x390] sm:$0xff]
  %v450 = vld [vmem:[%s1 + $0x398] sm:$0xff]
  %v451 = vld [vmem:[%s1 + $0x3a0] sm:$0xff]
  %v452 = vld [vmem:[%s1 + $0x3a8] sm:$0xff]
  %v453 = vld [vmem:[%s1 + $0x3b0] sm:$0xff]
  %v454 = vld [vmem:[%s1 + $0x3b8] sm:$0xff]
  %v455 = vld [vmem:[%s1 + $0x3c0] sm:$0xff]
  %v456 = vld [vmem:[%s1 + $0x3c8] sm:$0xff]
  %v457 = vld [vmem:[%s1 + $0x3d0] sm:$0xff]
  %v458 = vld [vmem:[%s1 + $0x3d8] sm:$0xff]
  %v459 = vld [vmem:[%s1 + $0x3e0] sm:$0xff]
  %v460 = vld [vmem:[%s1 + $0x3e8] sm:$0xff]
  %v461 = vld [vmem:[%s1 + $0x3f0] sm:$0xff]
  %v462 = vld [vmem:[%s1 + $0x3f8] sm:$0xff]
  %v463 = vld [vmem:[%s1 + $0x400] sm:$0xff]
  %v464 = vld [vmem:[%s1 + $0x408] sm:$0xff]
  %v465 = vld [vmem:[%s1 + $0x410] sm:$0xff]
  %v466 = vld [vmem:[%s1 + $0x418] sm:$0xff]
  %v467 = vld [vmem:[%s1 + $0x420] sm:$0xff]
  %v468 = vld [vmem:[%s1 + $0x428] sm:$0xff]
  %v469 = vld [vmem:[%s1 + $0x430] sm:$0xff]
  %v470 = vld [vmem:[%s1 + $0x438] sm:$0xff]
  %v471 = vld [vmem:[%s1 + $0x440] sm:$0xff]
  %v472 = vld [vmem:[%s1 + $0x448] sm:$0xff]
  %v473 = vld [vmem:[%s1 + $0x450] sm:$0xff]
  %v474 = vld [vmem:[%s1 + $0x458] sm:$0xff]
  %v475 = vld [vmem:[%s1 + $0x460] sm:$0xff]
  %v476 = vld [vmem:[%s1 + $0x468] sm:$0xff]
  %v477 = vld [vmem:[%s1 + $0x470] sm:$0xff]
  %v478 = vld [vmem:[%s1 + $0x478] sm:$0xff]
  %v479 = vld [vmem:[%s1 + $0x480] sm:$0xff]
  %v480 = vld [vmem:[%s1 + $0x488] sm:$0xff]
  %v481 = vld [vmem:[%s1 + $0x490] sm:$0xff]
  %v482 = vld [vmem:[%s1 + $0x498] sm:$0xff]
  %v483 = vld [vmem:[%s1 + $0x4a0] sm:$0xff]
  %v484 = vld [vmem:[%s1 + $0x4a8] sm:$0xff]
  %v485 = vld [vmem:[%s1 + $0x4b0] sm:$0xff]
  %v486 = vld [vmem:[%s1 + $0x4b8] sm:$0xff]
  %v487 = vld [vmem:[%s1 + $0x4c0] sm:$0xff]
  %v488 = vld [vmem:[%s1 + $0x4c8] sm:$0xff]
  %v489 = vld [vmem:[%s1 + $0x4d0] sm:$0xff]
  %v490 = vld [vmem:[%s1 + $0x4d8] sm:$0xff]
  %v491 = vld [vmem:[%s1 + $0x4e0] sm:$0xff]
  %v492 = vld [vmem:[%s1 + $0x4e8] sm:$0xff]
  %v493 = vld [vmem:[%s1 + $0x4f0] sm:$0xff]
  %v494 = vld [vmem:[%s1 + $0x4f8] sm:$0xff]
  %v495 = vld [vmem:[%s1 + $0x500] sm:$0xff]
  %v496 = vld [vmem:[%s1 + $0x508] sm:$0xff]
  %v497 = vld [vmem:[%s1 + $0x510] sm:$0xff]
  %v498 = vld [vmem:[%s1 + $0x518] sm:$0xff]
  %v499 = vld [vmem:[%s1 + $0x520] sm:$0xff]
  %v500 = vld [vmem:[%s1 + $0x528] sm:$0xff]
  %v501 = vld [vmem:[%s1 + $0x530] sm:$0xff]
  %v502 = vld [vmem:[%s1 + $0x538] sm:$0xff]
  %v503 = vld [vmem:[%s1 + $0x540] sm:$0xff]
  %v504 = vld [vmem:[%s1 + $0x548] sm:$0xff]
  %v505 = vld [vmem:[%s1 + $0x550] sm:$0xff]
  %v506 = vld [vmem:[%s1 + $0x558] sm:$0xff]
  %v507 = vld [vmem:[%s1 + $0x560] sm:$0xff]
  %v508 = vld [vmem:[%s1 + $0x568] sm:$0xff]
  %v509 = vld [vmem:[%s1 + $0x570] sm:$0xff]
  %v510 = vld [vmem:[%s1 + $0x578] sm:$0xff]
  %v511 = vld [vmem:[%s1 + $0x580] sm:$0xff]
  %v512 = vld [vmem:[%s1 + $0x588] sm:$0xff]
  %v513 = vld [vmem:[%s1 + $0x590] sm:$0xff]
  %v514 = vld [vmem:[%s1 + $0x598] sm:$0xff]
  %v515 = vld [vmem:[%s1 + $0x5a0] sm:$0xff]
  %v516 = vld [vmem:[%s1 + $0x5a8] sm:$0xff]
  %v517 = vld [vmem:[%s1 + $0x5b0] sm:$0xff]
  %v518 = vld [vmem:[%s1 + $0x5b8] sm:$0xff]
  %v519 = vld [vmem:[%s1 + $0x5c0] sm:$0xff]
  %v520 = vld [vmem:[%s1 + $0x5c8] sm:$0xff]
  %v521 = vld [vmem:[%s1 + $0x5d0] sm:$0xff]
  %v522 = vld [vmem:[%s1 + $0x5d8] sm:$0xff]
  %v523 = vld [vmem:[%s1 + $0x5e0] sm:$0xff]
  %v524 = vld [vmem:[%s1 + $0x5e8] sm:$0xff]
  %v525 = vld [vmem:[%s1 + $0x5f0] sm:$0xff]
  %v526 = vld [vmem:[%s1 + $0x5f8] sm:$0xff]
  %v527 = vld [vmem:[%s2] sm:$0xff]
  %v528 = vld [vmem:[%s2 + $0x8] sm:$0xf]
  %v531 = vlaneseq
  %v532 = vshrl.u32 %v531, 7
  %v533 = vsub.s32 0, %v532
  %v534 = vrot.slane %v527, %v533
  %v535 = vlaneseq
  %v536 = vshrl.u32 %v535, 7
  %v537 = vsub.s32 1, %v536
  %v538 = vrot.slane %v527, %v537
  %v539 = vlaneseq
  %v540 = vshrl.u32 %v539, 7
  %v541 = vsub.s32 2, %v540
  %v542 = vrot.slane %v527, %v541
  %v543 = vlaneseq
  %v544 = vshrl.u32 %v543, 7
  %v545 = vsub.s32 3, %v544
  %v546 = vrot.slane %v527, %v545
  %v547 = vlaneseq
  %v548 = vshrl.u32 %v547, 7
  %v549 = vsub.s32 4, %v548
  %v550 = vrot.slane %v527, %v549
  %v551 = vlaneseq
  %v552 = vshrl.u32 %v551, 7
  %v553 = vsub.s32 5, %v552
  %v554 = vrot.slane %v527, %v553
  %v555 = vlaneseq
  %v556 = vshrl.u32 %v555, 7
  %v557 = vsub.s32 6, %v556
  %v558 = vrot.slane %v527, %v557
  %v559 = vlaneseq
  %v560 = vshrl.u32 %v559, 7
  %v561 = vsub.s32 7, %v560
  %v562 = vrot.slane %v527, %v561
  %v563 = vlaneseq
  %v564 = vshrl.u32 %v563, 7
  %v565 = vsub.s32 0, %v564
  %v566 = vrot.slane %v528, %v565
  %v567 = vlaneseq
  %v568 = vshrl.u32 %v567, 7
  %v569 = vsub.s32 1, %v568
  %v570 = vrot.slane %v528, %v569
  %v571 = vlaneseq
  %v572 = vshrl.u32 %v571, 7
  %v573 = vsub.s32 2, %v572
  %v574 = vrot.slane %v528, %v573
  %v575 = vlaneseq
  %v576 = vshrl.u32 %v575, 7
  %v577 = vsub.s32 3, %v576
  %v578 = vrot.slane %v528, %v577
  %v783 = vunpack.c.l.b16 %v335
  %v784 = vunpack.c.h.b16 %v335
  %v785 = vunpack.c.l.b16 %v336
  %v786 = vunpack.c.h.b16 %v336
  %v787 = vunpack.c.l.b16 %v337
  %v788 = vunpack.c.h.b16 %v337
  %v789 = vunpack.c.l.b16 %v338
  %v790 = vunpack.c.h.b16 %v338
  %v791 = vunpack.c.l.b16 %v339
  %v792 = vunpack.c.h.b16 %v339
  %v793 = vunpack.c.l.b16 %v340
  %v794 = vunpack.c.h.b16 %v340
  %v795 = vunpack.c.l.b16 %v341
  %v796 = vunpack.c.h.b16 %v341
  %v797 = vunpack.c.l.b16 %v342
  %v798 = vunpack.c.h.b16 %v342
  %v799 = vunpack.c.l.b16 %v343
  %v800 = vunpack.c.h.b16 %v343
  %v801 = vunpack.c.l.b16 %v344
  %v802 = vunpack.c.h.b16 %v344
  %v803 = vunpack.c.l.b16 %v345
  %v804 = vunpack.c.h.b16 %v345
  %v805 = vunpack.c.l.b16 %v346
  %v806 = vunpack.c.h.b16 %v346
  %v807 = vunpack.c.l.b16 %v347
  %v808 = vunpack.c.h.b16 %v347
  %v809 = vunpack.c.l.b16 %v348
  %v810 = vunpack.c.h.b16 %v348
  %v811 = vunpack.c.l.b16 %v349
  %v812 = vunpack.c.h.b16 %v349
  %v813 = vunpack.c.l.b16 %v350
  %v814 = vunpack.c.h.b16 %v350
  %v815 = vunpack.c.l.b16 %v351
  %v816 = vunpack.c.h.b16 %v351
  %v817 = vunpack.c.l.b16 %v352
  %v818 = vunpack.c.h.b16 %v352
  %v819 = vunpack.c.l.b16 %v353
  %v820 = vunpack.c.h.b16 %v353
  %v821 = vunpack.c.l.b16 %v354
  %v822 = vunpack.c.h.b16 %v354
  %v823 = vunpack.c.l.b16 %v355
  %v824 = vunpack.c.h.b16 %v355
  %v825 = vunpack.c.l.b16 %v356
  %v826 = vunpack.c.h.b16 %v356
  %v827 = vunpack.c.l.b16 %v357
  %v828 = vunpack.c.h.b16 %v357
  %v829 = vunpack.c.l.b16 %v358
  %v830 = vunpack.c.h.b16 %v358
  %v831 = vunpack.c.l.b16 %v359
  %v832 = vunpack.c.h.b16 %v359
  %v833 = vunpack.c.l.b16 %v360
  %v834 = vunpack.c.h.b16 %v360
  %v835 = vunpack.c.l.b16 %v361
  %v836 = vunpack.c.h.b16 %v361
  %v837 = vunpack.c.l.b16 %v362
  %v838 = vunpack.c.h.b16 %v362
  %v839 = vunpack.c.l.b16 %v363
  %v840 = vunpack.c.h.b16 %v363
  %v841 = vunpack.c.l.b16 %v364
  %v842 = vunpack.c.h.b16 %v364
  %v843 = vunpack.c.l.b16 %v365
  %v844 = vunpack.c.h.b16 %v365
  %v845 = vunpack.c.l.b16 %v366
  %v846 = vunpack.c.h.b16 %v366
  %v847 = vunpack.c.l.b16 %v367
  %v848 = vunpack.c.h.b16 %v367
  %v849 = vunpack.c.l.b16 %v368
  %v850 = vunpack.c.h.b16 %v368
  %v851 = vunpack.c.l.b16 %v369
  %v852 = vunpack.c.h.b16 %v369
  %v853 = vunpack.c.l.b16 %v370
  %v854 = vunpack.c.h.b16 %v370
  %v855 = vunpack.c.l.b16 %v371
  %v856 = vunpack.c.h.b16 %v371
  %v857 = vunpack.c.l.b16 %v372
  %v858 = vunpack.c.h.b16 %v372
  %v859 = vunpack.c.l.b16 %v373
  %v860 = vunpack.c.h.b16 %v373
  %v861 = vunpack.c.l.b16 %v374
  %v862 = vunpack.c.h.b16 %v374
  %v863 = vunpack.c.l.b16 %v375
  %v864 = vunpack.c.h.b16 %v375
  %v865 = vunpack.c.l.b16 %v376
  %v866 = vunpack.c.h.b16 %v376
  %v867 = vunpack.c.l.b16 %v377
  %v868 = vunpack.c.h.b16 %v377
  %v869 = vunpack.c.l.b16 %v378
  %v870 = vunpack.c.h.b16 %v378
  %v871 = vunpack.c.l.b16 %v379
  %v872 = vunpack.c.h.b16 %v379
  %v873 = vunpack.c.l.b16 %v380
  %v874 = vunpack.c.h.b16 %v380
  %v875 = vunpack.c.l.b16 %v381
  %v876 = vunpack.c.h.b16 %v381
  %v877 = vunpack.c.l.b16 %v382
  %v878 = vunpack.c.h.b16 %v382
  %v879 = vunpack.c.l.b16 %v383
  %v880 = vunpack.c.h.b16 %v383
  %v881 = vunpack.c.l.b16 %v384
  %v882 = vunpack.c.h.b16 %v384
  %v883 = vunpack.c.l.b16 %v385
  %v884 = vunpack.c.h.b16 %v385
  %v885 = vunpack.c.l.b16 %v386
  %v886 = vunpack.c.h.b16 %v386
  %v887 = vunpack.c.l.b16 %v387
  %v888 = vunpack.c.h.b16 %v387
  %v889 = vunpack.c.l.b16 %v388
  %v890 = vunpack.c.h.b16 %v388
  %v891 = vunpack.c.l.b16 %v389
  %v892 = vunpack.c.h.b16 %v389
  %v893 = vunpack.c.l.b16 %v390
  %v894 = vunpack.c.h.b16 %v390
  %v895 = vunpack.c.l.b16 %v391
  %v896 = vunpack.c.h.b16 %v391
  %v897 = vunpack.c.l.b16 %v392
  %v898 = vunpack.c.h.b16 %v392
  %v899 = vunpack.c.l.b16 %v393
  %v900 = vunpack.c.h.b16 %v393
  %v901 = vunpack.c.l.b16 %v394
  %v902 = vunpack.c.h.b16 %v394
  %v903 = vunpack.c.l.b16 %v395
  %v904 = vunpack.c.h.b16 %v395
  %v905 = vunpack.c.l.b16 %v396
  %v906 = vunpack.c.h.b16 %v396
  %v907 = vunpack.c.l.b16 %v397
  %v908 = vunpack.c.h.b16 %v397
  %v909 = vunpack.c.l.b16 %v398
  %v910 = vunpack.c.h.b16 %v398
  %v911 = vunpack.c.l.b16 %v399
  %v912 = vunpack.c.h.b16 %v399
  %v913 = vunpack.c.l.b16 %v400
  %v914 = vunpack.c.h.b16 %v400
  %v915 = vunpack.c.l.b16 %v401
  %v916 = vunpack.c.h.b16 %v401
  %v917 = vunpack.c.l.b16 %v402
  %v918 = vunpack.c.h.b16 %v402
  %v919 = vunpack.c.l.b16 %v403
  %v920 = vunpack.c.h.b16 %v403
  %v921 = vunpack.c.l.b16 %v404
  %v922 = vunpack.c.h.b16 %v404
  %v923 = vunpack.c.l.b16 %v405
  %v924 = vunpack.c.h.b16 %v405
  %v925 = vunpack.c.l.b16 %v406
  %v926 = vunpack.c.h.b16 %v406
  %v927 = vunpack.c.l.b16 %v407
  %v928 = vunpack.c.h.b16 %v407
  %v929 = vunpack.c.l.b16 %v408
  %v930 = vunpack.c.h.b16 %v408
  %v931 = vunpack.c.l.b16 %v409
  %v932 = vunpack.c.h.b16 %v409
  %v933 = vunpack.c.l.b16 %v410
  %v934 = vunpack.c.h.b16 %v410
  %v935 = vunpack.c.l.b16 %v411
  %v936 = vunpack.c.h.b16 %v411
  %v937 = vunpack.c.l.b16 %v412
  %v938 = vunpack.c.h.b16 %v412
  %v939 = vunpack.c.l.b16 %v413
  %v940 = vunpack.c.h.b16 %v413
  %v941 = vunpack.c.l.b16 %v414
  %v942 = vunpack.c.h.b16 %v414
  %v943 = vunpack.c.l.b16 %v415
  %v944 = vunpack.c.h.b16 %v415
  %v945 = vunpack.c.l.b16 %v416
  %v946 = vunpack.c.h.b16 %v416
  %v947 = vunpack.c.l.b16 %v417
  %v948 = vunpack.c.h.b16 %v417
  %v949 = vunpack.c.l.b16 %v418
  %v950 = vunpack.c.h.b16 %v418
  %v951 = vunpack.c.l.b16 %v419
  %v952 = vunpack.c.h.b16 %v419
  %v953 = vunpack.c.l.b16 %v420
  %v954 = vunpack.c.h.b16 %v420
  %v955 = vunpack.c.l.b16 %v421
  %v956 = vunpack.c.h.b16 %v421
  %v957 = vunpack.c.l.b16 %v422
  %v958 = vunpack.c.h.b16 %v422
  %v959 = vunpack.c.l.b16 %v423
  %v960 = vunpack.c.h.b16 %v423
  %v961 = vunpack.c.l.b16 %v424
  %v962 = vunpack.c.h.b16 %v424
  %v963 = vunpack.c.l.b16 %v425
  %v964 = vunpack.c.h.b16 %v425
  %v965 = vunpack.c.l.b16 %v426
  %v966 = vunpack.c.h.b16 %v426
  %v967 = vunpack.c.l.b16 %v427
  %v968 = vunpack.c.h.b16 %v427
  %v969 = vunpack.c.l.b16 %v428
  %v970 = vunpack.c.h.b16 %v428
  %v971 = vunpack.c.l.b16 %v429
  %v972 = vunpack.c.h.b16 %v429
  %v973 = vunpack.c.l.b16 %v430
  %v974 = vunpack.c.h.b16 %v430
  %v975 = vunpack.c.l.b16 %v431
  %v976 = vunpack.c.h.b16 %v431
  %v977 = vunpack.c.l.b16 %v432
  %v978 = vunpack.c.h.b16 %v432
  %v979 = vunpack.c.l.b16 %v433
  %v980 = vunpack.c.h.b16 %v433
  %v981 = vunpack.c.l.b16 %v434
  %v982 = vunpack.c.h.b16 %v434
  %v983 = vunpack.c.l.b16 %v435
  %v984 = vunpack.c.h.b16 %v435
  %v985 = vunpack.c.l.b16 %v436
  %v986 = vunpack.c.h.b16 %v436
  %v987 = vunpack.c.l.b16 %v437
  %v988 = vunpack.c.h.b16 %v437
  %v989 = vunpack.c.l.b16 %v438
  %v990 = vunpack.c.h.b16 %v438
  %v991 = vunpack.c.l.b16 %v439
  %v992 = vunpack.c.h.b16 %v439
  %v993 = vunpack.c.l.b16 %v440
  %v994 = vunpack.c.h.b16 %v440
  %v995 = vunpack.c.l.b16 %v441
  %v996 = vunpack.c.h.b16 %v441
  %v997 = vunpack.c.l.b16 %v442
  %v998 = vunpack.c.h.b16 %v442
  %v999 = vunpack.c.l.b16 %v443
  %v1000 = vunpack.c.h.b16 %v443
  %v1001 = vunpack.c.l.b16 %v444
  %v1002 = vunpack.c.h.b16 %v444
  %v1003 = vunpack.c.l.b16 %v445
  %v1004 = vunpack.c.h.b16 %v445
  %v1005 = vunpack.c.l.b16 %v446
  %v1006 = vunpack.c.h.b16 %v446
  %v1007 = vunpack.c.l.b16 %v447
  %v1008 = vunpack.c.h.b16 %v447
  %v1009 = vunpack.c.l.b16 %v448
  %v1010 = vunpack.c.h.b16 %v448
  %v1011 = vunpack.c.l.b16 %v449
  %v1012 = vunpack.c.h.b16 %v449
  %v1013 = vunpack.c.l.b16 %v450
  %v1014 = vunpack.c.h.b16 %v450
  %v1015 = vunpack.c.l.b16 %v451
  %v1016 = vunpack.c.h.b16 %v451
  %v1017 = vunpack.c.l.b16 %v452
  %v1018 = vunpack.c.h.b16 %v452
  %v1019 = vunpack.c.l.b16 %v453
  %v1020 = vunpack.c.h.b16 %v453
  %v1021 = vunpack.c.l.b16 %v454
  %v1022 = vunpack.c.h.b16 %v454
  %v1023 = vunpack.c.l.b16 %v455
  %v1024 = vunpack.c.h.b16 %v455
  %v1025 = vunpack.c.l.b16 %v456
  %v1026 = vunpack.c.h.b16 %v456
  %v1027 = vunpack.c.l.b16 %v457
  %v1028 = vunpack.c.h.b16 %v457
  %v1029 = vunpack.c.l.b16 %v458
  %v1030 = vunpack.c.h.b16 %v458
  %v1031 = vunpack.c.l.b16 %v459
  %v1032 = vunpack.c.h.b16 %v459
  %v1033 = vunpack.c.l.b16 %v460
  %v1034 = vunpack.c.h.b16 %v460
  %v1035 = vunpack.c.l.b16 %v461
  %v1036 = vunpack.c.h.b16 %v461
  %v1037 = vunpack.c.l.b16 %v462
  %v1038 = vunpack.c.h.b16 %v462
  %v1039 = vunpack.c.l.b16 %v463
  %v1040 = vunpack.c.h.b16 %v463
  %v1041 = vunpack.c.l.b16 %v464
  %v1042 = vunpack.c.h.b16 %v464
  %v1043 = vunpack.c.l.b16 %v465
  %v1044 = vunpack.c.h.b16 %v465
  %v1045 = vunpack.c.l.b16 %v466
  %v1046 = vunpack.c.h.b16 %v466
  %v1047 = vunpack.c.l.b16 %v467
  %v1048 = vunpack.c.h.b16 %v467
  %v1049 = vunpack.c.l.b16 %v468
  %v1050 = vunpack.c.h.b16 %v468
  %v1051 = vunpack.c.l.b16 %v469
  %v1052 = vunpack.c.h.b16 %v469
  %v1053 = vunpack.c.l.b16 %v470
  %v1054 = vunpack.c.h.b16 %v470
  %v1055 = vunpack.c.l.b16 %v471
  %v1056 = vunpack.c.h.b16 %v471
  %v1057 = vunpack.c.l.b16 %v472
  %v1058 = vunpack.c.h.b16 %v472
  %v1059 = vunpack.c.l.b16 %v473
  %v1060 = vunpack.c.h.b16 %v473
  %v1061 = vunpack.c.l.b16 %v474
  %v1062 = vunpack.c.h.b16 %v474
  %v1063 = vunpack.c.l.b16 %v475
  %v1064 = vunpack.c.h.b16 %v475
  %v1065 = vunpack.c.l.b16 %v476
  %v1066 = vunpack.c.h.b16 %v476
  %v1067 = vunpack.c.l.b16 %v477
  %v1068 = vunpack.c.h.b16 %v477
  %v1069 = vunpack.c.l.b16 %v478
  %v1070 = vunpack.c.h.b16 %v478
  %v1071 = vunpack.c.l.b16 %v479
  %v1072 = vunpack.c.h.b16 %v479
  %v1073 = vunpack.c.l.b16 %v480
  %v1074 = vunpack.c.h.b16 %v480
  %v1075 = vunpack.c.l.b16 %v481
  %v1076 = vunpack.c.h.b16 %v481
  %v1077 = vunpack.c.l.b16 %v482
  %v1078 = vunpack.c.h.b16 %v482
  %v1079 = vunpack.c.l.b16 %v483
  %v1080 = vunpack.c.h.b16 %v483
  %v1081 = vunpack.c.l.b16 %v484
  %v1082 = vunpack.c.h.b16 %v484
  %v1083 = vunpack.c.l.b16 %v485
  %v1084 = vunpack.c.h.b16 %v485
  %v1085 = vunpack.c.l.b16 %v486
  %v1086 = vunpack.c.h.b16 %v486
  %v1087 = vunpack.c.l.b16 %v487
  %v1088 = vunpack.c.h.b16 %v487
  %v1089 = vunpack.c.l.b16 %v488
  %v1090 = vunpack.c.h.b16 %v488
  %v1091 = vunpack.c.l.b16 %v489
  %v1092 = vunpack.c.h.b16 %v489
  %v1093 = vunpack.c.l.b16 %v490
  %v1094 = vunpack.c.h.b16 %v490
  %v1095 = vunpack.c.l.b16 %v491
  %v1096 = vunpack.c.h.b16 %v491
  %v1097 = vunpack.c.l.b16 %v492
  %v1098 = vunpack.c.h.b16 %v492
  %v1099 = vunpack.c.l.b16 %v493
  %v1100 = vunpack.c.h.b16 %v493
  %v1101 = vunpack.c.l.b16 %v494
  %v1102 = vunpack.c.h.b16 %v494
  %v1103 = vunpack.c.l.b16 %v495
  %v1104 = vunpack.c.h.b16 %v495
  %v1105 = vunpack.c.l.b16 %v496
  %v1106 = vunpack.c.h.b16 %v496
  %v1107 = vunpack.c.l.b16 %v497
  %v1108 = vunpack.c.h.b16 %v497
  %v1109 = vunpack.c.l.b16 %v498
  %v1110 = vunpack.c.h.b16 %v498
  %v1111 = vunpack.c.l.b16 %v499
  %v1112 = vunpack.c.h.b16 %v499
  %v1113 = vunpack.c.l.b16 %v500
  %v1114 = vunpack.c.h.b16 %v500
  %v1115 = vunpack.c.l.b16 %v501
  %v1116 = vunpack.c.h.b16 %v501
  %v1117 = vunpack.c.l.b16 %v502
  %v1118 = vunpack.c.h.b16 %v502
  %v1119 = vunpack.c.l.b16 %v503
  %v1120 = vunpack.c.h.b16 %v503
  %v1121 = vunpack.c.l.b16 %v504
  %v1122 = vunpack.c.h.b16 %v504
  %v1123 = vunpack.c.l.b16 %v505
  %v1124 = vunpack.c.h.b16 %v505
  %v1125 = vunpack.c.l.b16 %v506
  %v1126 = vunpack.c.h.b16 %v506
  %v1127 = vunpack.c.l.b16 %v507
  %v1128 = vunpack.c.h.b16 %v507
  %v1129 = vunpack.c.l.b16 %v508
  %v1130 = vunpack.c.h.b16 %v508
  %v1131 = vunpack.c.l.b16 %v509
  %v1132 = vunpack.c.h.b16 %v509
  %v1133 = vunpack.c.l.b16 %v510
  %v1134 = vunpack.c.h.b16 %v510
  %v1135 = vunpack.c.l.b16 %v511
  %v1136 = vunpack.c.h.b16 %v511
  %v1137 = vunpack.c.l.b16 %v512
  %v1138 = vunpack.c.h.b16 %v512
  %v1139 = vunpack.c.l.b16 %v513
  %v1140 = vunpack.c.h.b16 %v513
  %v1141 = vunpack.c.l.b16 %v514
  %v1142 = vunpack.c.h.b16 %v514
  %v1143 = vunpack.c.l.b16 %v515
  %v1144 = vunpack.c.h.b16 %v515
  %v1145 = vunpack.c.l.b16 %v516
  %v1146 = vunpack.c.h.b16 %v516
  %v1147 = vunpack.c.l.b16 %v517
  %v1148 = vunpack.c.h.b16 %v517
  %v1149 = vunpack.c.l.b16 %v518
  %v1150 = vunpack.c.h.b16 %v518
  %v1151 = vunpack.c.l.b16 %v519
  %v1152 = vunpack.c.h.b16 %v519
  %v1153 = vunpack.c.l.b16 %v520
  %v1154 = vunpack.c.h.b16 %v520
  %v1155 = vunpack.c.l.b16 %v521
  %v1156 = vunpack.c.h.b16 %v521
  %v1157 = vunpack.c.l.b16 %v522
  %v1158 = vunpack.c.h.b16 %v522
  %v1159 = vunpack.c.l.b16 %v523
  %v1160 = vunpack.c.h.b16 %v523
  %v1161 = vunpack.c.l.b16 %v524
  %v1162 = vunpack.c.h.b16 %v524
  %v1163 = vunpack.c.l.b16 %v525
  %v1164 = vunpack.c.h.b16 %v525
  %v1165 = vunpack.c.l.b16 %v526
  %v1166 = vunpack.c.h.b16 %v526
  %v1167 = vpack.c.b16 %v795, %v783
  %v1168 = vpack.c.b16 %v796, %v784
  %v1169 = vpack.c.b16 %v797, %v785
  %v1170 = vpack.c.b16 %v798, %v786
  %v1171 = vpack.c.b16 %v799, %v787
  %v1172 = vpack.c.b16 %v800, %v788
  %v1173 = vpack.c.b16 %v801, %v789
  %v1174 = vpack.c.b16 %v802, %v790
  %v1175 = vpack.c.b16 %v803, %v791
  %v1176 = vpack.c.b16 %v804, %v792
  %v1177 = vpack.c.b16 %v805, %v793
  %v1178 = vpack.c.b16 %v806, %v794
  %v1179 = vpack.c.b16 %v819, %v807
  %v1180 = vpack.c.b16 %v820, %v808
  %v1181 = vpack.c.b16 %v821, %v809
  %v1182 = vpack.c.b16 %v822, %v810
  %v1183 = vpack.c.b16 %v823, %v811
  %v1184 = vpack.c.b16 %v824, %v812
  %v1185 = vpack.c.b16 %v825, %v813
  %v1186 = vpack.c.b16 %v826, %v814
  %v1187 = vpack.c.b16 %v827, %v815
  %v1188 = vpack.c.b16 %v828, %v816
  %v1189 = vpack.c.b16 %v829, %v817
  %v1190 = vpack.c.b16 %v830, %v818
  %v1191 = vpack.c.b16 %v843, %v831
  %v1192 = vpack.c.b16 %v844, %v832
  %v1193 = vpack.c.b16 %v845, %v833
  %v1194 = vpack.c.b16 %v846, %v834
  %v1195 = vpack.c.b16 %v847, %v835
  %v1196 = vpack.c.b16 %v848, %v836
  %v1197 = vpack.c.b16 %v849, %v837
  %v1198 = vpack.c.b16 %v850, %v838
  %v1199 = vpack.c.b16 %v851, %v839
  %v1200 = vpack.c.b16 %v852, %v840
  %v1201 = vpack.c.b16 %v853, %v841
  %v1202 = vpack.c.b16 %v854, %v842
  %v1203 = vpack.c.b16 %v867, %v855
  %v1204 = vpack.c.b16 %v868, %v856
  %v1205 = vpack.c.b16 %v869, %v857
  %v1206 = vpack.c.b16 %v870, %v858
  %v1207 = vpack.c.b16 %v871, %v859
  %v1208 = vpack.c.b16 %v872, %v860
  %v1209 = vpack.c.b16 %v873, %v861
  %v1210 = vpack.c.b16 %v874, %v862
  %v1211 = vpack.c.b16 %v875, %v863
  %v1212 = vpack.c.b16 %v876, %v864
  %v1213 = vpack.c.b16 %v877, %v865
  %v1214 = vpack.c.b16 %v878, %v866
  %v1215 = vpack.c.b16 %v891, %v879
  %v1216 = vpack.c.b16 %v892, %v880
  %v1217 = vpack.c.b16 %v893, %v881
  %v1218 = vpack.c.b16 %v894, %v882
  %v1219 = vpack.c.b16 %v895, %v883
  %v1220 = vpack.c.b16 %v896, %v884
  %v1221 = vpack.c.b16 %v897, %v885
  %v1222 = vpack.c.b16 %v898, %v886
  %v1223 = vpack.c.b16 %v899, %v887
  %v1224 = vpack.c.b16 %v900, %v888
  %v1225 = vpack.c.b16 %v901, %v889
  %v1226 = vpack.c.b16 %v902, %v890
  %v1227 = vpack.c.b16 %v915, %v903
  %v1228 = vpack.c.b16 %v916, %v904
  %v1229 = vpack.c.b16 %v917, %v905
  %v1230 = vpack.c.b16 %v918, %v906
  %v1231 = vpack.c.b16 %v919, %v907
  %v1232 = vpack.c.b16 %v920, %v908
  %v1233 = vpack.c.b16 %v921, %v909
  %v1234 = vpack.c.b16 %v922, %v910
  %v1235 = vpack.c.b16 %v923, %v911
  %v1236 = vpack.c.b16 %v924, %v912
  %v1237 = vpack.c.b16 %v925, %v913
  %v1238 = vpack.c.b16 %v926, %v914
  %v1239 = vpack.c.b16 %v939, %v927
  %v1240 = vpack.c.b16 %v940, %v928
  %v1241 = vpack.c.b16 %v941, %v929
  %v1242 = vpack.c.b16 %v942, %v930
  %v1243 = vpack.c.b16 %v943, %v931
  %v1244 = vpack.c.b16 %v944, %v932
  %v1245 = vpack.c.b16 %v945, %v933
  %v1246 = vpack.c.b16 %v946, %v934
  %v1247 = vpack.c.b16 %v947, %v935
  %v1248 = vpack.c.b16 %v948, %v936
  %v1249 = vpack.c.b16 %v949, %v937
  %v1250 = vpack.c.b16 %v950, %v938
  %v1251 = vpack.c.b16 %v963, %v951
  %v1252 = vpack.c.b16 %v964, %v952
  %v1253 = vpack.c.b16 %v965, %v953
  %v1254 = vpack.c.b16 %v966, %v954
  %v1255 = vpack.c.b16 %v967, %v955
  %v1256 = vpack.c.b16 %v968, %v956
  %v1257 = vpack.c.b16 %v969, %v957
  %v1258 = vpack.c.b16 %v970, %v958
  %v1259 = vpack.c.b16 %v971, %v959
  %v1260 = vpack.c.b16 %v972, %v960
  %v1261 = vpack.c.b16 %v973, %v961
  %v1262 = vpack.c.b16 %v974, %v962
  %v1263 = vpack.c.b16 %v987, %v975
  %v1264 = vpack.c.b16 %v988, %v976
  %v1265 = vpack.c.b16 %v989, %v977
  %v1266 = vpack.c.b16 %v990, %v978
  %v1267 = vpack.c.b16 %v991, %v979
  %v1268 = vpack.c.b16 %v992, %v980
  %v1269 = vpack.c.b16 %v993, %v981
  %v1270 = vpack.c.b16 %v994, %v982
  %v1271 = vpack.c.b16 %v995, %v983
  %v1272 = vpack.c.b16 %v996, %v984
  %v1273 = vpack.c.b16 %v997, %v985
  %v1274 = vpack.c.b16 %v998, %v986
  %v1275 = vpack.c.b16 %v1011, %v999
  %v1276 = vpack.c.b16 %v1012, %v1000
  %v1277 = vpack.c.b16 %v1013, %v1001
  %v1278 = vpack.c.b16 %v1014, %v1002
  %v1279 = vpack.c.b16 %v1015, %v1003
  %v1280 = vpack.c.b16 %v1016, %v1004
  %v1281 = vpack.c.b16 %v1017, %v1005
  %v1282 = vpack.c.b16 %v1018, %v1006
  %v1283 = vpack.c.b16 %v1019, %v1007
  %v1284 = vpack.c.b16 %v1020, %v1008
  %v1285 = vpack.c.b16 %v1021, %v1009
  %v1286 = vpack.c.b16 %v1022, %v1010
  %v1287 = vpack.c.b16 %v1035, %v1023
  %v1288 = vpack.c.b16 %v1036, %v1024
  %v1289 = vpack.c.b16 %v1037, %v1025
  %v1290 = vpack.c.b16 %v1038, %v1026
  %v1291 = vpack.c.b16 %v1039, %v1027
  %v1292 = vpack.c.b16 %v1040, %v1028
  %v1293 = vpack.c.b16 %v1041, %v1029
  %v1294 = vpack.c.b16 %v1042, %v1030
  %v1295 = vpack.c.b16 %v1043, %v1031
  %v1296 = vpack.c.b16 %v1044, %v1032
  %v1297 = vpack.c.b16 %v1045, %v1033
  %v1298 = vpack.c.b16 %v1046, %v1034
  %v1299 = vpack.c.b16 %v1059, %v1047
  %v1300 = vpack.c.b16 %v1060, %v1048
  %v1301 = vpack.c.b16 %v1061, %v1049
  %v1302 = vpack.c.b16 %v1062, %v1050
  %v1303 = vpack.c.b16 %v1063, %v1051
  %v1304 = vpack.c.b16 %v1064, %v1052
  %v1305 = vpack.c.b16 %v1065, %v1053
  %v1306 = vpack.c.b16 %v1066, %v1054
  %v1307 = vpack.c.b16 %v1067, %v1055
  %v1308 = vpack.c.b16 %v1068, %v1056
  %v1309 = vpack.c.b16 %v1069, %v1057
  %v1310 = vpack.c.b16 %v1070, %v1058
  %v1311 = vpack.c.b16 %v1083, %v1071
  %v1312 = vpack.c.b16 %v1084, %v1072
  %v1313 = vpack.c.b16 %v1085, %v1073
  %v1314 = vpack.c.b16 %v1086, %v1074
  %v1315 = vpack.c.b16 %v1087, %v1075
  %v1316 = vpack.c.b16 %v1088, %v1076
  %v1317 = vpack.c.b16 %v1089, %v1077
  %v1318 = vpack.c.b16 %v1090, %v1078
  %v1319 = vpack.c.b16 %v1091, %v1079
  %v1320 = vpack.c.b16 %v1092, %v1080
  %v1321 = vpack.c.b16 %v1093, %v1081
  %v1322 = vpack.c.b16 %v1094, %v1082
  %v1323 = vpack.c.b16 %v1107, %v1095
  %v1324 = vpack.c.b16 %v1108, %v1096
  %v1325 = vpack.c.b16 %v1109, %v1097
  %v1326 = vpack.c.b16 %v1110, %v1098
  %v1327 = vpack.c.b16 %v1111, %v1099
  %v1328 = vpack.c.b16 %v1112, %v1100
  %v1329 = vpack.c.b16 %v1113, %v1101
  %v1330 = vpack.c.b16 %v1114, %v1102
  %v1331 = vpack.c.b16 %v1115, %v1103
  %v1332 = vpack.c.b16 %v1116, %v1104
  %v1333 = vpack.c.b16 %v1117, %v1105
  %v1334 = vpack.c.b16 %v1118, %v1106
  %v1335 = vpack.c.b16 %v1131, %v1119
  %v1336 = vpack.c.b16 %v1132, %v1120
  %v1337 = vpack.c.b16 %v1133, %v1121
  %v1338 = vpack.c.b16 %v1134, %v1122
  %v1339 = vpack.c.b16 %v1135, %v1123
  %v1340 = vpack.c.b16 %v1136, %v1124
  %v1341 = vpack.c.b16 %v1137, %v1125
  %v1342 = vpack.c.b16 %v1138, %v1126
  %v1343 = vpack.c.b16 %v1139, %v1127
  %v1344 = vpack.c.b16 %v1140, %v1128
  %v1345 = vpack.c.b16 %v1141, %v1129
  %v1346 = vpack.c.b16 %v1142, %v1130
  %v1347 = vpack.c.b16 %v1155, %v1143
  %v1348 = vpack.c.b16 %v1156, %v1144
  %v1349 = vpack.c.b16 %v1157, %v1145
  %v1350 = vpack.c.b16 %v1158, %v1146
  %v1351 = vpack.c.b16 %v1159, %v1147
  %v1352 = vpack.c.b16 %v1160, %v1148
  %v1353 = vpack.c.b16 %v1161, %v1149
  %v1354 = vpack.c.b16 %v1162, %v1150
  %v1355 = vpack.c.b16 %v1163, %v1151
  %v1356 = vpack.c.b16 %v1164, %v1152
  %v1357 = vpack.c.b16 %v1165, %v1153
  %v1358 = vpack.c.b16 %v1166, %v1154
  %1551 = vmatprep.subr.bf16.mxu0 %v1168
  %1552 = vmatpush1.bf16.msra.mxu0 %v1167
  %1553 = vmatprep.subr.bf16.mxu0 %v1180
  %1554 = vmatpush1.bf16.msra.mxu0 %v1179
  %1555 = vmatprep.subr.bf16.mxu0 %v1192
  %1556 = vmatpush1.bf16.msra.mxu0 %v1191
  %1557 = vmatprep.subr.bf16.mxu0 %v1204
  %1558 = vmatpush1.bf16.msra.mxu0 %v1203
  %1559 = vmatprep.subr.bf16.mxu0 %v1216
  %1560 = vmatpush1.bf16.msra.mxu0 %v1215
  %1561 = vmatprep.subr.bf16.mxu0 %v1228
  %1562 = vmatpush1.bf16.msra.mxu0 %v1227
  %1563 = vmatprep.subr.bf16.mxu0 %v1240
  %1564 = vmatpush1.bf16.msra.mxu0 %v1239
  %1565 = vmatprep.subr.bf16.mxu0 %v1252
  %1566 = vmatpush1.bf16.msra.mxu0 %v1251
  %1567 = vmatprep.subr.bf16.mxu0 %v1264
  %1568 = vmatpush1.bf16.msra.mxu0 %v1263
  %1569 = vmatprep.subr.bf16.mxu0 %v1276
  %1570 = vmatpush1.bf16.msra.mxu0 %v1275
  %1571 = vmatprep.subr.bf16.mxu0 %v1288
  %1572 = vmatpush1.bf16.msra.mxu0 %v1287
  %1573 = vmatprep.subr.bf16.mxu0 %v1300
  %1574 = vmatpush1.bf16.msra.mxu0 %v1299
  %1575 = vmatprep.subr.bf16.mxu0 %v1312
  %1576 = vmatpush1.bf16.msra.mxu0 %v1311
  %1577 = vmatprep.subr.bf16.mxu0 %v1324
  %1578 = vmatpush1.bf16.msra.mxu0 %v1323
  %1579 = vmatprep.subr.bf16.mxu0 %v1336
  %1580 = vmatpush1.bf16.msra.mxu0 %v1335
  %1581 = vmatprep.subr.bf16.mxu0 %v1348
  %1582 = vmatpush1.bf16.msra.mxu0 %v1347
  %1583 = vmatprep.mubr.bf16.mxu0 %v320
  %1584 = vmatmul.mubr.bf16.gmra.mrb[0].mxu0 %v319
  %v1585 = vpop.f32.mrb[0].mxu0
  %v1586 = vadd.f32 %v534, %v1585
  %v1587 = vpop.f32.mrb[0].mxu0
  %v1588 = vadd.f32 %v538, %v1587
  %v1589 = vpop.f32.mrb[0].mxu0
  %v1590 = vadd.f32 %v534, %v1589
  %v1591 = vpop.f32.mrb[0].mxu0
  %v1592 = vadd.f32 %v538, %v1591
  %1593 = vmatprep.mubr.bf16.mxu0 %v322
  %1594 = vmatmul.mubr.bf16.gmra.mrb[0].mxu0 %v321
  %v1595 = vpop.f32.mrb[0].mxu0
  %v1596 = vadd.f32 %v534, %v1595
  %v1597 = vpop.f32.mrb[0].mxu0
  %v1598 = vadd.f32 %v538, %v1597
  %v1599 = vpop.f32.mrb[0].mxu0
  %v1600 = vadd.f32 %v534, %v1599
  %v1601 = vpop.f32.mrb[0].mxu0
  %v1602 = vadd.f32 %v538, %v1601
  %1603 = vmatprep.mubr.bf16.mxu0 %v324
  %1604 = vmatmul.mubr.bf16.gmra.mrb[0].mxu0 %v323
  %v1605 = vpop.f32.mrb[0].mxu0
  %v1606 = vadd.f32 %v534, %v1605
  %v1607 = vpop.f32.mrb[0].mxu0
  %v1608 = vadd.f32 %v538, %v1607
  %v1609 = vpop.f32.mrb[0].mxu0
  %v1610 = vadd.f32 %v534, %v1609
  %v1611 = vpop.f32.mrb[0].mxu0
  %v1612 = vadd.f32 %v538, %v1611
  %1613 = vmatprep.mubr.bf16.mxu0 %v326
  %1614 = vmatmul.mubr.bf16.gmra.mrb[0].mxu0 %v325
  %v1615 = vpop.f32.mrb[0].mxu0
  %v1616 = vadd.f32 %v534, %v1615
  %v1617 = vpop.f32.mrb[0].mxu0
  %v1618 = vadd.f32 %v538, %v1617
  %v1619 = vpop.f32.mrb[0].mxu0
  %v1620 = vadd.f32 %v534, %v1619
  %v1621 = vpop.f32.mrb[0].mxu0
  %v1622 = vadd.f32 %v538, %v1621
  %1623 = vmatprep.mubr.bf16.mxu0 %v328
  %1624 = vmatmul.mubr.bf16.gmra.mrb[0].mxu0 %v327
  %v1625 = vpop.f32.mrb[0].mxu0
  %v1626 = vadd.f32 %v534, %v1625
  %v1627 = vpop.f32.mrb[0].mxu0
  %v1628 = vadd.f32 %v538, %v1627
  %v1629 = vpop.f32.mrb[0].mxu0
  %v1630 = vadd.f32 %v534, %v1629
  %v1631 = vpop.f32.mrb[0].mxu0
  %v1632 = vadd.f32 %v538, %v1631
  %1633 = vmatprep.mubr.bf16.mxu0 %v330
  %1634 = vmatmul.mubr.bf16.gmra.mrb[0].mxu0 %v329
  %v1635 = vpop.f32.mrb[0].mxu0
  %v1636 = vadd.f32 %v534, %v1635
  %v1637 = vpop.f32.mrb[0].mxu0
  %v1638 = vadd.f32 %v538, %v1637
  %v1639 = vpop.f32.mrb[0].mxu0
  %v1640 = vadd.f32 %v534, %v1639
  %v1641 = vpop.f32.mrb[0].mxu0
  %v1642 = vadd.f32 %v538, %v1641
  %1643 = vmatprep.mubr.bf16.mxu0 %v332
  %1644 = vmatmul.mubr.bf16.gmra.mrb[0].mxu0 %v331
  %v1645 = vpop.f32.mrb[0].mxu0
  %v1646 = vadd.f32 %v534, %v1645
  %v1647 = vpop.f32.mrb[0].mxu0
  %v1648 = vadd.f32 %v538, %v1647
  %v1649 = vpop.f32.mrb[0].mxu0
  %v1650 = vadd.f32 %v534, %v1649
  %v1651 = vpop.f32.mrb[0].mxu0
  %v1652 = vadd.f32 %v538, %v1651
  %1653 = vmatprep.mubr.bf16.mxu0 %v334
  %1654 = vmatmul.mubr.bf16.gmra.mrb[0].mxu0 %v333
  %v1655 = vpop.f32.mrb[0].mxu0
  %v1656 = vadd.f32 %v534, %v1655
  %v1657 = vpop.f32.mrb[0].mxu0
  %v1658 = vadd.f32 %v538, %v1657
  %v1659 = vpop.f32.mrb[0].mxu0
  %v1660 = vadd.f32 %v534, %v1659
  %v1661 = vpop.f32.mrb[0].mxu0
  %v1662 = vadd.f32 %v538, %v1661
  %1663 = vdwg.mxu0
  %1664 = vmatprep.subr.bf16.mxu0 %v1170
  %1665 = vmatpush1.bf16.msra.mxu0 %v1169
  %1666 = vmatprep.subr.bf16.mxu0 %v1182
  %1667 = vmatpush1.bf16.msra.mxu0 %v1181
  %1668 = vmatprep.subr.bf16.mxu0 %v1194
  %1669 = vmatpush1.bf16.msra.mxu0 %v1193
  %1670 = vmatprep.subr.bf16.mxu0 %v1206
  %1671 = vmatpush1.bf16.msra.mxu0 %v1205
  %1672 = vmatprep.subr.bf16.mxu0 %v1218
  %1673 = vmatpush1.bf16.msra.mxu0 %v1217
  %1674 = vmatprep.subr.bf16.mxu0 %v1230
  %1675 = vmatpush1.bf16.msra.mxu0 %v1229
  %1676 = vmatprep.subr.bf16.mxu0 %v1242
  %1677 = vmatpush1.bf16.msra.mxu0 %v1241
  %1678 = vmatprep.subr.bf16.mxu0 %v1254
  %1679 = vmatpush1.bf16.msra.mxu0 %v1253
  %1680 = vmatprep.subr.bf16.mxu0 %v1266
  %1681 = vmatpush1.bf16.msra.mxu0 %v1265
  %1682 = vmatprep.subr.bf16.mxu0 %v1278
  %1683 = vmatpush1.bf16.msra.mxu0 %v1277
  %1684 = vmatprep.subr.bf16.mxu0 %v1290
  %1685 = vmatpush1.bf16.msra.mxu0 %v1289
  %1686 = vmatprep.subr.bf16.mxu0 %v1302
  %1687 = vmatpush1.bf16.msra.mxu0 %v1301
  %1688 = vmatprep.subr.bf16.mxu0 %v1314
  %1689 = vmatpush1.bf16.msra.mxu0 %v1313
  %1690 = vmatprep.subr.bf16.mxu0 %v1326
  %1691 = vmatpush1.bf16.msra.mxu0 %v1325
  %1692 = vmatprep.subr.bf16.mxu0 %v1338
  %1693 = vmatpush1.bf16.msra.mxu0 %v1337
  %1694 = vmatprep.subr.bf16.mxu0 %v1350
  %1695 = vmatpush1.bf16.msra.mxu0 %v1349
  %1696 = vmatprep.mubr.bf16.mxu0 %v320
  %1697 = vmatmul.mubr.bf16.gmra.mrb[0].mxu0 %v319
  %v1698 = vpop.f32.mrb[0].mxu0
  %v1699 = vadd.f32 %v542, %v1698
  %v1700 = vpop.f32.mrb[0].mxu0
  %v1701 = vadd.f32 %v546, %v1700
  %v1702 = vpop.f32.mrb[0].mxu0
  %v1703 = vadd.f32 %v542, %v1702
  %v1704 = vpop.f32.mrb[0].mxu0
  %v1705 = vadd.f32 %v546, %v1704
  %1706 = vmatprep.mubr.bf16.mxu0 %v322
  %1707 = vmatmul.mubr.bf16.gmra.mrb[0].mxu0 %v321
  %v1708 = vpop.f32.mrb[0].mxu0
  %v1709 = vadd.f32 %v542, %v1708
  %v1710 = vpop.f32.mrb[0].mxu0
  %v1711 = vadd.f32 %v546, %v1710
  %v1712 = vpop.f32.mrb[0].mxu0
  %v1713 = vadd.f32 %v542, %v1712
  %v1714 = vpop.f32.mrb[0].mxu0
  %v1715 = vadd.f32 %v546, %v1714
  %1716 = vmatprep.mubr.bf16.mxu0 %v324
  %1717 = vmatmul.mubr.bf16.gmra.mrb[0].mxu0 %v323
  %v1718 = vpop.f32.mrb[0].mxu0
  %v1719 = vadd.f32 %v542, %v1718
  %v1720 = vpop.f32.mrb[0].mxu0
  %v1721 = vadd.f32 %v546, %v1720
  %v1722 = vpop.f32.mrb[0].mxu0
  %v1723 = vadd.f32 %v542, %v1722
  %v1724 = vpop.f32.mrb[0].mxu0
  %v1725 = vadd.f32 %v546, %v1724
  %1726 = vmatprep.mubr.bf16.mxu0 %v326
  %1727 = vmatmul.mubr.bf16.gmra.mrb[0].mxu0 %v325
  %v1728 = vpop.f32.mrb[0].mxu0
  %v1729 = vadd.f32 %v542, %v1728
  %v1730 = vpop.f32.mrb[0].mxu0
  %v1731 = vadd.f32 %v546, %v1730
  %v1732 = vpop.f32.mrb[0].mxu0
  %v1733 = vadd.f32 %v542, %v1732
  %v1734 = vpop.f32.mrb[0].mxu0
  %v1735 = vadd.f32 %v546, %v1734
  %1736 = vmatprep.mubr.bf16.mxu0 %v328
  %1737 = vmatmul.mubr.bf16.gmra.mrb[0].mxu0 %v327
  %v1738 = vpop.f32.mrb[0].mxu0
  %v1739 = vadd.f32 %v542, %v1738
  %v1740 = vpop.f32.mrb[0].mxu0
  %v1741 = vadd.f32 %v546, %v1740
  %v1742 = vpop.f32.mrb[0].mxu0
  %v1743 = vadd.f32 %v542, %v1742
  %v1744 = vpop.f32.mrb[0].mxu0
  %v1745 = vadd.f32 %v546, %v1744
  %1746 = vmatprep.mubr.bf16.mxu0 %v330
  %1747 = vmatmul.mubr.bf16.gmra.mrb[0].mxu0 %v329
  %v1748 = vpop.f32.mrb[0].mxu0
  %v1749 = vadd.f32 %v542, %v1748
  %v1750 = vpop.f32.mrb[0].mxu0
  %v1751 = vadd.f32 %v546, %v1750
  %v1752 = vpop.f32.mrb[0].mxu0
  %v1753 = vadd.f32 %v542, %v1752
  %v1754 = vpop.f32.mrb[0].mxu0
  %v1755 = vadd.f32 %v546, %v1754
  %1756 = vmatprep.mubr.bf16.mxu0 %v332
  %1757 = vmatmul.mubr.bf16.gmra.mrb[0].mxu0 %v331
  %v1758 = vpop.f32.mrb[0].mxu0
  %v1759 = vadd.f32 %v542, %v1758
  %v1760 = vpop.f32.mrb[0].mxu0
  %v1761 = vadd.f32 %v546, %v1760
  %v1762 = vpop.f32.mrb[0].mxu0
  %v1763 = vadd.f32 %v542, %v1762
  %v1764 = vpop.f32.mrb[0].mxu0
  %v1765 = vadd.f32 %v546, %v1764
  %1766 = vmatprep.mubr.bf16.mxu0 %v334
  %1767 = vmatmul.mubr.bf16.gmra.mrb[0].mxu0 %v333
  %v1768 = vpop.f32.mrb[0].mxu0
  %v1769 = vadd.f32 %v542, %v1768
  %v1770 = vpop.f32.mrb[0].mxu0
  %v1771 = vadd.f32 %v546, %v1770
  %v1772 = vpop.f32.mrb[0].mxu0
  %v1773 = vadd.f32 %v542, %v1772
  %v1774 = vpop.f32.mrb[0].mxu0
  %v1775 = vadd.f32 %v546, %v1774
  %1776 = vdwg.mxu0
  %1777 = vmatprep.subr.bf16.mxu0 %v1172
  %1778 = vmatpush1.bf16.msra.mxu0 %v1171
  %1779 = vmatprep.subr.bf16.mxu0 %v1184
  %1780 = vmatpush1.bf16.msra.mxu0 %v1183
  %1781 = vmatprep.subr.bf16.mxu0 %v1196
  %1782 = vmatpush1.bf16.msra.mxu0 %v1195
  %1783 = vmatprep.subr.bf16.mxu0 %v1208
  %1784 = vmatpush1.bf16.msra.mxu0 %v1207
  %1785 = vmatprep.subr.bf16.mxu0 %v1220
  %1786 = vmatpush1.bf16.msra.mxu0 %v1219
  %1787 = vmatprep.subr.bf16.mxu0 %v1232
  %1788 = vmatpush1.bf16.msra.mxu0 %v1231
  %1789 = vmatprep.subr.bf16.mxu0 %v1244
  %1790 = vmatpush1.bf16.msra.mxu0 %v1243
  %1791 = vmatprep.subr.bf16.mxu0 %v1256
  %1792 = vmatpush1.bf16.msra.mxu0 %v1255
  %1793 = vmatprep.subr.bf16.mxu0 %v1268
  %1794 = vmatpush1.bf16.msra.mxu0 %v1267
  %1795 = vmatprep.subr.bf16.mxu0 %v1280
  %1796 = vmatpush1.bf16.msra.mxu0 %v1279
  %1797 = vmatprep.subr.bf16.mxu0 %v1292
  %1798 = vmatpush1.bf16.msra.mxu0 %v1291
  %1799 = vmatprep.subr.bf16.mxu0 %v1304
  %1800 = vmatpush1.bf16.msra.mxu0 %v1303
  %1801 = vmatprep.subr.bf16.mxu0 %v1316
  %1802 = vmatpush1.bf16.msra.mxu0 %v1315
  %1803 = vmatprep.subr.bf16.mxu0 %v1328
  %1804 = vmatpush1.bf16.msra.mxu0 %v1327
  %1805 = vmatprep.subr.bf16.mxu0 %v1340
  %1806 = vmatpush1.bf16.msra.mxu0 %v1339
  %1807 = vmatprep.subr.bf16.mxu0 %v1352
  %1808 = vmatpush1.bf16.msra.mxu0 %v1351
  %1809 = vmatprep.mubr.bf16.mxu0 %v320
  %1810 = vmatmul.mubr.bf16.gmra.mrb[0].mxu0 %v319
  %v1811 = vpop.f32.mrb[0].mxu0
  %v1812 = vadd.f32 %v550, %v1811
  %v1813 = vpop.f32.mrb[0].mxu0
  %v1814 = vadd.f32 %v554, %v1813
  %v1815 = vpop.f32.mrb[0].mxu0
  %v1816 = vadd.f32 %v550, %v1815
  %v1817 = vpop.f32.mrb[0].mxu0
  %v1818 = vadd.f32 %v554, %v1817
  %1819 = vmatprep.mubr.bf16.mxu0 %v322
  %1820 = vmatmul.mubr.bf16.gmra.mrb[0].mxu0 %v321
  %v1821 = vpop.f32.mrb[0].mxu0
  %v1822 = vadd.f32 %v550, %v1821
  %v1823 = vpop.f32.mrb[0].mxu0
  %v1824 = vadd.f32 %v554, %v1823
  %v1825 = vpop.f32.mrb[0].mxu0
  %v1826 = vadd.f32 %v550, %v1825
  %v1827 = vpop.f32.mrb[0].mxu0
  %v1828 = vadd.f32 %v554, %v1827
  %1829 = vmatprep.mubr.bf16.mxu0 %v324
  %1830 = vmatmul.mubr.bf16.gmra.mrb[0].mxu0 %v323
  %v1831 = vpop.f32.mrb[0].mxu0
  %v1832 = vadd.f32 %v550, %v1831
  %v1833 = vpop.f32.mrb[0].mxu0
  %v1834 = vadd.f32 %v554, %v1833
  %v1835 = vpop.f32.mrb[0].mxu0
  %v1836 = vadd.f32 %v550, %v1835
  %v1837 = vpop.f32.mrb[0].mxu0
  %v1838 = vadd.f32 %v554, %v1837
  %1839 = vmatprep.mubr.bf16.mxu0 %v326
  %1840 = vmatmul.mubr.bf16.gmra.mrb[0].mxu0 %v325
  %v1841 = vpop.f32.mrb[0].mxu0
  %v1842 = vadd.f32 %v550, %v1841
  %v1843 = vpop.f32.mrb[0].mxu0
  %v1844 = vadd.f32 %v554, %v1843
  %v1845 = vpop.f32.mrb[0].mxu0
  %v1846 = vadd.f32 %v550, %v1845
  %v1847 = vpop.f32.mrb[0].mxu0
  %v1848 = vadd.f32 %v554, %v1847
  %1849 = vmatprep.mubr.bf16.mxu0 %v328
  %1850 = vmatmul.mubr.bf16.gmra.mrb[0].mxu0 %v327
  %v1851 = vpop.f32.mrb[0].mxu0
  %v1852 = vadd.f32 %v550, %v1851
  %v1853 = vpop.f32.mrb[0].mxu0
  %v1854 = vadd.f32 %v554, %v1853
  %v1855 = vpop.f32.mrb[0].mxu0
  %v1856 = vadd.f32 %v550, %v1855
  %v1857 = vpop.f32.mrb[0].mxu0
  %v1858 = vadd.f32 %v554, %v1857
  %1859 = vmatprep.mubr.bf16.mxu0 %v330
  %1860 = vmatmul.mubr.bf16.gmra.mrb[0].mxu0 %v329
  %v1861 = vpop.f32.mrb[0].mxu0
  %v1862 = vadd.f32 %v550, %v1861
  %v1863 = vpop.f32.mrb[0].mxu0
  %v1864 = vadd.f32 %v554, %v1863
  %v1865 = vpop.f32.mrb[0].mxu0
  %v1866 = vadd.f32 %v550, %v1865
  %v1867 = vpop.f32.mrb[0].mxu0
  %v1868 = vadd.f32 %v554, %v1867
  %1869 = vmatprep.mubr.bf16.mxu0 %v332
  %1870 = vmatmul.mubr.bf16.gmra.mrb[0].mxu0 %v331
  %v1871 = vpop.f32.mrb[0].mxu0
  %v1872 = vadd.f32 %v550, %v1871
  %v1873 = vpop.f32.mrb[0].mxu0
  %v1874 = vadd.f32 %v554, %v1873
  %v1875 = vpop.f32.mrb[0].mxu0
  %v1876 = vadd.f32 %v550, %v1875
  %v1877 = vpop.f32.mrb[0].mxu0
  %v1878 = vadd.f32 %v554, %v1877
  %1879 = vmatprep.mubr.bf16.mxu0 %v334
  %1880 = vmatmul.mubr.bf16.gmra.mrb[0].mxu0 %v333
  %v1881 = vpop.f32.mrb[0].mxu0
  %v1882 = vadd.f32 %v550, %v1881
  %v1883 = vpop.f32.mrb[0].mxu0
  %v1884 = vadd.f32 %v554, %v1883
  %v1885 = vpop.f32.mrb[0].mxu0
  %v1886 = vadd.f32 %v550, %v1885
  %v1887 = vpop.f32.mrb[0].mxu0
  %v1888 = vadd.f32 %v554, %v1887
  %1889 = vdwg.mxu0
  %1890 = vmatprep.subr.bf16.mxu0 %v1174
  %1891 = vmatpush1.bf16.msra.mxu0 %v1173
  %1892 = vmatprep.subr.bf16.mxu0 %v1186
  %1893 = vmatpush1.bf16.msra.mxu0 %v1185
  %1894 = vmatprep.subr.bf16.mxu0 %v1198
  %1895 = vmatpush1.bf16.msra.mxu0 %v1197
  %1896 = vmatprep.subr.bf16.mxu0 %v1210
  %1897 = vmatpush1.bf16.msra.mxu0 %v1209
  %1898 = vmatprep.subr.bf16.mxu0 %v1222
  %1899 = vmatpush1.bf16.msra.mxu0 %v1221
  %1900 = vmatprep.subr.bf16.mxu0 %v1234
  %1901 = vmatpush1.bf16.msra.mxu0 %v1233
  %1902 = vmatprep.subr.bf16.mxu0 %v1246
  %1903 = vmatpush1.bf16.msra.mxu0 %v1245
  %1904 = vmatprep.subr.bf16.mxu0 %v1258
  %1905 = vmatpush1.bf16.msra.mxu0 %v1257
  %1906 = vmatprep.subr.bf16.mxu0 %v1270
  %1907 = vmatpush1.bf16.msra.mxu0 %v1269
  %1908 = vmatprep.subr.bf16.mxu0 %v1282
  %1909 = vmatpush1.bf16.msra.mxu0 %v1281
  %1910 = vmatprep.subr.bf16.mxu0 %v1294
  %1911 = vmatpush1.bf16.msra.mxu0 %v1293
  %1912 = vmatprep.subr.bf16.mxu0 %v1306
  %1913 = vmatpush1.bf16.msra.mxu0 %v1305
  %1914 = vmatprep.subr.bf16.mxu0 %v1318
  %1915 = vmatpush1.bf16.msra.mxu0 %v1317
  %1916 = vmatprep.subr.bf16.mxu0 %v1330
  %1917 = vmatpush1.bf16.msra.mxu0 %v1329
  %1918 = vmatprep.subr.bf16.mxu0 %v1342
  %1919 = vmatpush1.bf16.msra.mxu0 %v1341
  %1920 = vmatprep.subr.bf16.mxu0 %v1354
  %1921 = vmatpush1.bf16.msra.mxu0 %v1353
  %1922 = vmatprep.mubr.bf16.mxu0 %v320
  %1923 = vmatmul.mubr.bf16.gmra.mrb[0].mxu0 %v319
  %v1924 = vpop.f32.mrb[0].mxu0
  %v1925 = vadd.f32 %v558, %v1924
  %v1926 = vpop.f32.mrb[0].mxu0
  %v1927 = vadd.f32 %v562, %v1926
  %v1928 = vpop.f32.mrb[0].mxu0
  %v1929 = vadd.f32 %v558, %v1928
  %v1930 = vpop.f32.mrb[0].mxu0
  %v1931 = vadd.f32 %v562, %v1930
  %1932 = vmatprep.mubr.bf16.mxu0 %v322
  %1933 = vmatmul.mubr.bf16.gmra.mrb[0].mxu0 %v321
  %v1934 = vpop.f32.mrb[0].mxu0
  %v1935 = vadd.f32 %v558, %v1934
  %v1936 = vpop.f32.mrb[0].mxu0
  %v1937 = vadd.f32 %v562, %v1936
  %v1938 = vpop.f32.mrb[0].mxu0
  %v1939 = vadd.f32 %v558, %v1938
  %v1940 = vpop.f32.mrb[0].mxu0
  %v1941 = vadd.f32 %v562, %v1940
  %1942 = vmatprep.mubr.bf16.mxu0 %v324
  %1943 = vmatmul.mubr.bf16.gmra.mrb[0].mxu0 %v323
  %v1944 = vpop.f32.mrb[0].mxu0
  %v1945 = vadd.f32 %v558, %v1944
  %v1946 = vpop.f32.mrb[0].mxu0
  %v1947 = vadd.f32 %v562, %v1946
  %v1948 = vpop.f32.mrb[0].mxu0
  %v1949 = vadd.f32 %v558, %v1948
  %v1950 = vpop.f32.mrb[0].mxu0
  %v1951 = vadd.f32 %v562, %v1950
  %1952 = vmatprep.mubr.bf16.mxu0 %v326
  %1953 = vmatmul.mubr.bf16.gmra.mrb[0].mxu0 %v325
  %v1954 = vpop.f32.mrb[0].mxu0
  %v1955 = vadd.f32 %v558, %v1954
  %v1956 = vpop.f32.mrb[0].mxu0
  %v1957 = vadd.f32 %v562, %v1956
  %v1958 = vpop.f32.mrb[0].mxu0
  %v1959 = vadd.f32 %v558, %v1958
  %v1960 = vpop.f32.mrb[0].mxu0
  %v1961 = vadd.f32 %v562, %v1960
  %1962 = vmatprep.mubr.bf16.mxu0 %v328
  %1963 = vmatmul.mubr.bf16.gmra.mrb[0].mxu0 %v327
  %v1964 = vpop.f32.mrb[0].mxu0
  %v1965 = vadd.f32 %v558, %v1964
  %v1966 = vpop.f32.mrb[0].mxu0
  %v1967 = vadd.f32 %v562, %v1966
  %v1968 = vpop.f32.mrb[0].mxu0
  %v1969 = vadd.f32 %v558, %v1968
  %v1970 = vpop.f32.mrb[0].mxu0
  %v1971 = vadd.f32 %v562, %v1970
  %1972 = vmatprep.mubr.bf16.mxu0 %v330
  %1973 = vmatmul.mubr.bf16.gmra.mrb[0].mxu0 %v329
  %v1974 = vpop.f32.mrb[0].mxu0
  %v1975 = vadd.f32 %v558, %v1974
  %v1976 = vpop.f32.mrb[0].mxu0
  %v1977 = vadd.f32 %v562, %v1976
  %v1978 = vpop.f32.mrb[0].mxu0
  %v1979 = vadd.f32 %v558, %v1978
  %v1980 = vpop.f32.mrb[0].mxu0
  %v1981 = vadd.f32 %v562, %v1980
  %1982 = vmatprep.mubr.bf16.mxu0 %v332
  %1983 = vmatmul.mubr.bf16.gmra.mrb[0].mxu0 %v331
  %v1984 = vpop.f32.mrb[0].mxu0
  %v1985 = vadd.f32 %v558, %v1984
  %v1986 = vpop.f32.mrb[0].mxu0
  %v1987 = vadd.f32 %v562, %v1986
  %v1988 = vpop.f32.mrb[0].mxu0
  %v1989 = vadd.f32 %v558, %v1988
  %v1990 = vpop.f32.mrb[0].mxu0
  %v1991 = vadd.f32 %v562, %v1990
  %1992 = vmatprep.mubr.bf16.mxu0 %v334
  %1993 = vmatmul.mubr.bf16.gmra.mrb[0].mxu0 %v333
  %v1994 = vpop.f32.mrb[0].mxu0
  %v1995 = vadd.f32 %v558, %v1994
  %v1996 = vpop.f32.mrb[0].mxu0
  %v1997 = vadd.f32 %v562, %v1996
  %v1998 = vpop.f32.mrb[0].mxu0
  %v1999 = vadd.f32 %v558, %v1998
  %v2000 = vpop.f32.mrb[0].mxu0
  %v2001 = vadd.f32 %v562, %v2000
  %2002 = vdwg.mxu0
  %2003 = vmatprep.subr.bf16.mxu0 %v1176
  %2004 = vmatpush1.bf16.msra.mxu0 %v1175
  %2005 = vmatprep.subr.bf16.mxu0 %v1188
  %2006 = vmatpush1.bf16.msra.mxu0 %v1187
  %2007 = vmatprep.subr.bf16.mxu0 %v1200
  %2008 = vmatpush1.bf16.msra.mxu0 %v1199
  %2009 = vmatprep.subr.bf16.mxu0 %v1212
  %2010 = vmatpush1.bf16.msra.mxu0 %v1211
  %2011 = vmatprep.subr.bf16.mxu0 %v1224
  %2012 = vmatpush1.bf16.msra.mxu0 %v1223
  %2013 = vmatprep.subr.bf16.mxu0 %v1236
  %2014 = vmatpush1.bf16.msra.mxu0 %v1235
  %2015 = vmatprep.subr.bf16.mxu0 %v1248
  %2016 = vmatpush1.bf16.msra.mxu0 %v1247
  %2017 = vmatprep.subr.bf16.mxu0 %v1260
  %2018 = vmatpush1.bf16.msra.mxu0 %v1259
  %2019 = vmatprep.subr.bf16.mxu0 %v1272
  %2020 = vmatpush1.bf16.msra.mxu0 %v1271
  %2021 = vmatprep.subr.bf16.mxu0 %v1284
  %2022 = vmatpush1.bf16.msra.mxu0 %v1283
  %2023 = vmatprep.subr.bf16.mxu0 %v1296
  %2024 = vmatpush1.bf16.msra.mxu0 %v1295
  %2025 = vmatprep.subr.bf16.mxu0 %v1308
  %2026 = vmatpush1.bf16.msra.mxu0 %v1307
  %2027 = vmatprep.subr.bf16.mxu0 %v1320
  %2028 = vmatpush1.bf16.msra.mxu0 %v1319
  %2029 = vmatprep.subr.bf16.mxu0 %v1332
  %2030 = vmatpush1.bf16.msra.mxu0 %v1331
  %2031 = vmatprep.subr.bf16.mxu0 %v1344
  %2032 = vmatpush1.bf16.msra.mxu0 %v1343
  %2033 = vmatprep.subr.bf16.mxu0 %v1356
  %2034 = vmatpush1.bf16.msra.mxu0 %v1355
  %2035 = vmatprep.mubr.bf16.mxu0 %v320
  %2036 = vmatmul.mubr.bf16.gmra.mrb[0].mxu0 %v319
  %v2037 = vpop.f32.mrb[0].mxu0
  %v2038 = vadd.f32 %v566, %v2037
  %v2039 = vpop.f32.mrb[0].mxu0
  %v2040 = vadd.f32 %v570, %v2039
  %v2041 = vpop.f32.mrb[0].mxu0
  %v2042 = vadd.f32 %v566, %v2041
  %v2043 = vpop.f32.mrb[0].mxu0
  %v2044 = vadd.f32 %v570, %v2043
  %2045 = vmatprep.mubr.bf16.mxu0 %v322
  %2046 = vmatmul.mubr.bf16.gmra.mrb[0].mxu0 %v321
  %v2047 = vpop.f32.mrb[0].mxu0
  %v2048 = vadd.f32 %v566, %v2047
  %v2049 = vpop.f32.mrb[0].mxu0
  %v2050 = vadd.f32 %v570, %v2049
  %v2051 = vpop.f32.mrb[0].mxu0
  %v2052 = vadd.f32 %v566, %v2051
  %v2053 = vpop.f32.mrb[0].mxu0
  %v2054 = vadd.f32 %v570, %v2053
  %2055 = vmatprep.mubr.bf16.mxu0 %v324
  %2056 = vmatmul.mubr.bf16.gmra.mrb[0].mxu0 %v323
  %v2057 = vpop.f32.mrb[0].mxu0
  %v2058 = vadd.f32 %v566, %v2057
  %v2059 = vpop.f32.mrb[0].mxu0
  %v2060 = vadd.f32 %v570, %v2059
  %v2061 = vpop.f32.mrb[0].mxu0
  %v2062 = vadd.f32 %v566, %v2061
  %v2063 = vpop.f32.mrb[0].mxu0
  %v2064 = vadd.f32 %v570, %v2063
  %2065 = vmatprep.mubr.bf16.mxu0 %v326
  %2066 = vmatmul.mubr.bf16.gmra.mrb[0].mxu0 %v325
  %v2067 = vpop.f32.mrb[0].mxu0
  %v2068 = vadd.f32 %v566, %v2067
  %v2069 = vpop.f32.mrb[0].mxu0
  %v2070 = vadd.f32 %v570, %v2069
  %v2071 = vpop.f32.mrb[0].mxu0
  %v2072 = vadd.f32 %v566, %v2071
  %v2073 = vpop.f32.mrb[0].mxu0
  %v2074 = vadd.f32 %v570, %v2073
  %2075 = vmatprep.mubr.bf16.mxu0 %v328
  %2076 = vmatmul.mubr.bf16.gmra.mrb[0].mxu0 %v327
  %v2077 = vpop.f32.mrb[0].mxu0
  %v2078 = vadd.f32 %v566, %v2077
  %v2079 = vpop.f32.mrb[0].mxu0
  %v2080 = vadd.f32 %v570, %v2079
  %v2081 = vpop.f32.mrb[0].mxu0
  %v2082 = vadd.f32 %v566, %v2081
  %v2083 = vpop.f32.mrb[0].mxu0
  %v2084 = vadd.f32 %v570, %v2083
  %2085 = vmatprep.mubr.bf16.mxu0 %v330
  %2086 = vmatmul.mubr.bf16.gmra.mrb[0].mxu0 %v329
  %v2087 = vpop.f32.mrb[0].mxu0
  %v2088 = vadd.f32 %v566, %v2087
  %v2089 = vpop.f32.mrb[0].mxu0
  %v2090 = vadd.f32 %v570, %v2089
  %v2091 = vpop.f32.mrb[0].mxu0
  %v2092 = vadd.f32 %v566, %v2091
  %v2093 = vpop.f32.mrb[0].mxu0
  %v2094 = vadd.f32 %v570, %v2093
  %2095 = vmatprep.mubr.bf16.mxu0 %v332
  %2096 = vmatmul.mubr.bf16.gmra.mrb[0].mxu0 %v331
  %v2097 = vpop.f32.mrb[0].mxu0
  %v2098 = vadd.f32 %v566, %v2097
  %v2099 = vpop.f32.mrb[0].mxu0
  %v2100 = vadd.f32 %v570, %v2099
  %v2101 = vpop.f32.mrb[0].mxu0
  %v2102 = vadd.f32 %v566, %v2101
  %v2103 = vpop.f32.mrb[0].mxu0
  %v2104 = vadd.f32 %v570, %v2103
  %2105 = vmatprep.mubr.bf16.mxu0 %v334
  %2106 = vmatmul.mubr.bf16.gmra.mrb[0].mxu0 %v333
  %v2107 = vpop.f32.mrb[0].mxu0
  %v2108 = vadd.f32 %v566, %v2107
  %v2109 = vpop.f32.mrb[0].mxu0
  %v2110 = vadd.f32 %v570, %v2109
  %v2111 = vpop.f32.mrb[0].mxu0
  %v2112 = vadd.f32 %v566, %v2111
  %v2113 = vpop.f32.mrb[0].mxu0
  %v2114 = vadd.f32 %v570, %v2113
  %2115 = vdwg.mxu0
  %2116 = vmatprep.subr.bf16.mxu0 %v1178
  %2117 = vmatpush1.bf16.msra.mxu0 %v1177
  %2118 = vmatprep.subr.bf16.mxu0 %v1190
  %2119 = vmatpush1.bf16.msra.mxu0 %v1189
  %2120 = vmatprep.subr.bf16.mxu0 %v1202
  %2121 = vmatpush1.bf16.msra.mxu0 %v1201
  %2122 = vmatprep.subr.bf16.mxu0 %v1214
  %2123 = vmatpush1.bf16.msra.mxu0 %v1213
  %2124 = vmatprep.subr.bf16.mxu0 %v1226
  %2125 = vmatpush1.bf16.msra.mxu0 %v1225
  %2126 = vmatprep.subr.bf16.mxu0 %v1238
  %2127 = vmatpush1.bf16.msra.mxu0 %v1237
  %2128 = vmatprep.subr.bf16.mxu0 %v1250
  %2129 = vmatpush1.bf16.msra.mxu0 %v1249
  %2130 = vmatprep.subr.bf16.mxu0 %v1262
  %2131 = vmatpush1.bf16.msra.mxu0 %v1261
  %2132 = vmatprep.subr.bf16.mxu0 %v1274
  %2133 = vmatpush1.bf16.msra.mxu0 %v1273
  %2134 = vmatprep.subr.bf16.mxu0 %v1286
  %2135 = vmatpush1.bf16.msra.mxu0 %v1285
  %2136 = vmatprep.subr.bf16.mxu0 %v1298
  %2137 = vmatpush1.bf16.msra.mxu0 %v1297
  %2138 = vmatprep.subr.bf16.mxu0 %v1310
  %2139 = vmatpush1.bf16.msra.mxu0 %v1309
  %2140 = vmatprep.subr.bf16.mxu0 %v1322
  %2141 = vmatpush1.bf16.msra.mxu0 %v1321
  %2142 = vmatprep.subr.bf16.mxu0 %v1334
  %2143 = vmatpush1.bf16.msra.mxu0 %v1333
  %2144 = vmatprep.subr.bf16.mxu0 %v1346
  %2145 = vmatpush1.bf16.msra.mxu0 %v1345
  %2146 = vmatprep.subr.bf16.mxu0 %v1358
  %2147 = vmatpush1.bf16.msra.mxu0 %v1357
  %2148 = vmatprep.mubr.bf16.mxu0 %v320
  %2149 = vmatmul.mubr.bf16.gmra.mrb[0].mxu0 %v319
  %v2150 = vpop.f32.mrb[0].mxu0
  %v2151 = vadd.f32 %v574, %v2150
  %v2152 = vpop.f32.mrb[0].mxu0
  %v2153 = vadd.f32 %v578, %v2152
  %v2154 = vpop.f32.mrb[0].mxu0
  %v2155 = vadd.f32 %v574, %v2154
  %v2156 = vpop.f32.mrb[0].mxu0
  %v2157 = vadd.f32 %v578, %v2156
  %2158 = vmatprep.mubr.bf16.mxu0 %v322
  %2159 = vmatmul.mubr.bf16.gmra.mrb[0].mxu0 %v321
  %v2160 = vpop.f32.mrb[0].mxu0
  %v2161 = vadd.f32 %v574, %v2160
  %v2162 = vpop.f32.mrb[0].mxu0
  %v2163 = vadd.f32 %v578, %v2162
  %v2164 = vpop.f32.mrb[0].mxu0
  %v2165 = vadd.f32 %v574, %v2164
  %v2166 = vpop.f32.mrb[0].mxu0
  %v2167 = vadd.f32 %v578, %v2166
  %2168 = vmatprep.mubr.bf16.mxu0 %v324
  %2169 = vmatmul.mubr.bf16.gmra.mrb[0].mxu0 %v323
  %v2170 = vpop.f32.mrb[0].mxu0
  %v2171 = vadd.f32 %v574, %v2170
  %v2172 = vpop.f32.mrb[0].mxu0
  %v2173 = vadd.f32 %v578, %v2172
  %v2174 = vpop.f32.mrb[0].mxu0
  %v2175 = vadd.f32 %v574, %v2174
  %v2176 = vpop.f32.mrb[0].mxu0
  %v2177 = vadd.f32 %v578, %v2176
  %2178 = vmatprep.mubr.bf16.mxu0 %v326
  %2179 = vmatmul.mubr.bf16.gmra.mrb[0].mxu0 %v325
  %v2180 = vpop.f32.mrb[0].mxu0
  %v2181 = vadd.f32 %v574, %v2180
  %v2182 = vpop.f32.mrb[0].mxu0
  %v2183 = vadd.f32 %v578, %v2182
  %v2184 = vpop.f32.mrb[0].mxu0
  %v2185 = vadd.f32 %v574, %v2184
  %v2186 = vpop.f32.mrb[0].mxu0
  %v2187 = vadd.f32 %v578, %v2186
  %2188 = vmatprep.mubr.bf16.mxu0 %v328
  %2189 = vmatmul.mubr.bf16.gmra.mrb[0].mxu0 %v327
  %v2190 = vpop.f32.mrb[0].mxu0
  %v2191 = vadd.f32 %v574, %v2190
  %v2192 = vpop.f32.mrb[0].mxu0
  %v2193 = vadd.f32 %v578, %v2192
  %v2194 = vpop.f32.mrb[0].mxu0
  %v2195 = vadd.f32 %v574, %v2194
  %v2196 = vpop.f32.mrb[0].mxu0
  %v2197 = vadd.f32 %v578, %v2196
  %2198 = vmatprep.mubr.bf16.mxu0 %v330
  %2199 = vmatmul.mubr.bf16.gmra.mrb[0].mxu0 %v329
  %v2200 = vpop.f32.mrb[0].mxu0
  %v2201 = vadd.f32 %v574, %v2200
  %v2202 = vpop.f32.mrb[0].mxu0
  %v2203 = vadd.f32 %v578, %v2202
  %v2204 = vpop.f32.mrb[0].mxu0
  %v2205 = vadd.f32 %v574, %v2204
  %v2206 = vpop.f32.mrb[0].mxu0
  %v2207 = vadd.f32 %v578, %v2206
  %2208 = vmatprep.mubr.bf16.mxu0 %v332
  %2209 = vmatmul.mubr.bf16.gmra.mrb[0].mxu0 %v331
  %v2210 = vpop.f32.mrb[0].mxu0
  %v2211 = vadd.f32 %v574, %v2210
  %v2212 = vpop.f32.mrb[0].mxu0
  %v2213 = vadd.f32 %v578, %v2212
  %v2214 = vpop.f32.mrb[0].mxu0
  %v2215 = vadd.f32 %v574, %v2214
  %v2216 = vpop.f32.mrb[0].mxu0
  %v2217 = vadd.f32 %v578, %v2216
  %2218 = vmatprep.mubr.bf16.mxu0 %v334
  %2219 = vmatmul.mubr.bf16.gmra.mrb[0].mxu0 %v333
  %v2220 = vpop.f32.mrb[0].mxu0
  %v2221 = vadd.f32 %v574, %v2220
  %v2222 = vpop.f32.mrb[0].mxu0
  %v2223 = vadd.f32 %v578, %v2222
  %v2224 = vpop.f32.mrb[0].mxu0
  %v2225 = vadd.f32 %v574, %v2224
  %v2226 = vpop.f32.mrb[0].mxu0
  %v2227 = vadd.f32 %v578, %v2226
  %2228 = vdwg.mxu0
  %v2229 = vpack.c.bf16 %v1590, %v1586
  %v2230 = vpack.c.bf16 %v1592, %v1588
  %v2231 = vpack.c.bf16 %v1703, %v1699
  %v2232 = vpack.c.bf16 %v1705, %v1701
  %v2233 = vpack.c.bf16 %v1816, %v1812
  %v2234 = vpack.c.bf16 %v1818, %v1814
  %v2235 = vpack.c.bf16 %v1929, %v1925
  %v2236 = vpack.c.bf16 %v1931, %v1927
  %v2237 = vpack.c.bf16 %v2042, %v2038
  %v2238 = vpack.c.bf16 %v2044, %v2040
  %v2239 = vpack.c.bf16 %v2155, %v2151
  %v2240 = vpack.c.bf16 %v2157, %v2153
  %v2241 = vpack.c.bf16 %v1600, %v1596
  %v2242 = vpack.c.bf16 %v1602, %v1598
  %v2243 = vpack.c.bf16 %v1713, %v1709
  %v2244 = vpack.c.bf16 %v1715, %v1711
  %v2245 = vpack.c.bf16 %v1826, %v1822
  %v2246 = vpack.c.bf16 %v1828, %v1824
  %v2247 = vpack.c.bf16 %v1939, %v1935
  %v2248 = vpack.c.bf16 %v1941, %v1937
  %v2249 = vpack.c.bf16 %v2052, %v2048
  %v2250 = vpack.c.bf16 %v2054, %v2050
  %v2251 = vpack.c.bf16 %v2165, %v2161
  %v2252 = vpack.c.bf16 %v2167, %v2163
  %v2253 = vpack.c.bf16 %v1610, %v1606
  %v2254 = vpack.c.bf16 %v1612, %v1608
  %v2255 = vpack.c.bf16 %v1723, %v1719
  %v2256 = vpack.c.bf16 %v1725, %v1721
  %v2257 = vpack.c.bf16 %v1836, %v1832
  %v2258 = vpack.c.bf16 %v1838, %v1834
  %v2259 = vpack.c.bf16 %v1949, %v1945
  %v2260 = vpack.c.bf16 %v1951, %v1947
  %v2261 = vpack.c.bf16 %v2062, %v2058
  %v2262 = vpack.c.bf16 %v2064, %v2060
  %v2263 = vpack.c.bf16 %v2175, %v2171
  %v2264 = vpack.c.bf16 %v2177, %v2173
  %v2265 = vpack.c.bf16 %v1620, %v1616
  %v2266 = vpack.c.bf16 %v1622, %v1618
  %v2267 = vpack.c.bf16 %v1733, %v1729
  %v2268 = vpack.c.bf16 %v1735, %v1731
  %v2269 = vpack.c.bf16 %v1846, %v1842
  %v2270 = vpack.c.bf16 %v1848, %v1844
  %v2271 = vpack.c.bf16 %v1959, %v1955
  %v2272 = vpack.c.bf16 %v1961, %v1957
  %v2273 = vpack.c.bf16 %v2072, %v2068
  %v2274 = vpack.c.bf16 %v2074, %v2070
  %v2275 = vpack.c.bf16 %v2185, %v2181
  %v2276 = vpack.c.bf16 %v2187, %v2183
  %v2277 = vpack.c.bf16 %v1630, %v1626
  %v2278 = vpack.c.bf16 %v1632, %v1628
  %v2279 = vpack.c.bf16 %v1743, %v1739
  %v2280 = vpack.c.bf16 %v1745, %v1741
  %v2281 = vpack.c.bf16 %v1856, %v1852
  %v2282 = vpack.c.bf16 %v1858, %v1854
  %v2283 = vpack.c.bf16 %v1969, %v1965
  %v2284 = vpack.c.bf16 %v1971, %v1967
  %v2285 = vpack.c.bf16 %v2082, %v2078
  %v2286 = vpack.c.bf16 %v2084, %v2080
  %v2287 = vpack.c.bf16 %v2195, %v2191
  %v2288 = vpack.c.bf16 %v2197, %v2193
  %v2289 = vpack.c.bf16 %v1640, %v1636
  %v2290 = vpack.c.bf16 %v1642, %v1638
  %v2291 = vpack.c.bf16 %v1753, %v1749
  %v2292 = vpack.c.bf16 %v1755, %v1751
  %v2293 = vpack.c.bf16 %v1866, %v1862
  %v2294 = vpack.c.bf16 %v1868, %v1864
  %v2295 = vpack.c.bf16 %v1979, %v1975
  %v2296 = vpack.c.bf16 %v1981, %v1977
  %v2297 = vpack.c.bf16 %v2092, %v2088
  %v2298 = vpack.c.bf16 %v2094, %v2090
  %v2299 = vpack.c.bf16 %v2205, %v2201
  %v2300 = vpack.c.bf16 %v2207, %v2203
  %v2301 = vpack.c.bf16 %v1650, %v1646
  %v2302 = vpack.c.bf16 %v1652, %v1648
  %v2303 = vpack.c.bf16 %v1763, %v1759
  %v2304 = vpack.c.bf16 %v1765, %v1761
  %v2305 = vpack.c.bf16 %v1876, %v1872
  %v2306 = vpack.c.bf16 %v1878, %v1874
  %v2307 = vpack.c.bf16 %v1989, %v1985
  %v2308 = vpack.c.bf16 %v1991, %v1987
  %v2309 = vpack.c.bf16 %v2102, %v2098
  %v2310 = vpack.c.bf16 %v2104, %v2100
  %v2311 = vpack.c.bf16 %v2215, %v2211
  %v2312 = vpack.c.bf16 %v2217, %v2213
  %v2313 = vpack.c.bf16 %v1660, %v1656
  %v2314 = vpack.c.bf16 %v1662, %v1658
  %v2315 = vpack.c.bf16 %v1773, %v1769
  %v2316 = vpack.c.bf16 %v1775, %v1771
  %v2317 = vpack.c.bf16 %v1886, %v1882
  %v2318 = vpack.c.bf16 %v1888, %v1884
  %v2319 = vpack.c.bf16 %v1999, %v1995
  %v2320 = vpack.c.bf16 %v2001, %v1997
  %v2321 = vpack.c.bf16 %v2112, %v2108
  %v2322 = vpack.c.bf16 %v2114, %v2110
  %v2323 = vpack.c.bf16 %v2225, %v2221
  %v2324 = vpack.c.bf16 %v2227, %v2223
  %v2421 = vunpack.c.l.b16 %v2229
  %v2422 = vunpack.c.l.b16 %v2230
  %v2423 = vunpack.c.l.b16 %v2231
  %v2424 = vunpack.c.l.b16 %v2232
  %v2425 = vunpack.c.l.b16 %v2233
  %v2426 = vunpack.c.l.b16 %v2234
  %v2427 = vunpack.c.l.b16 %v2235
  %v2428 = vunpack.c.l.b16 %v2236
  %v2429 = vunpack.c.l.b16 %v2237
  %v2430 = vunpack.c.l.b16 %v2238
  %v2431 = vunpack.c.l.b16 %v2239
  %v2432 = vunpack.c.l.b16 %v2240
  %v2433 = vunpack.c.h.b16 %v2229
  %v2434 = vunpack.c.h.b16 %v2230
  %v2435 = vunpack.c.h.b16 %v2231
  %v2436 = vunpack.c.h.b16 %v2232
  %v2437 = vunpack.c.h.b16 %v2233
  %v2438 = vunpack.c.h.b16 %v2234
  %v2439 = vunpack.c.h.b16 %v2235
  %v2440 = vunpack.c.h.b16 %v2236
  %v2441 = vunpack.c.h.b16 %v2237
  %v2442 = vunpack.c.h.b16 %v2238
  %v2443 = vunpack.c.h.b16 %v2239
  %v2444 = vunpack.c.h.b16 %v2240
  %v2445 = vunpack.c.l.b16 %v2241
  %v2446 = vunpack.c.l.b16 %v2242
  %v2447 = vunpack.c.l.b16 %v2243
  %v2448 = vunpack.c.l.b16 %v2244
  %v2449 = vunpack.c.l.b16 %v2245
  %v2450 = vunpack.c.l.b16 %v2246
  %v2451 = vunpack.c.l.b16 %v2247
  %v2452 = vunpack.c.l.b16 %v2248
  %v2453 = vunpack.c.l.b16 %v2249
  %v2454 = vunpack.c.l.b16 %v2250
  %v2455 = vunpack.c.l.b16 %v2251
  %v2456 = vunpack.c.l.b16 %v2252
  %v2457 = vunpack.c.h.b16 %v2241
  %v2458 = vunpack.c.h.b16 %v2242
  %v2459 = vunpack.c.h.b16 %v2243
  %v2460 = vunpack.c.h.b16 %v2244
  %v2461 = vunpack.c.h.b16 %v2245
  %v2462 = vunpack.c.h.b16 %v2246
  %v2463 = vunpack.c.h.b16 %v2247
  %v2464 = vunpack.c.h.b16 %v2248
  %v2465 = vunpack.c.h.b16 %v2249
  %v2466 = vunpack.c.h.b16 %v2250
  %v2467 = vunpack.c.h.b16 %v2251
  %v2468 = vunpack.c.h.b16 %v2252
  %v2469 = vunpack.c.l.b16 %v2253
  %v2470 = vunpack.c.l.b16 %v2254
  %v2471 = vunpack.c.l.b16 %v2255
  %v2472 = vunpack.c.l.b16 %v2256
  %v2473 = vunpack.c.l.b16 %v2257
  %v2474 = vunpack.c.l.b16 %v2258
  %v2475 = vunpack.c.l.b16 %v2259
  %v2476 = vunpack.c.l.b16 %v2260
  %v2477 = vunpack.c.l.b16 %v2261
  %v2478 = vunpack.c.l.b16 %v2262
  %v2479 = vunpack.c.l.b16 %v2263
  %v2480 = vunpack.c.l.b16 %v2264
  %v2481 = vunpack.c.h.b16 %v2253
  %v2482 = vunpack.c.h.b16 %v2254
  %v2483 = vunpack.c.h.b16 %v2255
  %v2484 = vunpack.c.h.b16 %v2256
  %v2485 = vunpack.c.h.b16 %v2257
  %v2486 = vunpack.c.h.b16 %v2258
  %v2487 = vunpack.c.h.b16 %v2259
  %v2488 = vunpack.c.h.b16 %v2260
  %v2489 = vunpack.c.h.b16 %v2261
  %v2490 = vunpack.c.h.b16 %v2262
  %v2491 = vunpack.c.h.b16 %v2263
  %v2492 = vunpack.c.h.b16 %v2264
  %v2493 = vunpack.c.l.b16 %v2265
  %v2494 = vunpack.c.l.b16 %v2266
  %v2495 = vunpack.c.l.b16 %v2267
  %v2496 = vunpack.c.l.b16 %v2268
  %v2497 = vunpack.c.l.b16 %v2269
  %v2498 = vunpack.c.l.b16 %v2270
  %v2499 = vunpack.c.l.b16 %v2271
  %v2500 = vunpack.c.l.b16 %v2272
  %v2501 = vunpack.c.l.b16 %v2273
  %v2502 = vunpack.c.l.b16 %v2274
  %v2503 = vunpack.c.l.b16 %v2275
  %v2504 = vunpack.c.l.b16 %v2276
  %v2505 = vunpack.c.h.b16 %v2265
  %v2506 = vunpack.c.h.b16 %v2266
  %v2507 = vunpack.c.h.b16 %v2267
  %v2508 = vunpack.c.h.b16 %v2268
  %v2509 = vunpack.c.h.b16 %v2269
  %v2510 = vunpack.c.h.b16 %v2270
  %v2511 = vunpack.c.h.b16 %v2271
  %v2512 = vunpack.c.h.b16 %v2272
  %v2513 = vunpack.c.h.b16 %v2273
  %v2514 = vunpack.c.h.b16 %v2274
  %v2515 = vunpack.c.h.b16 %v2275
  %v2516 = vunpack.c.h.b16 %v2276
  %v2517 = vunpack.c.l.b16 %v2277
  %v2518 = vunpack.c.l.b16 %v2278
  %v2519 = vunpack.c.l.b16 %v2279
  %v2520 = vunpack.c.l.b16 %v2280
  %v2521 = vunpack.c.l.b16 %v2281
  %v2522 = vunpack.c.l.b16 %v2282
  %v2523 = vunpack.c.l.b16 %v2283
  %v2524 = vunpack.c.l.b16 %v2284
  %v2525 = vunpack.c.l.b16 %v2285
  %v2526 = vunpack.c.l.b16 %v2286
  %v2527 = vunpack.c.l.b16 %v2287
  %v2528 = vunpack.c.l.b16 %v2288
  %v2529 = vunpack.c.h.b16 %v2277
  %v2530 = vunpack.c.h.b16 %v2278
  %v2531 = vunpack.c.h.b16 %v2279
  %v2532 = vunpack.c.h.b16 %v2280
  %v2533 = vunpack.c.h.b16 %v2281
  %v2534 = vunpack.c.h.b16 %v2282
  %v2535 = vunpack.c.h.b16 %v2283
  %v2536 = vunpack.c.h.b16 %v2284
  %v2537 = vunpack.c.h.b16 %v2285
  %v2538 = vunpack.c.h.b16 %v2286
  %v2539 = vunpack.c.h.b16 %v2287
  %v2540 = vunpack.c.h.b16 %v2288
  %v2541 = vunpack.c.l.b16 %v2289
  %v2542 = vunpack.c.l.b16 %v2290
  %v2543 = vunpack.c.l.b16 %v2291
  %v2544 = vunpack.c.l.b16 %v2292
  %v2545 = vunpack.c.l.b16 %v2293
  %v2546 = vunpack.c.l.b16 %v2294
  %v2547 = vunpack.c.l.b16 %v2295
  %v2548 = vunpack.c.l.b16 %v2296
  %v2549 = vunpack.c.l.b16 %v2297
  %v2550 = vunpack.c.l.b16 %v2298
  %v2551 = vunpack.c.l.b16 %v2299
  %v2552 = vunpack.c.l.b16 %v2300
  %v2553 = vunpack.c.h.b16 %v2289
  %v2554 = vunpack.c.h.b16 %v2290
  %v2555 = vunpack.c.h.b16 %v2291
  %v2556 = vunpack.c.h.b16 %v2292
  %v2557 = vunpack.c.h.b16 %v2293
  %v2558 = vunpack.c.h.b16 %v2294
  %v2559 = vunpack.c.h.b16 %v2295
  %v2560 = vunpack.c.h.b16 %v2296
  %v2561 = vunpack.c.h.b16 %v2297
  %v2562 = vunpack.c.h.b16 %v2298
  %v2563 = vunpack.c.h.b16 %v2299
  %v2564 = vunpack.c.h.b16 %v2300
  %v2565 = vunpack.c.l.b16 %v2301
  %v2566 = vunpack.c.l.b16 %v2302
  %v2567 = vunpack.c.l.b16 %v2303
  %v2568 = vunpack.c.l.b16 %v2304
  %v2569 = vunpack.c.l.b16 %v2305
  %v2570 = vunpack.c.l.b16 %v2306
  %v2571 = vunpack.c.l.b16 %v2307
  %v2572 = vunpack.c.l.b16 %v2308
  %v2573 = vunpack.c.l.b16 %v2309
  %v2574 = vunpack.c.l.b16 %v2310
  %v2575 = vunpack.c.l.b16 %v2311
  %v2576 = vunpack.c.l.b16 %v2312
  %v2577 = vunpack.c.h.b16 %v2301
  %v2578 = vunpack.c.h.b16 %v2302
  %v2579 = vunpack.c.h.b16 %v2303
  %v2580 = vunpack.c.h.b16 %v2304
  %v2581 = vunpack.c.h.b16 %v2305
  %v2582 = vunpack.c.h.b16 %v2306
  %v2583 = vunpack.c.h.b16 %v2307
  %v2584 = vunpack.c.h.b16 %v2308
  %v2585 = vunpack.c.h.b16 %v2309
  %v2586 = vunpack.c.h.b16 %v2310
  %v2587 = vunpack.c.h.b16 %v2311
  %v2588 = vunpack.c.h.b16 %v2312
  %v2589 = vunpack.c.l.b16 %v2313
  %v2590 = vunpack.c.l.b16 %v2314
  %v2591 = vunpack.c.l.b16 %v2315
  %v2592 = vunpack.c.l.b16 %v2316
  %v2593 = vunpack.c.l.b16 %v2317
  %v2594 = vunpack.c.l.b16 %v2318
  %v2595 = vunpack.c.l.b16 %v2319
  %v2596 = vunpack.c.l.b16 %v2320
  %v2597 = vunpack.c.l.b16 %v2321
  %v2598 = vunpack.c.l.b16 %v2322
  %v2599 = vunpack.c.l.b16 %v2323
  %v2600 = vunpack.c.l.b16 %v2324
  %v2601 = vunpack.c.h.b16 %v2313
  %v2602 = vunpack.c.h.b16 %v2314
  %v2603 = vunpack.c.h.b16 %v2315
  %v2604 = vunpack.c.h.b16 %v2316
  %v2605 = vunpack.c.h.b16 %v2317
  %v2606 = vunpack.c.h.b16 %v2318
  %v2607 = vunpack.c.h.b16 %v2319
  %v2608 = vunpack.c.h.b16 %v2320
  %v2609 = vunpack.c.h.b16 %v2321
  %v2610 = vunpack.c.h.b16 %v2322
  %v2611 = vunpack.c.h.b16 %v2323
  %v2612 = vunpack.c.h.b16 %v2324
  %v2613 = vpack.c.b16 %v2422, %v2421
  %v2614 = vpack.c.b16 %v2424, %v2423
  %v2615 = vpack.c.b16 %v2426, %v2425
  %v2616 = vpack.c.b16 %v2428, %v2427
  %v2617 = vpack.c.b16 %v2430, %v2429
  %v2618 = vpack.c.b16 %v2432, %v2431
  %v2619 = vpack.c.b16 %v2434, %v2433
  %v2620 = vpack.c.b16 %v2436, %v2435
  %v2621 = vpack.c.b16 %v2438, %v2437
  %v2622 = vpack.c.b16 %v2440, %v2439
  %v2623 = vpack.c.b16 %v2442, %v2441
  %v2624 = vpack.c.b16 %v2444, %v2443
  %v2625 = vpack.c.b16 %v2446, %v2445
  %v2626 = vpack.c.b16 %v2448, %v2447
  %v2627 = vpack.c.b16 %v2450, %v2449
  %v2628 = vpack.c.b16 %v2452, %v2451
  %v2629 = vpack.c.b16 %v2454, %v2453
  %v2630 = vpack.c.b16 %v2456, %v2455
  %v2631 = vpack.c.b16 %v2458, %v2457
  %v2632 = vpack.c.b16 %v2460, %v2459
  %v2633 = vpack.c.b16 %v2462, %v2461
  %v2634 = vpack.c.b16 %v2464, %v2463
  %v2635 = vpack.c.b16 %v2466, %v2465
  %v2636 = vpack.c.b16 %v2468, %v2467
  %v2637 = vpack.c.b16 %v2470, %v2469
  %v2638 = vpack.c.b16 %v2472, %v2471
  %v2639 = vpack.c.b16 %v2474, %v2473
  %v2640 = vpack.c.b16 %v2476, %v2475
  %v2641 = vpack.c.b16 %v2478, %v2477
  %v2642 = vpack.c.b16 %v2480, %v2479
  %v2643 = vpack.c.b16 %v2482, %v2481
  %v2644 = vpack.c.b16 %v2484, %v2483
  %v2645 = vpack.c.b16 %v2486, %v2485
  %v2646 = vpack.c.b16 %v2488, %v2487
  %v2647 = vpack.c.b16 %v2490, %v2489
  %v2648 = vpack.c.b16 %v2492, %v2491
  %v2649 = vpack.c.b16 %v2494, %v2493
  %v2650 = vpack.c.b16 %v2496, %v2495
  %v2651 = vpack.c.b16 %v2498, %v2497
  %v2652 = vpack.c.b16 %v2500, %v2499
  %v2653 = vpack.c.b16 %v2502, %v2501
  %v2654 = vpack.c.b16 %v2504, %v2503
  %v2655 = vpack.c.b16 %v2506, %v2505
  %v2656 = vpack.c.b16 %v2508, %v2507
  %v2657 = vpack.c.b16 %v2510, %v2509
  %v2658 = vpack.c.b16 %v2512, %v2511
  %v2659 = vpack.c.b16 %v2514, %v2513
  %v2660 = vpack.c.b16 %v2516, %v2515
  %v2661 = vpack.c.b16 %v2518, %v2517
  %v2662 = vpack.c.b16 %v2520, %v2519
  %v2663 = vpack.c.b16 %v2522, %v2521
  %v2664 = vpack.c.b16 %v2524, %v2523
  %v2665 = vpack.c.b16 %v2526, %v2525
  %v2666 = vpack.c.b16 %v2528, %v2527
  %v2667 = vpack.c.b16 %v2530, %v2529
  %v2668 = vpack.c.b16 %v2532, %v2531
  %v2669 = vpack.c.b16 %v2534, %v2533
  %v2670 = vpack.c.b16 %v2536, %v2535
  %v2671 = vpack.c.b16 %v2538, %v2537
  %v2672 = vpack.c.b16 %v2540, %v2539
  %v2673 = vpack.c.b16 %v2542, %v2541
  %v2674 = vpack.c.b16 %v2544, %v2543
  %v2675 = vpack.c.b16 %v2546, %v2545
  %v2676 = vpack.c.b16 %v2548, %v2547
  %v2677 = vpack.c.b16 %v2550, %v2549
  %v2678 = vpack.c.b16 %v2552, %v2551
  %v2679 = vpack.c.b16 %v2554, %v2553
  %v2680 = vpack.c.b16 %v2556, %v2555
  %v2681 = vpack.c.b16 %v2558, %v2557
  %v2682 = vpack.c.b16 %v2560, %v2559
  %v2683 = vpack.c.b16 %v2562, %v2561
  %v2684 = vpack.c.b16 %v2564, %v2563
  %v2685 = vpack.c.b16 %v2566, %v2565
  %v2686 = vpack.c.b16 %v2568, %v2567
  %v2687 = vpack.c.b16 %v2570, %v2569
  %v2688 = vpack.c.b16 %v2572, %v2571
  %v2689 = vpack.c.b16 %v2574, %v2573
  %v2690 = vpack.c.b16 %v2576, %v2575
  %v2691 = vpack.c.b16 %v2578, %v2577
  %v2692 = vpack.c.b16 %v2580, %v2579
  %v2693 = vpack.c.b16 %v2582, %v2581
  %v2694 = vpack.c.b16 %v2584, %v2583
  %v2695 = vpack.c.b16 %v2586, %v2585
  %v2696 = vpack.c.b16 %v2588, %v2587
  %v2697 = vpack.c.b16 %v2590, %v2589
  %v2698 = vpack.c.b16 %v2592, %v2591
  %v2699 = vpack.c.b16 %v2594, %v2593
  %v2700 = vpack.c.b16 %v2596, %v2595
  %v2701 = vpack.c.b16 %v2598, %v2597
  %v2702 = vpack.c.b16 %v2600, %v2599
  %v2703 = vpack.c.b16 %v2602, %v2601
  %v2704 = vpack.c.b16 %v2604, %v2603
  %v2705 = vpack.c.b16 %v2606, %v2605
  %v2706 = vpack.c.b16 %v2608, %v2607
  %v2707 = vpack.c.b16 %v2610, %v2609
  %v2708 = vpack.c.b16 %v2612, %v2611
  %2805 = vst [vmem:[%s3] sm:$0xff] %v2613
  %2806 = vst [vmem:[%s3 + $0x8] sm:$0xff] %v2614
  %2807 = vst [vmem:[%s3 + $0x10] sm:$0xff] %v2615
  %2808 = vst [vmem:[%s3 + $0x18] sm:$0xff] %v2616
  %2809 = vst [vmem:[%s3 + $0x20] sm:$0xff] %v2617
  %2810 = vst [vmem:[%s3 + $0x28] sm:$0xff] %v2618
  %2811 = vst [vmem:[%s3 + $0x30] sm:$0xff] %v2619
  %2812 = vst [vmem:[%s3 + $0x38] sm:$0xff] %v2620
  %2813 = vst [vmem:[%s3 + $0x40] sm:$0xff] %v2621
  %2814 = vst [vmem:[%s3 + $0x48] sm:$0xff] %v2622
  %2815 = vst [vmem:[%s3 + $0x50] sm:$0xff] %v2623
  %2816 = vst [vmem:[%s3 + $0x58] sm:$0xff] %v2624
  %2817 = vst [vmem:[%s3 + $0x60] sm:$0xff] %v2625
  %2818 = vst [vmem:[%s3 + $0x68] sm:$0xff] %v2626
  %2819 = vst [vmem:[%s3 + $0x70] sm:$0xff] %v2627
  %2820 = vst [vmem:[%s3 + $0x78] sm:$0xff] %v2628
  %2821 = vst [vmem:[%s3 + $0x80] sm:$0xff] %v2629
  %2822 = vst [vmem:[%s3 + $0x88] sm:$0xff] %v2630
  %2823 = vst [vmem:[%s3 + $0x90] sm:$0xff] %v2631
  %2824 = vst [vmem:[%s3 + $0x98] sm:$0xff] %v2632
  %2825 = vst [vmem:[%s3 + $0xa0] sm:$0xff] %v2633
  %2826 = vst [vmem:[%s3 + $0xa8] sm:$0xff] %v2634
  %2827 = vst [vmem:[%s3 + $0xb0] sm:$0xff] %v2635
  %2828 = vst [vmem:[%s3 + $0xb8] sm:$0xff] %v2636
  %2829 = vst [vmem:[%s3 + $0xc0] sm:$0xff] %v2637
  %2830 = vst [vmem:[%s3 + $0xc8] sm:$0xff] %v2638
  %2831 = vst [vmem:[%s3 + $0xd0] sm:$0xff] %v2639
  %2832 = vst [vmem:[%s3 + $0xd8] sm:$0xff] %v2640
  %2833 = vst [vmem:[%s3 + $0xe0] sm:$0xff] %v2641
  %2834 = vst [vmem:[%s3 + $0xe8] sm:$0xff] %v2642
  %2835 = vst [vmem:[%s3 + $0xf0] sm:$0xff] %v2643
  %2836 = vst [vmem:[%s3 + $0xf8] sm:$0xff] %v2644
  %2837 = vst [vmem:[%s3 + $0x100] sm:$0xff] %v2645
  %2838 = vst [vmem:[%s3 + $0x108] sm:$0xff] %v2646
  %2839 = vst [vmem:[%s3 + $0x110] sm:$0xff] %v2647
  %2840 = vst [vmem:[%s3 + $0x118] sm:$0xff] %v2648
  %2841 = vst [vmem:[%s3 + $0x120] sm:$0xff] %v2649
  %2842 = vst [vmem:[%s3 + $0x128] sm:$0xff] %v2650
  %2843 = vst [vmem:[%s3 + $0x130] sm:$0xff] %v2651
  %2844 = vst [vmem:[%s3 + $0x138] sm:$0xff] %v2652
  %2845 = vst [vmem:[%s3 + $0x140] sm:$0xff] %v2653
  %2846 = vst [vmem:[%s3 + $0x148] sm:$0xff] %v2654
  %2847 = vst [vmem:[%s3 + $0x150] sm:$0xff] %v2655
  %2848 = vst [vmem:[%s3 + $0x158] sm:$0xff] %v2656
  %2849 = vst [vmem:[%s3 + $0x160] sm:$0xff] %v2657
  %2850 = vst [vmem:[%s3 + $0x168] sm:$0xff] %v2658
  %2851 = vst [vmem:[%s3 + $0x170] sm:$0xff] %v2659
  %2852 = vst [vmem:[%s3 + $0x178] sm:$0xff] %v2660
  %2853 = vst [vmem:[%s3 + $0x180] sm:$0xff] %v2661
  %2854 = vst [vmem:[%s3 + $0x188] sm:$0xff] %v2662
  %2855 = vst [vmem:[%s3 + $0x190] sm:$0xff] %v2663
  %2856 = vst [vmem:[%s3 + $0x198] sm:$0xff] %v2664
  %2857 = vst [vmem:[%s3 + $0x1a0] sm:$0xff] %v2665
  %2858 = vst [vmem:[%s3 + $0x1a8] sm:$0xff] %v2666
  %2859 = vst [vmem:[%s3 + $0x1b0] sm:$0xff] %v2667
  %2860 = vst [vmem:[%s3 + $0x1b8] sm:$0xff] %v2668
  %2861 = vst [vmem:[%s3 + $0x1c0] sm:$0xff] %v2669
  %2862 = vst [vmem:[%s3 + $0x1c8] sm:$0xff] %v2670
  %2863 = vst [vmem:[%s3 + $0x1d0] sm:$0xff] %v2671
  %2864 = vst [vmem:[%s3 + $0x1d8] sm:$0xff] %v2672
  %2865 = vst [vmem:[%s3 + $0x1e0] sm:$0xff] %v2673
  %2866 = vst [vmem:[%s3 + $0x1e8] sm:$0xff] %v2674
  %2867 = vst [vmem:[%s3 + $0x1f0] sm:$0xff] %v2675
  %2868 = vst [vmem:[%s3 + $0x1f8] sm:$0xff] %v2676
  %2869 = vst [vmem:[%s3 + $0x200] sm:$0xff] %v2677
  %2870 = vst [vmem:[%s3 + $0x208] sm:$0xff] %v2678
  %2871 = vst [vmem:[%s3 + $0x210] sm:$0xff] %v2679
  %2872 = vst [vmem:[%s3 + $0x218] sm:$0xff] %v2680
  %2873 = vst [vmem:[%s3 + $0x220] sm:$0xff] %v2681
  %2874 = vst [vmem:[%s3 + $0x228] sm:$0xff] %v2682
  %2875 = vst [vmem:[%s3 + $0x230] sm:$0xff] %v2683
  %2876 = vst [vmem:[%s3 + $0x238] sm:$0xff] %v2684
  %2877 = vst [vmem:[%s3 + $0x240] sm:$0xff] %v2685
  %2878 = vst [vmem:[%s3 + $0x248] sm:$0xff] %v2686
  %2879 = vst [vmem:[%s3 + $0x250] sm:$0xff] %v2687
  %2880 = vst [vmem:[%s3 + $0x258] sm:$0xff] %v2688
  %2881 = vst [vmem:[%s3 + $0x260] sm:$0xff] %v2689
  %2882 = vst [vmem:[%s3 + $0x268] sm:$0xff] %v2690
  %2883 = vst [vmem:[%s3 + $0x270] sm:$0xff] %v2691
  %2884 = vst [vmem:[%s3 + $0x278] sm:$0xff] %v2692
  %2885 = vst [vmem:[%s3 + $0x280] sm:$0xff] %v2693
  %2886 = vst [vmem:[%s3 + $0x288] sm:$0xff] %v2694
  %2887 = vst [vmem:[%s3 + $0x290] sm:$0xff] %v2695
  %2888 = vst [vmem:[%s3 + $0x298] sm:$0xff] %v2696
  %2889 = vst [vmem:[%s3 + $0x2a0] sm:$0xff] %v2697
  %2890 = vst [vmem:[%s3 + $0x2a8] sm:$0xff] %v2698
  %2891 = vst [vmem:[%s3 + $0x2b0] sm:$0xff] %v2699
  %2892 = vst [vmem:[%s3 + $0x2b8] sm:$0xff] %v2700
  %2893 = vst [vmem:[%s3 + $0x2c0] sm:$0xff] %v2701
  %2894 = vst [vmem:[%s3 + $0x2c8] sm:$0xff] %v2702
  %2895 = vst [vmem:[%s3 + $0x2d0] sm:$0xff] %v2703
  %2896 = vst [vmem:[%s3 + $0x2d8] sm:$0xff] %v2704
  %2897 = vst [vmem:[%s3 + $0x2e0] sm:$0xff] %v2705
  %2898 = vst [vmem:[%s3 + $0x2e8] sm:$0xff] %v2706
  %2899 = vst [vmem:[%s3 + $0x2f0] sm:$0xff] %v2707
  %2900 = vst [vmem:[%s3 + $0x2f8] sm:$0xff] %v2708
  // Predicated region
  $region14: #{bert_embedder_forward.8} parent=0 // pred_check
    _
  $region15: #{bert_embedder_forward.8} parent=0 // pred_check_branch
    %2902 = sbr.rel (0) target = $region17
  $region16: #{bert_embedder_forward.8} parent=0 // pred_region
    _
  $region17: #{bert_embedder_forward.8} parent=0 // pred_fallthru
    _
  // Predicated region
  $region18: #{bert_embedder_forward.8} parent=0 // pred_check
    _
  $region19: #{bert_embedder_forward.8} parent=0 // pred_check_branch
    %2904 = sbr.rel (0) target = $region21
  $region20: #{bert_embedder_forward.8} parent=0 // pred_region
    _
  $region21: #{bert_embedder_forward.8} parent=0 // pred_fallthru
    _

// kernel: bert_embedder_forward.10
$region0: #{bert_embedder_forward.10}
  #allocation0 [shape = 'u32[]', space=smem, size = 0x4, offset = 0x4, fixed_abs, tag = 'smem constant byte address 0x4 - core index']
  #allocation1 [shape = 'u32[144,128]{1,0:T(1,128)}', space=vmem, size = 0x12000, scoped, tag = 'internal scratch']
  %s0 = inlined_call_operand.vmem [shape: bf16[128,256], index: 0, kind: input, shape index: {}]
  %s1 = inlined_call_operand.vmem [shape: bf16[256,1024], index: 1, kind: input, shape index: {}]
  %s2 = inlined_call_operand.vmem [shape: f32[1,1024], index: 2, kind: input, shape index: {}]
  %s3 = inlined_call_operand.vmem [shape: bf16[128,1024], index: 3, kind: output, shape index: {}]
  %s4 = sld [smem:[#allocation0]]
  $region22: #{bert_embedder_forward.10} parent=0
    _
  %s6 = ssub.s32 1, %s4
  %s7 = scalar_select 0, %s6, %s4
  // Predicated region
  $region2: #{bert_embedder_forward.10} parent=0 // pred_check
    _
  $region3: #{bert_embedder_forward.10} parent=0 // pred_check_branch
    %9 = sbr.rel (0) target = $region5
  $region4: #{bert_embedder_forward.10} parent=0 // pred_region
    _
  $region5: #{bert_embedder_forward.10} parent=0 // pred_fallthru
    _
  // Predicated region
  $region6: #{bert_embedder_forward.10} parent=0 // pred_check
    _
  $region7: #{bert_embedder_forward.10} parent=0 // pred_check_branch
    %11 = sbr.rel (0) target = $region9
  $region8: #{bert_embedder_forward.10} parent=0 // pred_region
    _
  $region9: #{bert_embedder_forward.10} parent=0 // pred_fallthru
    _
  // Predicated region
  $region10: #{bert_embedder_forward.10} parent=0 // pred_check
    _
  $region11: #{bert_embedder_forward.10} parent=0 // pred_check_branch
    %13 = sbr.rel (0) target = $region13
  $region12: #{bert_embedder_forward.10} parent=0 // pred_region
    _
  $region13: #{bert_embedder_forward.10} parent=0 // pred_fallthru
    _
  %v14 = vld [vmem:[%s0] sm:$0xff]
  %v15 = vld [vmem:[%s0 + $0x8] sm:$0xff]
  %v16 = vld [vmem:[%s0 + $0x10] sm:$0xff]
  %v17 = vld [vmem:[%s0 + $0x18] sm:$0xff]
  %v18 = vld [vmem:[%s0 + $0x20] sm:$0xff]
  %v19 = vld [vmem:[%s0 + $0x28] sm:$0xff]
  %v20 = vld [vmem:[%s0 + $0x30] sm:$0xff]
  %v21 = vld [vmem:[%s0 + $0x38] sm:$0xff]
  %v22 = vld [vmem:[%s0 + $0x40] sm:$0xff]
  %v23 = vld [vmem:[%s0 + $0x48] sm:$0xff]
  %v24 = vld [vmem:[%s0 + $0x50] sm:$0xff]
  %v25 = vld [vmem:[%s0 + $0x58] sm:$0xff]
  %v26 = vld [vmem:[%s0 + $0x60] sm:$0xff]
  %v27 = vld [vmem:[%s0 + $0x68] sm:$0xff]
  %v28 = vld [vmem:[%s0 + $0x70] sm:$0xff]
  %v29 = vld [vmem:[%s0 + $0x78] sm:$0xff]
  %v30 = vunpack.c.l.bf16 %v14
  %v31 = vunpack.c.h.bf16 %v14
  %v32 = vunpack.c.l.bf16 %v15
  %v33 = vunpack.c.h.bf16 %v15
  %v34 = vunpack.c.l.bf16 %v16
  %v35 = vunpack.c.h.bf16 %v16
  %v36 = vunpack.c.l.bf16 %v17
  %v37 = vunpack.c.h.bf16 %v17
  %v38 = vunpack.c.l.bf16 %v18
  %v39 = vunpack.c.h.bf16 %v18
  %v40 = vunpack.c.l.bf16 %v19
  %v41 = vunpack.c.h.bf16 %v19
  %v42 = vunpack.c.l.bf16 %v20
  %v43 = vunpack.c.h.bf16 %v20
  %v44 = vunpack.c.l.bf16 %v21
  %v45 = vunpack.c.h.bf16 %v21
  %v46 = vunpack.c.l.bf16 %v22
  %v47 = vunpack.c.h.bf16 %v22
  %v48 = vunpack.c.l.bf16 %v23
  %v49 = vunpack.c.h.bf16 %v23
  %v50 = vunpack.c.l.bf16 %v24
  %v51 = vunpack.c.h.bf16 %v24
  %v52 = vunpack.c.l.bf16 %v25
  %v53 = vunpack.c.h.bf16 %v25
  %v54 = vunpack.c.l.bf16 %v26
  %v55 = vunpack.c.h.bf16 %v26
  %v56 = vunpack.c.l.bf16 %v27
  %v57 = vunpack.c.h.bf16 %v27
  %v58 = vunpack.c.l.bf16 %v28
  %v59 = vunpack.c.h.bf16 %v28
  %v60 = vunpack.c.l.bf16 %v29
  %v61 = vunpack.c.h.bf16 %v29
  %v62 = vadd.f32 %v30, %v31
  %63 = vadd.xlane.f32.xlu0 %v62
  %v64 = vpop.xlane.xlu0 %63
  %v65 = vadd.f32 %v32, %v33
  %66 = vadd.xlane.f32.xlu0 %v65
  %v67 = vpop.xlane.xlu0 %66
  %v68 = vadd.f32 %v34, %v35
  %69 = vadd.xlane.f32.xlu0 %v68
  %v70 = vpop.xlane.xlu0 %69
  %v71 = vadd.f32 %v36, %v37
  %72 = vadd.xlane.f32.xlu0 %v71
  %v73 = vpop.xlane.xlu0 %72
  %v74 = vadd.f32 %v38, %v39
  %75 = vadd.xlane.f32.xlu0 %v74
  %v76 = vpop.xlane.xlu0 %75
  %v77 = vadd.f32 %v40, %v41
  %78 = vadd.xlane.f32.xlu0 %v77
  %v79 = vpop.xlane.xlu0 %78
  %v80 = vadd.f32 %v42, %v43
  %81 = vadd.xlane.f32.xlu0 %v80
  %v82 = vpop.xlane.xlu0 %81
  %v83 = vadd.f32 %v44, %v45
  %84 = vadd.xlane.f32.xlu0 %v83
  %v85 = vpop.xlane.xlu0 %84
  %v86 = vadd.f32 %v46, %v47
  %87 = vadd.xlane.f32.xlu0 %v86
  %v88 = vpop.xlane.xlu0 %87
  %v89 = vadd.f32 %v48, %v49
  %90 = vadd.xlane.f32.xlu0 %v89
  %v91 = vpop.xlane.xlu0 %90
  %v92 = vadd.f32 %v50, %v51
  %93 = vadd.xlane.f32.xlu0 %v92
  %v94 = vpop.xlane.xlu0 %93
  %v95 = vadd.f32 %v52, %v53
  %96 = vadd.xlane.f32.xlu0 %v95
  %v97 = vpop.xlane.xlu0 %96
  %v98 = vadd.f32 %v54, %v55
  %99 = vadd.xlane.f32.xlu0 %v98
  %v100 = vpop.xlane.xlu0 %99
  %v101 = vadd.f32 %v56, %v57
  %102 = vadd.xlane.f32.xlu0 %v101
  %v103 = vpop.xlane.xlu0 %102
  %v104 = vadd.f32 %v58, %v59
  %105 = vadd.xlane.f32.xlu0 %v104
  %v106 = vpop.xlane.xlu0 %105
  %v107 = vadd.f32 %v60, %v61
  %108 = vadd.xlane.f32.xlu0 %v107
  %v109 = vpop.xlane.xlu0 %108
  %v110 = vrcp.pop 256.0
  %v111 = vmul.f32 %v64, %v110
  %v112 = vmul.f32 %v67, %v110
  %v113 = vmul.f32 %v70, %v110
  %v114 = vmul.f32 %v73, %v110
  %v115 = vmul.f32 %v76, %v110
  %v116 = vmul.f32 %v79, %v110
  %v117 = vmul.f32 %v82, %v110
  %v118 = vmul.f32 %v85, %v110
  %v119 = vmul.f32 %v88, %v110
  %v120 = vmul.f32 %v91, %v110
  %v121 = vmul.f32 %v94, %v110
  %v122 = vmul.f32 %v97, %v110
  %v123 = vmul.f32 %v100, %v110
  %v124 = vmul.f32 %v103, %v110
  %v125 = vmul.f32 %v106, %v110
  %v126 = vmul.f32 %v109, %v110
  %v127 = vsub.f32 %v30, %v111
  %v128 = vsub.f32 %v31, %v111
  %v129 = vsub.f32 %v32, %v112
  %v130 = vsub.f32 %v33, %v112
  %v131 = vsub.f32 %v34, %v113
  %v132 = vsub.f32 %v35, %v113
  %v133 = vsub.f32 %v36, %v114
  %v134 = vsub.f32 %v37, %v114
  %v135 = vsub.f32 %v38, %v115
  %v136 = vsub.f32 %v39, %v115
  %v137 = vsub.f32 %v40, %v116
  %v138 = vsub.f32 %v41, %v116
  %v139 = vsub.f32 %v42, %v117
  %v140 = vsub.f32 %v43, %v117
  %v141 = vsub.f32 %v44, %v118
  %v142 = vsub.f32 %v45, %v118
  %v143 = vsub.f32 %v46, %v119
  %v144 = vsub.f32 %v47, %v119
  %v145 = vsub.f32 %v48, %v120
  %v146 = vsub.f32 %v49, %v120
  %v147 = vsub.f32 %v50, %v121
  %v148 = vsub.f32 %v51, %v121
  %v149 = vsub.f32 %v52, %v122
  %v150 = vsub.f32 %v53, %v122
  %v151 = vsub.f32 %v54, %v123
  %v152 = vsub.f32 %v55, %v123
  %v153 = vsub.f32 %v56, %v124
  %v154 = vsub.f32 %v57, %v124
  %v155 = vsub.f32 %v58, %v125
  %v156 = vsub.f32 %v59, %v125
  %v157 = vsub.f32 %v60, %v126
  %v158 = vsub.f32 %v61, %v126
  %v159 = vmul.f32 %v127, %v127
  %v160 = vmul.f32 %v128, %v128
  %v161 = vmul.f32 %v129, %v129
  %v162 = vmul.f32 %v130, %v130
  %v163 = vmul.f32 %v131, %v131
  %v164 = vmul.f32 %v132, %v132
  %v165 = vmul.f32 %v133, %v133
  %v166 = vmul.f32 %v134, %v134
  %v167 = vmul.f32 %v135, %v135
  %v168 = vmul.f32 %v136, %v136
  %v169 = vmul.f32 %v137, %v137
  %v170 = vmul.f32 %v138, %v138
  %v171 = vmul.f32 %v139, %v139
  %v172 = vmul.f32 %v140, %v140
  %v173 = vmul.f32 %v141, %v141
  %v174 = vmul.f32 %v142, %v142
  %v175 = vmul.f32 %v143, %v143
  %v176 = vmul.f32 %v144, %v144
  %v177 = vmul.f32 %v145, %v145
  %v178 = vmul.f32 %v146, %v146
  %v179 = vmul.f32 %v147, %v147
  %v180 = vmul.f32 %v148, %v148
  %v181 = vmul.f32 %v149, %v149
  %v182 = vmul.f32 %v150, %v150
  %v183 = vmul.f32 %v151, %v151
  %v184 = vmul.f32 %v152, %v152
  %v185 = vmul.f32 %v153, %v153
  %v186 = vmul.f32 %v154, %v154
  %v187 = vmul.f32 %v155, %v155
  %v188 = vmul.f32 %v156, %v156
  %v189 = vmul.f32 %v157, %v157
  %v190 = vmul.f32 %v158, %v158
  %v191 = vadd.f32 %v159, %v160
  %192 = vadd.xlane.f32.xlu0 %v191
  %v193 = vpop.xlane.xlu0 %192
  %v194 = vadd.f32 %v161, %v162
  %195 = vadd.xlane.f32.xlu0 %v194
  %v196 = vpop.xlane.xlu0 %195
  %v197 = vadd.f32 %v163, %v164
  %198 = vadd.xlane.f32.xlu0 %v197
  %v199 = vpop.xlane.xlu0 %198
  %v200 = vadd.f32 %v165, %v166
  %201 = vadd.xlane.f32.xlu0 %v200
  %v202 = vpop.xlane.xlu0 %201
  %v203 = vadd.f32 %v167, %v168
  %204 = vadd.xlane.f32.xlu0 %v203
  %v205 = vpop.xlane.xlu0 %204
  %v206 = vadd.f32 %v169, %v170
  %207 = vadd.xlane.f32.xlu0 %v206
  %v208 = vpop.xlane.xlu0 %207
  %v209 = vadd.f32 %v171, %v172
  %210 = vadd.xlane.f32.xlu0 %v209
  %v211 = vpop.xlane.xlu0 %210
  %v212 = vadd.f32 %v173, %v174
  %213 = vadd.xlane.f32.xlu0 %v212
  %v214 = vpop.xlane.xlu0 %213
  %v215 = vadd.f32 %v175, %v176
  %216 = vadd.xlane.f32.xlu0 %v215
  %v217 = vpop.xlane.xlu0 %216
  %v218 = vadd.f32 %v177, %v178
  %219 = vadd.xlane.f32.xlu0 %v218
  %v220 = vpop.xlane.xlu0 %219
  %v221 = vadd.f32 %v179, %v180
  %222 = vadd.xlane.f32.xlu0 %v221
  %v223 = vpop.xlane.xlu0 %222
  %v224 = vadd.f32 %v181, %v182
  %225 = vadd.xlane.f32.xlu0 %v224
  %v226 = vpop.xlane.xlu0 %225
  %v227 = vadd.f32 %v183, %v184
  %228 = vadd.xlane.f32.xlu0 %v227
  %v229 = vpop.xlane.xlu0 %228
  %v230 = vadd.f32 %v185, %v186
  %231 = vadd.xlane.f32.xlu0 %v230
  %v232 = vpop.xlane.xlu0 %231
  %v233 = vadd.f32 %v187, %v188
  %234 = vadd.xlane.f32.xlu0 %v233
  %v235 = vpop.xlane.xlu0 %234
  %v236 = vadd.f32 %v189, %v190
  %237 = vadd.xlane.f32.xlu0 %v236
  %v238 = vpop.xlane.xlu0 %237
  %v239 = vmul.f32 %v193, %v110
  %v240 = vmul.f32 %v196, %v110
  %v241 = vmul.f32 %v199, %v110
  %v242 = vmul.f32 %v202, %v110
  %v243 = vmul.f32 %v205, %v110
  %v244 = vmul.f32 %v208, %v110
  %v245 = vmul.f32 %v211, %v110
  %v246 = vmul.f32 %v214, %v110
  %v247 = vmul.f32 %v217, %v110
  %v248 = vmul.f32 %v220, %v110
  %v249 = vmul.f32 %v223, %v110
  %v250 = vmul.f32 %v226, %v110
  %v251 = vmul.f32 %v229, %v110
  %v252 = vmul.f32 %v232, %v110
  %v253 = vmul.f32 %v235, %v110
  %v254 = vmul.f32 %v238, %v110
  %v255 = vadd.f32 %v239, 1e-05
  %v256 = vadd.f32 %v240, 1e-05
  %v257 = vadd.f32 %v241, 1e-05
  %v258 = vadd.f32 %v242, 1e-05
  %v259 = vadd.f32 %v243, 1e-05
  %v260 = vadd.f32 %v244, 1e-05
  %v261 = vadd.f32 %v245, 1e-05
  %v262 = vadd.f32 %v246, 1e-05
  %v263 = vadd.f32 %v247, 1e-05
  %v264 = vadd.f32 %v248, 1e-05
  %v265 = vadd.f32 %v249, 1e-05
  %v266 = vadd.f32 %v250, 1e-05
  %v267 = vadd.f32 %v251, 1e-05
  %v268 = vadd.f32 %v252, 1e-05
  %v269 = vadd.f32 %v253, 1e-05
  %v270 = vadd.f32 %v254, 1e-05
  %v271 = vrsqrt.pop %v255
  %v272 = vrsqrt.pop %v256
  %v273 = vrsqrt.pop %v257
  %v274 = vrsqrt.pop %v258
  %v275 = vrsqrt.pop %v259
  %v276 = vrsqrt.pop %v260
  %v277 = vrsqrt.pop %v261
  %v278 = vrsqrt.pop %v262
  %v279 = vrsqrt.pop %v263
  %v280 = vrsqrt.pop %v264
  %v281 = vrsqrt.pop %v265
  %v282 = vrsqrt.pop %v266
  %v283 = vrsqrt.pop %v267
  %v284 = vrsqrt.pop %v268
  %v285 = vrsqrt.pop %v269
  %v286 = vrsqrt.pop %v270
  %v287 = vmul.f32 %v127, %v271
  %v288 = vmul.f32 %v128, %v271
  %v289 = vmul.f32 %v129, %v272
  %v290 = vmul.f32 %v130, %v272
  %v291 = vmul.f32 %v131, %v273
  %v292 = vmul.f32 %v132, %v273
  %v293 = vmul.f32 %v133, %v274
  %v294 = vmul.f32 %v134, %v274
  %v295 = vmul.f32 %v135, %v275
  %v296 = vmul.f32 %v136, %v275
  %v297 = vmul.f32 %v137, %v276
  %v298 = vmul.f32 %v138, %v276
  %v299 = vmul.f32 %v139, %v277
  %v300 = vmul.f32 %v140, %v277
  %v301 = vmul.f32 %v141, %v278
  %v302 = vmul.f32 %v142, %v278
  %v303 = vmul.f32 %v143, %v279
  %v304 = vmul.f32 %v144, %v279
  %v305 = vmul.f32 %v145, %v280
  %v306 = vmul.f32 %v146, %v280
  %v307 = vmul.f32 %v147, %v281
  %v308 = vmul.f32 %v148, %v281
  %v309 = vmul.f32 %v149, %v282
  %v310 = vmul.f32 %v150, %v282
  %v311 = vmul.f32 %v151, %v283
  %v312 = vmul.f32 %v152, %v283
  %v313 = vmul.f32 %v153, %v284
  %v314 = vmul.f32 %v154, %v284
  %v315 = vmul.f32 %v155, %v285
  %v316 = vmul.f32 %v156, %v285
  %v317 = vmul.f32 %v157, %v286
  %v318 = vmul.f32 %v158, %v286
  %v319 = vpack.c.bf16 %v289, %v287
  %v320 = vpack.c.bf16 %v290, %v288
  %v321 = vpack.c.bf16 %v293, %v291
  %v322 = vpack.c.bf16 %v294, %v292
  %v323 = vpack.c.bf16 %v297, %v295
  %v324 = vpack.c.bf16 %v298, %v296
  %v325 = vpack.c.bf16 %v301, %v299
  %v326 = vpack.c.bf16 %v302, %v300
  %v327 = vpack.c.bf16 %v305, %v303
  %v328 = vpack.c.bf16 %v306, %v304
  %v329 = vpack.c.bf16 %v309, %v307
  %v330 = vpack.c.bf16 %v310, %v308
  %v331 = vpack.c.bf16 %v313, %v311
  %v332 = vpack.c.bf16 %v314, %v312
  %v333 = vpack.c.bf16 %v317, %v315
  %v334 = vpack.c.bf16 %v318, %v316
  %v335 = vld [vmem:[%s1] sm:$0xff]
  %v336 = vld [vmem:[%s1 + $0x8] sm:$0xff]
  %v337 = vld [vmem:[%s1 + $0x10] sm:$0xff]
  %v338 = vld [vmem:[%s1 + $0x18] sm:$0xff]
  %v339 = vld [vmem:[%s1 + $0x20] sm:$0xff]
  %v340 = vld [vmem:[%s1 + $0x28] sm:$0xff]
  %v341 = vld [vmem:[%s1 + $0x30] sm:$0xff]
  %v342 = vld [vmem:[%s1 + $0x38] sm:$0xff]
  %v343 = vld [vmem:[%s1 + $0x40] sm:$0xff]
  %v344 = vld [vmem:[%s1 + $0x48] sm:$0xff]
  %v345 = vld [vmem:[%s1 + $0x50] sm:$0xff]
  %v346 = vld [vmem:[%s1 + $0x58] sm:$0xff]
  %v347 = vld [vmem:[%s1 + $0x60] sm:$0xff]
  %v348 = vld [vmem:[%s1 + $0x68] sm:$0xff]
  %v349 = vld [vmem:[%s1 + $0x70] sm:$0xff]
  %v350 = vld [vmem:[%s1 + $0x78] sm:$0xff]
  %v351 = vld [vmem:[%s1 + $0x80] sm:$0xff]
  %v352 = vld [vmem:[%s1 + $0x88] sm:$0xff]
  %v353 = vld [vmem:[%s1 + $0x90] sm:$0xff]
  %v354 = vld [vmem:[%s1 + $0x98] sm:$0xff]
  %v355 = vld [vmem:[%s1 + $0xa0] sm:$0xff]
  %v356 = vld [vmem:[%s1 + $0xa8] sm:$0xff]
  %v357 = vld [vmem:[%s1 + $0xb0] sm:$0xff]
  %v358 = vld [vmem:[%s1 + $0xb8] sm:$0xff]
  %v359 = vld [vmem:[%s1 + $0xc0] sm:$0xff]
  %v360 = vld [vmem:[%s1 + $0xc8] sm:$0xff]
  %v361 = vld [vmem:[%s1 + $0xd0] sm:$0xff]
  %v362 = vld [vmem:[%s1 + $0xd8] sm:$0xff]
  %v363 = vld [vmem:[%s1 + $0xe0] sm:$0xff]
  %v364 = vld [vmem:[%s1 + $0xe8] sm:$0xff]
  %v365 = vld [vmem:[%s1 + $0xf0] sm:$0xff]
  %v366 = vld [vmem:[%s1 + $0xf8] sm:$0xff]
  %v367 = vld [vmem:[%s1 + $0x100] sm:$0xff]
  %v368 = vld [vmem:[%s1 + $0x108] sm:$0xff]
  %v369 = vld [vmem:[%s1 + $0x110] sm:$0xff]
  %v370 = vld [vmem:[%s1 + $0x118] sm:$0xff]
  %v371 = vld [vmem:[%s1 + $0x120] sm:$0xff]
  %v372 = vld [vmem:[%s1 + $0x128] sm:$0xff]
  %v373 = vld [vmem:[%s1 + $0x130] sm:$0xff]
  %v374 = vld [vmem:[%s1 + $0x138] sm:$0xff]
  %v375 = vld [vmem:[%s1 + $0x140] sm:$0xff]
  %v376 = vld [vmem:[%s1 + $0x148] sm:$0xff]
  %v377 = vld [vmem:[%s1 + $0x150] sm:$0xff]
  %v378 = vld [vmem:[%s1 + $0x158] sm:$0xff]
  %v379 = vld [vmem:[%s1 + $0x160] sm:$0xff]
  %v380 = vld [vmem:[%s1 + $0x168] sm:$0xff]
  %v381 = vld [vmem:[%s1 + $0x170] sm:$0xff]
  %v382 = vld [vmem:[%s1 + $0x178] sm:$0xff]
  %v383 = vld [vmem:[%s1 + $0x180] sm:$0xff]
  %v384 = vld [vmem:[%s1 + $0x188] sm:$0xff]
  %v385 = vld [vmem:[%s1 + $0x190] sm:$0xff]
  %v386 = vld [vmem:[%s1 + $0x198] sm:$0xff]
  %v387 = vld [vmem:[%s1 + $0x1a0] sm:$0xff]
  %v388 = vld [vmem:[%s1 + $0x1a8] sm:$0xff]
  %v389 = vld [vmem:[%s1 + $0x1b0] sm:$0xff]
  %v390 = vld [vmem:[%s1 + $0x1b8] sm:$0xff]
  %v391 = vld [vmem:[%s1 + $0x1c0] sm:$0xff]
  %v392 = vld [vmem:[%s1 + $0x1c8] sm:$0xff]
  %v393 = vld [vmem:[%s1 + $0x1d0] sm:$0xff]
  %v394 = vld [vmem:[%s1 + $0x1d8] sm:$0xff]
  %v395 = vld [vmem:[%s1 + $0x1e0] sm:$0xff]
  %v396 = vld [vmem:[%s1 + $0x1e8] sm:$0xff]
  %v397 = vld [vmem:[%s1 + $0x1f0] sm:$0xff]
  %v398 = vld [vmem:[%s1 + $0x1f8] sm:$0xff]
  %v399 = vld [vmem:[%s1 + $0x200] sm:$0xff]
  %v400 = vld [vmem:[%s1 + $0x208] sm:$0xff]
  %v401 = vld [vmem:[%s1 + $0x210] sm:$0xff]
  %v402 = vld [vmem:[%s1 + $0x218] sm:$0xff]
  %v403 = vld [vmem:[%s1 + $0x220] sm:$0xff]
  %v404 = vld [vmem:[%s1 + $0x228] sm:$0xff]
  %v405 = vld [vmem:[%s1 + $0x230] sm:$0xff]
  %v406 = vld [vmem:[%s1 + $0x238] sm:$0xff]
  %v407 = vld [vmem:[%s1 + $0x240] sm:$0xff]
  %v408 = vld [vmem:[%s1 + $0x248] sm:$0xff]
  %v409 = vld [vmem:[%s1 + $0x250] sm:$0xff]
  %v410 = vld [vmem:[%s1 + $0x258] sm:$0xff]
  %v411 = vld [vmem:[%s1 + $0x260] sm:$0xff]
  %v412 = vld [vmem:[%s1 + $0x268] sm:$0xff]
  %v413 = vld [vmem:[%s1 + $0x270] sm:$0xff]
  %v414 = vld [vmem:[%s1 + $0x278] sm:$0xff]
  %v415 = vld [vmem:[%s1 + $0x280] sm:$0xff]
  %v416 = vld [vmem:[%s1 + $0x288] sm:$0xff]
  %v417 = vld [vmem:[%s1 + $0x290] sm:$0xff]
  %v418 = vld [vmem:[%s1 + $0x298] sm:$0xff]
  %v419 = vld [vmem:[%s1 + $0x2a0] sm:$0xff]
  %v420 = vld [vmem:[%s1 + $0x2a8] sm:$0xff]
  %v421 = vld [vmem:[%s1 + $0x2b0] sm:$0xff]
  %v422 = vld [vmem:[%s1 + $0x2b8] sm:$0xff]
  %v423 = vld [vmem:[%s1 + $0x2c0] sm:$0xff]
  %v424 = vld [vmem:[%s1 + $0x2c8] sm:$0xff]
  %v425 = vld [vmem:[%s1 + $0x2d0] sm:$0xff]
  %v426 = vld [vmem:[%s1 + $0x2d8] sm:$0xff]
  %v427 = vld [vmem:[%s1 + $0x2e0] sm:$0xff]
  %v428 = vld [vmem:[%s1 + $0x2e8] sm:$0xff]
  %v429 = vld [vmem:[%s1 + $0x2f0] sm:$0xff]
  %v430 = vld [vmem:[%s1 + $0x2f8] sm:$0xff]
  %v431 = vld [vmem:[%s1 + $0x300] sm:$0xff]
  %v432 = vld [vmem:[%s1 + $0x308] sm:$0xff]
  %v433 = vld [vmem:[%s1 + $0x310] sm:$0xff]
  %v434 = vld [vmem:[%s1 + $0x318] sm:$0xff]
  %v435 = vld [vmem:[%s1 + $0x320] sm:$0xff]
  %v436 = vld [vmem:[%s1 + $0x328] sm:$0xff]
  %v437 = vld [vmem:[%s1 + $0x330] sm:$0xff]
  %v438 = vld [vmem:[%s1 + $0x338] sm:$0xff]
  %v439 = vld [vmem:[%s1 + $0x340] sm:$0xff]
  %v440 = vld [vmem:[%s1 + $0x348] sm:$0xff]
  %v441 = vld [vmem:[%s1 + $0x350] sm:$0xff]
  %v442 = vld [vmem:[%s1 + $0x358] sm:$0xff]
  %v443 = vld [vmem:[%s1 + $0x360] sm:$0xff]
  %v444 = vld [vmem:[%s1 + $0x368] sm:$0xff]
  %v445 = vld [vmem:[%s1 + $0x370] sm:$0xff]
  %v446 = vld [vmem:[%s1 + $0x378] sm:$0xff]
  %v447 = vld [vmem:[%s1 + $0x380] sm:$0xff]
  %v448 = vld [vmem:[%s1 + $0x388] sm:$0xff]
  %v449 = vld [vmem:[%s1 + $0x390] sm:$0xff]
  %v450 = vld [vmem:[%s1 + $0x398] sm:$0xff]
  %v451 = vld [vmem:[%s1 + $0x3a0] sm:$0xff]
  %v452 = vld [vmem:[%s1 + $0x3a8] sm:$0xff]
  %v453 = vld [vmem:[%s1 + $0x3b0] sm:$0xff]
  %v454 = vld [vmem:[%s1 + $0x3b8] sm:$0xff]
  %v455 = vld [vmem:[%s1 + $0x3c0] sm:$0xff]
  %v456 = vld [vmem:[%s1 + $0x3c8] sm:$0xff]
  %v457 = vld [vmem:[%s1 + $0x3d0] sm:$0xff]
  %v458 = vld [vmem:[%s1 + $0x3d8] sm:$0xff]
  %v459 = vld [vmem:[%s1 + $0x3e0] sm:$0xff]
  %v460 = vld [vmem:[%s1 + $0x3e8] sm:$0xff]
  %v461 = vld [vmem:[%s1 + $0x3f0] sm:$0xff]
  %v462 = vld [vmem:[%s1 + $0x3f8] sm:$0xff]
  %v463 = vld [vmem:[%s2] sm:$0xff]
  %v465 = vlaneseq
  %v466 = vshrl.u32 %v465, 7
  %v467 = vsub.s32 0, %v466
  %v468 = vrot.slane %v463, %v467
  %v469 = vlaneseq
  %v470 = vshrl.u32 %v469, 7
  %v471 = vsub.s32 1, %v470
  %v472 = vrot.slane %v463, %v471
  %v473 = vlaneseq
  %v474 = vshrl.u32 %v473, 7
  %v475 = vsub.s32 2, %v474
  %v476 = vrot.slane %v463, %v475
  %v477 = vlaneseq
  %v478 = vshrl.u32 %v477, 7
  %v479 = vsub.s32 3, %v478
  %v480 = vrot.slane %v463, %v479
  %v481 = vlaneseq
  %v482 = vshrl.u32 %v481, 7
  %v483 = vsub.s32 4, %v482
  %v484 = vrot.slane %v463, %v483
  %v485 = vlaneseq
  %v486 = vshrl.u32 %v485, 7
  %v487 = vsub.s32 5, %v486
  %v488 = vrot.slane %v463, %v487
  %v489 = vlaneseq
  %v490 = vshrl.u32 %v489, 7
  %v491 = vsub.s32 6, %v490
  %v492 = vrot.slane %v463, %v491
  %v493 = vlaneseq
  %v494 = vshrl.u32 %v493, 7
  %v495 = vsub.s32 7, %v494
  %v496 = vrot.slane %v463, %v495
  %v633 = vunpack.c.l.b16 %v335
  %v634 = vunpack.c.h.b16 %v335
  %v635 = vunpack.c.l.b16 %v336
  %v636 = vunpack.c.h.b16 %v336
  %v637 = vunpack.c.l.b16 %v337
  %v638 = vunpack.c.h.b16 %v337
  %v639 = vunpack.c.l.b16 %v338
  %v640 = vunpack.c.h.b16 %v338
  %v641 = vunpack.c.l.b16 %v339
  %v642 = vunpack.c.h.b16 %v339
  %v643 = vunpack.c.l.b16 %v340
  %v644 = vunpack.c.h.b16 %v340
  %v645 = vunpack.c.l.b16 %v341
  %v646 = vunpack.c.h.b16 %v341
  %v647 = vunpack.c.l.b16 %v342
  %v648 = vunpack.c.h.b16 %v342
  %v649 = vunpack.c.l.b16 %v343
  %v650 = vunpack.c.h.b16 %v343
  %v651 = vunpack.c.l.b16 %v344
  %v652 = vunpack.c.h.b16 %v344
  %v653 = vunpack.c.l.b16 %v345
  %v654 = vunpack.c.h.b16 %v345
  %v655 = vunpack.c.l.b16 %v346
  %v656 = vunpack.c.h.b16 %v346
  %v657 = vunpack.c.l.b16 %v347
  %v658 = vunpack.c.h.b16 %v347
  %v659 = vunpack.c.l.b16 %v348
  %v660 = vunpack.c.h.b16 %v348
  %v661 = vunpack.c.l.b16 %v349
  %v662 = vunpack.c.h.b16 %v349
  %v663 = vunpack.c.l.b16 %v350
  %v664 = vunpack.c.h.b16 %v350
  %v665 = vunpack.c.l.b16 %v351
  %v666 = vunpack.c.h.b16 %v351
  %v667 = vunpack.c.l.b16 %v352
  %v668 = vunpack.c.h.b16 %v352
  %v669 = vunpack.c.l.b16 %v353
  %v670 = vunpack.c.h.b16 %v353
  %v671 = vunpack.c.l.b16 %v354
  %v672 = vunpack.c.h.b16 %v354
  %v673 = vunpack.c.l.b16 %v355
  %v674 = vunpack.c.h.b16 %v355
  %v675 = vunpack.c.l.b16 %v356
  %v676 = vunpack.c.h.b16 %v356
  %v677 = vunpack.c.l.b16 %v357
  %v678 = vunpack.c.h.b16 %v357
  %v679 = vunpack.c.l.b16 %v358
  %v680 = vunpack.c.h.b16 %v358
  %v681 = vunpack.c.l.b16 %v359
  %v682 = vunpack.c.h.b16 %v359
  %v683 = vunpack.c.l.b16 %v360
  %v684 = vunpack.c.h.b16 %v360
  %v685 = vunpack.c.l.b16 %v361
  %v686 = vunpack.c.h.b16 %v361
  %v687 = vunpack.c.l.b16 %v362
  %v688 = vunpack.c.h.b16 %v362
  %v689 = vunpack.c.l.b16 %v363
  %v690 = vunpack.c.h.b16 %v363
  %v691 = vunpack.c.l.b16 %v364
  %v692 = vunpack.c.h.b16 %v364
  %v693 = vunpack.c.l.b16 %v365
  %v694 = vunpack.c.h.b16 %v365
  %v695 = vunpack.c.l.b16 %v366
  %v696 = vunpack.c.h.b16 %v366
  %v697 = vunpack.c.l.b16 %v367
  %v698 = vunpack.c.h.b16 %v367
  %v699 = vunpack.c.l.b16 %v368
  %v700 = vunpack.c.h.b16 %v368
  %v701 = vunpack.c.l.b16 %v369
  %v702 = vunpack.c.h.b16 %v369
  %v703 = vunpack.c.l.b16 %v370
  %v704 = vunpack.c.h.b16 %v370
  %v705 = vunpack.c.l.b16 %v371
  %v706 = vunpack.c.h.b16 %v371
  %v707 = vunpack.c.l.b16 %v372
  %v708 = vunpack.c.h.b16 %v372
  %v709 = vunpack.c.l.b16 %v373
  %v710 = vunpack.c.h.b16 %v373
  %v711 = vunpack.c.l.b16 %v374
  %v712 = vunpack.c.h.b16 %v374
  %v713 = vunpack.c.l.b16 %v375
  %v714 = vunpack.c.h.b16 %v375
  %v715 = vunpack.c.l.b16 %v376
  %v716 = vunpack.c.h.b16 %v376
  %v717 = vunpack.c.l.b16 %v377
  %v718 = vunpack.c.h.b16 %v377
  %v719 = vunpack.c.l.b16 %v378
  %v720 = vunpack.c.h.b16 %v378
  %v721 = vunpack.c.l.b16 %v379
  %v722 = vunpack.c.h.b16 %v379
  %v723 = vunpack.c.l.b16 %v380
  %v724 = vunpack.c.h.b16 %v380
  %v725 = vunpack.c.l.b16 %v381
  %v726 = vunpack.c.h.b16 %v381
  %v727 = vunpack.c.l.b16 %v382
  %v728 = vunpack.c.h.b16 %v382
  %v729 = vunpack.c.l.b16 %v383
  %v730 = vunpack.c.h.b16 %v383
  %v731 = vunpack.c.l.b16 %v384
  %v732 = vunpack.c.h.b16 %v384
  %v733 = vunpack.c.l.b16 %v385
  %v734 = vunpack.c.h.b16 %v385
  %v735 = vunpack.c.l.b16 %v386
  %v736 = vunpack.c.h.b16 %v386
  %v737 = vunpack.c.l.b16 %v387
  %v738 = vunpack.c.h.b16 %v387
  %v739 = vunpack.c.l.b16 %v388
  %v740 = vunpack.c.h.b16 %v388
  %v741 = vunpack.c.l.b16 %v389
  %v742 = vunpack.c.h.b16 %v389
  %v743 = vunpack.c.l.b16 %v390
  %v744 = vunpack.c.h.b16 %v390
  %v745 = vunpack.c.l.b16 %v391
  %v746 = vunpack.c.h.b16 %v391
  %v747 = vunpack.c.l.b16 %v392
  %v748 = vunpack.c.h.b16 %v392
  %v749 = vunpack.c.l.b16 %v393
  %v750 = vunpack.c.h.b16 %v393
  %v751 = vunpack.c.l.b16 %v394
  %v752 = vunpack.c.h.b16 %v394
  %v753 = vunpack.c.l.b16 %v395
  %v754 = vunpack.c.h.b16 %v395
  %v755 = vunpack.c.l.b16 %v396
  %v756 = vunpack.c.h.b16 %v396
  %v757 = vunpack.c.l.b16 %v397
  %v758 = vunpack.c.h.b16 %v397
  %v759 = vunpack.c.l.b16 %v398
  %v760 = vunpack.c.h.b16 %v398
  %v761 = vunpack.c.l.b16 %v399
  %v762 = vunpack.c.h.b16 %v399
  %v763 = vunpack.c.l.b16 %v400
  %v764 = vunpack.c.h.b16 %v400
  %v765 = vunpack.c.l.b16 %v401
  %v766 = vunpack.c.h.b16 %v401
  %v767 = vunpack.c.l.b16 %v402
  %v768 = vunpack.c.h.b16 %v402
  %v769 = vunpack.c.l.b16 %v403
  %v770 = vunpack.c.h.b16 %v403
  %v771 = vunpack.c.l.b16 %v404
  %v772 = vunpack.c.h.b16 %v404
  %v773 = vunpack.c.l.b16 %v405
  %v774 = vunpack.c.h.b16 %v405
  %v775 = vunpack.c.l.b16 %v406
  %v776 = vunpack.c.h.b16 %v406
  %v777 = vunpack.c.l.b16 %v407
  %v778 = vunpack.c.h.b16 %v407
  %v779 = vunpack.c.l.b16 %v408
  %v780 = vunpack.c.h.b16 %v408
  %v781 = vunpack.c.l.b16 %v409
  %v782 = vunpack.c.h.b16 %v409
  %v783 = vunpack.c.l.b16 %v410
  %v784 = vunpack.c.h.b16 %v410
  %v785 = vunpack.c.l.b16 %v411
  %v786 = vunpack.c.h.b16 %v411
  %v787 = vunpack.c.l.b16 %v412
  %v788 = vunpack.c.h.b16 %v412
  %v789 = vunpack.c.l.b16 %v413
  %v790 = vunpack.c.h.b16 %v413
  %v791 = vunpack.c.l.b16 %v414
  %v792 = vunpack.c.h.b16 %v414
  %v793 = vunpack.c.l.b16 %v415
  %v794 = vunpack.c.h.b16 %v415
  %v795 = vunpack.c.l.b16 %v416
  %v796 = vunpack.c.h.b16 %v416
  %v797 = vunpack.c.l.b16 %v417
  %v798 = vunpack.c.h.b16 %v417
  %v799 = vunpack.c.l.b16 %v418
  %v800 = vunpack.c.h.b16 %v418
  %v801 = vunpack.c.l.b16 %v419
  %v802 = vunpack.c.h.b16 %v419
  %v803 = vunpack.c.l.b16 %v420
  %v804 = vunpack.c.h.b16 %v420
  %v805 = vunpack.c.l.b16 %v421
  %v806 = vunpack.c.h.b16 %v421
  %v807 = vunpack.c.l.b16 %v422
  %v808 = vunpack.c.h.b16 %v422
  %v809 = vunpack.c.l.b16 %v423
  %v810 = vunpack.c.h.b16 %v423
  %v811 = vunpack.c.l.b16 %v424
  %v812 = vunpack.c.h.b16 %v424
  %v813 = vunpack.c.l.b16 %v425
  %v814 = vunpack.c.h.b16 %v425
  %v815 = vunpack.c.l.b16 %v426
  %v816 = vunpack.c.h.b16 %v426
  %v817 = vunpack.c.l.b16 %v427
  %v818 = vunpack.c.h.b16 %v427
  %v819 = vunpack.c.l.b16 %v428
  %v820 = vunpack.c.h.b16 %v428
  %v821 = vunpack.c.l.b16 %v429
  %v822 = vunpack.c.h.b16 %v429
  %v823 = vunpack.c.l.b16 %v430
  %v824 = vunpack.c.h.b16 %v430
  %v825 = vunpack.c.l.b16 %v431
  %v826 = vunpack.c.h.b16 %v431
  %v827 = vunpack.c.l.b16 %v432
  %v828 = vunpack.c.h.b16 %v432
  %v829 = vunpack.c.l.b16 %v433
  %v830 = vunpack.c.h.b16 %v433
  %v831 = vunpack.c.l.b16 %v434
  %v832 = vunpack.c.h.b16 %v434
  %v833 = vunpack.c.l.b16 %v435
  %v834 = vunpack.c.h.b16 %v435
  %v835 = vunpack.c.l.b16 %v436
  %v836 = vunpack.c.h.b16 %v436
  %v837 = vunpack.c.l.b16 %v437
  %v838 = vunpack.c.h.b16 %v437
  %v839 = vunpack.c.l.b16 %v438
  %v840 = vunpack.c.h.b16 %v438
  %v841 = vunpack.c.l.b16 %v439
  %v842 = vunpack.c.h.b16 %v439
  %v843 = vunpack.c.l.b16 %v440
  %v844 = vunpack.c.h.b16 %v440
  %v845 = vunpack.c.l.b16 %v441
  %v846 = vunpack.c.h.b16 %v441
  %v847 = vunpack.c.l.b16 %v442
  %v848 = vunpack.c.h.b16 %v442
  %v849 = vunpack.c.l.b16 %v443
  %v850 = vunpack.c.h.b16 %v443
  %v851 = vunpack.c.l.b16 %v444
  %v852 = vunpack.c.h.b16 %v444
  %v853 = vunpack.c.l.b16 %v445
  %v854 = vunpack.c.h.b16 %v445
  %v855 = vunpack.c.l.b16 %v446
  %v856 = vunpack.c.h.b16 %v446
  %v857 = vunpack.c.l.b16 %v447
  %v858 = vunpack.c.h.b16 %v447
  %v859 = vunpack.c.l.b16 %v448
  %v860 = vunpack.c.h.b16 %v448
  %v861 = vunpack.c.l.b16 %v449
  %v862 = vunpack.c.h.b16 %v449
  %v863 = vunpack.c.l.b16 %v450
  %v864 = vunpack.c.h.b16 %v450
  %v865 = vunpack.c.l.b16 %v451
  %v866 = vunpack.c.h.b16 %v451
  %v867 = vunpack.c.l.b16 %v452
  %v868 = vunpack.c.h.b16 %v452
  %v869 = vunpack.c.l.b16 %v453
  %v870 = vunpack.c.h.b16 %v453
  %v871 = vunpack.c.l.b16 %v454
  %v872 = vunpack.c.h.b16 %v454
  %v873 = vunpack.c.l.b16 %v455
  %v874 = vunpack.c.h.b16 %v455
  %v875 = vunpack.c.l.b16 %v456
  %v876 = vunpack.c.h.b16 %v456
  %v877 = vunpack.c.l.b16 %v457
  %v878 = vunpack.c.h.b16 %v457
  %v879 = vunpack.c.l.b16 %v458
  %v880 = vunpack.c.h.b16 %v458
  %v881 = vunpack.c.l.b16 %v459
  %v882 = vunpack.c.h.b16 %v459
  %v883 = vunpack.c.l.b16 %v460
  %v884 = vunpack.c.h.b16 %v460
  %v885 = vunpack.c.l.b16 %v461
  %v886 = vunpack.c.h.b16 %v461
  %v887 = vunpack.c.l.b16 %v462
  %v888 = vunpack.c.h.b16 %v462
  %v889 = vpack.c.b16 %v641, %v633
  %v890 = vpack.c.b16 %v642, %v634
  %v891 = vpack.c.b16 %v643, %v635
  %v892 = vpack.c.b16 %v644, %v636
  %v893 = vpack.c.b16 %v645, %v637
  %v894 = vpack.c.b16 %v646, %v638
  %v895 = vpack.c.b16 %v647, %v639
  %v896 = vpack.c.b16 %v648, %v640
  %v897 = vpack.c.b16 %v657, %v649
  %v898 = vpack.c.b16 %v658, %v650
  %v899 = vpack.c.b16 %v659, %v651
  %v900 = vpack.c.b16 %v660, %v652
  %v901 = vpack.c.b16 %v661, %v653
  %v902 = vpack.c.b16 %v662, %v654
  %v903 = vpack.c.b16 %v663, %v655
  %v904 = vpack.c.b16 %v664, %v656
  %v905 = vpack.c.b16 %v673, %v665
  %v906 = vpack.c.b16 %v674, %v666
  %v907 = vpack.c.b16 %v675, %v667
  %v908 = vpack.c.b16 %v676, %v668
  %v909 = vpack.c.b16 %v677, %v669
  %v910 = vpack.c.b16 %v678, %v670
  %v911 = vpack.c.b16 %v679, %v671
  %v912 = vpack.c.b16 %v680, %v672
  %v913 = vpack.c.b16 %v689, %v681
  %v914 = vpack.c.b16 %v690, %v682
  %v915 = vpack.c.b16 %v691, %v683
  %v916 = vpack.c.b16 %v692, %v684
  %v917 = vpack.c.b16 %v693, %v685
  %v918 = vpack.c.b16 %v694, %v686
  %v919 = vpack.c.b16 %v695, %v687
  %v920 = vpack.c.b16 %v696, %v688
  %v921 = vpack.c.b16 %v705, %v697
  %v922 = vpack.c.b16 %v706, %v698
  %v923 = vpack.c.b16 %v707, %v699
  %v924 = vpack.c.b16 %v708, %v700
  %v925 = vpack.c.b16 %v709, %v701
  %v926 = vpack.c.b16 %v710, %v702
  %v927 = vpack.c.b16 %v711, %v703
  %v928 = vpack.c.b16 %v712, %v704
  %v929 = vpack.c.b16 %v721, %v713
  %v930 = vpack.c.b16 %v722, %v714
  %v931 = vpack.c.b16 %v723, %v715
  %v932 = vpack.c.b16 %v724, %v716
  %v933 = vpack.c.b16 %v725, %v717
  %v934 = vpack.c.b16 %v726, %v718
  %v935 = vpack.c.b16 %v727, %v719
  %v936 = vpack.c.b16 %v728, %v720
  %v937 = vpack.c.b16 %v737, %v729
  %v938 = vpack.c.b16 %v738, %v730
  %v939 = vpack.c.b16 %v739, %v731
  %v940 = vpack.c.b16 %v740, %v732
  %v941 = vpack.c.b16 %v741, %v733
  %v942 = vpack.c.b16 %v742, %v734
  %v943 = vpack.c.b16 %v743, %v735
  %v944 = vpack.c.b16 %v744, %v736
  %v945 = vpack.c.b16 %v753, %v745
  %v946 = vpack.c.b16 %v754, %v746
  %v947 = vpack.c.b16 %v755, %v747
  %v948 = vpack.c.b16 %v756, %v748
  %v949 = vpack.c.b16 %v757, %v749
  %v950 = vpack.c.b16 %v758, %v750
  %v951 = vpack.c.b16 %v759, %v751
  %v952 = vpack.c.b16 %v760, %v752
  %v953 = vpack.c.b16 %v769, %v761
  %v954 = vpack.c.b16 %v770, %v762
  %v955 = vpack.c.b16 %v771, %v763
  %v956 = vpack.c.b16 %v772, %v764
  %v957 = vpack.c.b16 %v773, %v765
  %v958 = vpack.c.b16 %v774, %v766
  %v959 = vpack.c.b16 %v775, %v767
  %v960 = vpack.c.b16 %v776, %v768
  %v961 = vpack.c.b16 %v785, %v777
  %v962 = vpack.c.b16 %v786, %v778
  %v963 = vpack.c.b16 %v787, %v779
  %v964 = vpack.c.b16 %v788, %v780
  %v965 = vpack.c.b16 %v789, %v781
  %v966 = vpack.c.b16 %v790, %v782
  %v967 = vpack.c.b16 %v791, %v783
  %v968 = vpack.c.b16 %v792, %v784
  %v969 = vpack.c.b16 %v801, %v793
  %v970 = vpack.c.b16 %v802, %v794
  %v971 = vpack.c.b16 %v803, %v795
  %v972 = vpack.c.b16 %v804, %v796
  %v973 = vpack.c.b16 %v805, %v797
  %v974 = vpack.c.b16 %v806, %v798
  %v975 = vpack.c.b16 %v807, %v799
  %v976 = vpack.c.b16 %v808, %v800
  %v977 = vpack.c.b16 %v817, %v809
  %v978 = vpack.c.b16 %v818, %v810
  %v979 = vpack.c.b16 %v819, %v811
  %v980 = vpack.c.b16 %v820, %v812
  %v981 = vpack.c.b16 %v821, %v813
  %v982 = vpack.c.b16 %v822, %v814
  %v983 = vpack.c.b16 %v823, %v815
  %v984 = vpack.c.b16 %v824, %v816
  %v985 = vpack.c.b16 %v833, %v825
  %v986 = vpack.c.b16 %v834, %v826
  %v987 = vpack.c.b16 %v835, %v827
  %v988 = vpack.c.b16 %v836, %v828
  %v989 = vpack.c.b16 %v837, %v829
  %v990 = vpack.c.b16 %v838, %v830
  %v991 = vpack.c.b16 %v839, %v831
  %v992 = vpack.c.b16 %v840, %v832
  %v993 = vpack.c.b16 %v849, %v841
  %v994 = vpack.c.b16 %v850, %v842
  %v995 = vpack.c.b16 %v851, %v843
  %v996 = vpack.c.b16 %v852, %v844
  %v997 = vpack.c.b16 %v853, %v845
  %v998 = vpack.c.b16 %v854, %v846
  %v999 = vpack.c.b16 %v855, %v847
  %v1000 = vpack.c.b16 %v856, %v848
  %v1001 = vpack.c.b16 %v865, %v857
  %v1002 = vpack.c.b16 %v866, %v858
  %v1003 = vpack.c.b16 %v867, %v859
  %v1004 = vpack.c.b16 %v868, %v860
  %v1005 = vpack.c.b16 %v869, %v861
  %v1006 = vpack.c.b16 %v870, %v862
  %v1007 = vpack.c.b16 %v871, %v863
  %v1008 = vpack.c.b16 %v872, %v864
  %v1009 = vpack.c.b16 %v881, %v873
  %v1010 = vpack.c.b16 %v882, %v874
  %v1011 = vpack.c.b16 %v883, %v875
  %v1012 = vpack.c.b16 %v884, %v876
  %v1013 = vpack.c.b16 %v885, %v877
  %v1014 = vpack.c.b16 %v886, %v878
  %v1015 = vpack.c.b16 %v887, %v879
  %v1016 = vpack.c.b16 %v888, %v880
  %1145 = vmatprep.subr.bf16.mxu0 %v890
  %1146 = vmatpush1.bf16.msra.mxu0 %v889
  %1147 = vmatprep.subr.bf16.mxu0 %v898
  %1148 = vmatpush1.bf16.msra.mxu0 %v897
  %1149 = vmatprep.subr.bf16.mxu0 %v906
  %1150 = vmatpush1.bf16.msra.mxu0 %v905
  %1151 = vmatprep.subr.bf16.mxu0 %v914
  %1152 = vmatpush1.bf16.msra.mxu0 %v913
  %1153 = vmatprep.subr.bf16.mxu0 %v922
  %1154 = vmatpush1.bf16.msra.mxu0 %v921
  %1155 = vmatprep.subr.bf16.mxu0 %v930
  %1156 = vmatpush1.bf16.msra.mxu0 %v929
  %1157 = vmatprep.subr.bf16.mxu0 %v938
  %1158 = vmatpush1.bf16.msra.mxu0 %v937
  %1159 = vmatprep.subr.bf16.mxu0 %v946
  %1160 = vmatpush1.bf16.msra.mxu0 %v945
  %1161 = vmatprep.subr.bf16.mxu0 %v954
  %1162 = vmatpush1.bf16.msra.mxu0 %v953
  %1163 = vmatprep.subr.bf16.mxu0 %v962
  %1164 = vmatpush1.bf16.msra.mxu0 %v961
  %1165 = vmatprep.subr.bf16.mxu0 %v970
  %1166 = vmatpush1.bf16.msra.mxu0 %v969
  %1167 = vmatprep.subr.bf16.mxu0 %v978
  %1168 = vmatpush1.bf16.msra.mxu0 %v977
  %1169 = vmatprep.subr.bf16.mxu0 %v986
  %1170 = vmatpush1.bf16.msra.mxu0 %v985
  %1171 = vmatprep.subr.bf16.mxu0 %v994
  %1172 = vmatpush1.bf16.msra.mxu0 %v993
  %1173 = vmatprep.subr.bf16.mxu0 %v1002
  %1174 = vmatpush1.bf16.msra.mxu0 %v1001
  %1175 = vmatprep.subr.bf16.mxu0 %v1010
  %1176 = vmatpush1.bf16.msra.mxu0 %v1009
  %1177 = vmatprep.mubr.bf16.mxu0 %v320
  %1178 = vmatmul.mubr.bf16.gmra.mrb[0].mxu0 %v319
  %v1179 = vpop.f32.mrb[0].mxu0
  %v1180 = vadd.f32 %v468, %v1179
  %v1181 = vpop.f32.mrb[0].mxu0
  %v1182 = vadd.f32 %v472, %v1181
  %v1183 = vpop.f32.mrb[0].mxu0
  %v1184 = vadd.f32 %v468, %v1183
  %v1185 = vpop.f32.mrb[0].mxu0
  %v1186 = vadd.f32 %v472, %v1185
  %1187 = vmatprep.mubr.bf16.mxu0 %v322
  %1188 = vmatmul.mubr.bf16.gmra.mrb[0].mxu0 %v321
  %v1189 = vpop.f32.mrb[0].mxu0
  %v1190 = vadd.f32 %v468, %v1189
  %v1191 = vpop.f32.mrb[0].mxu0
  %v1192 = vadd.f32 %v472, %v1191
  %v1193 = vpop.f32.mrb[0].mxu0
  %v1194 = vadd.f32 %v468, %v1193
  %v1195 = vpop.f32.mrb[0].mxu0
  %v1196 = vadd.f32 %v472, %v1195
  %1197 = vmatprep.mubr.bf16.mxu0 %v324
  %1198 = vmatmul.mubr.bf16.gmra.mrb[0].mxu0 %v323
  %v1199 = vpop.f32.mrb[0].mxu0
  %v1200 = vadd.f32 %v468, %v1199
  %v1201 = vpop.f32.mrb[0].mxu0
  %v1202 = vadd.f32 %v472, %v1201
  %v1203 = vpop.f32.mrb[0].mxu0
  %v1204 = vadd.f32 %v468, %v1203
  %v1205 = vpop.f32.mrb[0].mxu0
  %v1206 = vadd.f32 %v472, %v1205
  %1207 = vmatprep.mubr.bf16.mxu0 %v326
  %1208 = vmatmul.mubr.bf16.gmra.mrb[0].mxu0 %v325
  %v1209 = vpop.f32.mrb[0].mxu0
  %v1210 = vadd.f32 %v468, %v1209
  %v1211 = vpop.f32.mrb[0].mxu0
  %v1212 = vadd.f32 %v472, %v1211
  %v1213 = vpop.f32.mrb[0].mxu0
  %v1214 = vadd.f32 %v468, %v1213
  %v1215 = vpop.f32.mrb[0].mxu0
  %v1216 = vadd.f32 %v472, %v1215
  %1217 = vmatprep.mubr.bf16.mxu0 %v328
  %1218 = vmatmul.mubr.bf16.gmra.mrb[0].mxu0 %v327
  %v1219 = vpop.f32.mrb[0].mxu0
  %v1220 = vadd.f32 %v468, %v1219
  %v1221 = vpop.f32.mrb[0].mxu0
  %v1222 = vadd.f32 %v472, %v1221
  %v1223 = vpop.f32.mrb[0].mxu0
  %v1224 = vadd.f32 %v468, %v1223
  %v1225 = vpop.f32.mrb[0].mxu0
  %v1226 = vadd.f32 %v472, %v1225
  %1227 = vmatprep.mubr.bf16.mxu0 %v330
  %1228 = vmatmul.mubr.bf16.gmra.mrb[0].mxu0 %v329
  %v1229 = vpop.f32.mrb[0].mxu0
  %v1230 = vadd.f32 %v468, %v1229
  %v1231 = vpop.f32.mrb[0].mxu0
  %v1232 = vadd.f32 %v472, %v1231
  %v1233 = vpop.f32.mrb[0].mxu0
  %v1234 = vadd.f32 %v468, %v1233
  %v1235 = vpop.f32.mrb[0].mxu0
  %v1236 = vadd.f32 %v472, %v1235
  %1237 = vmatprep.mubr.bf16.mxu0 %v332
  %1238 = vmatmul.mubr.bf16.gmra.mrb[0].mxu0 %v331
  %v1239 = vpop.f32.mrb[0].mxu0
  %v1240 = vadd.f32 %v468, %v1239
  %v1241 = vpop.f32.mrb[0].mxu0
  %v1242 = vadd.f32 %v472, %v1241
  %v1243 = vpop.f32.mrb[0].mxu0
  %v1244 = vadd.f32 %v468, %v1243
  %v1245 = vpop.f32.mrb[0].mxu0
  %v1246 = vadd.f32 %v472, %v1245
  %1247 = vmatprep.mubr.bf16.mxu0 %v334
  %1248 = vmatmul.mubr.bf16.gmra.mrb[0].mxu0 %v333
  %v1249 = vpop.f32.mrb[0].mxu0
  %v1250 = vadd.f32 %v468, %v1249
  %v1251 = vpop.f32.mrb[0].mxu0
  %v1252 = vadd.f32 %v472, %v1251
  %v1253 = vpop.f32.mrb[0].mxu0
  %v1254 = vadd.f32 %v468, %v1253
  %v1255 = vpop.f32.mrb[0].mxu0
  %v1256 = vadd.f32 %v472, %v1255
  %1257 = vdwg.mxu0
  %1258 = vmatprep.subr.bf16.mxu0 %v892
  %1259 = vmatpush1.bf16.msra.mxu0 %v891
  %1260 = vmatprep.subr.bf16.mxu0 %v900
  %1261 = vmatpush1.bf16.msra.mxu0 %v899
  %1262 = vmatprep.subr.bf16.mxu0 %v908
  %1263 = vmatpush1.bf16.msra.mxu0 %v907
  %1264 = vmatprep.subr.bf16.mxu0 %v916
  %1265 = vmatpush1.bf16.msra.mxu0 %v915
  %1266 = vmatprep.subr.bf16.mxu0 %v924
  %1267 = vmatpush1.bf16.msra.mxu0 %v923
  %1268 = vmatprep.subr.bf16.mxu0 %v932
  %1269 = vmatpush1.bf16.msra.mxu0 %v931
  %1270 = vmatprep.subr.bf16.mxu0 %v940
  %1271 = vmatpush1.bf16.msra.mxu0 %v939
  %1272 = vmatprep.subr.bf16.mxu0 %v948
  %1273 = vmatpush1.bf16.msra.mxu0 %v947
  %1274 = vmatprep.subr.bf16.mxu0 %v956
  %1275 = vmatpush1.bf16.msra.mxu0 %v955
  %1276 = vmatprep.subr.bf16.mxu0 %v964
  %1277 = vmatpush1.bf16.msra.mxu0 %v963
  %1278 = vmatprep.subr.bf16.mxu0 %v972
  %1279 = vmatpush1.bf16.msra.mxu0 %v971
  %1280 = vmatprep.subr.bf16.mxu0 %v980
  %1281 = vmatpush1.bf16.msra.mxu0 %v979
  %1282 = vmatprep.subr.bf16.mxu0 %v988
  %1283 = vmatpush1.bf16.msra.mxu0 %v987
  %1284 = vmatprep.subr.bf16.mxu0 %v996
  %1285 = vmatpush1.bf16.msra.mxu0 %v995
  %1286 = vmatprep.subr.bf16.mxu0 %v1004
  %1287 = vmatpush1.bf16.msra.mxu0 %v1003
  %1288 = vmatprep.subr.bf16.mxu0 %v1012
  %1289 = vmatpush1.bf16.msra.mxu0 %v1011
  %1290 = vmatprep.mubr.bf16.mxu0 %v320
  %1291 = vmatmul.mubr.bf16.gmra.mrb[0].mxu0 %v319
  %v1292 = vpop.f32.mrb[0].mxu0
  %v1293 = vadd.f32 %v476, %v1292
  %v1294 = vpop.f32.mrb[0].mxu0
  %v1295 = vadd.f32 %v480, %v1294
  %v1296 = vpop.f32.mrb[0].mxu0
  %v1297 = vadd.f32 %v476, %v1296
  %v1298 = vpop.f32.mrb[0].mxu0
  %v1299 = vadd.f32 %v480, %v1298
  %1300 = vmatprep.mubr.bf16.mxu0 %v322
  %1301 = vmatmul.mubr.bf16.gmra.mrb[0].mxu0 %v321
  %v1302 = vpop.f32.mrb[0].mxu0
  %v1303 = vadd.f32 %v476, %v1302
  %v1304 = vpop.f32.mrb[0].mxu0
  %v1305 = vadd.f32 %v480, %v1304
  %v1306 = vpop.f32.mrb[0].mxu0
  %v1307 = vadd.f32 %v476, %v1306
  %v1308 = vpop.f32.mrb[0].mxu0
  %v1309 = vadd.f32 %v480, %v1308
  %1310 = vmatprep.mubr.bf16.mxu0 %v324
  %1311 = vmatmul.mubr.bf16.gmra.mrb[0].mxu0 %v323
  %v1312 = vpop.f32.mrb[0].mxu0
  %v1313 = vadd.f32 %v476, %v1312
  %v1314 = vpop.f32.mrb[0].mxu0
  %v1315 = vadd.f32 %v480, %v1314
  %v1316 = vpop.f32.mrb[0].mxu0
  %v1317 = vadd.f32 %v476, %v1316
  %v1318 = vpop.f32.mrb[0].mxu0
  %v1319 = vadd.f32 %v480, %v1318
  %1320 = vmatprep.mubr.bf16.mxu0 %v326
  %1321 = vmatmul.mubr.bf16.gmra.mrb[0].mxu0 %v325
  %v1322 = vpop.f32.mrb[0].mxu0
  %v1323 = vadd.f32 %v476, %v1322
  %v1324 = vpop.f32.mrb[0].mxu0
  %v1325 = vadd.f32 %v480, %v1324
  %v1326 = vpop.f32.mrb[0].mxu0
  %v1327 = vadd.f32 %v476, %v1326
  %v1328 = vpop.f32.mrb[0].mxu0
  %v1329 = vadd.f32 %v480, %v1328
  %1330 = vmatprep.mubr.bf16.mxu0 %v328
  %1331 = vmatmul.mubr.bf16.gmra.mrb[0].mxu0 %v327
  %v1332 = vpop.f32.mrb[0].mxu0
  %v1333 = vadd.f32 %v476, %v1332
  %v1334 = vpop.f32.mrb[0].mxu0
  %v1335 = vadd.f32 %v480, %v1334
  %v1336 = vpop.f32.mrb[0].mxu0
  %v1337 = vadd.f32 %v476, %v1336
  %v1338 = vpop.f32.mrb[0].mxu0
  %v1339 = vadd.f32 %v480, %v1338
  %1340 = vmatprep.mubr.bf16.mxu0 %v330
  %1341 = vmatmul.mubr.bf16.gmra.mrb[0].mxu0 %v329
  %v1342 = vpop.f32.mrb[0].mxu0
  %v1343 = vadd.f32 %v476, %v1342
  %v1344 = vpop.f32.mrb[0].mxu0
  %v1345 = vadd.f32 %v480, %v1344
  %v1346 = vpop.f32.mrb[0].mxu0
  %v1347 = vadd.f32 %v476, %v1346
  %v1348 = vpop.f32.mrb[0].mxu0
  %v1349 = vadd.f32 %v480, %v1348
  %1350 = vmatprep.mubr.bf16.mxu0 %v332
  %1351 = vmatmul.mubr.bf16.gmra.mrb[0].mxu0 %v331
  %v1352 = vpop.f32.mrb[0].mxu0
  %v1353 = vadd.f32 %v476, %v1352
  %v1354 = vpop.f32.mrb[0].mxu0
  %v1355 = vadd.f32 %v480, %v1354
  %v1356 = vpop.f32.mrb[0].mxu0
  %v1357 = vadd.f32 %v476, %v1356
  %v1358 = vpop.f32.mrb[0].mxu0
  %v1359 = vadd.f32 %v480, %v1358
  %1360 = vmatprep.mubr.bf16.mxu0 %v334
  %1361 = vmatmul.mubr.bf16.gmra.mrb[0].mxu0 %v333
  %v1362 = vpop.f32.mrb[0].mxu0
  %v1363 = vadd.f32 %v476, %v1362
  %v1364 = vpop.f32.mrb[0].mxu0
  %v1365 = vadd.f32 %v480, %v1364
  %v1366 = vpop.f32.mrb[0].mxu0
  %v1367 = vadd.f32 %v476, %v1366
  %v1368 = vpop.f32.mrb[0].mxu0
  %v1369 = vadd.f32 %v480, %v1368
  %1370 = vdwg.mxu0
  %1371 = vmatprep.subr.bf16.mxu0 %v894
  %1372 = vmatpush1.bf16.msra.mxu0 %v893
  %1373 = vmatprep.subr.bf16.mxu0 %v902
  %1374 = vmatpush1.bf16.msra.mxu0 %v901
  %1375 = vmatprep.subr.bf16.mxu0 %v910
  %1376 = vmatpush1.bf16.msra.mxu0 %v909
  %1377 = vmatprep.subr.bf16.mxu0 %v918
  %1378 = vmatpush1.bf16.msra.mxu0 %v917
  %1379 = vmatprep.subr.bf16.mxu0 %v926
  %1380 = vmatpush1.bf16.msra.mxu0 %v925
  %1381 = vmatprep.subr.bf16.mxu0 %v934
  %1382 = vmatpush1.bf16.msra.mxu0 %v933
  %1383 = vmatprep.subr.bf16.mxu0 %v942
  %1384 = vmatpush1.bf16.msra.mxu0 %v941
  %1385 = vmatprep.subr.bf16.mxu0 %v950
  %1386 = vmatpush1.bf16.msra.mxu0 %v949
  %1387 = vmatprep.subr.bf16.mxu0 %v958
  %1388 = vmatpush1.bf16.msra.mxu0 %v957
  %1389 = vmatprep.subr.bf16.mxu0 %v966
  %1390 = vmatpush1.bf16.msra.mxu0 %v965
  %1391 = vmatprep.subr.bf16.mxu0 %v974
  %1392 = vmatpush1.bf16.msra.mxu0 %v973
  %1393 = vmatprep.subr.bf16.mxu0 %v982
  %1394 = vmatpush1.bf16.msra.mxu0 %v981
  %1395 = vmatprep.subr.bf16.mxu0 %v990
  %1396 = vmatpush1.bf16.msra.mxu0 %v989
  %1397 = vmatprep.subr.bf16.mxu0 %v998
  %1398 = vmatpush1.bf16.msra.mxu0 %v997
  %1399 = vmatprep.subr.bf16.mxu0 %v1006
  %1400 = vmatpush1.bf16.msra.mxu0 %v1005
  %1401 = vmatprep.subr.bf16.mxu0 %v1014
  %1402 = vmatpush1.bf16.msra.mxu0 %v1013
  %1403 = vmatprep.mubr.bf16.mxu0 %v320
  %1404 = vmatmul.mubr.bf16.gmra.mrb[0].mxu0 %v319
  %v1405 = vpop.f32.mrb[0].mxu0
  %v1406 = vadd.f32 %v484, %v1405
  %v1407 = vpop.f32.mrb[0].mxu0
  %v1408 = vadd.f32 %v488, %v1407
  %v1409 = vpop.f32.mrb[0].mxu0
  %v1410 = vadd.f32 %v484, %v1409
  %v1411 = vpop.f32.mrb[0].mxu0
  %v1412 = vadd.f32 %v488, %v1411
  %1413 = vmatprep.mubr.bf16.mxu0 %v322
  %1414 = vmatmul.mubr.bf16.gmra.mrb[0].mxu0 %v321
  %v1415 = vpop.f32.mrb[0].mxu0
  %v1416 = vadd.f32 %v484, %v1415
  %v1417 = vpop.f32.mrb[0].mxu0
  %v1418 = vadd.f32 %v488, %v1417
  %v1419 = vpop.f32.mrb[0].mxu0
  %v1420 = vadd.f32 %v484, %v1419
  %v1421 = vpop.f32.mrb[0].mxu0
  %v1422 = vadd.f32 %v488, %v1421
  %1423 = vmatprep.mubr.bf16.mxu0 %v324
  %1424 = vmatmul.mubr.bf16.gmra.mrb[0].mxu0 %v323
  %v1425 = vpop.f32.mrb[0].mxu0
  %v1426 = vadd.f32 %v484, %v1425
  %v1427 = vpop.f32.mrb[0].mxu0
  %v1428 = vadd.f32 %v488, %v1427
  %v1429 = vpop.f32.mrb[0].mxu0
  %v1430 = vadd.f32 %v484, %v1429
  %v1431 = vpop.f32.mrb[0].mxu0
  %v1432 = vadd.f32 %v488, %v1431
  %1433 = vmatprep.mubr.bf16.mxu0 %v326
  %1434 = vmatmul.mubr.bf16.gmra.mrb[0].mxu0 %v325
  %v1435 = vpop.f32.mrb[0].mxu0
  %v1436 = vadd.f32 %v484, %v1435
  %v1437 = vpop.f32.mrb[0].mxu0
  %v1438 = vadd.f32 %v488, %v1437
  %v1439 = vpop.f32.mrb[0].mxu0
  %v1440 = vadd.f32 %v484, %v1439
  %v1441 = vpop.f32.mrb[0].mxu0
  %v1442 = vadd.f32 %v488, %v1441
  %1443 = vmatprep.mubr.bf16.mxu0 %v328
  %1444 = vmatmul.mubr.bf16.gmra.mrb[0].mxu0 %v327
  %v1445 = vpop.f32.mrb[0].mxu0
  %v1446 = vadd.f32 %v484, %v1445
  %v1447 = vpop.f32.mrb[0].mxu0
  %v1448 = vadd.f32 %v488, %v1447
  %v1449 = vpop.f32.mrb[0].mxu0
  %v1450 = vadd.f32 %v484, %v1449
  %v1451 = vpop.f32.mrb[0].mxu0
  %v1452 = vadd.f32 %v488, %v1451
  %1453 = vmatprep.mubr.bf16.mxu0 %v330
  %1454 = vmatmul.mubr.bf16.gmra.mrb[0].mxu0 %v329
  %v1455 = vpop.f32.mrb[0].mxu0
  %v1456 = vadd.f32 %v484, %v1455
  %v1457 = vpop.f32.mrb[0].mxu0
  %v1458 = vadd.f32 %v488, %v1457
  %v1459 = vpop.f32.mrb[0].mxu0
  %v1460 = vadd.f32 %v484, %v1459
  %v1461 = vpop.f32.mrb[0].mxu0
  %v1462 = vadd.f32 %v488, %v1461
  %1463 = vmatprep.mubr.bf16.mxu0 %v332
  %1464 = vmatmul.mubr.bf16.gmra.mrb[0].mxu0 %v331
  %v1465 = vpop.f32.mrb[0].mxu0
  %v1466 = vadd.f32 %v484, %v1465
  %v1467 = vpop.f32.mrb[0].mxu0
  %v1468 = vadd.f32 %v488, %v1467
  %v1469 = vpop.f32.mrb[0].mxu0
  %v1470 = vadd.f32 %v484, %v1469
  %v1471 = vpop.f32.mrb[0].mxu0
  %v1472 = vadd.f32 %v488, %v1471
  %1473 = vmatprep.mubr.bf16.mxu0 %v334
  %1474 = vmatmul.mubr.bf16.gmra.mrb[0].mxu0 %v333
  %v1475 = vpop.f32.mrb[0].mxu0
  %v1476 = vadd.f32 %v484, %v1475
  %v1477 = vpop.f32.mrb[0].mxu0
  %v1478 = vadd.f32 %v488, %v1477
  %v1479 = vpop.f32.mrb[0].mxu0
  %v1480 = vadd.f32 %v484, %v1479
  %v1481 = vpop.f32.mrb[0].mxu0
  %v1482 = vadd.f32 %v488, %v1481
  %1483 = vdwg.mxu0
  %1484 = vmatprep.subr.bf16.mxu0 %v896
  %1485 = vmatpush1.bf16.msra.mxu0 %v895
  %1486 = vmatprep.subr.bf16.mxu0 %v904
  %1487 = vmatpush1.bf16.msra.mxu0 %v903
  %1488 = vmatprep.subr.bf16.mxu0 %v912
  %1489 = vmatpush1.bf16.msra.mxu0 %v911
  %1490 = vmatprep.subr.bf16.mxu0 %v920
  %1491 = vmatpush1.bf16.msra.mxu0 %v919
  %1492 = vmatprep.subr.bf16.mxu0 %v928
  %1493 = vmatpush1.bf16.msra.mxu0 %v927
  %1494 = vmatprep.subr.bf16.mxu0 %v936
  %1495 = vmatpush1.bf16.msra.mxu0 %v935
  %1496 = vmatprep.subr.bf16.mxu0 %v944
  %1497 = vmatpush1.bf16.msra.mxu0 %v943
  %1498 = vmatprep.subr.bf16.mxu0 %v952
  %1499 = vmatpush1.bf16.msra.mxu0 %v951
  %1500 = vmatprep.subr.bf16.mxu0 %v960
  %1501 = vmatpush1.bf16.msra.mxu0 %v959
  %1502 = vmatprep.subr.bf16.mxu0 %v968
  %1503 = vmatpush1.bf16.msra.mxu0 %v967
  %1504 = vmatprep.subr.bf16.mxu0 %v976
  %1505 = vmatpush1.bf16.msra.mxu0 %v975
  %1506 = vmatprep.subr.bf16.mxu0 %v984
  %1507 = vmatpush1.bf16.msra.mxu0 %v983
  %1508 = vmatprep.subr.bf16.mxu0 %v992
  %1509 = vmatpush1.bf16.msra.mxu0 %v991
  %1510 = vmatprep.subr.bf16.mxu0 %v1000
  %1511 = vmatpush1.bf16.msra.mxu0 %v999
  %1512 = vmatprep.subr.bf16.mxu0 %v1008
  %1513 = vmatpush1.bf16.msra.mxu0 %v1007
  %1514 = vmatprep.subr.bf16.mxu0 %v1016
  %1515 = vmatpush1.bf16.msra.mxu0 %v1015
  %1516 = vmatprep.mubr.bf16.mxu0 %v320
  %1517 = vmatmul.mubr.bf16.gmra.mrb[0].mxu0 %v319
  %v1518 = vpop.f32.mrb[0].mxu0
  %v1519 = vadd.f32 %v492, %v1518
  %v1520 = vpop.f32.mrb[0].mxu0
  %v1521 = vadd.f32 %v496, %v1520
  %v1522 = vpop.f32.mrb[0].mxu0
  %v1523 = vadd.f32 %v492, %v1522
  %v1524 = vpop.f32.mrb[0].mxu0
  %v1525 = vadd.f32 %v496, %v1524
  %1526 = vmatprep.mubr.bf16.mxu0 %v322
  %1527 = vmatmul.mubr.bf16.gmra.mrb[0].mxu0 %v321
  %v1528 = vpop.f32.mrb[0].mxu0
  %v1529 = vadd.f32 %v492, %v1528
  %v1530 = vpop.f32.mrb[0].mxu0
  %v1531 = vadd.f32 %v496, %v1530
  %v1532 = vpop.f32.mrb[0].mxu0
  %v1533 = vadd.f32 %v492, %v1532
  %v1534 = vpop.f32.mrb[0].mxu0
  %v1535 = vadd.f32 %v496, %v1534
  %1536 = vmatprep.mubr.bf16.mxu0 %v324
  %1537 = vmatmul.mubr.bf16.gmra.mrb[0].mxu0 %v323
  %v1538 = vpop.f32.mrb[0].mxu0
  %v1539 = vadd.f32 %v492, %v1538
  %v1540 = vpop.f32.mrb[0].mxu0
  %v1541 = vadd.f32 %v496, %v1540
  %v1542 = vpop.f32.mrb[0].mxu0
  %v1543 = vadd.f32 %v492, %v1542
  %v1544 = vpop.f32.mrb[0].mxu0
  %v1545 = vadd.f32 %v496, %v1544
  %1546 = vmatprep.mubr.bf16.mxu0 %v326
  %1547 = vmatmul.mubr.bf16.gmra.mrb[0].mxu0 %v325
  %v1548 = vpop.f32.mrb[0].mxu0
  %v1549 = vadd.f32 %v492, %v1548
  %v1550 = vpop.f32.mrb[0].mxu0
  %v1551 = vadd.f32 %v496, %v1550
  %v1552 = vpop.f32.mrb[0].mxu0
  %v1553 = vadd.f32 %v492, %v1552
  %v1554 = vpop.f32.mrb[0].mxu0
  %v1555 = vadd.f32 %v496, %v1554
  %1556 = vmatprep.mubr.bf16.mxu0 %v328
  %1557 = vmatmul.mubr.bf16.gmra.mrb[0].mxu0 %v327
  %v1558 = vpop.f32.mrb[0].mxu0
  %v1559 = vadd.f32 %v492, %v1558
  %v1560 = vpop.f32.mrb[0].mxu0
  %v1561 = vadd.f32 %v496, %v1560
  %v1562 = vpop.f32.mrb[0].mxu0
  %v1563 = vadd.f32 %v492, %v1562
  %v1564 = vpop.f32.mrb[0].mxu0
  %v1565 = vadd.f32 %v496, %v1564
  %1566 = vmatprep.mubr.bf16.mxu0 %v330
  %1567 = vmatmul.mubr.bf16.gmra.mrb[0].mxu0 %v329
  %v1568 = vpop.f32.mrb[0].mxu0
  %v1569 = vadd.f32 %v492, %v1568
  %v1570 = vpop.f32.mrb[0].mxu0
  %v1571 = vadd.f32 %v496, %v1570
  %v1572 = vpop.f32.mrb[0].mxu0
  %v1573 = vadd.f32 %v492, %v1572
  %v1574 = vpop.f32.mrb[0].mxu0
  %v1575 = vadd.f32 %v496, %v1574
  %1576 = vmatprep.mubr.bf16.mxu0 %v332
  %1577 = vmatmul.mubr.bf16.gmra.mrb[0].mxu0 %v331
  %v1578 = vpop.f32.mrb[0].mxu0
  %v1579 = vadd.f32 %v492, %v1578
  %v1580 = vpop.f32.mrb[0].mxu0
  %v1581 = vadd.f32 %v496, %v1580
  %v1582 = vpop.f32.mrb[0].mxu0
  %v1583 = vadd.f32 %v492, %v1582
  %v1584 = vpop.f32.mrb[0].mxu0
  %v1585 = vadd.f32 %v496, %v1584
  %1586 = vmatprep.mubr.bf16.mxu0 %v334
  %1587 = vmatmul.mubr.bf16.gmra.mrb[0].mxu0 %v333
  %v1588 = vpop.f32.mrb[0].mxu0
  %v1589 = vadd.f32 %v492, %v1588
  %v1590 = vpop.f32.mrb[0].mxu0
  %v1591 = vadd.f32 %v496, %v1590
  %v1592 = vpop.f32.mrb[0].mxu0
  %v1593 = vadd.f32 %v492, %v1592
  %v1594 = vpop.f32.mrb[0].mxu0
  %v1595 = vadd.f32 %v496, %v1594
  %1596 = vdwg.mxu0
  %v1597 = vmul.f32 %v1180, 0.5
  %v1598 = vmul.f32 %v1182, 0.5
  %v1599 = vmul.f32 %v1293, 0.5
  %v1600 = vmul.f32 %v1295, 0.5
  %v1601 = vmul.f32 %v1406, 0.5
  %v1602 = vmul.f32 %v1408, 0.5
  %v1603 = vmul.f32 %v1519, 0.5
  %v1604 = vmul.f32 %v1521, 0.5
  %v1605 = vmul.f32 %v1184, 0.5
  %v1606 = vmul.f32 %v1186, 0.5
  %v1607 = vmul.f32 %v1297, 0.5
  %v1608 = vmul.f32 %v1299, 0.5
  %v1609 = vmul.f32 %v1410, 0.5
  %v1610 = vmul.f32 %v1412, 0.5
  %v1611 = vmul.f32 %v1523, 0.5
  %v1612 = vmul.f32 %v1525, 0.5
  %v1613 = vmul.f32 %v1190, 0.5
  %v1614 = vmul.f32 %v1192, 0.5
  %v1615 = vmul.f32 %v1303, 0.5
  %v1616 = vmul.f32 %v1305, 0.5
  %v1617 = vmul.f32 %v1416, 0.5
  %v1618 = vmul.f32 %v1418, 0.5
  %v1619 = vmul.f32 %v1529, 0.5
  %v1620 = vmul.f32 %v1531, 0.5
  %v1621 = vmul.f32 %v1194, 0.5
  %v1622 = vmul.f32 %v1196, 0.5
  %v1623 = vmul.f32 %v1307, 0.5
  %v1624 = vmul.f32 %v1309, 0.5
  %v1625 = vmul.f32 %v1420, 0.5
  %v1626 = vmul.f32 %v1422, 0.5
  %v1627 = vmul.f32 %v1533, 0.5
  %v1628 = vmul.f32 %v1535, 0.5
  %v1629 = vmul.f32 %v1200, 0.5
  %v1630 = vmul.f32 %v1202, 0.5
  %v1631 = vmul.f32 %v1313, 0.5
  %v1632 = vmul.f32 %v1315, 0.5
  %v1633 = vmul.f32 %v1426, 0.5
  %v1634 = vmul.f32 %v1428, 0.5
  %v1635 = vmul.f32 %v1539, 0.5
  %v1636 = vmul.f32 %v1541, 0.5
  %v1637 = vmul.f32 %v1204, 0.5
  %v1638 = vmul.f32 %v1206, 0.5
  %v1639 = vmul.f32 %v1317, 0.5
  %v1640 = vmul.f32 %v1319, 0.5
  %v1641 = vmul.f32 %v1430, 0.5
  %v1642 = vmul.f32 %v1432, 0.5
  %v1643 = vmul.f32 %v1543, 0.5
  %v1644 = vmul.f32 %v1545, 0.5
  %v1645 = vmul.f32 %v1210, 0.5
  %v1646 = vmul.f32 %v1212, 0.5
  %v1647 = vmul.f32 %v1323, 0.5
  %v1648 = vmul.f32 %v1325, 0.5
  %v1649 = vmul.f32 %v1436, 0.5
  %v1650 = vmul.f32 %v1438, 0.5
  %v1651 = vmul.f32 %v1549, 0.5
  %v1652 = vmul.f32 %v1551, 0.5
  %v1653 = vmul.f32 %v1214, 0.5
  %v1654 = vmul.f32 %v1216, 0.5
  %v1655 = vmul.f32 %v1327, 0.5
  %v1656 = vmul.f32 %v1329, 0.5
  %v1657 = vmul.f32 %v1440, 0.5
  %v1658 = vmul.f32 %v1442, 0.5
  %v1659 = vmul.f32 %v1553, 0.5
  %v1660 = vmul.f32 %v1555, 0.5
  %v1661 = vmul.f32 %v1220, 0.5
  %v1662 = vmul.f32 %v1222, 0.5
  %v1663 = vmul.f32 %v1333, 0.5
  %v1664 = vmul.f32 %v1335, 0.5
  %v1665 = vmul.f32 %v1446, 0.5
  %v1666 = vmul.f32 %v1448, 0.5
  %v1667 = vmul.f32 %v1559, 0.5
  %v1668 = vmul.f32 %v1561, 0.5
  %v1669 = vmul.f32 %v1224, 0.5
  %v1670 = vmul.f32 %v1226, 0.5
  %v1671 = vmul.f32 %v1337, 0.5
  %v1672 = vmul.f32 %v1339, 0.5
  %v1673 = vmul.f32 %v1450, 0.5
  %v1674 = vmul.f32 %v1452, 0.5
  %v1675 = vmul.f32 %v1563, 0.5
  %v1676 = vmul.f32 %v1565, 0.5
  %v1677 = vmul.f32 %v1230, 0.5
  %v1678 = vmul.f32 %v1232, 0.5
  %v1679 = vmul.f32 %v1343, 0.5
  %v1680 = vmul.f32 %v1345, 0.5
  %v1681 = vmul.f32 %v1456, 0.5
  %v1682 = vmul.f32 %v1458, 0.5
  %v1683 = vmul.f32 %v1569, 0.5
  %v1684 = vmul.f32 %v1571, 0.5
  %v1685 = vmul.f32 %v1234, 0.5
  %v1686 = vmul.f32 %v1236, 0.5
  %v1687 = vmul.f32 %v1347, 0.5
  %v1688 = vmul.f32 %v1349, 0.5
  %v1689 = vmul.f32 %v1460, 0.5
  %v1690 = vmul.f32 %v1462, 0.5
  %v1691 = vmul.f32 %v1573, 0.5
  %v1692 = vmul.f32 %v1575, 0.5
  %v1693 = vmul.f32 %v1240, 0.5
  %v1694 = vmul.f32 %v1242, 0.5
  %v1695 = vmul.f32 %v1353, 0.5
  %v1696 = vmul.f32 %v1355, 0.5
  %v1697 = vmul.f32 %v1466, 0.5
  %v1698 = vmul.f32 %v1468, 0.5
  %v1699 = vmul.f32 %v1579, 0.5
  %v1700 = vmul.f32 %v1581, 0.5
  %v1701 = vmul.f32 %v1244, 0.5
  %v1702 = vmul.f32 %v1246, 0.5
  %v1703 = vmul.f32 %v1357, 0.5
  %v1704 = vmul.f32 %v1359, 0.5
  %v1705 = vmul.f32 %v1470, 0.5
  %v1706 = vmul.f32 %v1472, 0.5
  %v1707 = vmul.f32 %v1583, 0.5
  %v1708 = vmul.f32 %v1585, 0.5
  %v1709 = vmul.f32 %v1250, 0.5
  %v1710 = vmul.f32 %v1252, 0.5
  %v1711 = vmul.f32 %v1363, 0.5
  %v1712 = vmul.f32 %v1365, 0.5
  %v1713 = vmul.f32 %v1476, 0.5
  %v1714 = vmul.f32 %v1478, 0.5
  %v1715 = vmul.f32 %v1589, 0.5
  %v1716 = vmul.f32 %v1591, 0.5
  %v1717 = vmul.f32 %v1254, 0.5
  %v1718 = vmul.f32 %v1256, 0.5
  %v1719 = vmul.f32 %v1367, 0.5
  %v1720 = vmul.f32 %v1369, 0.5
  %v1721 = vmul.f32 %v1480, 0.5
  %v1722 = vmul.f32 %v1482, 0.5
  %v1723 = vmul.f32 %v1593, 0.5
  %v1724 = vmul.f32 %v1595, 0.5
  %v1725 = vmul.f32 %v1180, 0.044715
  %v1726 = vmul.f32 %v1182, 0.044715
  %v1727 = vmul.f32 %v1293, 0.044715
  %v1728 = vmul.f32 %v1295, 0.044715
  %v1729 = vmul.f32 %v1406, 0.044715
  %v1730 = vmul.f32 %v1408, 0.044715
  %v1731 = vmul.f32 %v1519, 0.044715
  %v1732 = vmul.f32 %v1521, 0.044715
  %v1733 = vmul.f32 %v1184, 0.044715
  %v1734 = vmul.f32 %v1186, 0.044715
  %v1735 = vmul.f32 %v1297, 0.044715
  %v1736 = vmul.f32 %v1299, 0.044715
  %v1737 = vmul.f32 %v1410, 0.044715
  %v1738 = vmul.f32 %v1412, 0.044715
  %v1739 = vmul.f32 %v1523, 0.044715
  %v1740 = vmul.f32 %v1525, 0.044715
  %v1741 = vmul.f32 %v1190, 0.044715
  %v1742 = vmul.f32 %v1192, 0.044715
  %v1743 = vmul.f32 %v1303, 0.044715
  %v1744 = vmul.f32 %v1305, 0.044715
  %v1745 = vmul.f32 %v1416, 0.044715
  %v1746 = vmul.f32 %v1418, 0.044715
  %v1747 = vmul.f32 %v1529, 0.044715
  %v1748 = vmul.f32 %v1531, 0.044715
  %v1749 = vmul.f32 %v1194, 0.044715
  %v1750 = vmul.f32 %v1196, 0.044715
  %v1751 = vmul.f32 %v1307, 0.044715
  %v1752 = vmul.f32 %v1309, 0.044715
  %v1753 = vmul.f32 %v1420, 0.044715
  %v1754 = vmul.f32 %v1422, 0.044715
  %v1755 = vmul.f32 %v1533, 0.044715
  %v1756 = vmul.f32 %v1535, 0.044715
  %v1757 = vmul.f32 %v1200, 0.044715
  %v1758 = vmul.f32 %v1202, 0.044715
  %v1759 = vmul.f32 %v1313, 0.044715
  %v1760 = vmul.f32 %v1315, 0.044715
  %v1761 = vmul.f32 %v1426, 0.044715
  %v1762 = vmul.f32 %v1428, 0.044715
  %v1763 = vmul.f32 %v1539, 0.044715
  %v1764 = vmul.f32 %v1541, 0.044715
  %v1765 = vmul.f32 %v1204, 0.044715
  %v1766 = vmul.f32 %v1206, 0.044715
  %v1767 = vmul.f32 %v1317, 0.044715
  %v1768 = vmul.f32 %v1319, 0.044715
  %v1769 = vmul.f32 %v1430, 0.044715
  %v1770 = vmul.f32 %v1432, 0.044715
  %v1771 = vmul.f32 %v1543, 0.044715
  %v1772 = vmul.f32 %v1545, 0.044715
  %v1773 = vmul.f32 %v1210, 0.044715
  %v1774 = vmul.f32 %v1212, 0.044715
  %v1775 = vmul.f32 %v1323, 0.044715
  %v1776 = vmul.f32 %v1325, 0.044715
  %v1777 = vmul.f32 %v1436, 0.044715
  %v1778 = vmul.f32 %v1438, 0.044715
  %v1779 = vmul.f32 %v1549, 0.044715
  %v1780 = vmul.f32 %v1551, 0.044715
  %v1781 = vmul.f32 %v1214, 0.044715
  %v1782 = vmul.f32 %v1216, 0.044715
  %v1783 = vmul.f32 %v1327, 0.044715
  %v1784 = vmul.f32 %v1329, 0.044715
  %v1785 = vmul.f32 %v1440, 0.044715
  %v1786 = vmul.f32 %v1442, 0.044715
  %v1787 = vmul.f32 %v1553, 0.044715
  %v1788 = vmul.f32 %v1555, 0.044715
  %v1789 = vmul.f32 %v1220, 0.044715
  %v1790 = vmul.f32 %v1222, 0.044715
  %v1791 = vmul.f32 %v1333, 0.044715
  %v1792 = vmul.f32 %v1335, 0.044715
  %v1793 = vmul.f32 %v1446, 0.044715
  %v1794 = vmul.f32 %v1448, 0.044715
  %v1795 = vmul.f32 %v1559, 0.044715
  %v1796 = vmul.f32 %v1561, 0.044715
  %v1797 = vmul.f32 %v1224, 0.044715
  %v1798 = vmul.f32 %v1226, 0.044715
  %v1799 = vmul.f32 %v1337, 0.044715
  %v1800 = vmul.f32 %v1339, 0.044715
  %v1801 = vmul.f32 %v1450, 0.044715
  %v1802 = vmul.f32 %v1452, 0.044715
  %v1803 = vmul.f32 %v1563, 0.044715
  %v1804 = vmul.f32 %v1565, 0.044715
  %v1805 = vmul.f32 %v1230, 0.044715
  %v1806 = vmul.f32 %v1232, 0.044715
  %v1807 = vmul.f32 %v1343, 0.044715
  %v1808 = vmul.f32 %v1345, 0.044715
  %v1809 = vmul.f32 %v1456, 0.044715
  %v1810 = vmul.f32 %v1458, 0.044715
  %v1811 = vmul.f32 %v1569, 0.044715
  %v1812 = vmul.f32 %v1571, 0.044715
  %v1813 = vmul.f32 %v1234, 0.044715
  %v1814 = vmul.f32 %v1236, 0.044715
  %v1815 = vmul.f32 %v1347, 0.044715
  %v1816 = vmul.f32 %v1349, 0.044715
  %v1817 = vmul.f32 %v1460, 0.044715
  %v1818 = vmul.f32 %v1462, 0.044715
  %v1819 = vmul.f32 %v1573, 0.044715
  %v1820 = vmul.f32 %v1575, 0.044715
  %v1821 = vmul.f32 %v1240, 0.044715
  %v1822 = vmul.f32 %v1242, 0.044715
  %v1823 = vmul.f32 %v1353, 0.044715
  %v1824 = vmul.f32 %v1355, 0.044715
  %v1825 = vmul.f32 %v1466, 0.044715
  %v1826 = vmul.f32 %v1468, 0.044715
  %v1827 = vmul.f32 %v1579, 0.044715
  %v1828 = vmul.f32 %v1581, 0.044715
  %v1829 = vmul.f32 %v1244, 0.044715
  %v1830 = vmul.f32 %v1246, 0.044715
  %v1831 = vmul.f32 %v1357, 0.044715
  %v1832 = vmul.f32 %v1359, 0.044715
  %v1833 = vmul.f32 %v1470, 0.044715
  %v1834 = vmul.f32 %v1472, 0.044715
  %v1835 = vmul.f32 %v1583, 0.044715
  %v1836 = vmul.f32 %v1585, 0.044715
  %v1837 = vmul.f32 %v1250, 0.044715
  %v1838 = vmul.f32 %v1252, 0.044715
  %v1839 = vmul.f32 %v1363, 0.044715
  %v1840 = vmul.f32 %v1365, 0.044715
  %v1841 = vmul.f32 %v1476, 0.044715
  %v1842 = vmul.f32 %v1478, 0.044715
  %v1843 = vmul.f32 %v1589, 0.044715
  %v1844 = vmul.f32 %v1591, 0.044715
  %v1845 = vmul.f32 %v1254, 0.044715
  %v1846 = vmul.f32 %v1256, 0.044715
  %v1847 = vmul.f32 %v1367, 0.044715
  %v1848 = vmul.f32 %v1369, 0.044715
  %v1849 = vmul.f32 %v1480, 0.044715
  %v1850 = vmul.f32 %v1482, 0.044715
  %v1851 = vmul.f32 %v1593, 0.044715
  %v1852 = vmul.f32 %v1595, 0.044715
  %v1853 = vmul.f32 %v1725, %v1180
  %v1854 = vmul.f32 %v1726, %v1182
  %v1855 = vmul.f32 %v1727, %v1293
  %v1856 = vmul.f32 %v1728, %v1295
  %v1857 = vmul.f32 %v1729, %v1406
  %v1858 = vmul.f32 %v1730, %v1408
  %v1859 = vmul.f32 %v1731, %v1519
  %v1860 = vmul.f32 %v1732, %v1521
  %v1861 = vmul.f32 %v1733, %v1184
  %v1862 = vmul.f32 %v1734, %v1186
  %v1863 = vmul.f32 %v1735, %v1297
  %v1864 = vmul.f32 %v1736, %v1299
  %v1865 = vmul.f32 %v1737, %v1410
  %v1866 = vmul.f32 %v1738, %v1412
  %v1867 = vmul.f32 %v1739, %v1523
  %v1868 = vmul.f32 %v1740, %v1525
  %v1869 = vmul.f32 %v1741, %v1190
  %v1870 = vmul.f32 %v1742, %v1192
  %v1871 = vmul.f32 %v1743, %v1303
  %v1872 = vmul.f32 %v1744, %v1305
  %v1873 = vmul.f32 %v1745, %v1416
  %v1874 = vmul.f32 %v1746, %v1418
  %v1875 = vmul.f32 %v1747, %v1529
  %v1876 = vmul.f32 %v1748, %v1531
  %v1877 = vmul.f32 %v1749, %v1194
  %v1878 = vmul.f32 %v1750, %v1196
  %v1879 = vmul.f32 %v1751, %v1307
  %v1880 = vmul.f32 %v1752, %v1309
  %v1881 = vmul.f32 %v1753, %v1420
  %v1882 = vmul.f32 %v1754, %v1422
  %v1883 = vmul.f32 %v1755, %v1533
  %v1884 = vmul.f32 %v1756, %v1535
  %v1885 = vmul.f32 %v1757, %v1200
  %v1886 = vmul.f32 %v1758, %v1202
  %v1887 = vmul.f32 %v1759, %v1313
  %v1888 = vmul.f32 %v1760, %v1315
  %v1889 = vmul.f32 %v1761, %v1426
  %v1890 = vmul.f32 %v1762, %v1428
  %v1891 = vmul.f32 %v1763, %v1539
  %v1892 = vmul.f32 %v1764, %v1541
  %v1893 = vmul.f32 %v1765, %v1204
  %v1894 = vmul.f32 %v1766, %v1206
  %v1895 = vmul.f32 %v1767, %v1317
  %v1896 = vmul.f32 %v1768, %v1319
  %v1897 = vmul.f32 %v1769, %v1430
  %v1898 = vmul.f32 %v1770, %v1432
  %v1899 = vmul.f32 %v1771, %v1543
  %v1900 = vmul.f32 %v1772, %v1545
  %v1901 = vmul.f32 %v1773, %v1210
  %v1902 = vmul.f32 %v1774, %v1212
  %v1903 = vmul.f32 %v1775, %v1323
  %v1904 = vmul.f32 %v1776, %v1325
  %v1905 = vmul.f32 %v1777, %v1436
  %v1906 = vmul.f32 %v1778, %v1438
  %v1907 = vmul.f32 %v1779, %v1549
  %v1908 = vmul.f32 %v1780, %v1551
  %v1909 = vmul.f32 %v1781, %v1214
  %v1910 = vmul.f32 %v1782, %v1216
  %v1911 = vmul.f32 %v1783, %v1327
  %v1912 = vmul.f32 %v1784, %v1329
  %v1913 = vmul.f32 %v1785, %v1440
  %v1914 = vmul.f32 %v1786, %v1442
  %v1915 = vmul.f32 %v1787, %v1553
  %v1916 = vmul.f32 %v1788, %v1555
  %v1917 = vmul.f32 %v1789, %v1220
  %v1918 = vmul.f32 %v1790, %v1222
  %v1919 = vmul.f32 %v1791, %v1333
  %v1920 = vmul.f32 %v1792, %v1335
  %v1921 = vmul.f32 %v1793, %v1446
  %v1922 = vmul.f32 %v1794, %v1448
  %v1923 = vmul.f32 %v1795, %v1559
  %v1924 = vmul.f32 %v1796, %v1561
  %v1925 = vmul.f32 %v1797, %v1224
  %v1926 = vmul.f32 %v1798, %v1226
  %v1927 = vmul.f32 %v1799, %v1337
  %v1928 = vmul.f32 %v1800, %v1339
  %v1929 = vmul.f32 %v1801, %v1450
  %v1930 = vmul.f32 %v1802, %v1452
  %v1931 = vmul.f32 %v1803, %v1563
  %v1932 = vmul.f32 %v1804, %v1565
  %v1933 = vmul.f32 %v1805, %v1230
  %v1934 = vmul.f32 %v1806, %v1232
  %v1935 = vmul.f32 %v1807, %v1343
  %v1936 = vmul.f32 %v1808, %v1345
  %v1937 = vmul.f32 %v1809, %v1456
  %v1938 = vmul.f32 %v1810, %v1458
  %v1939 = vmul.f32 %v1811, %v1569
  %v1940 = vmul.f32 %v1812, %v1571
  %v1941 = vmul.f32 %v1813, %v1234
  %v1942 = vmul.f32 %v1814, %v1236
  %v1943 = vmul.f32 %v1815, %v1347
  %v1944 = vmul.f32 %v1816, %v1349
  %v1945 = vmul.f32 %v1817, %v1460
  %v1946 = vmul.f32 %v1818, %v1462
  %v1947 = vmul.f32 %v1819, %v1573
  %v1948 = vmul.f32 %v1820, %v1575
  %v1949 = vmul.f32 %v1821, %v1240
  %v1950 = vmul.f32 %v1822, %v1242
  %v1951 = vmul.f32 %v1823, %v1353
  %v1952 = vmul.f32 %v1824, %v1355
  %v1953 = vmul.f32 %v1825, %v1466
  %v1954 = vmul.f32 %v1826, %v1468
  %v1955 = vmul.f32 %v1827, %v1579
  %v1956 = vmul.f32 %v1828, %v1581
  %v1957 = vmul.f32 %v1829, %v1244
  %v1958 = vmul.f32 %v1830, %v1246
  %v1959 = vmul.f32 %v1831, %v1357
  %v1960 = vmul.f32 %v1832, %v1359
  %v1961 = vmul.f32 %v1833, %v1470
  %v1962 = vmul.f32 %v1834, %v1472
  %v1963 = vmul.f32 %v1835, %v1583
  %v1964 = vmul.f32 %v1836, %v1585
  %v1965 = vmul.f32 %v1837, %v1250
  %v1966 = vmul.f32 %v1838, %v1252
  %v1967 = vmul.f32 %v1839, %v1363
  %v1968 = vmul.f32 %v1840, %v1365
  %v1969 = vmul.f32 %v1841, %v1476
  %v1970 = vmul.f32 %v1842, %v1478
  %v1971 = vmul.f32 %v1843, %v1589
  %v1972 = vmul.f32 %v1844, %v1591
  %v1973 = vmul.f32 %v1845, %v1254
  %v1974 = vmul.f32 %v1846, %v1256
  %v1975 = vmul.f32 %v1847, %v1367
  %v1976 = vmul.f32 %v1848, %v1369
  %v1977 = vmul.f32 %v1849, %v1480
  %v1978 = vmul.f32 %v1850, %v1482
  %v1979 = vmul.f32 %v1851, %v1593
  %v1980 = vmul.f32 %v1852, %v1595
  %v1981 = vmul.f32 %v1853, %v1180
  %v1982 = vmul.f32 %v1854, %v1182
  %v1983 = vmul.f32 %v1855, %v1293
  %v1984 = vmul.f32 %v1856, %v1295
  %v1985 = vmul.f32 %v1857, %v1406
  %v1986 = vmul.f32 %v1858, %v1408
  %v1987 = vmul.f32 %v1859, %v1519
  %v1988 = vmul.f32 %v1860, %v1521
  %v1989 = vmul.f32 %v1861, %v1184
  %v1990 = vmul.f32 %v1862, %v1186
  %v1991 = vmul.f32 %v1863, %v1297
  %v1992 = vmul.f32 %v1864, %v1299
  %v1993 = vmul.f32 %v1865, %v1410
  %v1994 = vmul.f32 %v1866, %v1412
  %v1995 = vmul.f32 %v1867, %v1523
  %v1996 = vmul.f32 %v1868, %v1525
  %v1997 = vmul.f32 %v1869, %v1190
  %v1998 = vmul.f32 %v1870, %v1192
  %v1999 = vmul.f32 %v1871, %v1303
  %v2000 = vmul.f32 %v1872, %v1305
  %v2001 = vmul.f32 %v1873, %v1416
  %v2002 = vmul.f32 %v1874, %v1418
  %v2003 = vmul.f32 %v1875, %v1529
  %v2004 = vmul.f32 %v1876, %v1531
  %v2005 = vmul.f32 %v1877, %v1194
  %v2006 = vmul.f32 %v1878, %v1196
  %v2007 = vmul.f32 %v1879, %v1307
  %v2008 = vmul.f32 %v1880, %v1309
  %v2009 = vmul.f32 %v1881, %v1420
  %v2010 = vmul.f32 %v1882, %v1422
  %v2011 = vmul.f32 %v1883, %v1533
  %v2012 = vmul.f32 %v1884, %v1535
  %v2013 = vmul.f32 %v1885, %v1200
  %v2014 = vmul.f32 %v1886, %v1202
  %v2015 = vmul.f32 %v1887, %v1313
  %v2016 = vmul.f32 %v1888, %v1315
  %v2017 = vmul.f32 %v1889, %v1426
  %v2018 = vmul.f32 %v1890, %v1428
  %v2019 = vmul.f32 %v1891, %v1539
  %v2020 = vmul.f32 %v1892, %v1541
  %v2021 = vmul.f32 %v1893, %v1204
  %v2022 = vmul.f32 %v1894, %v1206
  %v2023 = vmul.f32 %v1895, %v1317
  %v2024 = vmul.f32 %v1896, %v1319
  %v2025 = vmul.f32 %v1897, %v1430
  %v2026 = vmul.f32 %v1898, %v1432
  %v2027 = vmul.f32 %v1899, %v1543
  %v2028 = vmul.f32 %v1900, %v1545
  %v2029 = vmul.f32 %v1901, %v1210
  %v2030 = vmul.f32 %v1902, %v1212
  %v2031 = vmul.f32 %v1903, %v1323
  %v2032 = vmul.f32 %v1904, %v1325
  %v2033 = vmul.f32 %v1905, %v1436
  %v2034 = vmul.f32 %v1906, %v1438
  %v2035 = vmul.f32 %v1907, %v1549
  %v2036 = vmul.f32 %v1908, %v1551
  %v2037 = vmul.f32 %v1909, %v1214
  %v2038 = vmul.f32 %v1910, %v1216
  %v2039 = vmul.f32 %v1911, %v1327
  %v2040 = vmul.f32 %v1912, %v1329
  %v2041 = vmul.f32 %v1913, %v1440
  %v2042 = vmul.f32 %v1914, %v1442
  %v2043 = vmul.f32 %v1915, %v1553
  %v2044 = vmul.f32 %v1916, %v1555
  %v2045 = vmul.f32 %v1917, %v1220
  %v2046 = vmul.f32 %v1918, %v1222
  %v2047 = vmul.f32 %v1919, %v1333
  %v2048 = vmul.f32 %v1920, %v1335
  %v2049 = vmul.f32 %v1921, %v1446
  %v2050 = vmul.f32 %v1922, %v1448
  %v2051 = vmul.f32 %v1923, %v1559
  %v2052 = vmul.f32 %v1924, %v1561
  %v2053 = vmul.f32 %v1925, %v1224
  %v2054 = vmul.f32 %v1926, %v1226
  %v2055 = vmul.f32 %v1927, %v1337
  %v2056 = vmul.f32 %v1928, %v1339
  %v2057 = vmul.f32 %v1929, %v1450
  %v2058 = vmul.f32 %v1930, %v1452
  %v2059 = vmul.f32 %v1931, %v1563
  %v2060 = vmul.f32 %v1932, %v1565
  %v2061 = vmul.f32 %v1933, %v1230
  %v2062 = vmul.f32 %v1934, %v1232
  %v2063 = vmul.f32 %v1935, %v1343
  %v2064 = vmul.f32 %v1936, %v1345
  %v2065 = vmul.f32 %v1937, %v1456
  %v2066 = vmul.f32 %v1938, %v1458
  %v2067 = vmul.f32 %v1939, %v1569
  %v2068 = vmul.f32 %v1940, %v1571
  %v2069 = vmul.f32 %v1941, %v1234
  %v2070 = vmul.f32 %v1942, %v1236
  %v2071 = vmul.f32 %v1943, %v1347
  %v2072 = vmul.f32 %v1944, %v1349
  %v2073 = vmul.f32 %v1945, %v1460
  %v2074 = vmul.f32 %v1946, %v1462
  %v2075 = vmul.f32 %v1947, %v1573
  %v2076 = vmul.f32 %v1948, %v1575
  %v2077 = vmul.f32 %v1949, %v1240
  %v2078 = vmul.f32 %v1950, %v1242
  %v2079 = vmul.f32 %v1951, %v1353
  %v2080 = vmul.f32 %v1952, %v1355
  %v2081 = vmul.f32 %v1953, %v1466
  %v2082 = vmul.f32 %v1954, %v1468
  %v2083 = vmul.f32 %v1955, %v1579
  %v2084 = vmul.f32 %v1956, %v1581
  %v2085 = vmul.f32 %v1957, %v1244
  %v2086 = vmul.f32 %v1958, %v1246
  %v2087 = vmul.f32 %v1959, %v1357
  %v2088 = vmul.f32 %v1960, %v1359
  %v2089 = vmul.f32 %v1961, %v1470
  %v2090 = vmul.f32 %v1962, %v1472
  %v2091 = vmul.f32 %v1963, %v1583
  %v2092 = vmul.f32 %v1964, %v1585
  %v2093 = vmul.f32 %v1965, %v1250
  %v2094 = vmul.f32 %v1966, %v1252
  %v2095 = vmul.f32 %v1967, %v1363
  %v2096 = vmul.f32 %v1968, %v1365
  %v2097 = vmul.f32 %v1969, %v1476
  %v2098 = vmul.f32 %v1970, %v1478
  %v2099 = vmul.f32 %v1971, %v1589
  %v2100 = vmul.f32 %v1972, %v1591
  %v2101 = vmul.f32 %v1973, %v1254
  %v2102 = vmul.f32 %v1974, %v1256
  %v2103 = vmul.f32 %v1975, %v1367
  %v2104 = vmul.f32 %v1976, %v1369
  %v2105 = vmul.f32 %v1977, %v1480
  %v2106 = vmul.f32 %v1978, %v1482
  %v2107 = vmul.f32 %v1979, %v1593
  %v2108 = vmul.f32 %v1980, %v1595
  %v2109 = vadd.f32 %v1180, %v1981
  %v2110 = vadd.f32 %v1182, %v1982
  %v2111 = vadd.f32 %v1293, %v1983
  %v2112 = vadd.f32 %v1295, %v1984
  %v2113 = vadd.f32 %v1406, %v1985
  %v2114 = vadd.f32 %v1408, %v1986
  %v2115 = vadd.f32 %v1519, %v1987
  %v2116 = vadd.f32 %v1521, %v1988
  %v2117 = vadd.f32 %v1184, %v1989
  %v2118 = vadd.f32 %v1186, %v1990
  %v2119 = vadd.f32 %v1297, %v1991
  %v2120 = vadd.f32 %v1299, %v1992
  %v2121 = vadd.f32 %v1410, %v1993
  %v2122 = vadd.f32 %v1412, %v1994
  %v2123 = vadd.f32 %v1523, %v1995
  %v2124 = vadd.f32 %v1525, %v1996
  %v2125 = vadd.f32 %v1190, %v1997
  %v2126 = vadd.f32 %v1192, %v1998
  %v2127 = vadd.f32 %v1303, %v1999
  %v2128 = vadd.f32 %v1305, %v2000
  %v2129 = vadd.f32 %v1416, %v2001
  %v2130 = vadd.f32 %v1418, %v2002
  %v2131 = vadd.f32 %v1529, %v2003
  %v2132 = vadd.f32 %v1531, %v2004
  %v2133 = vadd.f32 %v1194, %v2005
  %v2134 = vadd.f32 %v1196, %v2006
  %v2135 = vadd.f32 %v1307, %v2007
  %v2136 = vadd.f32 %v1309, %v2008
  %v2137 = vadd.f32 %v1420, %v2009
  %v2138 = vadd.f32 %v1422, %v2010
  %v2139 = vadd.f32 %v1533, %v2011
  %v2140 = vadd.f32 %v1535, %v2012
  %v2141 = vadd.f32 %v1200, %v2013
  %v2142 = vadd.f32 %v1202, %v2014
  %v2143 = vadd.f32 %v1313, %v2015
  %v2144 = vadd.f32 %v1315, %v2016
  %v2145 = vadd.f32 %v1426, %v2017
  %v2146 = vadd.f32 %v1428, %v2018
  %v2147 = vadd.f32 %v1539, %v2019
  %v2148 = vadd.f32 %v1541, %v2020
  %v2149 = vadd.f32 %v1204, %v2021
  %v2150 = vadd.f32 %v1206, %v2022
  %v2151 = vadd.f32 %v1317, %v2023
  %v2152 = vadd.f32 %v1319, %v2024
  %v2153 = vadd.f32 %v1430, %v2025
  %v2154 = vadd.f32 %v1432, %v2026
  %v2155 = vadd.f32 %v1543, %v2027
  %v2156 = vadd.f32 %v1545, %v2028
  %v2157 = vadd.f32 %v1210, %v2029
  %v2158 = vadd.f32 %v1212, %v2030
  %v2159 = vadd.f32 %v1323, %v2031
  %v2160 = vadd.f32 %v1325, %v2032
  %v2161 = vadd.f32 %v1436, %v2033
  %v2162 = vadd.f32 %v1438, %v2034
  %v2163 = vadd.f32 %v1549, %v2035
  %v2164 = vadd.f32 %v1551, %v2036
  %v2165 = vadd.f32 %v1214, %v2037
  %v2166 = vadd.f32 %v1216, %v2038
  %v2167 = vadd.f32 %v1327, %v2039
  %v2168 = vadd.f32 %v1329, %v2040
  %v2169 = vadd.f32 %v1440, %v2041
  %v2170 = vadd.f32 %v1442, %v2042
  %v2171 = vadd.f32 %v1553, %v2043
  %v2172 = vadd.f32 %v1555, %v2044
  %v2173 = vadd.f32 %v1220, %v2045
  %v2174 = vadd.f32 %v1222, %v2046
  %v2175 = vadd.f32 %v1333, %v2047
  %v2176 = vadd.f32 %v1335, %v2048
  %v2177 = vadd.f32 %v1446, %v2049
  %v2178 = vadd.f32 %v1448, %v2050
  %v2179 = vadd.f32 %v1559, %v2051
  %v2180 = vadd.f32 %v1561, %v2052
  %v2181 = vadd.f32 %v1224, %v2053
  %v2182 = vadd.f32 %v1226, %v2054
  %v2183 = vadd.f32 %v1337, %v2055
  %v2184 = vadd.f32 %v1339, %v2056
  %v2185 = vadd.f32 %v1450, %v2057
  %v2186 = vadd.f32 %v1452, %v2058
  %v2187 = vadd.f32 %v1563, %v2059
  %v2188 = vadd.f32 %v1565, %v2060
  %v2189 = vadd.f32 %v1230, %v2061
  %v2190 = vadd.f32 %v1232, %v2062
  %v2191 = vadd.f32 %v1343, %v2063
  %v2192 = vadd.f32 %v1345, %v2064
  %v2193 = vadd.f32 %v1456, %v2065
  %v2194 = vadd.f32 %v1458, %v2066
  %v2195 = vadd.f32 %v1569, %v2067
  %v2196 = vadd.f32 %v1571, %v2068
  %v2197 = vadd.f32 %v1234, %v2069
  %v2198 = vadd.f32 %v1236, %v2070
  %v2199 = vadd.f32 %v1347, %v2071
  %v2200 = vadd.f32 %v1349, %v2072
  %v2201 = vadd.f32 %v1460, %v2073
  %v2202 = vadd.f32 %v1462, %v2074
  %v2203 = vadd.f32 %v1573, %v2075
  %v2204 = vadd.f32 %v1575, %v2076
  %v2205 = vadd.f32 %v1240, %v2077
  %v2206 = vadd.f32 %v1242, %v2078
  %v2207 = vadd.f32 %v1353, %v2079
  %v2208 = vadd.f32 %v1355, %v2080
  %v2209 = vadd.f32 %v1466, %v2081
  %v2210 = vadd.f32 %v1468, %v2082
  %v2211 = vadd.f32 %v1579, %v2083
  %v2212 = vadd.f32 %v1581, %v2084
  %v2213 = vadd.f32 %v1244, %v2085
  %v2214 = vadd.f32 %v1246, %v2086
  %v2215 = vadd.f32 %v1357, %v2087
  %v2216 = vadd.f32 %v1359, %v2088
  %v2217 = vadd.f32 %v1470, %v2089
  %v2218 = vadd.f32 %v1472, %v2090
  %v2219 = vadd.f32 %v1583, %v2091
  %v2220 = vadd.f32 %v1585, %v2092
  %v2221 = vadd.f32 %v1250, %v2093
  %v2222 = vadd.f32 %v1252, %v2094
  %v2223 = vadd.f32 %v1363, %v2095
  %v2224 = vadd.f32 %v1365, %v2096
  %v2225 = vadd.f32 %v1476, %v2097
  %v2226 = vadd.f32 %v1478, %v2098
  %v2227 = vadd.f32 %v1589, %v2099
  %v2228 = vadd.f32 %v1591, %v2100
  %v2229 = vadd.f32 %v1254, %v2101
  %v2230 = vadd.f32 %v1256, %v2102
  %v2231 = vadd.f32 %v1367, %v2103
  %v2232 = vadd.f32 %v1369, %v2104
  %v2233 = vadd.f32 %v1480, %v2105
  %v2234 = vadd.f32 %v1482, %v2106
  %v2235 = vadd.f32 %v1593, %v2107
  %v2236 = vadd.f32 %v1595, %v2108
  %v2237 = vmul.f32 %v2109, 0.7978846
  %v2238 = vmul.f32 %v2110, 0.7978846
  %v2239 = vmul.f32 %v2111, 0.7978846
  %v2240 = vmul.f32 %v2112, 0.7978846
  %v2241 = vmul.f32 %v2113, 0.7978846
  %v2242 = vmul.f32 %v2114, 0.7978846
  %v2243 = vmul.f32 %v2115, 0.7978846
  %v2244 = vmul.f32 %v2116, 0.7978846
  %v2245 = vmul.f32 %v2117, 0.7978846
  %v2246 = vmul.f32 %v2118, 0.7978846
  %v2247 = vmul.f32 %v2119, 0.7978846
  %v2248 = vmul.f32 %v2120, 0.7978846
  %v2249 = vmul.f32 %v2121, 0.7978846
  %v2250 = vmul.f32 %v2122, 0.7978846
  %v2251 = vmul.f32 %v2123, 0.7978846
  %v2252 = vmul.f32 %v2124, 0.7978846
  %v2253 = vmul.f32 %v2125, 0.7978846
  %v2254 = vmul.f32 %v2126, 0.7978846
  %v2255 = vmul.f32 %v2127, 0.7978846
  %v2256 = vmul.f32 %v2128, 0.7978846
  %v2257 = vmul.f32 %v2129, 0.7978846
  %v2258 = vmul.f32 %v2130, 0.7978846
  %v2259 = vmul.f32 %v2131, 0.7978846
  %v2260 = vmul.f32 %v2132, 0.7978846
  %v2261 = vmul.f32 %v2133, 0.7978846
  %v2262 = vmul.f32 %v2134, 0.7978846
  %v2263 = vmul.f32 %v2135, 0.7978846
  %v2264 = vmul.f32 %v2136, 0.7978846
  %v2265 = vmul.f32 %v2137, 0.7978846
  %v2266 = vmul.f32 %v2138, 0.7978846
  %v2267 = vmul.f32 %v2139, 0.7978846
  %v2268 = vmul.f32 %v2140, 0.7978846
  %v2269 = vmul.f32 %v2141, 0.7978846
  %v2270 = vmul.f32 %v2142, 0.7978846
  %v2271 = vmul.f32 %v2143, 0.7978846
  %v2272 = vmul.f32 %v2144, 0.7978846
  %v2273 = vmul.f32 %v2145, 0.7978846
  %v2274 = vmul.f32 %v2146, 0.7978846
  %v2275 = vmul.f32 %v2147, 0.7978846
  %v2276 = vmul.f32 %v2148, 0.7978846
  %v2277 = vmul.f32 %v2149, 0.7978846
  %v2278 = vmul.f32 %v2150, 0.7978846
  %v2279 = vmul.f32 %v2151, 0.7978846
  %v2280 = vmul.f32 %v2152, 0.7978846
  %v2281 = vmul.f32 %v2153, 0.7978846
  %v2282 = vmul.f32 %v2154, 0.7978846
  %v2283 = vmul.f32 %v2155, 0.7978846
  %v2284 = vmul.f32 %v2156, 0.7978846
  %v2285 = vmul.f32 %v2157, 0.7978846
  %v2286 = vmul.f32 %v2158, 0.7978846
  %v2287 = vmul.f32 %v2159, 0.7978846
  %v2288 = vmul.f32 %v2160, 0.7978846
  %v2289 = vmul.f32 %v2161, 0.7978846
  %v2290 = vmul.f32 %v2162, 0.7978846
  %v2291 = vmul.f32 %v2163, 0.7978846
  %v2292 = vmul.f32 %v2164, 0.7978846
  %v2293 = vmul.f32 %v2165, 0.7978846
  %v2294 = vmul.f32 %v2166, 0.7978846
  %v2295 = vmul.f32 %v2167, 0.7978846
  %v2296 = vmul.f32 %v2168, 0.7978846
  %v2297 = vmul.f32 %v2169, 0.7978846
  %v2298 = vmul.f32 %v2170, 0.7978846
  %v2299 = vmul.f32 %v2171, 0.7978846
  %v2300 = vmul.f32 %v2172, 0.7978846
  %v2301 = vmul.f32 %v2173, 0.7978846
  %v2302 = vmul.f32 %v2174, 0.7978846
  %v2303 = vmul.f32 %v2175, 0.7978846
  %v2304 = vmul.f32 %v2176, 0.7978846
  %v2305 = vmul.f32 %v2177, 0.7978846
  %v2306 = vmul.f32 %v2178, 0.7978846
  %v2307 = vmul.f32 %v2179, 0.7978846
  %v2308 = vmul.f32 %v2180, 0.7978846
  %v2309 = vmul.f32 %v2181, 0.7978846
  %v2310 = vmul.f32 %v2182, 0.7978846
  %v2311 = vmul.f32 %v2183, 0.7978846
  %v2312 = vmul.f32 %v2184, 0.7978846
  %v2313 = vmul.f32 %v2185, 0.7978846
  %v2314 = vmul.f32 %v2186, 0.7978846
  %v2315 = vmul.f32 %v2187, 0.7978846
  %v2316 = vmul.f32 %v2188, 0.7978846
  %v2317 = vmul.f32 %v2189, 0.7978846
  %v2318 = vmul.f32 %v2190, 0.7978846
  %v2319 = vmul.f32 %v2191, 0.7978846
  %v2320 = vmul.f32 %v2192, 0.7978846
  %v2321 = vmul.f32 %v2193, 0.7978846
  %v2322 = vmul.f32 %v2194, 0.7978846
  %v2323 = vmul.f32 %v2195, 0.7978846
  %v2324 = vmul.f32 %v2196, 0.7978846
  %v2325 = vmul.f32 %v2197, 0.7978846
  %v2326 = vmul.f32 %v2198, 0.7978846
  %v2327 = vmul.f32 %v2199, 0.7978846
  %v2328 = vmul.f32 %v2200, 0.7978846
  %v2329 = vmul.f32 %v2201, 0.7978846
  %v2330 = vmul.f32 %v2202, 0.7978846
  %v2331 = vmul.f32 %v2203, 0.7978846
  %v2332 = vmul.f32 %v2204, 0.7978846
  %v2333 = vmul.f32 %v2205, 0.7978846
  %v2334 = vmul.f32 %v2206, 0.7978846
  %v2335 = vmul.f32 %v2207, 0.7978846
  %v2336 = vmul.f32 %v2208, 0.7978846
  %v2337 = vmul.f32 %v2209, 0.7978846
  %v2338 = vmul.f32 %v2210, 0.7978846
  %v2339 = vmul.f32 %v2211, 0.7978846
  %v2340 = vmul.f32 %v2212, 0.7978846
  %v2341 = vmul.f32 %v2213, 0.7978846
  %v2342 = vmul.f32 %v2214, 0.7978846
  %v2343 = vmul.f32 %v2215, 0.7978846
  %v2344 = vmul.f32 %v2216, 0.7978846
  %v2345 = vmul.f32 %v2217, 0.7978846
  %v2346 = vmul.f32 %v2218, 0.7978846
  %v2347 = vmul.f32 %v2219, 0.7978846
  %v2348 = vmul.f32 %v2220, 0.7978846
  %v2349 = vmul.f32 %v2221, 0.7978846
  %v2350 = vmul.f32 %v2222, 0.7978846
  %v2351 = vmul.f32 %v2223, 0.7978846
  %v2352 = vmul.f32 %v2224, 0.7978846
  %v2353 = vmul.f32 %v2225, 0.7978846
  %v2354 = vmul.f32 %v2226, 0.7978846
  %v2355 = vmul.f32 %v2227, 0.7978846
  %v2356 = vmul.f32 %v2228, 0.7978846
  %v2357 = vmul.f32 %v2229, 0.7978846
  %v2358 = vmul.f32 %v2230, 0.7978846
  %v2359 = vmul.f32 %v2231, 0.7978846
  %v2360 = vmul.f32 %v2232, 0.7978846
  %v2361 = vmul.f32 %v2233, 0.7978846
  %v2362 = vmul.f32 %v2234, 0.7978846
  %v2363 = vmul.f32 %v2235, 0.7978846
  %v2364 = vmul.f32 %v2236, 0.7978846
  %v2365 = vtanh.pop %v2237
  %v2366 = vtanh.pop %v2238
  %v2367 = vtanh.pop %v2239
  %v2368 = vtanh.pop %v2240
  %v2369 = vtanh.pop %v2241
  %v2370 = vtanh.pop %v2242
  %v2371 = vtanh.pop %v2243
  %v2372 = vtanh.pop %v2244
  %v2373 = vtanh.pop %v2245
  %v2374 = vtanh.pop %v2246
  %v2375 = vtanh.pop %v2247
  %v2376 = vtanh.pop %v2248
  %v2377 = vtanh.pop %v2249
  %v2378 = vtanh.pop %v2250
  %v2379 = vtanh.pop %v2251
  %v2380 = vtanh.pop %v2252
  %v2381 = vtanh.pop %v2253
  %v2382 = vtanh.pop %v2254
  %v2383 = vtanh.pop %v2255
  %v2384 = vtanh.pop %v2256
  %v2385 = vtanh.pop %v2257
  %v2386 = vtanh.pop %v2258
  %v2387 = vtanh.pop %v2259
  %v2388 = vtanh.pop %v2260
  %v2389 = vtanh.pop %v2261
  %v2390 = vtanh.pop %v2262
  %v2391 = vtanh.pop %v2263
  %v2392 = vtanh.pop %v2264
  %v2393 = vtanh.pop %v2265
  %v2394 = vtanh.pop %v2266
  %v2395 = vtanh.pop %v2267
  %v2396 = vtanh.pop %v2268
  %v2397 = vtanh.pop %v2269
  %v2398 = vtanh.pop %v2270
  %v2399 = vtanh.pop %v2271
  %v2400 = vtanh.pop %v2272
  %v2401 = vtanh.pop %v2273
  %v2402 = vtanh.pop %v2274
  %v2403 = vtanh.pop %v2275
  %v2404 = vtanh.pop %v2276
  %v2405 = vtanh.pop %v2277
  %v2406 = vtanh.pop %v2278
  %v2407 = vtanh.pop %v2279
  %v2408 = vtanh.pop %v2280
  %v2409 = vtanh.pop %v2281
  %v2410 = vtanh.pop %v2282
  %v2411 = vtanh.pop %v2283
  %v2412 = vtanh.pop %v2284
  %v2413 = vtanh.pop %v2285
  %v2414 = vtanh.pop %v2286
  %v2415 = vtanh.pop %v2287
  %v2416 = vtanh.pop %v2288
  %v2417 = vtanh.pop %v2289
  %v2418 = vtanh.pop %v2290
  %v2419 = vtanh.pop %v2291
  %v2420 = vtanh.pop %v2292
  %v2421 = vtanh.pop %v2293
  %v2422 = vtanh.pop %v2294
  %v2423 = vtanh.pop %v2295
  %v2424 = vtanh.pop %v2296
  %v2425 = vtanh.pop %v2297
  %v2426 = vtanh.pop %v2298
  %v2427 = vtanh.pop %v2299
  %v2428 = vtanh.pop %v2300
  %v2429 = vtanh.pop %v2301
  %v2430 = vtanh.pop %v2302
  %v2431 = vtanh.pop %v2303
  %v2432 = vtanh.pop %v2304
  %v2433 = vtanh.pop %v2305
  %v2434 = vtanh.pop %v2306
  %v2435 = vtanh.pop %v2307
  %v2436 = vtanh.pop %v2308
  %v2437 = vtanh.pop %v2309
  %v2438 = vtanh.pop %v2310
  %v2439 = vtanh.pop %v2311
  %v2440 = vtanh.pop %v2312
  %v2441 = vtanh.pop %v2313
  %v2442 = vtanh.pop %v2314
  %v2443 = vtanh.pop %v2315
  %v2444 = vtanh.pop %v2316
  %v2445 = vtanh.pop %v2317
  %v2446 = vtanh.pop %v2318
  %v2447 = vtanh.pop %v2319
  %v2448 = vtanh.pop %v2320
  %v2449 = vtanh.pop %v2321
  %v2450 = vtanh.pop %v2322
  %v2451 = vtanh.pop %v2323
  %v2452 = vtanh.pop %v2324
  %v2453 = vtanh.pop %v2325
  %v2454 = vtanh.pop %v2326
  %v2455 = vtanh.pop %v2327
  %v2456 = vtanh.pop %v2328
  %v2457 = vtanh.pop %v2329
  %v2458 = vtanh.pop %v2330
  %v2459 = vtanh.pop %v2331
  %v2460 = vtanh.pop %v2332
  %v2461 = vtanh.pop %v2333
  %v2462 = vtanh.pop %v2334
  %v2463 = vtanh.pop %v2335
  %v2464 = vtanh.pop %v2336
  %v2465 = vtanh.pop %v2337
  %v2466 = vtanh.pop %v2338
  %v2467 = vtanh.pop %v2339
  %v2468 = vtanh.pop %v2340
  %v2469 = vtanh.pop %v2341
  %v2470 = vtanh.pop %v2342
  %v2471 = vtanh.pop %v2343
  %v2472 = vtanh.pop %v2344
  %v2473 = vtanh.pop %v2345
  %v2474 = vtanh.pop %v2346
  %v2475 = vtanh.pop %v2347
  %v2476 = vtanh.pop %v2348
  %v2477 = vtanh.pop %v2349
  %v2478 = vtanh.pop %v2350
  %v2479 = vtanh.pop %v2351
  %v2480 = vtanh.pop %v2352
  %v2481 = vtanh.pop %v2353
  %v2482 = vtanh.pop %v2354
  %v2483 = vtanh.pop %v2355
  %v2484 = vtanh.pop %v2356
  %v2485 = vtanh.pop %v2357
  %v2486 = vtanh.pop %v2358
  %v2487 = vtanh.pop %v2359
  %v2488 = vtanh.pop %v2360
  %v2489 = vtanh.pop %v2361
  %v2490 = vtanh.pop %v2362
  %v2491 = vtanh.pop %v2363
  %v2492 = vtanh.pop %v2364
  %v2493 = vadd.f32 %v2365, 1.0
  %v2494 = vadd.f32 %v2366, 1.0
  %v2495 = vadd.f32 %v2367, 1.0
  %v2496 = vadd.f32 %v2368, 1.0
  %v2497 = vadd.f32 %v2369, 1.0
  %v2498 = vadd.f32 %v2370, 1.0
  %v2499 = vadd.f32 %v2371, 1.0
  %v2500 = vadd.f32 %v2372, 1.0
  %v2501 = vadd.f32 %v2373, 1.0
  %v2502 = vadd.f32 %v2374, 1.0
  %v2503 = vadd.f32 %v2375, 1.0
  %v2504 = vadd.f32 %v2376, 1.0
  %v2505 = vadd.f32 %v2377, 1.0
  %v2506 = vadd.f32 %v2378, 1.0
  %v2507 = vadd.f32 %v2379, 1.0
  %v2508 = vadd.f32 %v2380, 1.0
  %v2509 = vadd.f32 %v2381, 1.0
  %v2510 = vadd.f32 %v2382, 1.0
  %v2511 = vadd.f32 %v2383, 1.0
  %v2512 = vadd.f32 %v2384, 1.0
  %v2513 = vadd.f32 %v2385, 1.0
  %v2514 = vadd.f32 %v2386, 1.0
  %v2515 = vadd.f32 %v2387, 1.0
  %v2516 = vadd.f32 %v2388, 1.0
  %v2517 = vadd.f32 %v2389, 1.0
  %v2518 = vadd.f32 %v2390, 1.0
  %v2519 = vadd.f32 %v2391, 1.0
  %v2520 = vadd.f32 %v2392, 1.0
  %v2521 = vadd.f32 %v2393, 1.0
  %v2522 = vadd.f32 %v2394, 1.0
  %v2523 = vadd.f32 %v2395, 1.0
  %v2524 = vadd.f32 %v2396, 1.0
  %v2525 = vadd.f32 %v2397, 1.0
  %v2526 = vadd.f32 %v2398, 1.0
  %v2527 = vadd.f32 %v2399, 1.0
  %v2528 = vadd.f32 %v2400, 1.0
  %v2529 = vadd.f32 %v2401, 1.0
  %v2530 = vadd.f32 %v2402, 1.0
  %v2531 = vadd.f32 %v2403, 1.0
  %v2532 = vadd.f32 %v2404, 1.0
  %v2533 = vadd.f32 %v2405, 1.0
  %v2534 = vadd.f32 %v2406, 1.0
  %v2535 = vadd.f32 %v2407, 1.0
  %v2536 = vadd.f32 %v2408, 1.0
  %v2537 = vadd.f32 %v2409, 1.0
  %v2538 = vadd.f32 %v2410, 1.0
  %v2539 = vadd.f32 %v2411, 1.0
  %v2540 = vadd.f32 %v2412, 1.0
  %v2541 = vadd.f32 %v2413, 1.0
  %v2542 = vadd.f32 %v2414, 1.0
  %v2543 = vadd.f32 %v2415, 1.0
  %v2544 = vadd.f32 %v2416, 1.0
  %v2545 = vadd.f32 %v2417, 1.0
  %v2546 = vadd.f32 %v2418, 1.0
  %v2547 = vadd.f32 %v2419, 1.0
  %v2548 = vadd.f32 %v2420, 1.0
  %v2549 = vadd.f32 %v2421, 1.0
  %v2550 = vadd.f32 %v2422, 1.0
  %v2551 = vadd.f32 %v2423, 1.0
  %v2552 = vadd.f32 %v2424, 1.0
  %v2553 = vadd.f32 %v2425, 1.0
  %v2554 = vadd.f32 %v2426, 1.0
  %v2555 = vadd.f32 %v2427, 1.0
  %v2556 = vadd.f32 %v2428, 1.0
  %v2557 = vadd.f32 %v2429, 1.0
  %v2558 = vadd.f32 %v2430, 1.0
  %v2559 = vadd.f32 %v2431, 1.0
  %v2560 = vadd.f32 %v2432, 1.0
  %v2561 = vadd.f32 %v2433, 1.0
  %v2562 = vadd.f32 %v2434, 1.0
  %v2563 = vadd.f32 %v2435, 1.0
  %v2564 = vadd.f32 %v2436, 1.0
  %v2565 = vadd.f32 %v2437, 1.0
  %v2566 = vadd.f32 %v2438, 1.0
  %v2567 = vadd.f32 %v2439, 1.0
  %v2568 = vadd.f32 %v2440, 1.0
  %v2569 = vadd.f32 %v2441, 1.0
  %v2570 = vadd.f32 %v2442, 1.0
  %v2571 = vadd.f32 %v2443, 1.0
  %v2572 = vadd.f32 %v2444, 1.0
  %v2573 = vadd.f32 %v2445, 1.0
  %v2574 = vadd.f32 %v2446, 1.0
  %v2575 = vadd.f32 %v2447, 1.0
  %v2576 = vadd.f32 %v2448, 1.0
  %v2577 = vadd.f32 %v2449, 1.0
  %v2578 = vadd.f32 %v2450, 1.0
  %v2579 = vadd.f32 %v2451, 1.0
  %v2580 = vadd.f32 %v2452, 1.0
  %v2581 = vadd.f32 %v2453, 1.0
  %v2582 = vadd.f32 %v2454, 1.0
  %v2583 = vadd.f32 %v2455, 1.0
  %v2584 = vadd.f32 %v2456, 1.0
  %v2585 = vadd.f32 %v2457, 1.0
  %v2586 = vadd.f32 %v2458, 1.0
  %v2587 = vadd.f32 %v2459, 1.0
  %v2588 = vadd.f32 %v2460, 1.0
  %v2589 = vadd.f32 %v2461, 1.0
  %v2590 = vadd.f32 %v2462, 1.0
  %v2591 = vadd.f32 %v2463, 1.0
  %v2592 = vadd.f32 %v2464, 1.0
  %v2593 = vadd.f32 %v2465, 1.0
  %v2594 = vadd.f32 %v2466, 1.0
  %v2595 = vadd.f32 %v2467, 1.0
  %v2596 = vadd.f32 %v2468, 1.0
  %v2597 = vadd.f32 %v2469, 1.0
  %v2598 = vadd.f32 %v2470, 1.0
  %v2599 = vadd.f32 %v2471, 1.0
  %v2600 = vadd.f32 %v2472, 1.0
  %v2601 = vadd.f32 %v2473, 1.0
  %v2602 = vadd.f32 %v2474, 1.0
  %v2603 = vadd.f32 %v2475, 1.0
  %v2604 = vadd.f32 %v2476, 1.0
  %v2605 = vadd.f32 %v2477, 1.0
  %v2606 = vadd.f32 %v2478, 1.0
  %v2607 = vadd.f32 %v2479, 1.0
  %v2608 = vadd.f32 %v2480, 1.0
  %v2609 = vadd.f32 %v2481, 1.0
  %v2610 = vadd.f32 %v2482, 1.0
  %v2611 = vadd.f32 %v2483, 1.0
  %v2612 = vadd.f32 %v2484, 1.0
  %v2613 = vadd.f32 %v2485, 1.0
  %v2614 = vadd.f32 %v2486, 1.0
  %v2615 = vadd.f32 %v2487, 1.0
  %v2616 = vadd.f32 %v2488, 1.0
  %v2617 = vadd.f32 %v2489, 1.0
  %v2618 = vadd.f32 %v2490, 1.0
  %v2619 = vadd.f32 %v2491, 1.0
  %v2620 = vadd.f32 %v2492, 1.0
  %v2621 = vmul.f32 %v1597, %v2493
  %v2622 = vmul.f32 %v1598, %v2494
  %v2623 = vmul.f32 %v1599, %v2495
  %v2624 = vmul.f32 %v1600, %v2496
  %v2625 = vmul.f32 %v1601, %v2497
  %v2626 = vmul.f32 %v1602, %v2498
  %v2627 = vmul.f32 %v1603, %v2499
  %v2628 = vmul.f32 %v1604, %v2500
  %v2629 = vmul.f32 %v1605, %v2501
  %v2630 = vmul.f32 %v1606, %v2502
  %v2631 = vmul.f32 %v1607, %v2503
  %v2632 = vmul.f32 %v1608, %v2504
  %v2633 = vmul.f32 %v1609, %v2505
  %v2634 = vmul.f32 %v1610, %v2506
  %v2635 = vmul.f32 %v1611, %v2507
  %v2636 = vmul.f32 %v1612, %v2508
  %v2637 = vmul.f32 %v1613, %v2509
  %v2638 = vmul.f32 %v1614, %v2510
  %v2639 = vmul.f32 %v1615, %v2511
  %v2640 = vmul.f32 %v1616, %v2512
  %v2641 = vmul.f32 %v1617, %v2513
  %v2642 = vmul.f32 %v1618, %v2514
  %v2643 = vmul.f32 %v1619, %v2515
  %v2644 = vmul.f32 %v1620, %v2516
  %v2645 = vmul.f32 %v1621, %v2517
  %v2646 = vmul.f32 %v1622, %v2518
  %v2647 = vmul.f32 %v1623, %v2519
  %v2648 = vmul.f32 %v1624, %v2520
  %v2649 = vmul.f32 %v1625, %v2521
  %v2650 = vmul.f32 %v1626, %v2522
  %v2651 = vmul.f32 %v1627, %v2523
  %v2652 = vmul.f32 %v1628, %v2524
  %v2653 = vmul.f32 %v1629, %v2525
  %v2654 = vmul.f32 %v1630, %v2526
  %v2655 = vmul.f32 %v1631, %v2527
  %v2656 = vmul.f32 %v1632, %v2528
  %v2657 = vmul.f32 %v1633, %v2529
  %v2658 = vmul.f32 %v1634, %v2530
  %v2659 = vmul.f32 %v1635, %v2531
  %v2660 = vmul.f32 %v1636, %v2532
  %v2661 = vmul.f32 %v1637, %v2533
  %v2662 = vmul.f32 %v1638, %v2534
  %v2663 = vmul.f32 %v1639, %v2535
  %v2664 = vmul.f32 %v1640, %v2536
  %v2665 = vmul.f32 %v1641, %v2537
  %v2666 = vmul.f32 %v1642, %v2538
  %v2667 = vmul.f32 %v1643, %v2539
  %v2668 = vmul.f32 %v1644, %v2540
  %v2669 = vmul.f32 %v1645, %v2541
  %v2670 = vmul.f32 %v1646, %v2542
  %v2671 = vmul.f32 %v1647, %v2543
  %v2672 = vmul.f32 %v1648, %v2544
  %v2673 = vmul.f32 %v1649, %v2545
  %v2674 = vmul.f32 %v1650, %v2546
  %v2675 = vmul.f32 %v1651, %v2547
  %v2676 = vmul.f32 %v1652, %v2548
  %v2677 = vmul.f32 %v1653, %v2549
  %v2678 = vmul.f32 %v1654, %v2550
  %v2679 = vmul.f32 %v1655, %v2551
  %v2680 = vmul.f32 %v1656, %v2552
  %v2681 = vmul.f32 %v1657, %v2553
  %v2682 = vmul.f32 %v1658, %v2554
  %v2683 = vmul.f32 %v1659, %v2555
  %v2684 = vmul.f32 %v1660, %v2556
  %v2685 = vmul.f32 %v1661, %v2557
  %v2686 = vmul.f32 %v1662, %v2558
  %v2687 = vmul.f32 %v1663, %v2559
  %v2688 = vmul.f32 %v1664, %v2560
  %v2689 = vmul.f32 %v1665, %v2561
  %v2690 = vmul.f32 %v1666, %v2562
  %v2691 = vmul.f32 %v1667, %v2563
  %v2692 = vmul.f32 %v1668, %v2564
  %v2693 = vmul.f32 %v1669, %v2565
  %v2694 = vmul.f32 %v1670, %v2566
  %v2695 = vmul.f32 %v1671, %v2567
  %v2696 = vmul.f32 %v1672, %v2568
  %v2697 = vmul.f32 %v1673, %v2569
  %v2698 = vmul.f32 %v1674, %v2570
  %v2699 = vmul.f32 %v1675, %v2571
  %v2700 = vmul.f32 %v1676, %v2572
  %v2701 = vmul.f32 %v1677, %v2573
  %v2702 = vmul.f32 %v1678, %v2574
  %v2703 = vmul.f32 %v1679, %v2575
  %v2704 = vmul.f32 %v1680, %v2576
  %v2705 = vmul.f32 %v1681, %v2577
  %v2706 = vmul.f32 %v1682, %v2578
  %v2707 = vmul.f32 %v1683, %v2579
  %v2708 = vmul.f32 %v1684, %v2580
  %v2709 = vmul.f32 %v1685, %v2581
  %v2710 = vmul.f32 %v1686, %v2582
  %v2711 = vmul.f32 %v1687, %v2583
  %v2712 = vmul.f32 %v1688, %v2584
  %v2713 = vmul.f32 %v1689, %v2585
  %v2714 = vmul.f32 %v1690, %v2586
  %v2715 = vmul.f32 %v1691, %v2587
  %v2716 = vmul.f32 %v1692, %v2588
  %v2717 = vmul.f32 %v1693, %v2589
  %v2718 = vmul.f32 %v1694, %v2590
  %v2719 = vmul.f32 %v1695, %v2591
  %v2720 = vmul.f32 %v1696, %v2592
  %v2721 = vmul.f32 %v1697, %v2593
  %v2722 = vmul.f32 %v1698, %v2594
  %v2723 = vmul.f32 %v1699, %v2595
  %v2724 = vmul.f32 %v1700, %v2596
  %v2725 = vmul.f32 %v1701, %v2597
  %v2726 = vmul.f32 %v1702, %v2598
  %v2727 = vmul.f32 %v1703, %v2599
  %v2728 = vmul.f32 %v1704, %v2600
  %v2729 = vmul.f32 %v1705, %v2601
  %v2730 = vmul.f32 %v1706, %v2602
  %v2731 = vmul.f32 %v1707, %v2603
  %v2732 = vmul.f32 %v1708, %v2604
  %v2733 = vmul.f32 %v1709, %v2605
  %v2734 = vmul.f32 %v1710, %v2606
  %v2735 = vmul.f32 %v1711, %v2607
  %v2736 = vmul.f32 %v1712, %v2608
  %v2737 = vmul.f32 %v1713, %v2609
  %v2738 = vmul.f32 %v1714, %v2610
  %v2739 = vmul.f32 %v1715, %v2611
  %v2740 = vmul.f32 %v1716, %v2612
  %v2741 = vmul.f32 %v1717, %v2613
  %v2742 = vmul.f32 %v1718, %v2614
  %v2743 = vmul.f32 %v1719, %v2615
  %v2744 = vmul.f32 %v1720, %v2616
  %v2745 = vmul.f32 %v1721, %v2617
  %v2746 = vmul.f32 %v1722, %v2618
  %v2747 = vmul.f32 %v1723, %v2619
  %v2748 = vmul.f32 %v1724, %v2620
  %v2749 = vpack.c.bf16 %v2629, %v2621
  %v2750 = vpack.c.bf16 %v2630, %v2622
  %v2751 = vpack.c.bf16 %v2631, %v2623
  %v2752 = vpack.c.bf16 %v2632, %v2624
  %v2753 = vpack.c.bf16 %v2633, %v2625
  %v2754 = vpack.c.bf16 %v2634, %v2626
  %v2755 = vpack.c.bf16 %v2635, %v2627
  %v2756 = vpack.c.bf16 %v2636, %v2628
  %v2757 = vpack.c.bf16 %v2645, %v2637
  %v2758 = vpack.c.bf16 %v2646, %v2638
  %v2759 = vpack.c.bf16 %v2647, %v2639
  %v2760 = vpack.c.bf16 %v2648, %v2640
  %v2761 = vpack.c.bf16 %v2649, %v2641
  %v2762 = vpack.c.bf16 %v2650, %v2642
  %v2763 = vpack.c.bf16 %v2651, %v2643
  %v2764 = vpack.c.bf16 %v2652, %v2644
  %v2765 = vpack.c.bf16 %v2661, %v2653
  %v2766 = vpack.c.bf16 %v2662, %v2654
  %v2767 = vpack.c.bf16 %v2663, %v2655
  %v2768 = vpack.c.bf16 %v2664, %v2656
  %v2769 = vpack.c.bf16 %v2665, %v2657
  %v2770 = vpack.c.bf16 %v2666, %v2658
  %v2771 = vpack.c.bf16 %v2667, %v2659
  %v2772 = vpack.c.bf16 %v2668, %v2660
  %v2773 = vpack.c.bf16 %v2677, %v2669
  %v2774 = vpack.c.bf16 %v2678, %v2670
  %v2775 = vpack.c.bf16 %v2679, %v2671
  %v2776 = vpack.c.bf16 %v2680, %v2672
  %v2777 = vpack.c.bf16 %v2681, %v2673
  %v2778 = vpack.c.bf16 %v2682, %v2674
  %v2779 = vpack.c.bf16 %v2683, %v2675
  %v2780 = vpack.c.bf16 %v2684, %v2676
  %v2781 = vpack.c.bf16 %v2693, %v2685
  %v2782 = vpack.c.bf16 %v2694, %v2686
  %v2783 = vpack.c.bf16 %v2695, %v2687
  %v2784 = vpack.c.bf16 %v2696, %v2688
  %v2785 = vpack.c.bf16 %v2697, %v2689
  %v2786 = vpack.c.bf16 %v2698, %v2690
  %v2787 = vpack.c.bf16 %v2699, %v2691
  %v2788 = vpack.c.bf16 %v2700, %v2692
  %v2789 = vpack.c.bf16 %v2709, %v2701
  %v2790 = vpack.c.bf16 %v2710, %v2702
  %v2791 = vpack.c.bf16 %v2711, %v2703
  %v2792 = vpack.c.bf16 %v2712, %v2704
  %v2793 = vpack.c.bf16 %v2713, %v2705
  %v2794 = vpack.c.bf16 %v2714, %v2706
  %v2795 = vpack.c.bf16 %v2715, %v2707
  %v2796 = vpack.c.bf16 %v2716, %v2708
  %v2797 = vpack.c.bf16 %v2725, %v2717
  %v2798 = vpack.c.bf16 %v2726, %v2718
  %v2799 = vpack.c.bf16 %v2727, %v2719
  %v2800 = vpack.c.bf16 %v2728, %v2720
  %v2801 = vpack.c.bf16 %v2729, %v2721
  %v2802 = vpack.c.bf16 %v2730, %v2722
  %v2803 = vpack.c.bf16 %v2731, %v2723
  %v2804 = vpack.c.bf16 %v2732, %v2724
  %v2805 = vpack.c.bf16 %v2741, %v2733
  %v2806 = vpack.c.bf16 %v2742, %v2734
  %v2807 = vpack.c.bf16 %v2743, %v2735
  %v2808 = vpack.c.bf16 %v2744, %v2736
  %v2809 = vpack.c.bf16 %v2745, %v2737
  %v2810 = vpack.c.bf16 %v2746, %v2738
  %v2811 = vpack.c.bf16 %v2747, %v2739
  %v2812 = vpack.c.bf16 %v2748, %v2740
  %v2877 = vunpack.c.l.b16 %v2749
  %v2878 = vunpack.c.l.b16 %v2750
  %v2879 = vunpack.c.l.b16 %v2751
  %v2880 = vunpack.c.l.b16 %v2752
  %v2881 = vunpack.c.l.b16 %v2753
  %v2882 = vunpack.c.l.b16 %v2754
  %v2883 = vunpack.c.l.b16 %v2755
  %v2884 = vunpack.c.l.b16 %v2756
  %v2885 = vunpack.c.h.b16 %v2749
  %v2886 = vunpack.c.h.b16 %v2750
  %v2887 = vunpack.c.h.b16 %v2751
  %v2888 = vunpack.c.h.b16 %v2752
  %v2889 = vunpack.c.h.b16 %v2753
  %v2890 = vunpack.c.h.b16 %v2754
  %v2891 = vunpack.c.h.b16 %v2755
  %v2892 = vunpack.c.h.b16 %v2756
  %v2893 = vunpack.c.l.b16 %v2757
  %v2894 = vunpack.c.l.b16 %v2758
  %v2895 = vunpack.c.l.b16 %v2759
  %v2896 = vunpack.c.l.b16 %v2760
  %v2897 = vunpack.c.l.b16 %v2761
  %v2898 = vunpack.c.l.b16 %v2762
  %v2899 = vunpack.c.l.b16 %v2763
  %v2900 = vunpack.c.l.b16 %v2764
  %v2901 = vunpack.c.h.b16 %v2757
  %v2902 = vunpack.c.h.b16 %v2758
  %v2903 = vunpack.c.h.b16 %v2759
  %v2904 = vunpack.c.h.b16 %v2760
  %v2905 = vunpack.c.h.b16 %v2761
  %v2906 = vunpack.c.h.b16 %v2762
  %v2907 = vunpack.c.h.b16 %v2763
  %v2908 = vunpack.c.h.b16 %v2764
  %v2909 = vunpack.c.l.b16 %v2765
  %v2910 = vunpack.c.l.b16 %v2766
  %v2911 = vunpack.c.l.b16 %v2767
  %v2912 = vunpack.c.l.b16 %v2768
  %v2913 = vunpack.c.l.b16 %v2769
  %v2914 = vunpack.c.l.b16 %v2770
  %v2915 = vunpack.c.l.b16 %v2771
  %v2916 = vunpack.c.l.b16 %v2772
  %v2917 = vunpack.c.h.b16 %v2765
  %v2918 = vunpack.c.h.b16 %v2766
  %v2919 = vunpack.c.h.b16 %v2767
  %v2920 = vunpack.c.h.b16 %v2768
  %v2921 = vunpack.c.h.b16 %v2769
  %v2922 = vunpack.c.h.b16 %v2770
  %v2923 = vunpack.c.h.b16 %v2771
  %v2924 = vunpack.c.h.b16 %v2772
  %v2925 = vunpack.c.l.b16 %v2773
  %v2926 = vunpack.c.l.b16 %v2774
  %v2927 = vunpack.c.l.b16 %v2775
  %v2928 = vunpack.c.l.b16 %v2776
  %v2929 = vunpack.c.l.b16 %v2777
  %v2930 = vunpack.c.l.b16 %v2778
  %v2931 = vunpack.c.l.b16 %v2779
  %v2932 = vunpack.c.l.b16 %v2780
  %v2933 = vunpack.c.h.b16 %v2773
  %v2934 = vunpack.c.h.b16 %v2774
  %v2935 = vunpack.c.h.b16 %v2775
  %v2936 = vunpack.c.h.b16 %v2776
  %v2937 = vunpack.c.h.b16 %v2777
  %v2938 = vunpack.c.h.b16 %v2778
  %v2939 = vunpack.c.h.b16 %v2779
  %v2940 = vunpack.c.h.b16 %v2780
  %v2941 = vunpack.c.l.b16 %v2781
  %v2942 = vunpack.c.l.b16 %v2782
  %v2943 = vunpack.c.l.b16 %v2783
  %v2944 = vunpack.c.l.b16 %v2784
  %v2945 = vunpack.c.l.b16 %v2785
  %v2946 = vunpack.c.l.b16 %v2786
  %v2947 = vunpack.c.l.b16 %v2787
  %v2948 = vunpack.c.l.b16 %v2788
  %v2949 = vunpack.c.h.b16 %v2781
  %v2950 = vunpack.c.h.b16 %v2782
  %v2951 = vunpack.c.h.b16 %v2783
  %v2952 = vunpack.c.h.b16 %v2784
  %v2953 = vunpack.c.h.b16 %v2785
  %v2954 = vunpack.c.h.b16 %v2786
  %v2955 = vunpack.c.h.b16 %v2787
  %v2956 = vunpack.c.h.b16 %v2788
  %v2957 = vunpack.c.l.b16 %v2789
  %v2958 = vunpack.c.l.b16 %v2790
  %v2959 = vunpack.c.l.b16 %v2791
  %v2960 = vunpack.c.l.b16 %v2792
  %v2961 = vunpack.c.l.b16 %v2793
  %v2962 = vunpack.c.l.b16 %v2794
  %v2963 = vunpack.c.l.b16 %v2795
  %v2964 = vunpack.c.l.b16 %v2796
  %v2965 = vunpack.c.h.b16 %v2789
  %v2966 = vunpack.c.h.b16 %v2790
  %v2967 = vunpack.c.h.b16 %v2791
  %v2968 = vunpack.c.h.b16 %v2792
  %v2969 = vunpack.c.h.b16 %v2793
  %v2970 = vunpack.c.h.b16 %v2794
  %v2971 = vunpack.c.h.b16 %v2795
  %v2972 = vunpack.c.h.b16 %v2796
  %v2973 = vunpack.c.l.b16 %v2797
  %v2974 = vunpack.c.l.b16 %v2798
  %v2975 = vunpack.c.l.b16 %v2799
  %v2976 = vunpack.c.l.b16 %v2800
  %v2977 = vunpack.c.l.b16 %v2801
  %v2978 = vunpack.c.l.b16 %v2802
  %v2979 = vunpack.c.l.b16 %v2803
  %v2980 = vunpack.c.l.b16 %v2804
  %v2981 = vunpack.c.h.b16 %v2797
  %v2982 = vunpack.c.h.b16 %v2798
  %v2983 = vunpack.c.h.b16 %v2799
  %v2984 = vunpack.c.h.b16 %v2800
  %v2985 = vunpack.c.h.b16 %v2801
  %v2986 = vunpack.c.h.b16 %v2802
  %v2987 = vunpack.c.h.b16 %v2803
  %v2988 = vunpack.c.h.b16 %v2804
  %v2989 = vunpack.c.l.b16 %v2805
  %v2990 = vunpack.c.l.b16 %v2806
  %v2991 = vunpack.c.l.b16 %v2807
  %v2992 = vunpack.c.l.b16 %v2808
  %v2993 = vunpack.c.l.b16 %v2809
  %v2994 = vunpack.c.l.b16 %v2810
  %v2995 = vunpack.c.l.b16 %v2811
  %v2996 = vunpack.c.l.b16 %v2812
  %v2997 = vunpack.c.h.b16 %v2805
  %v2998 = vunpack.c.h.b16 %v2806
  %v2999 = vunpack.c.h.b16 %v2807
  %v3000 = vunpack.c.h.b16 %v2808
  %v3001 = vunpack.c.h.b16 %v2809
  %v3002 = vunpack.c.h.b16 %v2810
  %v3003 = vunpack.c.h.b16 %v2811
  %v3004 = vunpack.c.h.b16 %v2812
  %v3005 = vpack.c.b16 %v2878, %v2877
  %v3006 = vpack.c.b16 %v2880, %v2879
  %v3007 = vpack.c.b16 %v2882, %v2881
  %v3008 = vpack.c.b16 %v2884, %v2883
  %v3009 = vpack.c.b16 %v2886, %v2885
  %v3010 = vpack.c.b16 %v2888, %v2887
  %v3011 = vpack.c.b16 %v2890, %v2889
  %v3012 = vpack.c.b16 %v2892, %v2891
  %v3013 = vpack.c.b16 %v2894, %v2893
  %v3014 = vpack.c.b16 %v2896, %v2895
  %v3015 = vpack.c.b16 %v2898, %v2897
  %v3016 = vpack.c.b16 %v2900, %v2899
  %v3017 = vpack.c.b16 %v2902, %v2901
  %v3018 = vpack.c.b16 %v2904, %v2903
  %v3019 = vpack.c.b16 %v2906, %v2905
  %v3020 = vpack.c.b16 %v2908, %v2907
  %v3021 = vpack.c.b16 %v2910, %v2909
  %v3022 = vpack.c.b16 %v2912, %v2911
  %v3023 = vpack.c.b16 %v2914, %v2913
  %v3024 = vpack.c.b16 %v2916, %v2915
  %v3025 = vpack.c.b16 %v2918, %v2917
  %v3026 = vpack.c.b16 %v2920, %v2919
  %v3027 = vpack.c.b16 %v2922, %v2921
  %v3028 = vpack.c.b16 %v2924, %v2923
  %v3029 = vpack.c.b16 %v2926, %v2925
  %v3030 = vpack.c.b16 %v2928, %v2927
  %v3031 = vpack.c.b16 %v2930, %v2929
  %v3032 = vpack.c.b16 %v2932, %v2931
  %v3033 = vpack.c.b16 %v2934, %v2933
  %v3034 = vpack.c.b16 %v2936, %v2935
  %v3035 = vpack.c.b16 %v2938, %v2937
  %v3036 = vpack.c.b16 %v2940, %v2939
  %v3037 = vpack.c.b16 %v2942, %v2941
  %v3038 = vpack.c.b16 %v2944, %v2943
  %v3039 = vpack.c.b16 %v2946, %v2945
  %v3040 = vpack.c.b16 %v2948, %v2947
  %v3041 = vpack.c.b16 %v2950, %v2949
  %v3042 = vpack.c.b16 %v2952, %v2951
  %v3043 = vpack.c.b16 %v2954, %v2953
  %v3044 = vpack.c.b16 %v2956, %v2955
  %v3045 = vpack.c.b16 %v2958, %v2957
  %v3046 = vpack.c.b16 %v2960, %v2959
  %v3047 = vpack.c.b16 %v2962, %v2961
  %v3048 = vpack.c.b16 %v2964, %v2963
  %v3049 = vpack.c.b16 %v2966, %v2965
  %v3050 = vpack.c.b16 %v2968, %v2967
  %v3051 = vpack.c.b16 %v2970, %v2969
  %v3052 = vpack.c.b16 %v2972, %v2971
  %v3053 = vpack.c.b16 %v2974, %v2973
  %v3054 = vpack.c.b16 %v2976, %v2975
  %v3055 = vpack.c.b16 %v2978, %v2977
  %v3056 = vpack.c.b16 %v2980, %v2979
  %v3057 = vpack.c.b16 %v2982, %v2981
  %v3058 = vpack.c.b16 %v2984, %v2983
  %v3059 = vpack.c.b16 %v2986, %v2985
  %v3060 = vpack.c.b16 %v2988, %v2987
  %v3061 = vpack.c.b16 %v2990, %v2989
  %v3062 = vpack.c.b16 %v2992, %v2991
  %v3063 = vpack.c.b16 %v2994, %v2993
  %v3064 = vpack.c.b16 %v2996, %v2995
  %v3065 = vpack.c.b16 %v2998, %v2997
  %v3066 = vpack.c.b16 %v3000, %v2999
  %v3067 = vpack.c.b16 %v3002, %v3001
  %v3068 = vpack.c.b16 %v3004, %v3003
  %3133 = vst [vmem:[%s3] sm:$0xff] %v3005
  %3134 = vst [vmem:[%s3 + $0x8] sm:$0xff] %v3006
  %3135 = vst [vmem:[%s3 + $0x10] sm:$0xff] %v3007
  %3136 = vst [vmem:[%s3 + $0x18] sm:$0xff] %v3008
  %3137 = vst [vmem:[%s3 + $0x20] sm:$0xff] %v3009
  %3138 = vst [vmem:[%s3 + $0x28] sm:$0xff] %v3010
  %3139 = vst [vmem:[%s3 + $0x30] sm:$0xff] %v3011
  %3140 = vst [vmem:[%s3 + $0x38] sm:$0xff] %v3012
  %3141 = vst [vmem:[%s3 + $0x40] sm:$0xff] %v3013
  %3142 = vst [vmem:[%s3 + $0x48] sm:$0xff] %v3014
  %3143 = vst [vmem:[%s3 + $0x50] sm:$0xff] %v3015
  %3144 = vst [vmem:[%s3 + $0x58] sm:$0xff] %v3016
  %3145 = vst [vmem:[%s3 + $0x60] sm:$0xff] %v3017
  %3146 = vst [vmem:[%s3 + $0x68] sm:$0xff] %v3018
  %3147 = vst [vmem:[%s3 + $0x70] sm:$0xff] %v3019
  %3148 = vst [vmem:[%s3 + $0x78] sm:$0xff] %v3020
  %3149 = vst [vmem:[%s3 + $0x80] sm:$0xff] %v3021
  %3150 = vst [vmem:[%s3 + $0x88] sm:$0xff] %v3022
  %3151 = vst [vmem:[%s3 + $0x90] sm:$0xff] %v3023
  %3152 = vst [vmem:[%s3 + $0x98] sm:$0xff] %v3024
  %3153 = vst [vmem:[%s3 + $0xa0] sm:$0xff] %v3025
  %3154 = vst [vmem:[%s3 + $0xa8] sm:$0xff] %v3026
  %3155 = vst [vmem:[%s3 + $0xb0] sm:$0xff] %v3027
  %3156 = vst [vmem:[%s3 + $0xb8] sm:$0xff] %v3028
  %3157 = vst [vmem:[%s3 + $0xc0] sm:$0xff] %v3029
  %3158 = vst [vmem:[%s3 + $0xc8] sm:$0xff] %v3030
  %3159 = vst [vmem:[%s3 + $0xd0] sm:$0xff] %v3031
  %3160 = vst [vmem:[%s3 + $0xd8] sm:$0xff] %v3032
  %3161 = vst [vmem:[%s3 + $0xe0] sm:$0xff] %v3033
  %3162 = vst [vmem:[%s3 + $0xe8] sm:$0xff] %v3034
  %3163 = vst [vmem:[%s3 + $0xf0] sm:$0xff] %v3035
  %3164 = vst [vmem:[%s3 + $0xf8] sm:$0xff] %v3036
  %3165 = vst [vmem:[%s3 + $0x100] sm:$0xff] %v3037
  %3166 = vst [vmem:[%s3 + $0x108] sm:$0xff] %v3038
  %3167 = vst [vmem:[%s3 + $0x110] sm:$0xff] %v3039
  %3168 = vst [vmem:[%s3 + $0x118] sm:$0xff] %v3040
  %3169 = vst [vmem:[%s3 + $0x120] sm:$0xff] %v3041
  %3170 = vst [vmem:[%s3 + $0x128] sm:$0xff] %v3042
  %3171 = vst [vmem:[%s3 + $0x130] sm:$0xff] %v3043
  %3172 = vst [vmem:[%s3 + $0x138] sm:$0xff] %v3044
  %3173 = vst [vmem:[%s3 + $0x140] sm:$0xff] %v3045
  %3174 = vst [vmem:[%s3 + $0x148] sm:$0xff] %v3046
  %3175 = vst [vmem:[%s3 + $0x150] sm:$0xff] %v3047
  %3176 = vst [vmem:[%s3 + $0x158] sm:$0xff] %v3048
  %3177 = vst [vmem:[%s3 + $0x160] sm:$0xff] %v3049
  %3178 = vst [vmem:[%s3 + $0x168] sm:$0xff] %v3050
  %3179 = vst [vmem:[%s3 + $0x170] sm:$0xff] %v3051
  %3180 = vst [vmem:[%s3 + $0x178] sm:$0xff] %v3052
  %3181 = vst [vmem:[%s3 + $0x180] sm:$0xff] %v3053
  %3182 = vst [vmem:[%s3 + $0x188] sm:$0xff] %v3054
  %3183 = vst [vmem:[%s3 + $0x190] sm:$0xff] %v3055
  %3184 = vst [vmem:[%s3 + $0x198] sm:$0xff] %v3056
  %3185 = vst [vmem:[%s3 + $0x1a0] sm:$0xff] %v3057
  %3186 = vst [vmem:[%s3 + $0x1a8] sm:$0xff] %v3058
  %3187 = vst [vmem:[%s3 + $0x1b0] sm:$0xff] %v3059
  %3188 = vst [vmem:[%s3 + $0x1b8] sm:$0xff] %v3060
  %3189 = vst [vmem:[%s3 + $0x1c0] sm:$0xff] %v3061
  %3190 = vst [vmem:[%s3 + $0x1c8] sm:$0xff] %v3062
  %3191 = vst [vmem:[%s3 + $0x1d0] sm:$0xff] %v3063
  %3192 = vst [vmem:[%s3 + $0x1d8] sm:$0xff] %v3064
  %3193 = vst [vmem:[%s3 + $0x1e0] sm:$0xff] %v3065
  %3194 = vst [vmem:[%s3 + $0x1e8] sm:$0xff] %v3066
  %3195 = vst [vmem:[%s3 + $0x1f0] sm:$0xff] %v3067
  %3196 = vst [vmem:[%s3 + $0x1f8] sm:$0xff] %v3068
  // Predicated region
  $region14: #{bert_embedder_forward.10} parent=0 // pred_check
    _
  $region15: #{bert_embedder_forward.10} parent=0 // pred_check_branch
    %3198 = sbr.rel (0) target = $region17
  $region16: #{bert_embedder_forward.10} parent=0 // pred_region
    _
  $region17: #{bert_embedder_forward.10} parent=0 // pred_fallthru
    _
  // Predicated region
  $region18: #{bert_embedder_forward.10} parent=0 // pred_check
    _
  $region19: #{bert_embedder_forward.10} parent=0 // pred_check_branch
    %3200 = sbr.rel (0) target = $region21
  $region20: #{bert_embedder_forward.10} parent=0 // pred_region
    _
  $region21: #{bert_embedder_forward.10} parent=0 // pred_fallthru
    _

// kernel: bert_embedder_forward.9
$region0: #{bert_embedder_forward.9}
  #allocation0 [shape = 'u32[]', space=smem, size = 0x4, offset = 0x4, fixed_abs, tag = 'smem constant byte address 0x4 - core index']
  #allocation1 [shape = 'u32[144,128]{1,0:T(1,128)}', space=vmem, size = 0x12000, scoped, tag = 'internal scratch']
  %s0 = inlined_call_operand.vmem [shape: bf16[128,1536], index: 0, kind: input, shape index: {}]
  %s1 = inlined_call_operand.vmem [shape: bf16[512,256], index: 1, kind: input, shape index: {}]
  %s2 = inlined_call_operand.vmem [shape: f32[1,256], index: 2, kind: input, shape index: {}]
  %s3 = inlined_call_operand.vmem [shape: bf16[128,256], index: 3, kind: input, shape index: {}]
  %s4 = inlined_call_operand.vmem [shape: bf16[128,256], index: 4, kind: output, shape index: {}]
  %s5 = sld [smem:[#allocation0]]
  $region49: #{bert_embedder_forward.9} parent=0
    _
  %s7 = ssub.s32 1, %s5
  %s8 = scalar_select 0, %s7, %s5
  loop: start=0, step=1, limit=4
  $region2: #{bert_embedder_forward.9} parent=0 // loop_pre_header
    _
  $region3: #{bert_embedder_forward.9} parent=0 // loop_header
    %s10 = sphi 0, %s14
    %p11 = scmp.ge.s32.totalorder %s10, 4
    %s20 = sphi 0, %s22
    %s23 = sphi 0, %s20
    %s24 = sphi 0, %s23
    %s40 = sphi 0, %s24
    %s44 = sphi 0, %s44
    %s46 = sphi 0, %s44
    %s47 = sphi 0, %s46
    %s61 = sphi 0, %s47
    %s65 = sphi 0, %s65
    %s67 = sphi 0, %s65
    %s68 = sphi 0, %s67
    %s82 = sphi 0, %s68
    %s88 = sphi 0, %s90
    %s91 = sphi 0, %s88
    %s92 = sphi 0, %s91
    %s108 = sphi 0, %s92
    %s114 = sphi 0, %s116
    %s117 = sphi 0, %s114
    %s118 = sphi 0, %s117
    %s134 = sphi 0, %s118
  $region4: #{bert_embedder_forward.9} parent=0 // loop_header_branch
    %13 = sbr.rel (%p11) target = $region8
  $region5: #{bert_embedder_forward.9} parent=0 // loop_body
    %s15 = ssub.s32 %s10, 1
    %s16 = ssub.s32 %s10, 2
    %s17 = sadd.s32 %s10, 1
    %s18 = ssub.s32 %s10, %s17
    %p19 = scmp.eq.s32.totalorder %s18, 0
    %s21 = sadd.s32 %s20, 1
    %s22 = scalar_select %p19, %s20, %s21
    %p25 = pneg %p19
    %p26 = scmp.eq.s32.totalorder %s10, 1
    %p27 = por %p25, %p26
    %p28 = scmp.ne.s32.totalorder %s20, %s23
    %p29 = scmp.eq.s32.totalorder %s10, 0
    %p30 = por %p28, %p29
    %p31 = scmp.ne.s32.totalorder %s20, %s23
    %p32 = scmp.eq.s32.totalorder %s15, 1
    %p33 = por %p31, %p32
    %p34 = scmp.ne.s32.totalorder %s23, %s24
    %p35 = scmp.eq.s32.totalorder %s15, 0
    %p36 = por %p34, %p35
    %p37 = scmp.ne.s32.totalorder %s23, %s24
    %p38 = scmp.eq.s32.totalorder %s16, 1
    %p39 = por %p37, %p38
    %p41 = scmp.ne.s32.totalorder %s24, %s40
    %p42 = scmp.eq.s32.totalorder %s16, 0
    %p43 = por %p41, %p42
    %s45 = sadd.s32 %s44, 1
    %p48 = scmp.eq.s32.totalorder %s10, 1
    %p49 = scmp.ne.s32.totalorder %s44, %s46
    %p50 = scmp.eq.s32.totalorder %s10, 0
    %p51 = por %p49, %p50
    %p52 = scmp.ne.s32.totalorder %s44, %s46
    %p53 = scmp.eq.s32.totalorder %s15, 1
    %p54 = por %p52, %p53
    %p55 = scmp.ne.s32.totalorder %s46, %s47
    %p56 = scmp.eq.s32.totalorder %s15, 0
    %p57 = por %p55, %p56
    %p58 = scmp.ne.s32.totalorder %s46, %s47
    %p59 = scmp.eq.s32.totalorder %s16, 1
    %p60 = por %p58, %p59
    %p62 = scmp.ne.s32.totalorder %s47, %s61
    %p63 = scmp.eq.s32.totalorder %s16, 0
    %p64 = por %p62, %p63
    %s66 = sadd.s32 %s65, 1
    %p69 = scmp.eq.s32.totalorder %s10, 1
    %p70 = scmp.ne.s32.totalorder %s65, %s67
    %p71 = scmp.eq.s32.totalorder %s10, 0
    %p72 = por %p70, %p71
    %p73 = scmp.ne.s32.totalorder %s65, %s67
    %p74 = scmp.eq.s32.totalorder %s15, 1
    %p75 = por %p73, %p74
    %p76 = scmp.ne.s32.totalorder %s67, %s68
    %p77 = scmp.eq.s32.totalorder %s15, 0
    %p78 = por %p76, %p77
    %p79 = scmp.ne.s32.totalorder %s67, %s68
    %p80 = scmp.eq.s32.totalorder %s16, 1
    %p81 = por %p79, %p80
    %p83 = scmp.ne.s32.totalorder %s68, %s82
    %p84 = scmp.eq.s32.totalorder %s16, 0
    %p85 = por %p83, %p84
    %s86 = ssub.s32 %s10, %s17
    %p87 = scmp.eq.s32.totalorder %s86, 0
    %s89 = sadd.s32 %s88, 1
    %s90 = scalar_select %p87, %s88, %s89
    %p93 = pneg %p87
    %p94 = scmp.eq.s32.totalorder %s10, 1
    %p95 = por %p93, %p94
    %p96 = scmp.ne.s32.totalorder %s88, %s91
    %p97 = scmp.eq.s32.totalorder %s10, 0
    %p98 = por %p96, %p97
    %p99 = scmp.ne.s32.totalorder %s88, %s91
    %p100 = scmp.eq.s32.totalorder %s15, 1
    %p101 = por %p99, %p100
    %p102 = scmp.ne.s32.totalorder %s91, %s92
    %p103 = scmp.eq.s32.totalorder %s15, 0
    %p104 = por %p102, %p103
    %p105 = scmp.ne.s32.totalorder %s91, %s92
    %p106 = scmp.eq.s32.totalorder %s16, 1
    %p107 = por %p105, %p106
    %p109 = scmp.ne.s32.totalorder %s92, %s108
    %p110 = scmp.eq.s32.totalorder %s16, 0
    %p111 = por %p109, %p110
    %s112 = ssub.s32 %s10, %s17
    %p113 = scmp.eq.s32.totalorder %s112, 0
    %s115 = sadd.s32 %s114, 1
    %s116 = scalar_select %p113, %s114, %s115
    %p119 = pneg %p113
    %p120 = scmp.eq.s32.totalorder %s10, 1
    %p121 = por %p119, %p120
    %p122 = scmp.ne.s32.totalorder %s114, %s117
    %p123 = scmp.eq.s32.totalorder %s10, 0
    %p124 = por %p122, %p123
    %p125 = scmp.ne.s32.totalorder %s114, %s117
    %p126 = scmp.eq.s32.totalorder %s15, 1
    %p127 = por %p125, %p126
    %p128 = scmp.ne.s32.totalorder %s117, %s118
    %p129 = scmp.eq.s32.totalorder %s15, 0
    %p130 = por %p128, %p129
    %p131 = scmp.ne.s32.totalorder %s117, %s118
    %p132 = scmp.eq.s32.totalorder %s16, 1
    %p133 = por %p131, %p132
    %p135 = scmp.ne.s32.totalorder %s118, %s134
    %p136 = scmp.eq.s32.totalorder %s16, 0
    %p137 = por %p135, %p136
    %p138 = scmp.le.s32.totalorder 1, %s10
    %p139 = scmp.lt.s32.totalorder %s10, 3
    %p140 = pnand %p138, %p139
    %p141 = pneg %p140
    // Predicated region
    $region9: #{bert_embedder_forward.9} parent=5 // pred_check
      _
    $region10: #{bert_embedder_forward.9} parent=5 // pred_check_branch
      %143 = sbr.rel (%p140) target = $region12
    $region11: #{bert_embedder_forward.9} parent=5 // pred_region
      %s144 = ssub.s32 %s10, 1
      // Predicated region
      $region13: #{bert_embedder_forward.9} parent=11 // pred_check
        %p145 = pneg %p57
      $region14: #{bert_embedder_forward.9} parent=11 // pred_check_branch
        %147 = sbr.rel (%p145) target = $region16
      $region15: #{bert_embedder_forward.9} parent=11 // pred_region
        _
      $region16: #{bert_embedder_forward.9} parent=11 // pred_fallthru
        _
      // Predicated region
      $region17: #{bert_embedder_forward.9} parent=11 // pred_check
        %p148 = pneg %p78
      $region18: #{bert_embedder_forward.9} parent=11 // pred_check_branch
        %150 = sbr.rel (%p148) target = $region20
      $region19: #{bert_embedder_forward.9} parent=11 // pred_region
        _
      $region20: #{bert_embedder_forward.9} parent=11 // pred_fallthru
        _
    $region12: #{bert_embedder_forward.9} parent=5 // pred_fallthru
      _
    %p151 = scmp.lt.s32.totalorder %s10, 2
    // Predicated region
    $region21: #{bert_embedder_forward.9} parent=5 // pred_check
      %p152 = pneg %p151
    $region22: #{bert_embedder_forward.9} parent=5 // pred_check_branch
      %154 = sbr.rel (%p152) target = $region24
    $region23: #{bert_embedder_forward.9} parent=5 // pred_region
      // Predicated region
      $region25: #{bert_embedder_forward.9} parent=23 // pred_check
        %p155 = pneg %p30
      $region26: #{bert_embedder_forward.9} parent=23 // pred_check_branch
        %157 = sbr.rel (%p155) target = $region28
      $region27: #{bert_embedder_forward.9} parent=23 // pred_region
        %s158 = smul.u32 8, %s10
        %p159 = scmp.lt.s32.totalorder %s158, 15
        %s160 = scalar_select %p159, %s158, 15
        %s161 = smul.addr %s160, 12
        %s162 = smul.addr %s161, 4
        %s163 = scalar_lea.vmem %s0, %s162
        %s164 = smul.u32 8, %s10
      $region28: #{bert_embedder_forward.9} parent=23 // pred_fallthru
        _
      // Predicated region
      $region29: #{bert_embedder_forward.9} parent=23 // pred_check
        %p165 = pneg %p98
      $region30: #{bert_embedder_forward.9} parent=23 // pred_check_branch
        %167 = sbr.rel (%p165) target = $region32
      $region31: #{bert_embedder_forward.9} parent=23 // pred_region
        %s168 = smul.u32 8, %s10
        %p169 = scmp.lt.s32.totalorder %s168, 15
        %s170 = scalar_select %p169, %s168, 15
        %s171 = smul.addr %s170, 2
        %s172 = smul.addr %s171, 4
        %s173 = scalar_lea.vmem %s3, %s172
        %s174 = smul.u32 8, %s10
      $region32: #{bert_embedder_forward.9} parent=23 // pred_fallthru
        _
    $region24: #{bert_embedder_forward.9} parent=5 // pred_fallthru
      _
    %p175 = scmp.le.s32.totalorder 1, %s10
    %p176 = scmp.lt.s32.totalorder %s10, 3
    %p177 = pnand %p175, %p176
    %p178 = pneg %p177
    // Predicated region
    $region33: #{bert_embedder_forward.9} parent=5 // pred_check
      _
    $region34: #{bert_embedder_forward.9} parent=5 // pred_check_branch
      %180 = sbr.rel (%p177) target = $region36
    $region35: #{bert_embedder_forward.9} parent=5 // pred_region
      %s181 = ssub.s32 %s10, 1
      %s182 = smul.u32 8, %s15
      %p183 = scmp.lt.s32.totalorder %s182, 15
      %s184 = scalar_select %p183, %s182, 15
      %s185 = smul.addr %s184, 12
      %s186 = smul.addr %s185, 4
      %s187 = scalar_lea.vmem %s0, %s186
      %p188 = pneg %p36
      %p189 = pneg %p33
      %p190 = pneg %p57
      %p191 = pneg %p54
      %p192 = pneg %p78
      %p193 = pneg %p75
      %s194 = smul.u32 8, %s15
      %p195 = scmp.lt.s32.totalorder %s194, 15
      %s196 = scalar_select %p195, %s194, 15
      %s197 = smul.addr %s196, 2
      %s198 = smul.addr %s197, 4
      %s199 = scalar_lea.vmem %s3, %s198
      %p200 = pneg %p104
      %p201 = pneg %p101
      %p202 = pneg %p130
      %p203 = pneg %p127
      %s204 = smul.u32 8, %s15
      %p205 = scmp.lt.s32.totalorder %s204, 15
      %s206 = scalar_select %p205, %s204, 15
      %s207 = smul.addr %s206, 2
      %s208 = smul.addr %s207, 4
      %s209 = scalar_lea.vmem %s4, %s208
      %s210 = smul.u32 8, %s15
      %p211 = scmp.lt.s32.totalorder %s210, 15
      %s212 = scalar_select %p211, %s210, 15
      %s213 = smul.addr %s212, 12
      %s214 = smul.addr %s213, 4
      %s215 = scalar_lea.vmem %s0, %s214
      %s216 = smul.u32 8, %s15
      %s217 = smul.u32 8, %s15
      %p218 = scmp.lt.s32.totalorder %s217, 15
      %s219 = scalar_select %p218, %s217, 15
      %s220 = smul.addr %s219, 2
      %s221 = smul.addr %s220, 4
      %s222 = scalar_lea.vmem %s3, %s221
      %s223 = smul.u32 8, %s15
      %s224 = smul.u32 8, %s15
      %p225 = scmp.lt.s32.totalorder %s224, 15
      %s226 = scalar_select %p225, %s224, 15
      %s227 = smul.addr %s226, 2
      %s228 = smul.addr %s227, 4
      %s229 = scalar_lea.vmem %s4, %s228
      %s230 = smul.u32 8, %s15
      %v232 = vld [vmem:[%s215] sm:$0xff]
      %v233 = vld [vmem:[%s215 + $0x8] sm:$0xff]
      %v234 = vld [vmem:[%s215 + $0x10] sm:$0xff]
      %v235 = vld [vmem:[%s215 + $0x18] sm:$0xff]
      %v236 = vld [vmem:[%s215 + $0x20] sm:$0xff]
      %v237 = vld [vmem:[%s215 + $0x28] sm:$0xff]
      %v238 = vld [vmem:[%s215 + $0x30] sm:$0xff]
      %v239 = vld [vmem:[%s215 + $0x38] sm:$0xff]
      %v240 = vld [vmem:[%s215 + $0x40] sm:$0xff]
      %v241 = vld [vmem:[%s215 + $0x48] sm:$0xff]
      %v242 = vld [vmem:[%s215 + $0x50] sm:$0xff]
      %v243 = vld [vmem:[%s215 + $0x58] sm:$0xff]
      %v244 = vld [vmem:[%s215 + $0x60] sm:$0xff]
      %v245 = vld [vmem:[%s215 + $0x68] sm:$0xff]
      %v246 = vld [vmem:[%s215 + $0x70] sm:$0xff]
      %v247 = vld [vmem:[%s215 + $0x78] sm:$0xff]
      %v248 = vld [vmem:[%s215 + $0x80] sm:$0xff]
      %v249 = vld [vmem:[%s215 + $0x88] sm:$0xff]
      %v250 = vld [vmem:[%s215 + $0x90] sm:$0xff]
      %v251 = vld [vmem:[%s215 + $0x98] sm:$0xff]
      %v252 = vld [vmem:[%s215 + $0xa0] sm:$0xff]
      %v253 = vld [vmem:[%s215 + $0xa8] sm:$0xff]
      %v254 = vld [vmem:[%s215 + $0xb0] sm:$0xff]
      %v255 = vld [vmem:[%s215 + $0xb8] sm:$0xff]
      %v256 = vld [vmem:[%s215 + $0xc0] sm:$0xff]
      %v257 = vld [vmem:[%s215 + $0xc8] sm:$0xff]
      %v258 = vld [vmem:[%s215 + $0xd0] sm:$0xff]
      %v259 = vld [vmem:[%s215 + $0xd8] sm:$0xff]
      %v260 = vld [vmem:[%s215 + $0xe0] sm:$0xff]
      %v261 = vld [vmem:[%s215 + $0xe8] sm:$0xff]
      %v262 = vld [vmem:[%s215 + $0xf0] sm:$0xff]
      %v263 = vld [vmem:[%s215 + $0xf8] sm:$0xff]
      %v264 = vld [vmem:[%s215 + $0x100] sm:$0xff]
      %v265 = vld [vmem:[%s215 + $0x108] sm:$0xff]
      %v266 = vld [vmem:[%s215 + $0x110] sm:$0xff]
      %v267 = vld [vmem:[%s215 + $0x118] sm:$0xff]
      %v268 = vld [vmem:[%s215 + $0x120] sm:$0xff]
      %v269 = vld [vmem:[%s215 + $0x128] sm:$0xff]
      %v270 = vld [vmem:[%s215 + $0x130] sm:$0xff]
      %v271 = vld [vmem:[%s215 + $0x138] sm:$0xff]
      %v272 = vld [vmem:[%s215 + $0x140] sm:$0xff]
      %v273 = vld [vmem:[%s215 + $0x148] sm:$0xff]
      %v274 = vld [vmem:[%s215 + $0x150] sm:$0xff]
      %v275 = vld [vmem:[%s215 + $0x158] sm:$0xff]
      %v276 = vld [vmem:[%s215 + $0x160] sm:$0xff]
      %v277 = vld [vmem:[%s215 + $0x168] sm:$0xff]
      %v278 = vld [vmem:[%s215 + $0x170] sm:$0xff]
      %v279 = vld [vmem:[%s215 + $0x178] sm:$0xff]
      %v288 = vunpack.c.l.b16 %v232
      %v289 = vunpack.c.l.b16 %v238
      %v290 = vunpack.c.l.b16 %v244
      %v291 = vunpack.c.l.b16 %v250
      %v292 = vunpack.c.l.b16 %v256
      %v293 = vunpack.c.l.b16 %v262
      %v294 = vunpack.c.l.b16 %v268
      %v295 = vunpack.c.l.b16 %v274
      %v296 = vpack.c.b16 %v289, %v288
      %v297 = vpack.c.b16 %v291, %v290
      %v298 = vpack.c.b16 %v293, %v292
      %v299 = vpack.c.b16 %v295, %v294
      %v308 = vunpack.c.l.b16 %v234
      %v309 = vunpack.c.l.b16 %v240
      %v310 = vunpack.c.l.b16 %v246
      %v311 = vunpack.c.l.b16 %v252
      %v312 = vunpack.c.l.b16 %v258
      %v313 = vunpack.c.l.b16 %v264
      %v314 = vunpack.c.l.b16 %v270
      %v315 = vunpack.c.l.b16 %v276
      %v316 = vpack.c.b16 %v309, %v308
      %v317 = vpack.c.b16 %v311, %v310
      %v318 = vpack.c.b16 %v313, %v312
      %v319 = vpack.c.b16 %v315, %v314
      %vm320 = vcmask 523264
      %v322 = vsel %vm320, %v296, 0
      %v325 = vsel %vm320, %v297, 0
      %v328 = vsel %vm320, %v298, 0
      %v331 = vsel %vm320, %v299, 0
      %v334 = vsel %vm320, %v316, 0
      %v337 = vsel %vm320, %v317, 0
      %v340 = vsel %vm320, %v318, 0
      %v343 = vsel %vm320, %v319, 0
      %345 = vmatprep.subr.bf16.mxu0 0
      %346 = vmatpush1.bf16.xpose.msra.mxu0 %v334
      %347 = vmatprep.subr.bf16.mxu0 0
      %348 = vmatpush1.bf16.xpose.msra.mxu0 %v337
      %349 = vmatprep.subr.bf16.mxu0 0
      %350 = vmatpush1.bf16.xpose.msra.mxu0 %v340
      %351 = vmatprep.subr.bf16.mxu0 0
      %352 = vmatpush1.bf16.xpose.msra.mxu0 %v343
      %353 = vmatprep.subr.bf16.mxu0 0
      %354 = vmatpush1.bf16.xpose.msra.mxu0 0
      %355 = vmatprep.subr.bf16.mxu0 0
      %356 = vmatpush1.bf16.xpose.msra.mxu0 0
      %357 = vmatprep.subr.bf16.mxu0 0
      %358 = vmatpush1.bf16.xpose.msra.mxu0 0
      %359 = vmatprep.subr.bf16.mxu0 0
      %360 = vmatpush1.bf16.xpose.msra.mxu0 0
      %361 = vmatprep.subr.bf16.mxu0 0
      %362 = vmatpush1.bf16.xpose.msra.mxu0 0
      %363 = vmatprep.subr.bf16.mxu0 0
      %364 = vmatpush1.bf16.xpose.msra.mxu0 0
      %365 = vmatprep.subr.bf16.mxu0 0
      %366 = vmatpush1.bf16.xpose.msra.mxu0 0
      %367 = vmatprep.subr.bf16.mxu0 0
      %368 = vmatpush1.bf16.xpose.msra.mxu0 0
      %369 = vmatprep.subr.bf16.mxu0 0
      %370 = vmatpush1.bf16.xpose.msra.mxu0 0
      %371 = vmatprep.subr.bf16.mxu0 0
      %372 = vmatpush1.bf16.xpose.msra.mxu0 0
      %373 = vmatprep.subr.bf16.mxu0 0
      %374 = vmatpush1.bf16.xpose.msra.mxu0 0
      %375 = vmatprep.subr.bf16.mxu0 0
      %376 = vmatpush1.bf16.xpose.msra.mxu0 0
      %377 = vmatprep.mubr.bf16.mxu0 0
      %378 = vmatmul.mubr.bf16.gmra.mrb[0].mxu0 %v322
      %v379 = vpop.f32.mrb[0].mxu0
      %v380 = vadd.f32 0.0, %v379
      %v381 = vpop.f32.mrb[0].mxu0
      %v382 = vpop.f32.mrb[0].mxu0
      %v383 = vadd.f32 0.0, %v382
      %v384 = vpop.f32.mrb[0].mxu0
      %385 = vmatprep.mubr.bf16.mxu0 0
      %386 = vmatmul.mubr.bf16.gmra.mrb[0].mxu0 %v325
      %v387 = vpop.f32.mrb[0].mxu0
      %v388 = vadd.f32 0.0, %v387
      %v389 = vpop.f32.mrb[0].mxu0
      %v390 = vpop.f32.mrb[0].mxu0
      %v391 = vadd.f32 0.0, %v390
      %v392 = vpop.f32.mrb[0].mxu0
      %393 = vmatprep.mubr.bf16.mxu0 0
      %394 = vmatmul.mubr.bf16.gmra.mrb[0].mxu0 %v328
      %v395 = vpop.f32.mrb[0].mxu0
      %v396 = vadd.f32 0.0, %v395
      %v397 = vpop.f32.mrb[0].mxu0
      %v398 = vpop.f32.mrb[0].mxu0
      %v399 = vadd.f32 0.0, %v398
      %v400 = vpop.f32.mrb[0].mxu0
      %401 = vmatprep.mubr.bf16.mxu0 0
      %402 = vmatmul.mubr.bf16.gmra.mrb[0].mxu0 %v331
      %v403 = vpop.f32.mrb[0].mxu0
      %v404 = vadd.f32 0.0, %v403
      %v405 = vpop.f32.mrb[0].mxu0
      %v406 = vpop.f32.mrb[0].mxu0
      %v407 = vadd.f32 0.0, %v406
      %v408 = vpop.f32.mrb[0].mxu0
      %409 = vdwg.mxu0
      %v410 = vmul.f32 %v380, 0.125
      %v411 = vmul.f32 %v383, 0.125
      %v412 = vmul.f32 %v388, 0.125
      %v413 = vmul.f32 %v391, 0.125
      %v414 = vmul.f32 %v396, 0.125
      %v415 = vmul.f32 %v399, 0.125
      %v416 = vmul.f32 %v404, 0.125
      %v417 = vmul.f32 %v407, 0.125
      %v418 = vsel %vm320, %v410, -inf
      %419 = vmax.xlane.f32.xlu0 %v418
      %v420 = vpop.xlane.xlu0 %419
      %v421 = vsel %vm320, %v411, -inf
      %422 = vmax.xlane.f32.xlu0 %v421
      %v423 = vpop.xlane.xlu0 %422
      %v424 = vsel %vm320, %v412, -inf
      %425 = vmax.xlane.f32.xlu0 %v424
      %v426 = vpop.xlane.xlu0 %425
      %v427 = vsel %vm320, %v413, -inf
      %428 = vmax.xlane.f32.xlu0 %v427
      %v429 = vpop.xlane.xlu0 %428
      %v430 = vsel %vm320, %v414, -inf
      %431 = vmax.xlane.f32.xlu0 %v430
      %v432 = vpop.xlane.xlu0 %431
      %v433 = vsel %vm320, %v415, -inf
      %434 = vmax.xlane.f32.xlu0 %v433
      %v435 = vpop.xlane.xlu0 %434
      %v436 = vsel %vm320, %v416, -inf
      %437 = vmax.xlane.f32.xlu0 %v436
      %v438 = vpop.xlane.xlu0 %437
      %v439 = vsel %vm320, %v417, -inf
      %440 = vmax.xlane.f32.xlu0 %v439
      %v441 = vpop.xlane.xlu0 %440
      %v442 = vsub.f32 %v410, %v420
      %v443 = vsub.f32 %v411, %v423
      %v444 = vsub.f32 %v412, %v426
      %v445 = vsub.f32 %v413, %v429
      %v446 = vsub.f32 %v414, %v432
      %v447 = vsub.f32 %v415, %v435
      %v448 = vsub.f32 %v416, %v438
      %v449 = vsub.f32 %v417, %v441
      %v450 = vmul.f32 %v442, 1.442695
      %v451 = vpow.pop %v450
      %v452 = vmul.f32 %v443, 1.442695
      %v453 = vpow.pop %v452
      %v454 = vmul.f32 %v444, 1.442695
      %v455 = vpow.pop %v454
      %v456 = vmul.f32 %v445, 1.442695
      %v457 = vpow.pop %v456
      %v458 = vmul.f32 %v446, 1.442695
      %v459 = vpow.pop %v458
      %v460 = vmul.f32 %v447, 1.442695
      %v461 = vpow.pop %v460
      %v462 = vmul.f32 %v448, 1.442695
      %v463 = vpow.pop %v462
      %v464 = vmul.f32 %v449, 1.442695
      %v465 = vpow.pop %v464
      %v466 = vsel %vm320, %v451, 0.0
      %467 = vadd.xlane.f32.xlu0 %v466
      %v468 = vpop.xlane.xlu0 %467
      %v469 = vsel %vm320, %v453, 0.0
      %470 = vadd.xlane.f32.xlu0 %v469
      %v471 = vpop.xlane.xlu0 %470
      %v472 = vsel %vm320, %v455, 0.0
      %473 = vadd.xlane.f32.xlu0 %v472
      %v474 = vpop.xlane.xlu0 %473
      %v475 = vsel %vm320, %v457, 0.0
      %476 = vadd.xlane.f32.xlu0 %v475
      %v477 = vpop.xlane.xlu0 %476
      %v478 = vsel %vm320, %v459, 0.0
      %479 = vadd.xlane.f32.xlu0 %v478
      %v480 = vpop.xlane.xlu0 %479
      %v481 = vsel %vm320, %v461, 0.0
      %482 = vadd.xlane.f32.xlu0 %v481
      %v483 = vpop.xlane.xlu0 %482
      %v484 = vsel %vm320, %v463, 0.0
      %485 = vadd.xlane.f32.xlu0 %v484
      %v486 = vpop.xlane.xlu0 %485
      %v487 = vsel %vm320, %v465, 0.0
      %488 = vadd.xlane.f32.xlu0 %v487
      %v489 = vpop.xlane.xlu0 %488
      %v490 = vpack.c.bf16 %v453, %v451
      %v491 = vpack.c.bf16 %v457, %v455
      %v492 = vpack.c.bf16 %v461, %v459
      %v493 = vpack.c.bf16 %v465, %v463
      %v502 = vunpack.c.l.b16 %v236
      %v503 = vunpack.c.l.b16 %v242
      %v504 = vunpack.c.l.b16 %v248
      %v505 = vunpack.c.l.b16 %v254
      %v506 = vunpack.c.l.b16 %v260
      %v507 = vunpack.c.l.b16 %v266
      %v508 = vunpack.c.l.b16 %v272
      %v509 = vunpack.c.l.b16 %v278
      %v510 = vpack.c.b16 %v503, %v502
      %v511 = vpack.c.b16 %v505, %v504
      %v512 = vpack.c.b16 %v507, %v506
      %v513 = vpack.c.b16 %v509, %v508
      %v519 = vsel %vm320, %v490, 0
      %v522 = vsel %vm320, %v491, 0
      %v525 = vsel %vm320, %v492, 0
      %v528 = vsel %vm320, %v493, 0
      %530 = vmatprep.subr.bf16.mxu0 0
      %531 = vmatpush1.bf16.msra.mxu0 %v510
      %532 = vmatprep.subr.bf16.mxu0 0
      %533 = vmatpush1.bf16.msra.mxu0 %v511
      %534 = vmatprep.subr.bf16.mxu0 0
      %535 = vmatpush1.bf16.msra.mxu0 %v512
      %536 = vmatprep.subr.bf16.mxu0 0
      %537 = vmatpush1.bf16.msra.mxu0 %v513
      %538 = vmatprep.subr.bf16.mxu0 0
      %539 = vmatpush1.bf16.msra.mxu0 0
      %540 = vmatprep.subr.bf16.mxu0 0
      %541 = vmatpush1.bf16.msra.mxu0 0
      %542 = vmatprep.subr.bf16.mxu0 0
      %543 = vmatpush1.bf16.msra.mxu0 0
      %544 = vmatprep.subr.bf16.mxu0 0
      %545 = vmatpush1.bf16.msra.mxu0 0
      %546 = vmatprep.subr.bf16.mxu0 0
      %547 = vmatpush1.bf16.msra.mxu0 0
      %548 = vmatprep.subr.bf16.mxu0 0
      %549 = vmatpush1.bf16.msra.mxu0 0
      %550 = vmatprep.subr.bf16.mxu0 0
      %551 = vmatpush1.bf16.msra.mxu0 0
      %552 = vmatprep.subr.bf16.mxu0 0
      %553 = vmatpush1.bf16.msra.mxu0 0
      %554 = vmatprep.subr.bf16.mxu0 0
      %555 = vmatpush1.bf16.msra.mxu0 0
      %556 = vmatprep.subr.bf16.mxu0 0
      %557 = vmatpush1.bf16.msra.mxu0 0
      %558 = vmatprep.subr.bf16.mxu0 0
      %559 = vmatpush1.bf16.msra.mxu0 0
      %560 = vmatprep.subr.bf16.mxu0 0
      %561 = vmatpush1.bf16.msra.mxu0 0
      %562 = vmatprep.mubr.bf16.mxu0 0
      %563 = vmatmul.mubr.bf16.gmra.mrb[0].mxu0 %v519
      %v564 = vpop.f32.mrb[0].mxu0
      %v565 = vadd.f32 0.0, %v564
      %v566 = vpop.f32.mrb[0].mxu0
      %v567 = vpop.f32.mrb[0].mxu0
      %v568 = vadd.f32 0.0, %v567
      %v569 = vpop.f32.mrb[0].mxu0
      %570 = vmatprep.mubr.bf16.mxu0 0
      %571 = vmatmul.mubr.bf16.gmra.mrb[0].mxu0 %v522
      %v572 = vpop.f32.mrb[0].mxu0
      %v573 = vadd.f32 0.0, %v572
      %v574 = vpop.f32.mrb[0].mxu0
      %v575 = vpop.f32.mrb[0].mxu0
      %v576 = vadd.f32 0.0, %v575
      %v577 = vpop.f32.mrb[0].mxu0
      %578 = vmatprep.mubr.bf16.mxu0 0
      %579 = vmatmul.mubr.bf16.gmra.mrb[0].mxu0 %v525
      %v580 = vpop.f32.mrb[0].mxu0
      %v581 = vadd.f32 0.0, %v580
      %v582 = vpop.f32.mrb[0].mxu0
      %v583 = vpop.f32.mrb[0].mxu0
      %v584 = vadd.f32 0.0, %v583
      %v585 = vpop.f32.mrb[0].mxu0
      %586 = vmatprep.mubr.bf16.mxu0 0
      %587 = vmatmul.mubr.bf16.gmra.mrb[0].mxu0 %v528
      %v588 = vpop.f32.mrb[0].mxu0
      %v589 = vadd.f32 0.0, %v588
      %v590 = vpop.f32.mrb[0].mxu0
      %v591 = vpop.f32.mrb[0].mxu0
      %v592 = vadd.f32 0.0, %v591
      %v593 = vpop.f32.mrb[0].mxu0
      %594 = vdwg.mxu0
      %v595 = vrcp.pop %v468
      %v596 = vrcp.pop %v471
      %v597 = vrcp.pop %v474
      %v598 = vrcp.pop %v477
      %v599 = vrcp.pop %v480
      %v600 = vrcp.pop %v483
      %v601 = vrcp.pop %v486
      %v602 = vrcp.pop %v489
      %v603 = vmul.f32 %v565, %v595
      %v604 = vmul.f32 %v568, %v596
      %v605 = vmul.f32 %v573, %v597
      %v606 = vmul.f32 %v576, %v598
      %v607 = vmul.f32 %v581, %v599
      %v608 = vmul.f32 %v584, %v600
      %v609 = vmul.f32 %v589, %v601
      %v610 = vmul.f32 %v592, %v602
      %611 = vrot.lane.b32.xlu0 %v296, 64
      %v612 = vpop.permute.xlu0 %611
      %613 = vrot.lane.b32.xlu0 %v297, 64
      %v614 = vpop.permute.xlu0 %613
      %615 = vrot.lane.b32.xlu0 %v298, 64
      %v616 = vpop.permute.xlu0 %615
      %617 = vrot.lane.b32.xlu0 %v299, 64
      %v618 = vpop.permute.xlu0 %617
      %619 = vrot.lane.b32.xlu0 %v316, 64
      %v620 = vpop.permute.xlu0 %619
      %621 = vrot.lane.b32.xlu0 %v317, 64
      %v622 = vpop.permute.xlu0 %621
      %623 = vrot.lane.b32.xlu0 %v318, 64
      %v624 = vpop.permute.xlu0 %623
      %625 = vrot.lane.b32.xlu0 %v319, 64
      %v626 = vpop.permute.xlu0 %625
      %v628 = vsel %vm320, %v612, 0
      %v631 = vsel %vm320, %v614, 0
      %v634 = vsel %vm320, %v616, 0
      %v637 = vsel %vm320, %v618, 0
      %v640 = vsel %vm320, %v620, 0
      %v643 = vsel %vm320, %v622, 0
      %v646 = vsel %vm320, %v624, 0
      %v649 = vsel %vm320, %v626, 0
      %651 = vmatprep.subr.bf16.mxu0 0
      %652 = vmatpush1.bf16.xpose.msra.mxu0 %v640
      %653 = vmatprep.subr.bf16.mxu0 0
      %654 = vmatpush1.bf16.xpose.msra.mxu0 %v643
      %655 = vmatprep.subr.bf16.mxu0 0
      %656 = vmatpush1.bf16.xpose.msra.mxu0 %v646
      %657 = vmatprep.subr.bf16.mxu0 0
      %658 = vmatpush1.bf16.xpose.msra.mxu0 %v649
      %659 = vmatprep.subr.bf16.mxu0 0
      %660 = vmatpush1.bf16.xpose.msra.mxu0 0
      %661 = vmatprep.subr.bf16.mxu0 0
      %662 = vmatpush1.bf16.xpose.msra.mxu0 0
      %663 = vmatprep.subr.bf16.mxu0 0
      %664 = vmatpush1.bf16.xpose.msra.mxu0 0
      %665 = vmatprep.subr.bf16.mxu0 0
      %666 = vmatpush1.bf16.xpose.msra.mxu0 0
      %667 = vmatprep.subr.bf16.mxu0 0
      %668 = vmatpush1.bf16.xpose.msra.mxu0 0
      %669 = vmatprep.subr.bf16.mxu0 0
      %670 = vmatpush1.bf16.xpose.msra.mxu0 0
      %671 = vmatprep.subr.bf16.mxu0 0
      %672 = vmatpush1.bf16.xpose.msra.mxu0 0
      %673 = vmatprep.subr.bf16.mxu0 0
      %674 = vmatpush1.bf16.xpose.msra.mxu0 0
      %675 = vmatprep.subr.bf16.mxu0 0
      %676 = vmatpush1.bf16.xpose.msra.mxu0 0
      %677 = vmatprep.subr.bf16.mxu0 0
      %678 = vmatpush1.bf16.xpose.msra.mxu0 0
      %679 = vmatprep.subr.bf16.mxu0 0
      %680 = vmatpush1.bf16.xpose.msra.mxu0 0
      %681 = vmatprep.subr.bf16.mxu0 0
      %682 = vmatpush1.bf16.xpose.msra.mxu0 0
      %683 = vmatprep.mubr.bf16.mxu0 0
      %684 = vmatmul.mubr.bf16.gmra.mrb[0].mxu0 %v628
      %v685 = vpop.f32.mrb[0].mxu0
      %v686 = vadd.f32 0.0, %v685
      %v687 = vpop.f32.mrb[0].mxu0
      %v688 = vpop.f32.mrb[0].mxu0
      %v689 = vadd.f32 0.0, %v688
      %v690 = vpop.f32.mrb[0].mxu0
      %691 = vmatprep.mubr.bf16.mxu0 0
      %692 = vmatmul.mubr.bf16.gmra.mrb[0].mxu0 %v631
      %v693 = vpop.f32.mrb[0].mxu0
      %v694 = vadd.f32 0.0, %v693
      %v695 = vpop.f32.mrb[0].mxu0
      %v696 = vpop.f32.mrb[0].mxu0
      %v697 = vadd.f32 0.0, %v696
      %v698 = vpop.f32.mrb[0].mxu0
      %699 = vmatprep.mubr.bf16.mxu0 0
      %700 = vmatmul.mubr.bf16.gmra.mrb[0].mxu0 %v634
      %v701 = vpop.f32.mrb[0].mxu0
      %v702 = vadd.f32 0.0, %v701
      %v703 = vpop.f32.mrb[0].mxu0
      %v704 = vpop.f32.mrb[0].mxu0
      %v705 = vadd.f32 0.0, %v704
      %v706 = vpop.f32.mrb[0].mxu0
      %707 = vmatprep.mubr.bf16.mxu0 0
      %708 = vmatmul.mubr.bf16.gmra.mrb[0].mxu0 %v637
      %v709 = vpop.f32.mrb[0].mxu0
      %v710 = vadd.f32 0.0, %v709
      %v711 = vpop.f32.mrb[0].mxu0
      %v712 = vpop.f32.mrb[0].mxu0
      %v713 = vadd.f32 0.0, %v712
      %v714 = vpop.f32.mrb[0].mxu0
      %715 = vdwg.mxu0
      %v716 = vmul.f32 %v686, 0.125
      %v717 = vmul.f32 %v689, 0.125
      %v718 = vmul.f32 %v694, 0.125
      %v719 = vmul.f32 %v697, 0.125
      %v720 = vmul.f32 %v702, 0.125
      %v721 = vmul.f32 %v705, 0.125
      %v722 = vmul.f32 %v710, 0.125
      %v723 = vmul.f32 %v713, 0.125
      %v724 = vsel %vm320, %v716, -inf
      %725 = vmax.xlane.f32.xlu0 %v724
      %v726 = vpop.xlane.xlu0 %725
      %v727 = vsel %vm320, %v717, -inf
      %728 = vmax.xlane.f32.xlu0 %v727
      %v729 = vpop.xlane.xlu0 %728
      %v730 = vsel %vm320, %v718, -inf
      %731 = vmax.xlane.f32.xlu0 %v730
      %v732 = vpop.xlane.xlu0 %731
      %v733 = vsel %vm320, %v719, -inf
      %734 = vmax.xlane.f32.xlu0 %v733
      %v735 = vpop.xlane.xlu0 %734
      %v736 = vsel %vm320, %v720, -inf
      %737 = vmax.xlane.f32.xlu0 %v736
      %v738 = vpop.xlane.xlu0 %737
      %v739 = vsel %vm320, %v721, -inf
      %740 = vmax.xlane.f32.xlu0 %v739
      %v741 = vpop.xlane.xlu0 %740
      %v742 = vsel %vm320, %v722, -inf
      %743 = vmax.xlane.f32.xlu0 %v742
      %v744 = vpop.xlane.xlu0 %743
      %v745 = vsel %vm320, %v723, -inf
      %746 = vmax.xlane.f32.xlu0 %v745
      %v747 = vpop.xlane.xlu0 %746
      %v748 = vsub.f32 %v716, %v726
      %v749 = vsub.f32 %v717, %v729
      %v750 = vsub.f32 %v718, %v732
      %v751 = vsub.f32 %v719, %v735
      %v752 = vsub.f32 %v720, %v738
      %v753 = vsub.f32 %v721, %v741
      %v754 = vsub.f32 %v722, %v744
      %v755 = vsub.f32 %v723, %v747
      %v756 = vmul.f32 %v748, 1.442695
      %v757 = vpow.pop %v756
      %v758 = vmul.f32 %v749, 1.442695
      %v759 = vpow.pop %v758
      %v760 = vmul.f32 %v750, 1.442695
      %v761 = vpow.pop %v760
      %v762 = vmul.f32 %v751, 1.442695
      %v763 = vpow.pop %v762
      %v764 = vmul.f32 %v752, 1.442695
      %v765 = vpow.pop %v764
      %v766 = vmul.f32 %v753, 1.442695
      %v767 = vpow.pop %v766
      %v768 = vmul.f32 %v754, 1.442695
      %v769 = vpow.pop %v768
      %v770 = vmul.f32 %v755, 1.442695
      %v771 = vpow.pop %v770
      %v772 = vsel %vm320, %v757, 0.0
      %773 = vadd.xlane.f32.xlu0 %v772
      %v774 = vpop.xlane.xlu0 %773
      %v775 = vsel %vm320, %v759, 0.0
      %776 = vadd.xlane.f32.xlu0 %v775
      %v777 = vpop.xlane.xlu0 %776
      %v778 = vsel %vm320, %v761, 0.0
      %779 = vadd.xlane.f32.xlu0 %v778
      %v780 = vpop.xlane.xlu0 %779
      %v781 = vsel %vm320, %v763, 0.0
      %782 = vadd.xlane.f32.xlu0 %v781
      %v783 = vpop.xlane.xlu0 %782
      %v784 = vsel %vm320, %v765, 0.0
      %785 = vadd.xlane.f32.xlu0 %v784
      %v786 = vpop.xlane.xlu0 %785
      %v787 = vsel %vm320, %v767, 0.0
      %788 = vadd.xlane.f32.xlu0 %v787
      %v789 = vpop.xlane.xlu0 %788
      %v790 = vsel %vm320, %v769, 0.0
      %791 = vadd.xlane.f32.xlu0 %v790
      %v792 = vpop.xlane.xlu0 %791
      %v793 = vsel %vm320, %v771, 0.0
      %794 = vadd.xlane.f32.xlu0 %v793
      %v795 = vpop.xlane.xlu0 %794
      %v796 = vpack.c.bf16 %v759, %v757
      %v797 = vpack.c.bf16 %v763, %v761
      %v798 = vpack.c.bf16 %v767, %v765
      %v799 = vpack.c.bf16 %v771, %v769
      %800 = vrot.lane.b32.xlu0 %v510, 64
      %v801 = vpop.permute.xlu0 %800
      %802 = vrot.lane.b32.xlu0 %v511, 64
      %v803 = vpop.permute.xlu0 %802
      %804 = vrot.lane.b32.xlu0 %v512, 64
      %v805 = vpop.permute.xlu0 %804
      %806 = vrot.lane.b32.xlu0 %v513, 64
      %v807 = vpop.permute.xlu0 %806
      %v813 = vsel %vm320, %v796, 0
      %v816 = vsel %vm320, %v797, 0
      %v819 = vsel %vm320, %v798, 0
      %v822 = vsel %vm320, %v799, 0
      %824 = vmatprep.subr.bf16.mxu0 0
      %825 = vmatpush1.bf16.msra.mxu0 %v801
      %826 = vmatprep.subr.bf16.mxu0 0
      %827 = vmatpush1.bf16.msra.mxu0 %v803
      %828 = vmatprep.subr.bf16.mxu0 0
      %829 = vmatpush1.bf16.msra.mxu0 %v805
      %830 = vmatprep.subr.bf16.mxu0 0
      %831 = vmatpush1.bf16.msra.mxu0 %v807
      %832 = vmatprep.subr.bf16.mxu0 0
      %833 = vmatpush1.bf16.msra.mxu0 0
      %834 = vmatprep.subr.bf16.mxu0 0
      %835 = vmatpush1.bf16.msra.mxu0 0
      %836 = vmatprep.subr.bf16.mxu0 0
      %837 = vmatpush1.bf16.msra.mxu0 0
      %838 = vmatprep.subr.bf16.mxu0 0
      %839 = vmatpush1.bf16.msra.mxu0 0
      %840 = vmatprep.subr.bf16.mxu0 0
      %841 = vmatpush1.bf16.msra.mxu0 0
      %842 = vmatprep.subr.bf16.mxu0 0
      %843 = vmatpush1.bf16.msra.mxu0 0
      %844 = vmatprep.subr.bf16.mxu0 0
      %845 = vmatpush1.bf16.msra.mxu0 0
      %846 = vmatprep.subr.bf16.mxu0 0
      %847 = vmatpush1.bf16.msra.mxu0 0
      %848 = vmatprep.subr.bf16.mxu0 0
      %849 = vmatpush1.bf16.msra.mxu0 0
      %850 = vmatprep.subr.bf16.mxu0 0
      %851 = vmatpush1.bf16.msra.mxu0 0
      %852 = vmatprep.subr.bf16.mxu0 0
      %853 = vmatpush1.bf16.msra.mxu0 0
      %854 = vmatprep.subr.bf16.mxu0 0
      %855 = vmatpush1.bf16.msra.mxu0 0
      %856 = vmatprep.mubr.bf16.mxu0 0
      %857 = vmatmul.mubr.bf16.gmra.mrb[0].mxu0 %v813
      %v858 = vpop.f32.mrb[0].mxu0
      %v859 = vadd.f32 0.0, %v858
      %v860 = vpop.f32.mrb[0].mxu0
      %v861 = vpop.f32.mrb[0].mxu0
      %v862 = vadd.f32 0.0, %v861
      %v863 = vpop.f32.mrb[0].mxu0
      %864 = vmatprep.mubr.bf16.mxu0 0
      %865 = vmatmul.mubr.bf16.gmra.mrb[0].mxu0 %v816
      %v866 = vpop.f32.mrb[0].mxu0
      %v867 = vadd.f32 0.0, %v866
      %v868 = vpop.f32.mrb[0].mxu0
      %v869 = vpop.f32.mrb[0].mxu0
      %v870 = vadd.f32 0.0, %v869
      %v871 = vpop.f32.mrb[0].mxu0
      %872 = vmatprep.mubr.bf16.mxu0 0
      %873 = vmatmul.mubr.bf16.gmra.mrb[0].mxu0 %v819
      %v874 = vpop.f32.mrb[0].mxu0
      %v875 = vadd.f32 0.0, %v874
      %v876 = vpop.f32.mrb[0].mxu0
      %v877 = vpop.f32.mrb[0].mxu0
      %v878 = vadd.f32 0.0, %v877
      %v879 = vpop.f32.mrb[0].mxu0
      %880 = vmatprep.mubr.bf16.mxu0 0
      %881 = vmatmul.mubr.bf16.gmra.mrb[0].mxu0 %v822
      %v882 = vpop.f32.mrb[0].mxu0
      %v883 = vadd.f32 0.0, %v882
      %v884 = vpop.f32.mrb[0].mxu0
      %v885 = vpop.f32.mrb[0].mxu0
      %v886 = vadd.f32 0.0, %v885
      %v887 = vpop.f32.mrb[0].mxu0
      %888 = vdwg.mxu0
      %v889 = vrcp.pop %v774
      %v890 = vrcp.pop %v777
      %v891 = vrcp.pop %v780
      %v892 = vrcp.pop %v783
      %v893 = vrcp.pop %v786
      %v894 = vrcp.pop %v789
      %v895 = vrcp.pop %v792
      %v896 = vrcp.pop %v795
      %v897 = vmul.f32 %v859, %v889
      %v898 = vmul.f32 %v862, %v890
      %v899 = vmul.f32 %v867, %v891
      %v900 = vmul.f32 %v870, %v892
      %v901 = vmul.f32 %v875, %v893
      %v902 = vmul.f32 %v878, %v894
      %v903 = vmul.f32 %v883, %v895
      %v904 = vmul.f32 %v886, %v896
      %v905 = vunpack.c.h.b16 %v232
      %v906 = vunpack.c.h.b16 %v238
      %v907 = vunpack.c.h.b16 %v244
      %v908 = vunpack.c.h.b16 %v250
      %v909 = vunpack.c.h.b16 %v256
      %v910 = vunpack.c.h.b16 %v262
      %v911 = vunpack.c.h.b16 %v268
      %v912 = vunpack.c.h.b16 %v274
      %v913 = vpack.c.b16 %v906, %v905
      %v914 = vpack.c.b16 %v908, %v907
      %v915 = vpack.c.b16 %v910, %v909
      %v916 = vpack.c.b16 %v912, %v911
      %v917 = vunpack.c.h.b16 %v234
      %v918 = vunpack.c.h.b16 %v240
      %v919 = vunpack.c.h.b16 %v246
      %v920 = vunpack.c.h.b16 %v252
      %v921 = vunpack.c.h.b16 %v258
      %v922 = vunpack.c.h.b16 %v264
      %v923 = vunpack.c.h.b16 %v270
      %v924 = vunpack.c.h.b16 %v276
      %v925 = vpack.c.b16 %v918, %v917
      %v926 = vpack.c.b16 %v920, %v919
      %v927 = vpack.c.b16 %v922, %v921
      %v928 = vpack.c.b16 %v924, %v923
      %v930 = vsel %vm320, %v913, 0
      %v933 = vsel %vm320, %v914, 0
      %v936 = vsel %vm320, %v915, 0
      %v939 = vsel %vm320, %v916, 0
      %v942 = vsel %vm320, %v925, 0
      %v945 = vsel %vm320, %v926, 0
      %v948 = vsel %vm320, %v927, 0
      %v951 = vsel %vm320, %v928, 0
      %953 = vmatprep.subr.bf16.mxu0 0
      %954 = vmatpush1.bf16.xpose.msra.mxu0 %v942
      %955 = vmatprep.subr.bf16.mxu0 0
      %956 = vmatpush1.bf16.xpose.msra.mxu0 %v945
      %957 = vmatprep.subr.bf16.mxu0 0
      %958 = vmatpush1.bf16.xpose.msra.mxu0 %v948
      %959 = vmatprep.subr.bf16.mxu0 0
      %960 = vmatpush1.bf16.xpose.msra.mxu0 %v951
      %961 = vmatprep.subr.bf16.mxu0 0
      %962 = vmatpush1.bf16.xpose.msra.mxu0 0
      %963 = vmatprep.subr.bf16.mxu0 0
      %964 = vmatpush1.bf16.xpose.msra.mxu0 0
      %965 = vmatprep.subr.bf16.mxu0 0
      %966 = vmatpush1.bf16.xpose.msra.mxu0 0
      %967 = vmatprep.subr.bf16.mxu0 0
      %968 = vmatpush1.bf16.xpose.msra.mxu0 0
      %969 = vmatprep.subr.bf16.mxu0 0
      %970 = vmatpush1.bf16.xpose.msra.mxu0 0
      %971 = vmatprep.subr.bf16.mxu0 0
      %972 = vmatpush1.bf16.xpose.msra.mxu0 0
      %973 = vmatprep.subr.bf16.mxu0 0
      %974 = vmatpush1.bf16.xpose.msra.mxu0 0
      %975 = vmatprep.subr.bf16.mxu0 0
      %976 = vmatpush1.bf16.xpose.msra.mxu0 0
      %977 = vmatprep.subr.bf16.mxu0 0
      %978 = vmatpush1.bf16.xpose.msra.mxu0 0
      %979 = vmatprep.subr.bf16.mxu0 0
      %980 = vmatpush1.bf16.xpose.msra.mxu0 0
      %981 = vmatprep.subr.bf16.mxu0 0
      %982 = vmatpush1.bf16.xpose.msra.mxu0 0
      %983 = vmatprep.subr.bf16.mxu0 0
      %984 = vmatpush1.bf16.xpose.msra.mxu0 0
      %985 = vmatprep.mubr.bf16.mxu0 0
      %986 = vmatmul.mubr.bf16.gmra.mrb[0].mxu0 %v930
      %v987 = vpop.f32.mrb[0].mxu0
      %v988 = vadd.f32 0.0, %v987
      %v989 = vpop.f32.mrb[0].mxu0
      %v990 = vpop.f32.mrb[0].mxu0
      %v991 = vadd.f32 0.0, %v990
      %v992 = vpop.f32.mrb[0].mxu0
      %993 = vmatprep.mubr.bf16.mxu0 0
      %994 = vmatmul.mubr.bf16.gmra.mrb[0].mxu0 %v933
      %v995 = vpop.f32.mrb[0].mxu0
      %v996 = vadd.f32 0.0, %v995
      %v997 = vpop.f32.mrb[0].mxu0
      %v998 = vpop.f32.mrb[0].mxu0
      %v999 = vadd.f32 0.0, %v998
      %v1000 = vpop.f32.mrb[0].mxu0
      %1001 = vmatprep.mubr.bf16.mxu0 0
      %1002 = vmatmul.mubr.bf16.gmra.mrb[0].mxu0 %v936
      %v1003 = vpop.f32.mrb[0].mxu0
      %v1004 = vadd.f32 0.0, %v1003
      %v1005 = vpop.f32.mrb[0].mxu0
      %v1006 = vpop.f32.mrb[0].mxu0
      %v1007 = vadd.f32 0.0, %v1006
      %v1008 = vpop.f32.mrb[0].mxu0
      %1009 = vmatprep.mubr.bf16.mxu0 0
      %1010 = vmatmul.mubr.bf16.gmra.mrb[0].mxu0 %v939
      %v1011 = vpop.f32.mrb[0].mxu0
      %v1012 = vadd.f32 0.0, %v1011
      %v1013 = vpop.f32.mrb[0].mxu0
      %v1014 = vpop.f32.mrb[0].mxu0
      %v1015 = vadd.f32 0.0, %v1014
      %v1016 = vpop.f32.mrb[0].mxu0
      %1017 = vdwg.mxu0
      %v1018 = vmul.f32 %v988, 0.125
      %v1019 = vmul.f32 %v991, 0.125
      %v1020 = vmul.f32 %v996, 0.125
      %v1021 = vmul.f32 %v999, 0.125
      %v1022 = vmul.f32 %v1004, 0.125
      %v1023 = vmul.f32 %v1007, 0.125
      %v1024 = vmul.f32 %v1012, 0.125
      %v1025 = vmul.f32 %v1015, 0.125
      %v1026 = vsel %vm320, %v1018, -inf
      %1027 = vmax.xlane.f32.xlu0 %v1026
      %v1028 = vpop.xlane.xlu0 %1027
      %v1029 = vsel %vm320, %v1019, -inf
      %1030 = vmax.xlane.f32.xlu0 %v1029
      %v1031 = vpop.xlane.xlu0 %1030
      %v1032 = vsel %vm320, %v1020, -inf
      %1033 = vmax.xlane.f32.xlu0 %v1032
      %v1034 = vpop.xlane.xlu0 %1033
      %v1035 = vsel %vm320, %v1021, -inf
      %1036 = vmax.xlane.f32.xlu0 %v1035
      %v1037 = vpop.xlane.xlu0 %1036
      %v1038 = vsel %vm320, %v1022, -inf
      %1039 = vmax.xlane.f32.xlu0 %v1038
      %v1040 = vpop.xlane.xlu0 %1039
      %v1041 = vsel %vm320, %v1023, -inf
      %1042 = vmax.xlane.f32.xlu0 %v1041
      %v1043 = vpop.xlane.xlu0 %1042
      %v1044 = vsel %vm320, %v1024, -inf
      %1045 = vmax.xlane.f32.xlu0 %v1044
      %v1046 = vpop.xlane.xlu0 %1045
      %v1047 = vsel %vm320, %v1025, -inf
      %1048 = vmax.xlane.f32.xlu0 %v1047
      %v1049 = vpop.xlane.xlu0 %1048
      %v1050 = vsub.f32 %v1018, %v1028
      %v1051 = vsub.f32 %v1019, %v1031
      %v1052 = vsub.f32 %v1020, %v1034
      %v1053 = vsub.f32 %v1021, %v1037
      %v1054 = vsub.f32 %v1022, %v1040
      %v1055 = vsub.f32 %v1023, %v1043
      %v1056 = vsub.f32 %v1024, %v1046
      %v1057 = vsub.f32 %v1025, %v1049
      %v1058 = vmul.f32 %v1050, 1.442695
      %v1059 = vpow.pop %v1058
      %v1060 = vmul.f32 %v1051, 1.442695
      %v1061 = vpow.pop %v1060
      %v1062 = vmul.f32 %v1052, 1.442695
      %v1063 = vpow.pop %v1062
      %v1064 = vmul.f32 %v1053, 1.442695
      %v1065 = vpow.pop %v1064
      %v1066 = vmul.f32 %v1054, 1.442695
      %v1067 = vpow.pop %v1066
      %v1068 = vmul.f32 %v1055, 1.442695
      %v1069 = vpow.pop %v1068
      %v1070 = vmul.f32 %v1056, 1.442695
      %v1071 = vpow.pop %v1070
      %v1072 = vmul.f32 %v1057, 1.442695
      %v1073 = vpow.pop %v1072
      %v1074 = vsel %vm320, %v1059, 0.0
      %1075 = vadd.xlane.f32.xlu0 %v1074
      %v1076 = vpop.xlane.xlu0 %1075
      %v1077 = vsel %vm320, %v1061, 0.0
      %1078 = vadd.xlane.f32.xlu0 %v1077
      %v1079 = vpop.xlane.xlu0 %1078
      %v1080 = vsel %vm320, %v1063, 0.0
      %1081 = vadd.xlane.f32.xlu0 %v1080
      %v1082 = vpop.xlane.xlu0 %1081
      %v1083 = vsel %vm320, %v1065, 0.0
      %1084 = vadd.xlane.f32.xlu0 %v1083
      %v1085 = vpop.xlane.xlu0 %1084
      %v1086 = vsel %vm320, %v1067, 0.0
      %1087 = vadd.xlane.f32.xlu0 %v1086
      %v1088 = vpop.xlane.xlu0 %1087
      %v1089 = vsel %vm320, %v1069, 0.0
      %1090 = vadd.xlane.f32.xlu0 %v1089
      %v1091 = vpop.xlane.xlu0 %1090
      %v1092 = vsel %vm320, %v1071, 0.0
      %1093 = vadd.xlane.f32.xlu0 %v1092
      %v1094 = vpop.xlane.xlu0 %1093
      %v1095 = vsel %vm320, %v1073, 0.0
      %1096 = vadd.xlane.f32.xlu0 %v1095
      %v1097 = vpop.xlane.xlu0 %1096
      %v1098 = vpack.c.bf16 %v1061, %v1059
      %v1099 = vpack.c.bf16 %v1065, %v1063
      %v1100 = vpack.c.bf16 %v1069, %v1067
      %v1101 = vpack.c.bf16 %v1073, %v1071
      %v1102 = vunpack.c.h.b16 %v236
      %v1103 = vunpack.c.h.b16 %v242
      %v1104 = vunpack.c.h.b16 %v248
      %v1105 = vunpack.c.h.b16 %v254
      %v1106 = vunpack.c.h.b16 %v260
      %v1107 = vunpack.c.h.b16 %v266
      %v1108 = vunpack.c.h.b16 %v272
      %v1109 = vunpack.c.h.b16 %v278
      %v1110 = vpack.c.b16 %v1103, %v1102
      %v1111 = vpack.c.b16 %v1105, %v1104
      %v1112 = vpack.c.b16 %v1107, %v1106
      %v1113 = vpack.c.b16 %v1109, %v1108
      %v1119 = vsel %vm320, %v1098, 0
      %v1122 = vsel %vm320, %v1099, 0
      %v1125 = vsel %vm320, %v1100, 0
      %v1128 = vsel %vm320, %v1101, 0
      %1130 = vmatprep.subr.bf16.mxu0 0
      %1131 = vmatpush1.bf16.msra.mxu0 %v1110
      %1132 = vmatprep.subr.bf16.mxu0 0
      %1133 = vmatpush1.bf16.msra.mxu0 %v1111
      %1134 = vmatprep.subr.bf16.mxu0 0
      %1135 = vmatpush1.bf16.msra.mxu0 %v1112
      %1136 = vmatprep.subr.bf16.mxu0 0
      %1137 = vmatpush1.bf16.msra.mxu0 %v1113
      %1138 = vmatprep.subr.bf16.mxu0 0
      %1139 = vmatpush1.bf16.msra.mxu0 0
      %1140 = vmatprep.subr.bf16.mxu0 0
      %1141 = vmatpush1.bf16.msra.mxu0 0
      %1142 = vmatprep.subr.bf16.mxu0 0
      %1143 = vmatpush1.bf16.msra.mxu0 0
      %1144 = vmatprep.subr.bf16.mxu0 0
      %1145 = vmatpush1.bf16.msra.mxu0 0
      %1146 = vmatprep.subr.bf16.mxu0 0
      %1147 = vmatpush1.bf16.msra.mxu0 0
      %1148 = vmatprep.subr.bf16.mxu0 0
      %1149 = vmatpush1.bf16.msra.mxu0 0
      %1150 = vmatprep.subr.bf16.mxu0 0
      %1151 = vmatpush1.bf16.msra.mxu0 0
      %1152 = vmatprep.subr.bf16.mxu0 0
      %1153 = vmatpush1.bf16.msra.mxu0 0
      %1154 = vmatprep.subr.bf16.mxu0 0
      %1155 = vmatpush1.bf16.msra.mxu0 0
      %1156 = vmatprep.subr.bf16.mxu0 0
      %1157 = vmatpush1.bf16.msra.mxu0 0
      %1158 = vmatprep.subr.bf16.mxu0 0
      %1159 = vmatpush1.bf16.msra.mxu0 0
      %1160 = vmatprep.subr.bf16.mxu0 0
      %1161 = vmatpush1.bf16.msra.mxu0 0
      %1162 = vmatprep.mubr.bf16.mxu0 0
      %1163 = vmatmul.mubr.bf16.gmra.mrb[0].mxu0 %v1119
      %v1164 = vpop.f32.mrb[0].mxu0
      %v1165 = vadd.f32 0.0, %v1164
      %v1166 = vpop.f32.mrb[0].mxu0
      %v1167 = vpop.f32.mrb[0].mxu0
      %v1168 = vadd.f32 0.0, %v1167
      %v1169 = vpop.f32.mrb[0].mxu0
      %1170 = vmatprep.mubr.bf16.mxu0 0
      %1171 = vmatmul.mubr.bf16.gmra.mrb[0].mxu0 %v1122
      %v1172 = vpop.f32.mrb[0].mxu0
      %v1173 = vadd.f32 0.0, %v1172
      %v1174 = vpop.f32.mrb[0].mxu0
      %v1175 = vpop.f32.mrb[0].mxu0
      %v1176 = vadd.f32 0.0, %v1175
      %v1177 = vpop.f32.mrb[0].mxu0
      %1178 = vmatprep.mubr.bf16.mxu0 0
      %1179 = vmatmul.mubr.bf16.gmra.mrb[0].mxu0 %v1125
      %v1180 = vpop.f32.mrb[0].mxu0
      %v1181 = vadd.f32 0.0, %v1180
      %v1182 = vpop.f32.mrb[0].mxu0
      %v1183 = vpop.f32.mrb[0].mxu0
      %v1184 = vadd.f32 0.0, %v1183
      %v1185 = vpop.f32.mrb[0].mxu0
      %1186 = vmatprep.mubr.bf16.mxu0 0
      %1187 = vmatmul.mubr.bf16.gmra.mrb[0].mxu0 %v1128
      %v1188 = vpop.f32.mrb[0].mxu0
      %v1189 = vadd.f32 0.0, %v1188
      %v1190 = vpop.f32.mrb[0].mxu0
      %v1191 = vpop.f32.mrb[0].mxu0
      %v1192 = vadd.f32 0.0, %v1191
      %v1193 = vpop.f32.mrb[0].mxu0
      %1194 = vdwg.mxu0
      %v1195 = vrcp.pop %v1076
      %v1196 = vrcp.pop %v1079
      %v1197 = vrcp.pop %v1082
      %v1198 = vrcp.pop %v1085
      %v1199 = vrcp.pop %v1088
      %v1200 = vrcp.pop %v1091
      %v1201 = vrcp.pop %v1094
      %v1202 = vrcp.pop %v1097
      %v1203 = vmul.f32 %v1165, %v1195
      %v1204 = vmul.f32 %v1168, %v1196
      %v1205 = vmul.f32 %v1173, %v1197
      %v1206 = vmul.f32 %v1176, %v1198
      %v1207 = vmul.f32 %v1181, %v1199
      %v1208 = vmul.f32 %v1184, %v1200
      %v1209 = vmul.f32 %v1189, %v1201
      %v1210 = vmul.f32 %v1192, %v1202
      %1211 = vrot.lane.b32.xlu0 %v913, 64
      %v1212 = vpop.permute.xlu0 %1211
      %1213 = vrot.lane.b32.xlu0 %v914, 64
      %v1214 = vpop.permute.xlu0 %1213
      %1215 = vrot.lane.b32.xlu0 %v915, 64
      %v1216 = vpop.permute.xlu0 %1215
      %1217 = vrot.lane.b32.xlu0 %v916, 64
      %v1218 = vpop.permute.xlu0 %1217
      %1219 = vrot.lane.b32.xlu0 %v925, 64
      %v1220 = vpop.permute.xlu0 %1219
      %1221 = vrot.lane.b32.xlu0 %v926, 64
      %v1222 = vpop.permute.xlu0 %1221
      %1223 = vrot.lane.b32.xlu0 %v927, 64
      %v1224 = vpop.permute.xlu0 %1223
      %1225 = vrot.lane.b32.xlu0 %v928, 64
      %v1226 = vpop.permute.xlu0 %1225
      %v1228 = vsel %vm320, %v1212, 0
      %v1231 = vsel %vm320, %v1214, 0
      %v1234 = vsel %vm320, %v1216, 0
      %v1237 = vsel %vm320, %v1218, 0
      %v1240 = vsel %vm320, %v1220, 0
      %v1243 = vsel %vm320, %v1222, 0
      %v1246 = vsel %vm320, %v1224, 0
      %v1249 = vsel %vm320, %v1226, 0
      %1251 = vmatprep.subr.bf16.mxu0 0
      %1252 = vmatpush1.bf16.xpose.msra.mxu0 %v1240
      %1253 = vmatprep.subr.bf16.mxu0 0
      %1254 = vmatpush1.bf16.xpose.msra.mxu0 %v1243
      %1255 = vmatprep.subr.bf16.mxu0 0
      %1256 = vmatpush1.bf16.xpose.msra.mxu0 %v1246
      %1257 = vmatprep.subr.bf16.mxu0 0
      %1258 = vmatpush1.bf16.xpose.msra.mxu0 %v1249
      %1259 = vmatprep.subr.bf16.mxu0 0
      %1260 = vmatpush1.bf16.xpose.msra.mxu0 0
      %1261 = vmatprep.subr.bf16.mxu0 0
      %1262 = vmatpush1.bf16.xpose.msra.mxu0 0
      %1263 = vmatprep.subr.bf16.mxu0 0
      %1264 = vmatpush1.bf16.xpose.msra.mxu0 0
      %1265 = vmatprep.subr.bf16.mxu0 0
      %1266 = vmatpush1.bf16.xpose.msra.mxu0 0
      %1267 = vmatprep.subr.bf16.mxu0 0
      %1268 = vmatpush1.bf16.xpose.msra.mxu0 0
      %1269 = vmatprep.subr.bf16.mxu0 0
      %1270 = vmatpush1.bf16.xpose.msra.mxu0 0
      %1271 = vmatprep.subr.bf16.mxu0 0
      %1272 = vmatpush1.bf16.xpose.msra.mxu0 0
      %1273 = vmatprep.subr.bf16.mxu0 0
      %1274 = vmatpush1.bf16.xpose.msra.mxu0 0
      %1275 = vmatprep.subr.bf16.mxu0 0
      %1276 = vmatpush1.bf16.xpose.msra.mxu0 0
      %1277 = vmatprep.subr.bf16.mxu0 0
      %1278 = vmatpush1.bf16.xpose.msra.mxu0 0
      %1279 = vmatprep.subr.bf16.mxu0 0
      %1280 = vmatpush1.bf16.xpose.msra.mxu0 0
      %1281 = vmatprep.subr.bf16.mxu0 0
      %1282 = vmatpush1.bf16.xpose.msra.mxu0 0
      %1283 = vmatprep.mubr.bf16.mxu0 0
      %1284 = vmatmul.mubr.bf16.gmra.mrb[0].mxu0 %v1228
      %v1285 = vpop.f32.mrb[0].mxu0
      %v1286 = vadd.f32 0.0, %v1285
      %v1287 = vpop.f32.mrb[0].mxu0
      %v1288 = vpop.f32.mrb[0].mxu0
      %v1289 = vadd.f32 0.0, %v1288
      %v1290 = vpop.f32.mrb[0].mxu0
      %1291 = vmatprep.mubr.bf16.mxu0 0
      %1292 = vmatmul.mubr.bf16.gmra.mrb[0].mxu0 %v1231
      %v1293 = vpop.f32.mrb[0].mxu0
      %v1294 = vadd.f32 0.0, %v1293
      %v1295 = vpop.f32.mrb[0].mxu0
      %v1296 = vpop.f32.mrb[0].mxu0
      %v1297 = vadd.f32 0.0, %v1296
      %v1298 = vpop.f32.mrb[0].mxu0
      %1299 = vmatprep.mubr.bf16.mxu0 0
      %1300 = vmatmul.mubr.bf16.gmra.mrb[0].mxu0 %v1234
      %v1301 = vpop.f32.mrb[0].mxu0
      %v1302 = vadd.f32 0.0, %v1301
      %v1303 = vpop.f32.mrb[0].mxu0
      %v1304 = vpop.f32.mrb[0].mxu0
      %v1305 = vadd.f32 0.0, %v1304
      %v1306 = vpop.f32.mrb[0].mxu0
      %1307 = vmatprep.mubr.bf16.mxu0 0
      %1308 = vmatmul.mubr.bf16.gmra.mrb[0].mxu0 %v1237
      %v1309 = vpop.f32.mrb[0].mxu0
      %v1310 = vadd.f32 0.0, %v1309
      %v1311 = vpop.f32.mrb[0].mxu0
      %v1312 = vpop.f32.mrb[0].mxu0
      %v1313 = vadd.f32 0.0, %v1312
      %v1314 = vpop.f32.mrb[0].mxu0
      %1315 = vdwg.mxu0
      %v1316 = vmul.f32 %v1286, 0.125
      %v1317 = vmul.f32 %v1289, 0.125
      %v1318 = vmul.f32 %v1294, 0.125
      %v1319 = vmul.f32 %v1297, 0.125
      %v1320 = vmul.f32 %v1302, 0.125
      %v1321 = vmul.f32 %v1305, 0.125
      %v1322 = vmul.f32 %v1310, 0.125
      %v1323 = vmul.f32 %v1313, 0.125
      %v1324 = vsel %vm320, %v1316, -inf
      %1325 = vmax.xlane.f32.xlu0 %v1324
      %v1326 = vpop.xlane.xlu0 %1325
      %v1327 = vsel %vm320, %v1317, -inf
      %1328 = vmax.xlane.f32.xlu0 %v1327
      %v1329 = vpop.xlane.xlu0 %1328
      %v1330 = vsel %vm320, %v1318, -inf
      %1331 = vmax.xlane.f32.xlu0 %v1330
      %v1332 = vpop.xlane.xlu0 %1331
      %v1333 = vsel %vm320, %v1319, -inf
      %1334 = vmax.xlane.f32.xlu0 %v1333
      %v1335 = vpop.xlane.xlu0 %1334
      %v1336 = vsel %vm320, %v1320, -inf
      %1337 = vmax.xlane.f32.xlu0 %v1336
      %v1338 = vpop.xlane.xlu0 %1337
      %v1339 = vsel %vm320, %v1321, -inf
      %1340 = vmax.xlane.f32.xlu0 %v1339
      %v1341 = vpop.xlane.xlu0 %1340
      %v1342 = vsel %vm320, %v1322, -inf
      %1343 = vmax.xlane.f32.xlu0 %v1342
      %v1344 = vpop.xlane.xlu0 %1343
      %v1345 = vsel %vm320, %v1323, -inf
      %1346 = vmax.xlane.f32.xlu0 %v1345
      %v1347 = vpop.xlane.xlu0 %1346
      %v1348 = vsub.f32 %v1316, %v1326
      %v1349 = vsub.f32 %v1317, %v1329
      %v1350 = vsub.f32 %v1318, %v1332
      %v1351 = vsub.f32 %v1319, %v1335
      %v1352 = vsub.f32 %v1320, %v1338
      %v1353 = vsub.f32 %v1321, %v1341
      %v1354 = vsub.f32 %v1322, %v1344
      %v1355 = vsub.f32 %v1323, %v1347
      %v1356 = vmul.f32 %v1348, 1.442695
      %v1357 = vpow.pop %v1356
      %v1358 = vmul.f32 %v1349, 1.442695
      %v1359 = vpow.pop %v1358
      %v1360 = vmul.f32 %v1350, 1.442695
      %v1361 = vpow.pop %v1360
      %v1362 = vmul.f32 %v1351, 1.442695
      %v1363 = vpow.pop %v1362
      %v1364 = vmul.f32 %v1352, 1.442695
      %v1365 = vpow.pop %v1364
      %v1366 = vmul.f32 %v1353, 1.442695
      %v1367 = vpow.pop %v1366
      %v1368 = vmul.f32 %v1354, 1.442695
      %v1369 = vpow.pop %v1368
      %v1370 = vmul.f32 %v1355, 1.442695
      %v1371 = vpow.pop %v1370
      %v1372 = vsel %vm320, %v1357, 0.0
      %1373 = vadd.xlane.f32.xlu0 %v1372
      %v1374 = vpop.xlane.xlu0 %1373
      %v1375 = vsel %vm320, %v1359, 0.0
      %1376 = vadd.xlane.f32.xlu0 %v1375
      %v1377 = vpop.xlane.xlu0 %1376
      %v1378 = vsel %vm320, %v1361, 0.0
      %1379 = vadd.xlane.f32.xlu0 %v1378
      %v1380 = vpop.xlane.xlu0 %1379
      %v1381 = vsel %vm320, %v1363, 0.0
      %1382 = vadd.xlane.f32.xlu0 %v1381
      %v1383 = vpop.xlane.xlu0 %1382
      %v1384 = vsel %vm320, %v1365, 0.0
      %1385 = vadd.xlane.f32.xlu0 %v1384
      %v1386 = vpop.xlane.xlu0 %1385
      %v1387 = vsel %vm320, %v1367, 0.0
      %1388 = vadd.xlane.f32.xlu0 %v1387
      %v1389 = vpop.xlane.xlu0 %1388
      %v1390 = vsel %vm320, %v1369, 0.0
      %1391 = vadd.xlane.f32.xlu0 %v1390
      %v1392 = vpop.xlane.xlu0 %1391
      %v1393 = vsel %vm320, %v1371, 0.0
      %1394 = vadd.xlane.f32.xlu0 %v1393
      %v1395 = vpop.xlane.xlu0 %1394
      %v1396 = vpack.c.bf16 %v1359, %v1357
      %v1397 = vpack.c.bf16 %v1363, %v1361
      %v1398 = vpack.c.bf16 %v1367, %v1365
      %v1399 = vpack.c.bf16 %v1371, %v1369
      %1400 = vrot.lane.b32.xlu0 %v1110, 64
      %v1401 = vpop.permute.xlu0 %1400
      %1402 = vrot.lane.b32.xlu0 %v1111, 64
      %v1403 = vpop.permute.xlu0 %1402
      %1404 = vrot.lane.b32.xlu0 %v1112, 64
      %v1405 = vpop.permute.xlu0 %1404
      %1406 = vrot.lane.b32.xlu0 %v1113, 64
      %v1407 = vpop.permute.xlu0 %1406
      %v1413 = vsel %vm320, %v1396, 0
      %v1416 = vsel %vm320, %v1397, 0
      %v1419 = vsel %vm320, %v1398, 0
      %v1422 = vsel %vm320, %v1399, 0
      %1424 = vmatprep.subr.bf16.mxu0 0
      %1425 = vmatpush1.bf16.msra.mxu0 %v1401
      %1426 = vmatprep.subr.bf16.mxu0 0
      %1427 = vmatpush1.bf16.msra.mxu0 %v1403
      %1428 = vmatprep.subr.bf16.mxu0 0
      %1429 = vmatpush1.bf16.msra.mxu0 %v1405
      %1430 = vmatprep.subr.bf16.mxu0 0
      %1431 = vmatpush1.bf16.msra.mxu0 %v1407
      %1432 = vmatprep.subr.bf16.mxu0 0
      %1433 = vmatpush1.bf16.msra.mxu0 0
      %1434 = vmatprep.subr.bf16.mxu0 0
      %1435 = vmatpush1.bf16.msra.mxu0 0
      %1436 = vmatprep.subr.bf16.mxu0 0
      %1437 = vmatpush1.bf16.msra.mxu0 0
      %1438 = vmatprep.subr.bf16.mxu0 0
      %1439 = vmatpush1.bf16.msra.mxu0 0
      %1440 = vmatprep.subr.bf16.mxu0 0
      %1441 = vmatpush1.bf16.msra.mxu0 0
      %1442 = vmatprep.subr.bf16.mxu0 0
      %1443 = vmatpush1.bf16.msra.mxu0 0
      %1444 = vmatprep.subr.bf16.mxu0 0
      %1445 = vmatpush1.bf16.msra.mxu0 0
      %1446 = vmatprep.subr.bf16.mxu0 0
      %1447 = vmatpush1.bf16.msra.mxu0 0
      %1448 = vmatprep.subr.bf16.mxu0 0
      %1449 = vmatpush1.bf16.msra.mxu0 0
      %1450 = vmatprep.subr.bf16.mxu0 0
      %1451 = vmatpush1.bf16.msra.mxu0 0
      %1452 = vmatprep.subr.bf16.mxu0 0
      %1453 = vmatpush1.bf16.msra.mxu0 0
      %1454 = vmatprep.subr.bf16.mxu0 0
      %1455 = vmatpush1.bf16.msra.mxu0 0
      %1456 = vmatprep.mubr.bf16.mxu0 0
      %1457 = vmatmul.mubr.bf16.gmra.mrb[0].mxu0 %v1413
      %v1458 = vpop.f32.mrb[0].mxu0
      %v1459 = vadd.f32 0.0, %v1458
      %v1460 = vpop.f32.mrb[0].mxu0
      %v1461 = vpop.f32.mrb[0].mxu0
      %v1462 = vadd.f32 0.0, %v1461
      %v1463 = vpop.f32.mrb[0].mxu0
      %1464 = vmatprep.mubr.bf16.mxu0 0
      %1465 = vmatmul.mubr.bf16.gmra.mrb[0].mxu0 %v1416
      %v1466 = vpop.f32.mrb[0].mxu0
      %v1467 = vadd.f32 0.0, %v1466
      %v1468 = vpop.f32.mrb[0].mxu0
      %v1469 = vpop.f32.mrb[0].mxu0
      %v1470 = vadd.f32 0.0, %v1469
      %v1471 = vpop.f32.mrb[0].mxu0
      %1472 = vmatprep.mubr.bf16.mxu0 0
      %1473 = vmatmul.mubr.bf16.gmra.mrb[0].mxu0 %v1419
      %v1474 = vpop.f32.mrb[0].mxu0
      %v1475 = vadd.f32 0.0, %v1474
      %v1476 = vpop.f32.mrb[0].mxu0
      %v1477 = vpop.f32.mrb[0].mxu0
      %v1478 = vadd.f32 0.0, %v1477
      %v1479 = vpop.f32.mrb[0].mxu0
      %1480 = vmatprep.mubr.bf16.mxu0 0
      %1481 = vmatmul.mubr.bf16.gmra.mrb[0].mxu0 %v1422
      %v1482 = vpop.f32.mrb[0].mxu0
      %v1483 = vadd.f32 0.0, %v1482
      %v1484 = vpop.f32.mrb[0].mxu0
      %v1485 = vpop.f32.mrb[0].mxu0
      %v1486 = vadd.f32 0.0, %v1485
      %v1487 = vpop.f32.mrb[0].mxu0
      %1488 = vdwg.mxu0
      %v1489 = vrcp.pop %v1374
      %v1490 = vrcp.pop %v1377
      %v1491 = vrcp.pop %v1380
      %v1492 = vrcp.pop %v1383
      %v1493 = vrcp.pop %v1386
      %v1494 = vrcp.pop %v1389
      %v1495 = vrcp.pop %v1392
      %v1496 = vrcp.pop %v1395
      %v1497 = vmul.f32 %v1459, %v1489
      %v1498 = vmul.f32 %v1462, %v1490
      %v1499 = vmul.f32 %v1467, %v1491
      %v1500 = vmul.f32 %v1470, %v1492
      %v1501 = vmul.f32 %v1475, %v1493
      %v1502 = vmul.f32 %v1478, %v1494
      %v1503 = vmul.f32 %v1483, %v1495
      %v1504 = vmul.f32 %v1486, %v1496
      %v1513 = vunpack.c.l.b16 %v233
      %v1514 = vunpack.c.l.b16 %v239
      %v1515 = vunpack.c.l.b16 %v245
      %v1516 = vunpack.c.l.b16 %v251
      %v1517 = vunpack.c.l.b16 %v257
      %v1518 = vunpack.c.l.b16 %v263
      %v1519 = vunpack.c.l.b16 %v269
      %v1520 = vunpack.c.l.b16 %v275
      %v1521 = vpack.c.b16 %v1514, %v1513
      %v1522 = vpack.c.b16 %v1516, %v1515
      %v1523 = vpack.c.b16 %v1518, %v1517
      %v1524 = vpack.c.b16 %v1520, %v1519
      %v1533 = vunpack.c.l.b16 %v235
      %v1534 = vunpack.c.l.b16 %v241
      %v1535 = vunpack.c.l.b16 %v247
      %v1536 = vunpack.c.l.b16 %v253
      %v1537 = vunpack.c.l.b16 %v259
      %v1538 = vunpack.c.l.b16 %v265
      %v1539 = vunpack.c.l.b16 %v271
      %v1540 = vunpack.c.l.b16 %v277
      %v1541 = vpack.c.b16 %v1534, %v1533
      %v1542 = vpack.c.b16 %v1536, %v1535
      %v1543 = vpack.c.b16 %v1538, %v1537
      %v1544 = vpack.c.b16 %v1540, %v1539
      %v1546 = vsel %vm320, %v1521, 0
      %v1549 = vsel %vm320, %v1522, 0
      %v1552 = vsel %vm320, %v1523, 0
      %v1555 = vsel %vm320, %v1524, 0
      %v1558 = vsel %vm320, %v1541, 0
      %v1561 = vsel %vm320, %v1542, 0
      %v1564 = vsel %vm320, %v1543, 0
      %v1567 = vsel %vm320, %v1544, 0
      %1569 = vmatprep.subr.bf16.mxu0 0
      %1570 = vmatpush1.bf16.xpose.msra.mxu0 %v1558
      %1571 = vmatprep.subr.bf16.mxu0 0
      %1572 = vmatpush1.bf16.xpose.msra.mxu0 %v1561
      %1573 = vmatprep.subr.bf16.mxu0 0
      %1574 = vmatpush1.bf16.xpose.msra.mxu0 %v1564
      %1575 = vmatprep.subr.bf16.mxu0 0
      %1576 = vmatpush1.bf16.xpose.msra.mxu0 %v1567
      %1577 = vmatprep.subr.bf16.mxu0 0
      %1578 = vmatpush1.bf16.xpose.msra.mxu0 0
      %1579 = vmatprep.subr.bf16.mxu0 0
      %1580 = vmatpush1.bf16.xpose.msra.mxu0 0
      %1581 = vmatprep.subr.bf16.mxu0 0
      %1582 = vmatpush1.bf16.xpose.msra.mxu0 0
      %1583 = vmatprep.subr.bf16.mxu0 0
      %1584 = vmatpush1.bf16.xpose.msra.mxu0 0
      %1585 = vmatprep.subr.bf16.mxu0 0
      %1586 = vmatpush1.bf16.xpose.msra.mxu0 0
      %1587 = vmatprep.subr.bf16.mxu0 0
      %1588 = vmatpush1.bf16.xpose.msra.mxu0 0
      %1589 = vmatprep.subr.bf16.mxu0 0
      %1590 = vmatpush1.bf16.xpose.msra.mxu0 0
      %1591 = vmatprep.subr.bf16.mxu0 0
      %1592 = vmatpush1.bf16.xpose.msra.mxu0 0
      %1593 = vmatprep.subr.bf16.mxu0 0
      %1594 = vmatpush1.bf16.xpose.msra.mxu0 0
      %1595 = vmatprep.subr.bf16.mxu0 0
      %1596 = vmatpush1.bf16.xpose.msra.mxu0 0
      %1597 = vmatprep.subr.bf16.mxu0 0
      %1598 = vmatpush1.bf16.xpose.msra.mxu0 0
      %1599 = vmatprep.subr.bf16.mxu0 0
      %1600 = vmatpush1.bf16.xpose.msra.mxu0 0
      %1601 = vmatprep.mubr.bf16.mxu0 0
      %1602 = vmatmul.mubr.bf16.gmra.mrb[0].mxu0 %v1546
      %v1603 = vpop.f32.mrb[0].mxu0
      %v1604 = vadd.f32 0.0, %v1603
      %v1605 = vpop.f32.mrb[0].mxu0
      %v1606 = vpop.f32.mrb[0].mxu0
      %v1607 = vadd.f32 0.0, %v1606
      %v1608 = vpop.f32.mrb[0].mxu0
      %1609 = vmatprep.mubr.bf16.mxu0 0
      %1610 = vmatmul.mubr.bf16.gmra.mrb[0].mxu0 %v1549
      %v1611 = vpop.f32.mrb[0].mxu0
      %v1612 = vadd.f32 0.0, %v1611
      %v1613 = vpop.f32.mrb[0].mxu0
      %v1614 = vpop.f32.mrb[0].mxu0
      %v1615 = vadd.f32 0.0, %v1614
      %v1616 = vpop.f32.mrb[0].mxu0
      %1617 = vmatprep.mubr.bf16.mxu0 0
      %1618 = vmatmul.mubr.bf16.gmra.mrb[0].mxu0 %v1552
      %v1619 = vpop.f32.mrb[0].mxu0
      %v1620 = vadd.f32 0.0, %v1619
      %v1621 = vpop.f32.mrb[0].mxu0
      %v1622 = vpop.f32.mrb[0].mxu0
      %v1623 = vadd.f32 0.0, %v1622
      %v1624 = vpop.f32.mrb[0].mxu0
      %1625 = vmatprep.mubr.bf16.mxu0 0
      %1626 = vmatmul.mubr.bf16.gmra.mrb[0].mxu0 %v1555
      %v1627 = vpop.f32.mrb[0].mxu0
      %v1628 = vadd.f32 0.0, %v1627
      %v1629 = vpop.f32.mrb[0].mxu0
      %v1630 = vpop.f32.mrb[0].mxu0
      %v1631 = vadd.f32 0.0, %v1630
      %v1632 = vpop.f32.mrb[0].mxu0
      %1633 = vdwg.mxu0
      %v1634 = vmul.f32 %v1604, 0.125
      %v1635 = vmul.f32 %v1607, 0.125
      %v1636 = vmul.f32 %v1612, 0.125
      %v1637 = vmul.f32 %v1615, 0.125
      %v1638 = vmul.f32 %v1620, 0.125
      %v1639 = vmul.f32 %v1623, 0.125
      %v1640 = vmul.f32 %v1628, 0.125
      %v1641 = vmul.f32 %v1631, 0.125
      %v1642 = vsel %vm320, %v1634, -inf
      %1643 = vmax.xlane.f32.xlu0 %v1642
      %v1644 = vpop.xlane.xlu0 %1643
      %v1645 = vsel %vm320, %v1635, -inf
      %1646 = vmax.xlane.f32.xlu0 %v1645
      %v1647 = vpop.xlane.xlu0 %1646
      %v1648 = vsel %vm320, %v1636, -inf
      %1649 = vmax.xlane.f32.xlu0 %v1648
      %v1650 = vpop.xlane.xlu0 %1649
      %v1651 = vsel %vm320, %v1637, -inf
      %1652 = vmax.xlane.f32.xlu0 %v1651
      %v1653 = vpop.xlane.xlu0 %1652
      %v1654 = vsel %vm320, %v1638, -inf
      %1655 = vmax.xlane.f32.xlu0 %v1654
      %v1656 = vpop.xlane.xlu0 %1655
      %v1657 = vsel %vm320, %v1639, -inf
      %1658 = vmax.xlane.f32.xlu0 %v1657
      %v1659 = vpop.xlane.xlu0 %1658
      %v1660 = vsel %vm320, %v1640, -inf
      %1661 = vmax.xlane.f32.xlu0 %v1660
      %v1662 = vpop.xlane.xlu0 %1661
      %v1663 = vsel %vm320, %v1641, -inf
      %1664 = vmax.xlane.f32.xlu0 %v1663
      %v1665 = vpop.xlane.xlu0 %1664
      %v1666 = vsub.f32 %v1634, %v1644
      %v1667 = vsub.f32 %v1635, %v1647
      %v1668 = vsub.f32 %v1636, %v1650
      %v1669 = vsub.f32 %v1637, %v1653
      %v1670 = vsub.f32 %v1638, %v1656
      %v1671 = vsub.f32 %v1639, %v1659
      %v1672 = vsub.f32 %v1640, %v1662
      %v1673 = vsub.f32 %v1641, %v1665
      %v1674 = vmul.f32 %v1666, 1.442695
      %v1675 = vpow.pop %v1674
      %v1676 = vmul.f32 %v1667, 1.442695
      %v1677 = vpow.pop %v1676
      %v1678 = vmul.f32 %v1668, 1.442695
      %v1679 = vpow.pop %v1678
      %v1680 = vmul.f32 %v1669, 1.442695
      %v1681 = vpow.pop %v1680
      %v1682 = vmul.f32 %v1670, 1.442695
      %v1683 = vpow.pop %v1682
      %v1684 = vmul.f32 %v1671, 1.442695
      %v1685 = vpow.pop %v1684
      %v1686 = vmul.f32 %v1672, 1.442695
      %v1687 = vpow.pop %v1686
      %v1688 = vmul.f32 %v1673, 1.442695
      %v1689 = vpow.pop %v1688
      %v1690 = vsel %vm320, %v1675, 0.0
      %1691 = vadd.xlane.f32.xlu0 %v1690
      %v1692 = vpop.xlane.xlu0 %1691
      %v1693 = vsel %vm320, %v1677, 0.0
      %1694 = vadd.xlane.f32.xlu0 %v1693
      %v1695 = vpop.xlane.xlu0 %1694
      %v1696 = vsel %vm320, %v1679, 0.0
      %1697 = vadd.xlane.f32.xlu0 %v1696
      %v1698 = vpop.xlane.xlu0 %1697
      %v1699 = vsel %vm320, %v1681, 0.0
      %1700 = vadd.xlane.f32.xlu0 %v1699
      %v1701 = vpop.xlane.xlu0 %1700
      %v1702 = vsel %vm320, %v1683, 0.0
      %1703 = vadd.xlane.f32.xlu0 %v1702
      %v1704 = vpop.xlane.xlu0 %1703
      %v1705 = vsel %vm320, %v1685, 0.0
      %1706 = vadd.xlane.f32.xlu0 %v1705
      %v1707 = vpop.xlane.xlu0 %1706
      %v1708 = vsel %vm320, %v1687, 0.0
      %1709 = vadd.xlane.f32.xlu0 %v1708
      %v1710 = vpop.xlane.xlu0 %1709
      %v1711 = vsel %vm320, %v1689, 0.0
      %1712 = vadd.xlane.f32.xlu0 %v1711
      %v1713 = vpop.xlane.xlu0 %1712
      %v1714 = vpack.c.bf16 %v1677, %v1675
      %v1715 = vpack.c.bf16 %v1681, %v1679
      %v1716 = vpack.c.bf16 %v1685, %v1683
      %v1717 = vpack.c.bf16 %v1689, %v1687
      %v1726 = vunpack.c.l.b16 %v237
      %v1727 = vunpack.c.l.b16 %v243
      %v1728 = vunpack.c.l.b16 %v249
      %v1729 = vunpack.c.l.b16 %v255
      %v1730 = vunpack.c.l.b16 %v261
      %v1731 = vunpack.c.l.b16 %v267
      %v1732 = vunpack.c.l.b16 %v273
      %v1733 = vunpack.c.l.b16 %v279
      %v1734 = vpack.c.b16 %v1727, %v1726
      %v1735 = vpack.c.b16 %v1729, %v1728
      %v1736 = vpack.c.b16 %v1731, %v1730
      %v1737 = vpack.c.b16 %v1733, %v1732
      %v1743 = vsel %vm320, %v1714, 0
      %v1746 = vsel %vm320, %v1715, 0
      %v1749 = vsel %vm320, %v1716, 0
      %v1752 = vsel %vm320, %v1717, 0
      %1754 = vmatprep.subr.bf16.mxu0 0
      %1755 = vmatpush1.bf16.msra.mxu0 %v1734
      %1756 = vmatprep.subr.bf16.mxu0 0
      %1757 = vmatpush1.bf16.msra.mxu0 %v1735
      %1758 = vmatprep.subr.bf16.mxu0 0
      %1759 = vmatpush1.bf16.msra.mxu0 %v1736
      %1760 = vmatprep.subr.bf16.mxu0 0
      %1761 = vmatpush1.bf16.msra.mxu0 %v1737
      %1762 = vmatprep.subr.bf16.mxu0 0
      %1763 = vmatpush1.bf16.msra.mxu0 0
      %1764 = vmatprep.subr.bf16.mxu0 0
      %1765 = vmatpush1.bf16.msra.mxu0 0
      %1766 = vmatprep.subr.bf16.mxu0 0
      %1767 = vmatpush1.bf16.msra.mxu0 0
      %1768 = vmatprep.subr.bf16.mxu0 0
      %1769 = vmatpush1.bf16.msra.mxu0 0
      %1770 = vmatprep.subr.bf16.mxu0 0
      %1771 = vmatpush1.bf16.msra.mxu0 0
      %1772 = vmatprep.subr.bf16.mxu0 0
      %1773 = vmatpush1.bf16.msra.mxu0 0
      %1774 = vmatprep.subr.bf16.mxu0 0
      %1775 = vmatpush1.bf16.msra.mxu0 0
      %1776 = vmatprep.subr.bf16.mxu0 0
      %1777 = vmatpush1.bf16.msra.mxu0 0
      %1778 = vmatprep.subr.bf16.mxu0 0
      %1779 = vmatpush1.bf16.msra.mxu0 0
      %1780 = vmatprep.subr.bf16.mxu0 0
      %1781 = vmatpush1.bf16.msra.mxu0 0
      %1782 = vmatprep.subr.bf16.mxu0 0
      %1783 = vmatpush1.bf16.msra.mxu0 0
      %1784 = vmatprep.subr.bf16.mxu0 0
      %1785 = vmatpush1.bf16.msra.mxu0 0
      %1786 = vmatprep.mubr.bf16.mxu0 0
      %1787 = vmatmul.mubr.bf16.gmra.mrb[0].mxu0 %v1743
      %v1788 = vpop.f32.mrb[0].mxu0
      %v1789 = vadd.f32 0.0, %v1788
      %v1790 = vpop.f32.mrb[0].mxu0
      %v1791 = vpop.f32.mrb[0].mxu0
      %v1792 = vadd.f32 0.0, %v1791
      %v1793 = vpop.f32.mrb[0].mxu0
      %1794 = vmatprep.mubr.bf16.mxu0 0
      %1795 = vmatmul.mubr.bf16.gmra.mrb[0].mxu0 %v1746
      %v1796 = vpop.f32.mrb[0].mxu0
      %v1797 = vadd.f32 0.0, %v1796
      %v1798 = vpop.f32.mrb[0].mxu0
      %v1799 = vpop.f32.mrb[0].mxu0
      %v1800 = vadd.f32 0.0, %v1799
      %v1801 = vpop.f32.mrb[0].mxu0
      %1802 = vmatprep.mubr.bf16.mxu0 0
      %1803 = vmatmul.mubr.bf16.gmra.mrb[0].mxu0 %v1749
      %v1804 = vpop.f32.mrb[0].mxu0
      %v1805 = vadd.f32 0.0, %v1804
      %v1806 = vpop.f32.mrb[0].mxu0
      %v1807 = vpop.f32.mrb[0].mxu0
      %v1808 = vadd.f32 0.0, %v1807
      %v1809 = vpop.f32.mrb[0].mxu0
      %1810 = vmatprep.mubr.bf16.mxu0 0
      %1811 = vmatmul.mubr.bf16.gmra.mrb[0].mxu0 %v1752
      %v1812 = vpop.f32.mrb[0].mxu0
      %v1813 = vadd.f32 0.0, %v1812
      %v1814 = vpop.f32.mrb[0].mxu0
      %v1815 = vpop.f32.mrb[0].mxu0
      %v1816 = vadd.f32 0.0, %v1815
      %v1817 = vpop.f32.mrb[0].mxu0
      %1818 = vdwg.mxu0
      %v1819 = vrcp.pop %v1692
      %v1820 = vrcp.pop %v1695
      %v1821 = vrcp.pop %v1698
      %v1822 = vrcp.pop %v1701
      %v1823 = vrcp.pop %v1704
      %v1824 = vrcp.pop %v1707
      %v1825 = vrcp.pop %v1710
      %v1826 = vrcp.pop %v1713
      %v1827 = vmul.f32 %v1789, %v1819
      %v1828 = vmul.f32 %v1792, %v1820
      %v1829 = vmul.f32 %v1797, %v1821
      %v1830 = vmul.f32 %v1800, %v1822
      %v1831 = vmul.f32 %v1805, %v1823
      %v1832 = vmul.f32 %v1808, %v1824
      %v1833 = vmul.f32 %v1813, %v1825
      %v1834 = vmul.f32 %v1816, %v1826
      %1835 = vrot.lane.b32.xlu0 %v1521, 64
      %v1836 = vpop.permute.xlu0 %1835
      %1837 = vrot.lane.b32.xlu0 %v1522, 64
      %v1838 = vpop.permute.xlu0 %1837
      %1839 = vrot.lane.b32.xlu0 %v1523, 64
      %v1840 = vpop.permute.xlu0 %1839
      %1841 = vrot.lane.b32.xlu0 %v1524, 64
      %v1842 = vpop.permute.xlu0 %1841
      %1843 = vrot.lane.b32.xlu0 %v1541, 64
      %v1844 = vpop.permute.xlu0 %1843
      %1845 = vrot.lane.b32.xlu0 %v1542, 64
      %v1846 = vpop.permute.xlu0 %1845
      %1847 = vrot.lane.b32.xlu0 %v1543, 64
      %v1848 = vpop.permute.xlu0 %1847
      %1849 = vrot.lane.b32.xlu0 %v1544, 64
      %v1850 = vpop.permute.xlu0 %1849
      %v1852 = vsel %vm320, %v1836, 0
      %v1855 = vsel %vm320, %v1838, 0
      %v1858 = vsel %vm320, %v1840, 0
      %v1861 = vsel %vm320, %v1842, 0
      %v1864 = vsel %vm320, %v1844, 0
      %v1867 = vsel %vm320, %v1846, 0
      %v1870 = vsel %vm320, %v1848, 0
      %v1873 = vsel %vm320, %v1850, 0
      %1875 = vmatprep.subr.bf16.mxu0 0
      %1876 = vmatpush1.bf16.xpose.msra.mxu0 %v1864
      %1877 = vmatprep.subr.bf16.mxu0 0
      %1878 = vmatpush1.bf16.xpose.msra.mxu0 %v1867
      %1879 = vmatprep.subr.bf16.mxu0 0
      %1880 = vmatpush1.bf16.xpose.msra.mxu0 %v1870
      %1881 = vmatprep.subr.bf16.mxu0 0
      %1882 = vmatpush1.bf16.xpose.msra.mxu0 %v1873
      %1883 = vmatprep.subr.bf16.mxu0 0
      %1884 = vmatpush1.bf16.xpose.msra.mxu0 0
      %1885 = vmatprep.subr.bf16.mxu0 0
      %1886 = vmatpush1.bf16.xpose.msra.mxu0 0
      %1887 = vmatprep.subr.bf16.mxu0 0
      %1888 = vmatpush1.bf16.xpose.msra.mxu0 0
      %1889 = vmatprep.subr.bf16.mxu0 0
      %1890 = vmatpush1.bf16.xpose.msra.mxu0 0
      %1891 = vmatprep.subr.bf16.mxu0 0
      %1892 = vmatpush1.bf16.xpose.msra.mxu0 0
      %1893 = vmatprep.subr.bf16.mxu0 0
      %1894 = vmatpush1.bf16.xpose.msra.mxu0 0
      %1895 = vmatprep.subr.bf16.mxu0 0
      %1896 = vmatpush1.bf16.xpose.msra.mxu0 0
      %1897 = vmatprep.subr.bf16.mxu0 0
      %1898 = vmatpush1.bf16.xpose.msra.mxu0 0
      %1899 = vmatprep.subr.bf16.mxu0 0
      %1900 = vmatpush1.bf16.xpose.msra.mxu0 0
      %1901 = vmatprep.subr.bf16.mxu0 0
      %1902 = vmatpush1.bf16.xpose.msra.mxu0 0
      %1903 = vmatprep.subr.bf16.mxu0 0
      %1904 = vmatpush1.bf16.xpose.msra.mxu0 0
      %1905 = vmatprep.subr.bf16.mxu0 0
      %1906 = vmatpush1.bf16.xpose.msra.mxu0 0
      %1907 = vmatprep.mubr.bf16.mxu0 0
      %1908 = vmatmul.mubr.bf16.gmra.mrb[0].mxu0 %v1852
      %v1909 = vpop.f32.mrb[0].mxu0
      %v1910 = vadd.f32 0.0, %v1909
      %v1911 = vpop.f32.mrb[0].mxu0
      %v1912 = vpop.f32.mrb[0].mxu0
      %v1913 = vadd.f32 0.0, %v1912
      %v1914 = vpop.f32.mrb[0].mxu0
      %1915 = vmatprep.mubr.bf16.mxu0 0
      %1916 = vmatmul.mubr.bf16.gmra.mrb[0].mxu0 %v1855
      %v1917 = vpop.f32.mrb[0].mxu0
      %v1918 = vadd.f32 0.0, %v1917
      %v1919 = vpop.f32.mrb[0].mxu0
      %v1920 = vpop.f32.mrb[0].mxu0
      %v1921 = vadd.f32 0.0, %v1920
      %v1922 = vpop.f32.mrb[0].mxu0
      %1923 = vmatprep.mubr.bf16.mxu0 0
      %1924 = vmatmul.mubr.bf16.gmra.mrb[0].mxu0 %v1858
      %v1925 = vpop.f32.mrb[0].mxu0
      %v1926 = vadd.f32 0.0, %v1925
      %v1927 = vpop.f32.mrb[0].mxu0
      %v1928 = vpop.f32.mrb[0].mxu0
      %v1929 = vadd.f32 0.0, %v1928
      %v1930 = vpop.f32.mrb[0].mxu0
      %1931 = vmatprep.mubr.bf16.mxu0 0
      %1932 = vmatmul.mubr.bf16.gmra.mrb[0].mxu0 %v1861
      %v1933 = vpop.f32.mrb[0].mxu0
      %v1934 = vadd.f32 0.0, %v1933
      %v1935 = vpop.f32.mrb[0].mxu0
      %v1936 = vpop.f32.mrb[0].mxu0
      %v1937 = vadd.f32 0.0, %v1936
      %v1938 = vpop.f32.mrb[0].mxu0
      %1939 = vdwg.mxu0
      %v1940 = vmul.f32 %v1910, 0.125
      %v1941 = vmul.f32 %v1913, 0.125
      %v1942 = vmul.f32 %v1918, 0.125
      %v1943 = vmul.f32 %v1921, 0.125
      %v1944 = vmul.f32 %v1926, 0.125
      %v1945 = vmul.f32 %v1929, 0.125
      %v1946 = vmul.f32 %v1934, 0.125
      %v1947 = vmul.f32 %v1937, 0.125
      %v1948 = vsel %vm320, %v1940, -inf
      %1949 = vmax.xlane.f32.xlu0 %v1948
      %v1950 = vpop.xlane.xlu0 %1949
      %v1951 = vsel %vm320, %v1941, -inf
      %1952 = vmax.xlane.f32.xlu0 %v1951
      %v1953 = vpop.xlane.xlu0 %1952
      %v1954 = vsel %vm320, %v1942, -inf
      %1955 = vmax.xlane.f32.xlu0 %v1954
      %v1956 = vpop.xlane.xlu0 %1955
      %v1957 = vsel %vm320, %v1943, -inf
      %1958 = vmax.xlane.f32.xlu0 %v1957
      %v1959 = vpop.xlane.xlu0 %1958
      %v1960 = vsel %vm320, %v1944, -inf
      %1961 = vmax.xlane.f32.xlu0 %v1960
      %v1962 = vpop.xlane.xlu0 %1961
      %v1963 = vsel %vm320, %v1945, -inf
      %1964 = vmax.xlane.f32.xlu0 %v1963
      %v1965 = vpop.xlane.xlu0 %1964
      %v1966 = vsel %vm320, %v1946, -inf
      %1967 = vmax.xlane.f32.xlu0 %v1966
      %v1968 = vpop.xlane.xlu0 %1967
      %v1969 = vsel %vm320, %v1947, -inf
      %1970 = vmax.xlane.f32.xlu0 %v1969
      %v1971 = vpop.xlane.xlu0 %1970
      %v1972 = vsub.f32 %v1940, %v1950
      %v1973 = vsub.f32 %v1941, %v1953
      %v1974 = vsub.f32 %v1942, %v1956
      %v1975 = vsub.f32 %v1943, %v1959
      %v1976 = vsub.f32 %v1944, %v1962
      %v1977 = vsub.f32 %v1945, %v1965
      %v1978 = vsub.f32 %v1946, %v1968
      %v1979 = vsub.f32 %v1947, %v1971
      %v1980 = vmul.f32 %v1972, 1.442695
      %v1981 = vpow.pop %v1980
      %v1982 = vmul.f32 %v1973, 1.442695
      %v1983 = vpow.pop %v1982
      %v1984 = vmul.f32 %v1974, 1.442695
      %v1985 = vpow.pop %v1984
      %v1986 = vmul.f32 %v1975, 1.442695
      %v1987 = vpow.pop %v1986
      %v1988 = vmul.f32 %v1976, 1.442695
      %v1989 = vpow.pop %v1988
      %v1990 = vmul.f32 %v1977, 1.442695
      %v1991 = vpow.pop %v1990
      %v1992 = vmul.f32 %v1978, 1.442695
      %v1993 = vpow.pop %v1992
      %v1994 = vmul.f32 %v1979, 1.442695
      %v1995 = vpow.pop %v1994
      %v1996 = vsel %vm320, %v1981, 0.0
      %1997 = vadd.xlane.f32.xlu0 %v1996
      %v1998 = vpop.xlane.xlu0 %1997
      %v1999 = vsel %vm320, %v1983, 0.0
      %2000 = vadd.xlane.f32.xlu0 %v1999
      %v2001 = vpop.xlane.xlu0 %2000
      %v2002 = vsel %vm320, %v1985, 0.0
      %2003 = vadd.xlane.f32.xlu0 %v2002
      %v2004 = vpop.xlane.xlu0 %2003
      %v2005 = vsel %vm320, %v1987, 0.0
      %2006 = vadd.xlane.f32.xlu0 %v2005
      %v2007 = vpop.xlane.xlu0 %2006
      %v2008 = vsel %vm320, %v1989, 0.0
      %2009 = vadd.xlane.f32.xlu0 %v2008
      %v2010 = vpop.xlane.xlu0 %2009
      %v2011 = vsel %vm320, %v1991, 0.0
      %2012 = vadd.xlane.f32.xlu0 %v2011
      %v2013 = vpop.xlane.xlu0 %2012
      %v2014 = vsel %vm320, %v1993, 0.0
      %2015 = vadd.xlane.f32.xlu0 %v2014
      %v2016 = vpop.xlane.xlu0 %2015
      %v2017 = vsel %vm320, %v1995, 0.0
      %2018 = vadd.xlane.f32.xlu0 %v2017
      %v2019 = vpop.xlane.xlu0 %2018
      %v2020 = vpack.c.bf16 %v1983, %v1981
      %v2021 = vpack.c.bf16 %v1987, %v1985
      %v2022 = vpack.c.bf16 %v1991, %v1989
      %v2023 = vpack.c.bf16 %v1995, %v1993
      %2024 = vrot.lane.b32.xlu0 %v1734, 64
      %v2025 = vpop.permute.xlu0 %2024
      %2026 = vrot.lane.b32.xlu0 %v1735, 64
      %v2027 = vpop.permute.xlu0 %2026
      %2028 = vrot.lane.b32.xlu0 %v1736, 64
      %v2029 = vpop.permute.xlu0 %2028
      %2030 = vrot.lane.b32.xlu0 %v1737, 64
      %v2031 = vpop.permute.xlu0 %2030
      %v2037 = vsel %vm320, %v2020, 0
      %v2040 = vsel %vm320, %v2021, 0
      %v2043 = vsel %vm320, %v2022, 0
      %v2046 = vsel %vm320, %v2023, 0
      %2048 = vmatprep.subr.bf16.mxu0 0
      %2049 = vmatpush1.bf16.msra.mxu0 %v2025
      %2050 = vmatprep.subr.bf16.mxu0 0
      %2051 = vmatpush1.bf16.msra.mxu0 %v2027
      %2052 = vmatprep.subr.bf16.mxu0 0
      %2053 = vmatpush1.bf16.msra.mxu0 %v2029
      %2054 = vmatprep.subr.bf16.mxu0 0
      %2055 = vmatpush1.bf16.msra.mxu0 %v2031
      %2056 = vmatprep.subr.bf16.mxu0 0
      %2057 = vmatpush1.bf16.msra.mxu0 0
      %2058 = vmatprep.subr.bf16.mxu0 0
      %2059 = vmatpush1.bf16.msra.mxu0 0
      %2060 = vmatprep.subr.bf16.mxu0 0
      %2061 = vmatpush1.bf16.msra.mxu0 0
      %2062 = vmatprep.subr.bf16.mxu0 0
      %2063 = vmatpush1.bf16.msra.mxu0 0
      %2064 = vmatprep.subr.bf16.mxu0 0
      %2065 = vmatpush1.bf16.msra.mxu0 0
      %2066 = vmatprep.subr.bf16.mxu0 0
      %2067 = vmatpush1.bf16.msra.mxu0 0
      %2068 = vmatprep.subr.bf16.mxu0 0
      %2069 = vmatpush1.bf16.msra.mxu0 0
      %2070 = vmatprep.subr.bf16.mxu0 0
      %2071 = vmatpush1.bf16.msra.mxu0 0
      %2072 = vmatprep.subr.bf16.mxu0 0
      %2073 = vmatpush1.bf16.msra.mxu0 0
      %2074 = vmatprep.subr.bf16.mxu0 0
      %2075 = vmatpush1.bf16.msra.mxu0 0
      %2076 = vmatprep.subr.bf16.mxu0 0
      %2077 = vmatpush1.bf16.msra.mxu0 0
      %2078 = vmatprep.subr.bf16.mxu0 0
      %2079 = vmatpush1.bf16.msra.mxu0 0
      %2080 = vmatprep.mubr.bf16.mxu0 0
      %2081 = vmatmul.mubr.bf16.gmra.mrb[0].mxu0 %v2037
      %v2082 = vpop.f32.mrb[0].mxu0
      %v2083 = vadd.f32 0.0, %v2082
      %v2084 = vpop.f32.mrb[0].mxu0
      %v2085 = vpop.f32.mrb[0].mxu0
      %v2086 = vadd.f32 0.0, %v2085
      %v2087 = vpop.f32.mrb[0].mxu0
      %2088 = vmatprep.mubr.bf16.mxu0 0
      %2089 = vmatmul.mubr.bf16.gmra.mrb[0].mxu0 %v2040
      %v2090 = vpop.f32.mrb[0].mxu0
      %v2091 = vadd.f32 0.0, %v2090
      %v2092 = vpop.f32.mrb[0].mxu0
      %v2093 = vpop.f32.mrb[0].mxu0
      %v2094 = vadd.f32 0.0, %v2093
      %v2095 = vpop.f32.mrb[0].mxu0
      %2096 = vmatprep.mubr.bf16.mxu0 0
      %2097 = vmatmul.mubr.bf16.gmra.mrb[0].mxu0 %v2043
      %v2098 = vpop.f32.mrb[0].mxu0
      %v2099 = vadd.f32 0.0, %v2098
      %v2100 = vpop.f32.mrb[0].mxu0
      %v2101 = vpop.f32.mrb[0].mxu0
      %v2102 = vadd.f32 0.0, %v2101
      %v2103 = vpop.f32.mrb[0].mxu0
      %2104 = vmatprep.mubr.bf16.mxu0 0
      %2105 = vmatmul.mubr.bf16.gmra.mrb[0].mxu0 %v2046
      %v2106 = vpop.f32.mrb[0].mxu0
      %v2107 = vadd.f32 0.0, %v2106
      %v2108 = vpop.f32.mrb[0].mxu0
      %v2109 = vpop.f32.mrb[0].mxu0
      %v2110 = vadd.f32 0.0, %v2109
      %v2111 = vpop.f32.mrb[0].mxu0
      %2112 = vdwg.mxu0
      %v2113 = vrcp.pop %v1998
      %v2114 = vrcp.pop %v2001
      %v2115 = vrcp.pop %v2004
      %v2116 = vrcp.pop %v2007
      %v2117 = vrcp.pop %v2010
      %v2118 = vrcp.pop %v2013
      %v2119 = vrcp.pop %v2016
      %v2120 = vrcp.pop %v2019
      %v2121 = vmul.f32 %v2083, %v2113
      %v2122 = vmul.f32 %v2086, %v2114
      %v2123 = vmul.f32 %v2091, %v2115
      %v2124 = vmul.f32 %v2094, %v2116
      %v2125 = vmul.f32 %v2099, %v2117
      %v2126 = vmul.f32 %v2102, %v2118
      %v2127 = vmul.f32 %v2107, %v2119
      %v2128 = vmul.f32 %v2110, %v2120
      %v2129 = vunpack.c.h.b16 %v233
      %v2130 = vunpack.c.h.b16 %v239
      %v2131 = vunpack.c.h.b16 %v245
      %v2132 = vunpack.c.h.b16 %v251
      %v2133 = vunpack.c.h.b16 %v257
      %v2134 = vunpack.c.h.b16 %v263
      %v2135 = vunpack.c.h.b16 %v269
      %v2136 = vunpack.c.h.b16 %v275
      %v2137 = vpack.c.b16 %v2130, %v2129
      %v2138 = vpack.c.b16 %v2132, %v2131
      %v2139 = vpack.c.b16 %v2134, %v2133
      %v2140 = vpack.c.b16 %v2136, %v2135
      %v2141 = vunpack.c.h.b16 %v235
      %v2142 = vunpack.c.h.b16 %v241
      %v2143 = vunpack.c.h.b16 %v247
      %v2144 = vunpack.c.h.b16 %v253
      %v2145 = vunpack.c.h.b16 %v259
      %v2146 = vunpack.c.h.b16 %v265
      %v2147 = vunpack.c.h.b16 %v271
      %v2148 = vunpack.c.h.b16 %v277
      %v2149 = vpack.c.b16 %v2142, %v2141
      %v2150 = vpack.c.b16 %v2144, %v2143
      %v2151 = vpack.c.b16 %v2146, %v2145
      %v2152 = vpack.c.b16 %v2148, %v2147
      %v2154 = vsel %vm320, %v2137, 0
      %v2157 = vsel %vm320, %v2138, 0
      %v2160 = vsel %vm320, %v2139, 0
      %v2163 = vsel %vm320, %v2140, 0
      %v2166 = vsel %vm320, %v2149, 0
      %v2169 = vsel %vm320, %v2150, 0
      %v2172 = vsel %vm320, %v2151, 0
      %v2175 = vsel %vm320, %v2152, 0
      %2177 = vmatprep.subr.bf16.mxu0 0
      %2178 = vmatpush1.bf16.xpose.msra.mxu0 %v2166
      %2179 = vmatprep.subr.bf16.mxu0 0
      %2180 = vmatpush1.bf16.xpose.msra.mxu0 %v2169
      %2181 = vmatprep.subr.bf16.mxu0 0
      %2182 = vmatpush1.bf16.xpose.msra.mxu0 %v2172
      %2183 = vmatprep.subr.bf16.mxu0 0
      %2184 = vmatpush1.bf16.xpose.msra.mxu0 %v2175
      %2185 = vmatprep.subr.bf16.mxu0 0
      %2186 = vmatpush1.bf16.xpose.msra.mxu0 0
      %2187 = vmatprep.subr.bf16.mxu0 0
      %2188 = vmatpush1.bf16.xpose.msra.mxu0 0
      %2189 = vmatprep.subr.bf16.mxu0 0
      %2190 = vmatpush1.bf16.xpose.msra.mxu0 0
      %2191 = vmatprep.subr.bf16.mxu0 0
      %2192 = vmatpush1.bf16.xpose.msra.mxu0 0
      %2193 = vmatprep.subr.bf16.mxu0 0
      %2194 = vmatpush1.bf16.xpose.msra.mxu0 0
      %2195 = vmatprep.subr.bf16.mxu0 0
      %2196 = vmatpush1.bf16.xpose.msra.mxu0 0
      %2197 = vmatprep.subr.bf16.mxu0 0
      %2198 = vmatpush1.bf16.xpose.msra.mxu0 0
      %2199 = vmatprep.subr.bf16.mxu0 0
      %2200 = vmatpush1.bf16.xpose.msra.mxu0 0
      %2201 = vmatprep.subr.bf16.mxu0 0
      %2202 = vmatpush1.bf16.xpose.msra.mxu0 0
      %2203 = vmatprep.subr.bf16.mxu0 0
      %2204 = vmatpush1.bf16.xpose.msra.mxu0 0
      %2205 = vmatprep.subr.bf16.mxu0 0
      %2206 = vmatpush1.bf16.xpose.msra.mxu0 0
      %2207 = vmatprep.subr.bf16.mxu0 0
      %2208 = vmatpush1.bf16.xpose.msra.mxu0 0
      %2209 = vmatprep.mubr.bf16.mxu0 0
      %2210 = vmatmul.mubr.bf16.gmra.mrb[0].mxu0 %v2154
      %v2211 = vpop.f32.mrb[0].mxu0
      %v2212 = vadd.f32 0.0, %v2211
      %v2213 = vpop.f32.mrb[0].mxu0
      %v2214 = vpop.f32.mrb[0].mxu0
      %v2215 = vadd.f32 0.0, %v2214
      %v2216 = vpop.f32.mrb[0].mxu0
      %2217 = vmatprep.mubr.bf16.mxu0 0
      %2218 = vmatmul.mubr.bf16.gmra.mrb[0].mxu0 %v2157
      %v2219 = vpop.f32.mrb[0].mxu0
      %v2220 = vadd.f32 0.0, %v2219
      %v2221 = vpop.f32.mrb[0].mxu0
      %v2222 = vpop.f32.mrb[0].mxu0
      %v2223 = vadd.f32 0.0, %v2222
      %v2224 = vpop.f32.mrb[0].mxu0
      %2225 = vmatprep.mubr.bf16.mxu0 0
      %2226 = vmatmul.mubr.bf16.gmra.mrb[0].mxu0 %v2160
      %v2227 = vpop.f32.mrb[0].mxu0
      %v2228 = vadd.f32 0.0, %v2227
      %v2229 = vpop.f32.mrb[0].mxu0
      %v2230 = vpop.f32.mrb[0].mxu0
      %v2231 = vadd.f32 0.0, %v2230
      %v2232 = vpop.f32.mrb[0].mxu0
      %2233 = vmatprep.mubr.bf16.mxu0 0
      %2234 = vmatmul.mubr.bf16.gmra.mrb[0].mxu0 %v2163
      %v2235 = vpop.f32.mrb[0].mxu0
      %v2236 = vadd.f32 0.0, %v2235
      %v2237 = vpop.f32.mrb[0].mxu0
      %v2238 = vpop.f32.mrb[0].mxu0
      %v2239 = vadd.f32 0.0, %v2238
      %v2240 = vpop.f32.mrb[0].mxu0
      %2241 = vdwg.mxu0
      %v2242 = vmul.f32 %v2212, 0.125
      %v2243 = vmul.f32 %v2215, 0.125
      %v2244 = vmul.f32 %v2220, 0.125
      %v2245 = vmul.f32 %v2223, 0.125
      %v2246 = vmul.f32 %v2228, 0.125
      %v2247 = vmul.f32 %v2231, 0.125
      %v2248 = vmul.f32 %v2236, 0.125
      %v2249 = vmul.f32 %v2239, 0.125
      %v2250 = vsel %vm320, %v2242, -inf
      %2251 = vmax.xlane.f32.xlu0 %v2250
      %v2252 = vpop.xlane.xlu0 %2251
      %v2253 = vsel %vm320, %v2243, -inf
      %2254 = vmax.xlane.f32.xlu0 %v2253
      %v2255 = vpop.xlane.xlu0 %2254
      %v2256 = vsel %vm320, %v2244, -inf
      %2257 = vmax.xlane.f32.xlu0 %v2256
      %v2258 = vpop.xlane.xlu0 %2257
      %v2259 = vsel %vm320, %v2245, -inf
      %2260 = vmax.xlane.f32.xlu0 %v2259
      %v2261 = vpop.xlane.xlu0 %2260
      %v2262 = vsel %vm320, %v2246, -inf
      %2263 = vmax.xlane.f32.xlu0 %v2262
      %v2264 = vpop.xlane.xlu0 %2263
      %v2265 = vsel %vm320, %v2247, -inf
      %2266 = vmax.xlane.f32.xlu0 %v2265
      %v2267 = vpop.xlane.xlu0 %2266
      %v2268 = vsel %vm320, %v2248, -inf
      %2269 = vmax.xlane.f32.xlu0 %v2268
      %v2270 = vpop.xlane.xlu0 %2269
      %v2271 = vsel %vm320, %v2249, -inf
      %2272 = vmax.xlane.f32.xlu0 %v2271
      %v2273 = vpop.xlane.xlu0 %2272
      %v2274 = vsub.f32 %v2242, %v2252
      %v2275 = vsub.f32 %v2243, %v2255
      %v2276 = vsub.f32 %v2244, %v2258
      %v2277 = vsub.f32 %v2245, %v2261
      %v2278 = vsub.f32 %v2246, %v2264
      %v2279 = vsub.f32 %v2247, %v2267
      %v2280 = vsub.f32 %v2248, %v2270
      %v2281 = vsub.f32 %v2249, %v2273
      %v2282 = vmul.f32 %v2274, 1.442695
      %v2283 = vpow.pop %v2282
      %v2284 = vmul.f32 %v2275, 1.442695
      %v2285 = vpow.pop %v2284
      %v2286 = vmul.f32 %v2276, 1.442695
      %v2287 = vpow.pop %v2286
      %v2288 = vmul.f32 %v2277, 1.442695
      %v2289 = vpow.pop %v2288
      %v2290 = vmul.f32 %v2278, 1.442695
      %v2291 = vpow.pop %v2290
      %v2292 = vmul.f32 %v2279, 1.442695
      %v2293 = vpow.pop %v2292
      %v2294 = vmul.f32 %v2280, 1.442695
      %v2295 = vpow.pop %v2294
      %v2296 = vmul.f32 %v2281, 1.442695
      %v2297 = vpow.pop %v2296
      %v2298 = vsel %vm320, %v2283, 0.0
      %2299 = vadd.xlane.f32.xlu0 %v2298
      %v2300 = vpop.xlane.xlu0 %2299
      %v2301 = vsel %vm320, %v2285, 0.0
      %2302 = vadd.xlane.f32.xlu0 %v2301
      %v2303 = vpop.xlane.xlu0 %2302
      %v2304 = vsel %vm320, %v2287, 0.0
      %2305 = vadd.xlane.f32.xlu0 %v2304
      %v2306 = vpop.xlane.xlu0 %2305
      %v2307 = vsel %vm320, %v2289, 0.0
      %2308 = vadd.xlane.f32.xlu0 %v2307
      %v2309 = vpop.xlane.xlu0 %2308
      %v2310 = vsel %vm320, %v2291, 0.0
      %2311 = vadd.xlane.f32.xlu0 %v2310
      %v2312 = vpop.xlane.xlu0 %2311
      %v2313 = vsel %vm320, %v2293, 0.0
      %2314 = vadd.xlane.f32.xlu0 %v2313
      %v2315 = vpop.xlane.xlu0 %2314
      %v2316 = vsel %vm320, %v2295, 0.0
      %2317 = vadd.xlane.f32.xlu0 %v2316
      %v2318 = vpop.xlane.xlu0 %2317
      %v2319 = vsel %vm320, %v2297, 0.0
      %2320 = vadd.xlane.f32.xlu0 %v2319
      %v2321 = vpop.xlane.xlu0 %2320
      %v2322 = vpack.c.bf16 %v2285, %v2283
      %v2323 = vpack.c.bf16 %v2289, %v2287
      %v2324 = vpack.c.bf16 %v2293, %v2291
      %v2325 = vpack.c.bf16 %v2297, %v2295
      %v2326 = vunpack.c.h.b16 %v237
      %v2327 = vunpack.c.h.b16 %v243
      %v2328 = vunpack.c.h.b16 %v249
      %v2329 = vunpack.c.h.b16 %v255
      %v2330 = vunpack.c.h.b16 %v261
      %v2331 = vunpack.c.h.b16 %v267
      %v2332 = vunpack.c.h.b16 %v273
      %v2333 = vunpack.c.h.b16 %v279
      %v2334 = vpack.c.b16 %v2327, %v2326
      %v2335 = vpack.c.b16 %v2329, %v2328
      %v2336 = vpack.c.b16 %v2331, %v2330
      %v2337 = vpack.c.b16 %v2333, %v2332
      %v2343 = vsel %vm320, %v2322, 0
      %v2346 = vsel %vm320, %v2323, 0
      %v2349 = vsel %vm320, %v2324, 0
      %v2352 = vsel %vm320, %v2325, 0
      %2354 = vmatprep.subr.bf16.mxu0 0
      %2355 = vmatpush1.bf16.msra.mxu0 %v2334
      %2356 = vmatprep.subr.bf16.mxu0 0
      %2357 = vmatpush1.bf16.msra.mxu0 %v2335
      %2358 = vmatprep.subr.bf16.mxu0 0
      %2359 = vmatpush1.bf16.msra.mxu0 %v2336
      %2360 = vmatprep.subr.bf16.mxu0 0
      %2361 = vmatpush1.bf16.msra.mxu0 %v2337
      %2362 = vmatprep.subr.bf16.mxu0 0
      %2363 = vmatpush1.bf16.msra.mxu0 0
      %2364 = vmatprep.subr.bf16.mxu0 0
      %2365 = vmatpush1.bf16.msra.mxu0 0
      %2366 = vmatprep.subr.bf16.mxu0 0
      %2367 = vmatpush1.bf16.msra.mxu0 0
      %2368 = vmatprep.subr.bf16.mxu0 0
      %2369 = vmatpush1.bf16.msra.mxu0 0
      %2370 = vmatprep.subr.bf16.mxu0 0
      %2371 = vmatpush1.bf16.msra.mxu0 0
      %2372 = vmatprep.subr.bf16.mxu0 0
      %2373 = vmatpush1.bf16.msra.mxu0 0
      %2374 = vmatprep.subr.bf16.mxu0 0
      %2375 = vmatpush1.bf16.msra.mxu0 0
      %2376 = vmatprep.subr.bf16.mxu0 0
      %2377 = vmatpush1.bf16.msra.mxu0 0
      %2378 = vmatprep.subr.bf16.mxu0 0
      %2379 = vmatpush1.bf16.msra.mxu0 0
      %2380 = vmatprep.subr.bf16.mxu0 0
      %2381 = vmatpush1.bf16.msra.mxu0 0
      %2382 = vmatprep.subr.bf16.mxu0 0
      %2383 = vmatpush1.bf16.msra.mxu0 0
      %2384 = vmatprep.subr.bf16.mxu0 0
      %2385 = vmatpush1.bf16.msra.mxu0 0
      %2386 = vmatprep.mubr.bf16.mxu0 0
      %2387 = vmatmul.mubr.bf16.gmra.mrb[0].mxu0 %v2343
      %v2388 = vpop.f32.mrb[0].mxu0
      %v2389 = vadd.f32 0.0, %v2388
      %v2390 = vpop.f32.mrb[0].mxu0
      %v2391 = vpop.f32.mrb[0].mxu0
      %v2392 = vadd.f32 0.0, %v2391
      %v2393 = vpop.f32.mrb[0].mxu0
      %2394 = vmatprep.mubr.bf16.mxu0 0
      %2395 = vmatmul.mubr.bf16.gmra.mrb[0].mxu0 %v2346
      %v2396 = vpop.f32.mrb[0].mxu0
      %v2397 = vadd.f32 0.0, %v2396
      %v2398 = vpop.f32.mrb[0].mxu0
      %v2399 = vpop.f32.mrb[0].mxu0
      %v2400 = vadd.f32 0.0, %v2399
      %v2401 = vpop.f32.mrb[0].mxu0
      %2402 = vmatprep.mubr.bf16.mxu0 0
      %2403 = vmatmul.mubr.bf16.gmra.mrb[0].mxu0 %v2349
      %v2404 = vpop.f32.mrb[0].mxu0
      %v2405 = vadd.f32 0.0, %v2404
      %v2406 = vpop.f32.mrb[0].mxu0
      %v2407 = vpop.f32.mrb[0].mxu0
      %v2408 = vadd.f32 0.0, %v2407
      %v2409 = vpop.f32.mrb[0].mxu0
      %2410 = vmatprep.mubr.bf16.mxu0 0
      %2411 = vmatmul.mubr.bf16.gmra.mrb[0].mxu0 %v2352
      %v2412 = vpop.f32.mrb[0].mxu0
      %v2413 = vadd.f32 0.0, %v2412
      %v2414 = vpop.f32.mrb[0].mxu0
      %v2415 = vpop.f32.mrb[0].mxu0
      %v2416 = vadd.f32 0.0, %v2415
      %v2417 = vpop.f32.mrb[0].mxu0
      %2418 = vdwg.mxu0
      %v2419 = vrcp.pop %v2300
      %v2420 = vrcp.pop %v2303
      %v2421 = vrcp.pop %v2306
      %v2422 = vrcp.pop %v2309
      %v2423 = vrcp.pop %v2312
      %v2424 = vrcp.pop %v2315
      %v2425 = vrcp.pop %v2318
      %v2426 = vrcp.pop %v2321
      %v2427 = vmul.f32 %v2389, %v2419
      %v2428 = vmul.f32 %v2392, %v2420
      %v2429 = vmul.f32 %v2397, %v2421
      %v2430 = vmul.f32 %v2400, %v2422
      %v2431 = vmul.f32 %v2405, %v2423
      %v2432 = vmul.f32 %v2408, %v2424
      %v2433 = vmul.f32 %v2413, %v2425
      %v2434 = vmul.f32 %v2416, %v2426
      %2435 = vrot.lane.b32.xlu0 %v2137, 64
      %v2436 = vpop.permute.xlu0 %2435
      %2437 = vrot.lane.b32.xlu0 %v2138, 64
      %v2438 = vpop.permute.xlu0 %2437
      %2439 = vrot.lane.b32.xlu0 %v2139, 64
      %v2440 = vpop.permute.xlu0 %2439
      %2441 = vrot.lane.b32.xlu0 %v2140, 64
      %v2442 = vpop.permute.xlu0 %2441
      %2443 = vrot.lane.b32.xlu0 %v2149, 64
      %v2444 = vpop.permute.xlu0 %2443
      %2445 = vrot.lane.b32.xlu0 %v2150, 64
      %v2446 = vpop.permute.xlu0 %2445
      %2447 = vrot.lane.b32.xlu0 %v2151, 64
      %v2448 = vpop.permute.xlu0 %2447
      %2449 = vrot.lane.b32.xlu0 %v2152, 64
      %v2450 = vpop.permute.xlu0 %2449
      %v2452 = vsel %vm320, %v2436, 0
      %v2455 = vsel %vm320, %v2438, 0
      %v2458 = vsel %vm320, %v2440, 0
      %v2461 = vsel %vm320, %v2442, 0
      %v2464 = vsel %vm320, %v2444, 0
      %v2467 = vsel %vm320, %v2446, 0
      %v2470 = vsel %vm320, %v2448, 0
      %v2473 = vsel %vm320, %v2450, 0
      %2475 = vmatprep.subr.bf16.mxu0 0
      %2476 = vmatpush1.bf16.xpose.msra.mxu0 %v2464
      %2477 = vmatprep.subr.bf16.mxu0 0
      %2478 = vmatpush1.bf16.xpose.msra.mxu0 %v2467
      %2479 = vmatprep.subr.bf16.mxu0 0
      %2480 = vmatpush1.bf16.xpose.msra.mxu0 %v2470
      %2481 = vmatprep.subr.bf16.mxu0 0
      %2482 = vmatpush1.bf16.xpose.msra.mxu0 %v2473
      %2483 = vmatprep.subr.bf16.mxu0 0
      %2484 = vmatpush1.bf16.xpose.msra.mxu0 0
      %2485 = vmatprep.subr.bf16.mxu0 0
      %2486 = vmatpush1.bf16.xpose.msra.mxu0 0
      %2487 = vmatprep.subr.bf16.mxu0 0
      %2488 = vmatpush1.bf16.xpose.msra.mxu0 0
      %2489 = vmatprep.subr.bf16.mxu0 0
      %2490 = vmatpush1.bf16.xpose.msra.mxu0 0
      %2491 = vmatprep.subr.bf16.mxu0 0
      %2492 = vmatpush1.bf16.xpose.msra.mxu0 0
      %2493 = vmatprep.subr.bf16.mxu0 0
      %2494 = vmatpush1.bf16.xpose.msra.mxu0 0
      %2495 = vmatprep.subr.bf16.mxu0 0
      %2496 = vmatpush1.bf16.xpose.msra.mxu0 0
      %2497 = vmatprep.subr.bf16.mxu0 0
      %2498 = vmatpush1.bf16.xpose.msra.mxu0 0
      %2499 = vmatprep.subr.bf16.mxu0 0
      %2500 = vmatpush1.bf16.xpose.msra.mxu0 0
      %2501 = vmatprep.subr.bf16.mxu0 0
      %2502 = vmatpush1.bf16.xpose.msra.mxu0 0
      %2503 = vmatprep.subr.bf16.mxu0 0
      %2504 = vmatpush1.bf16.xpose.msra.mxu0 0
      %2505 = vmatprep.subr.bf16.mxu0 0
      %2506 = vmatpush1.bf16.xpose.msra.mxu0 0
      %2507 = vmatprep.mubr.bf16.mxu0 0
      %2508 = vmatmul.mubr.bf16.gmra.mrb[0].mxu0 %v2452
      %v2509 = vpop.f32.mrb[0].mxu0
      %v2510 = vadd.f32 0.0, %v2509
      %v2511 = vpop.f32.mrb[0].mxu0
      %v2512 = vpop.f32.mrb[0].mxu0
      %v2513 = vadd.f32 0.0, %v2512
      %v2514 = vpop.f32.mrb[0].mxu0
      %2515 = vmatprep.mubr.bf16.mxu0 0
      %2516 = vmatmul.mubr.bf16.gmra.mrb[0].mxu0 %v2455
      %v2517 = vpop.f32.mrb[0].mxu0
      %v2518 = vadd.f32 0.0, %v2517
      %v2519 = vpop.f32.mrb[0].mxu0
      %v2520 = vpop.f32.mrb[0].mxu0
      %v2521 = vadd.f32 0.0, %v2520
      %v2522 = vpop.f32.mrb[0].mxu0
      %2523 = vmatprep.mubr.bf16.mxu0 0
      %2524 = vmatmul.mubr.bf16.gmra.mrb[0].mxu0 %v2458
      %v2525 = vpop.f32.mrb[0].mxu0
      %v2526 = vadd.f32 0.0, %v2525
      %v2527 = vpop.f32.mrb[0].mxu0
      %v2528 = vpop.f32.mrb[0].mxu0
      %v2529 = vadd.f32 0.0, %v2528
      %v2530 = vpop.f32.mrb[0].mxu0
      %2531 = vmatprep.mubr.bf16.mxu0 0
      %2532 = vmatmul.mubr.bf16.gmra.mrb[0].mxu0 %v2461
      %v2533 = vpop.f32.mrb[0].mxu0
      %v2534 = vadd.f32 0.0, %v2533
      %v2535 = vpop.f32.mrb[0].mxu0
      %v2536 = vpop.f32.mrb[0].mxu0
      %v2537 = vadd.f32 0.0, %v2536
      %v2538 = vpop.f32.mrb[0].mxu0
      %2539 = vdwg.mxu0
      %v2540 = vmul.f32 %v2510, 0.125
      %v2541 = vmul.f32 %v2513, 0.125
      %v2542 = vmul.f32 %v2518, 0.125
      %v2543 = vmul.f32 %v2521, 0.125
      %v2544 = vmul.f32 %v2526, 0.125
      %v2545 = vmul.f32 %v2529, 0.125
      %v2546 = vmul.f32 %v2534, 0.125
      %v2547 = vmul.f32 %v2537, 0.125
      %v2548 = vsel %vm320, %v2540, -inf
      %2549 = vmax.xlane.f32.xlu0 %v2548
      %v2550 = vpop.xlane.xlu0 %2549
      %v2551 = vsel %vm320, %v2541, -inf
      %2552 = vmax.xlane.f32.xlu0 %v2551
      %v2553 = vpop.xlane.xlu0 %2552
      %v2554 = vsel %vm320, %v2542, -inf
      %2555 = vmax.xlane.f32.xlu0 %v2554
      %v2556 = vpop.xlane.xlu0 %2555
      %v2557 = vsel %vm320, %v2543, -inf
      %2558 = vmax.xlane.f32.xlu0 %v2557
      %v2559 = vpop.xlane.xlu0 %2558
      %v2560 = vsel %vm320, %v2544, -inf
      %2561 = vmax.xlane.f32.xlu0 %v2560
      %v2562 = vpop.xlane.xlu0 %2561
      %v2563 = vsel %vm320, %v2545, -inf
      %2564 = vmax.xlane.f32.xlu0 %v2563
      %v2565 = vpop.xlane.xlu0 %2564
      %v2566 = vsel %vm320, %v2546, -inf
      %2567 = vmax.xlane.f32.xlu0 %v2566
      %v2568 = vpop.xlane.xlu0 %2567
      %v2569 = vsel %vm320, %v2547, -inf
      %2570 = vmax.xlane.f32.xlu0 %v2569
      %v2571 = vpop.xlane.xlu0 %2570
      %v2572 = vsub.f32 %v2540, %v2550
      %v2573 = vsub.f32 %v2541, %v2553
      %v2574 = vsub.f32 %v2542, %v2556
      %v2575 = vsub.f32 %v2543, %v2559
      %v2576 = vsub.f32 %v2544, %v2562
      %v2577 = vsub.f32 %v2545, %v2565
      %v2578 = vsub.f32 %v2546, %v2568
      %v2579 = vsub.f32 %v2547, %v2571
      %v2580 = vmul.f32 %v2572, 1.442695
      %v2581 = vpow.pop %v2580
      %v2582 = vmul.f32 %v2573, 1.442695
      %v2583 = vpow.pop %v2582
      %v2584 = vmul.f32 %v2574, 1.442695
      %v2585 = vpow.pop %v2584
      %v2586 = vmul.f32 %v2575, 1.442695
      %v2587 = vpow.pop %v2586
      %v2588 = vmul.f32 %v2576, 1.442695
      %v2589 = vpow.pop %v2588
      %v2590 = vmul.f32 %v2577, 1.442695
      %v2591 = vpow.pop %v2590
      %v2592 = vmul.f32 %v2578, 1.442695
      %v2593 = vpow.pop %v2592
      %v2594 = vmul.f32 %v2579, 1.442695
      %v2595 = vpow.pop %v2594
      %v2596 = vsel %vm320, %v2581, 0.0
      %2597 = vadd.xlane.f32.xlu0 %v2596
      %v2598 = vpop.xlane.xlu0 %2597
      %v2599 = vsel %vm320, %v2583, 0.0
      %2600 = vadd.xlane.f32.xlu0 %v2599
      %v2601 = vpop.xlane.xlu0 %2600
      %v2602 = vsel %vm320, %v2585, 0.0
      %2603 = vadd.xlane.f32.xlu0 %v2602
      %v2604 = vpop.xlane.xlu0 %2603
      %v2605 = vsel %vm320, %v2587, 0.0
      %2606 = vadd.xlane.f32.xlu0 %v2605
      %v2607 = vpop.xlane.xlu0 %2606
      %v2608 = vsel %vm320, %v2589, 0.0
      %2609 = vadd.xlane.f32.xlu0 %v2608
      %v2610 = vpop.xlane.xlu0 %2609
      %v2611 = vsel %vm320, %v2591, 0.0
      %2612 = vadd.xlane.f32.xlu0 %v2611
      %v2613 = vpop.xlane.xlu0 %2612
      %v2614 = vsel %vm320, %v2593, 0.0
      %2615 = vadd.xlane.f32.xlu0 %v2614
      %v2616 = vpop.xlane.xlu0 %2615
      %v2617 = vsel %vm320, %v2595, 0.0
      %2618 = vadd.xlane.f32.xlu0 %v2617
      %v2619 = vpop.xlane.xlu0 %2618
      %v2620 = vpack.c.bf16 %v2583, %v2581
      %v2621 = vpack.c.bf16 %v2587, %v2585
      %v2622 = vpack.c.bf16 %v2591, %v2589
      %v2623 = vpack.c.bf16 %v2595, %v2593
      %2624 = vrot.lane.b32.xlu0 %v2334, 64
      %v2625 = vpop.permute.xlu0 %2624
      %2626 = vrot.lane.b32.xlu0 %v2335, 64
      %v2627 = vpop.permute.xlu0 %2626
      %2628 = vrot.lane.b32.xlu0 %v2336, 64
      %v2629 = vpop.permute.xlu0 %2628
      %2630 = vrot.lane.b32.xlu0 %v2337, 64
      %v2631 = vpop.permute.xlu0 %2630
      %v2637 = vsel %vm320, %v2620, 0
      %v2640 = vsel %vm320, %v2621, 0
      %v2643 = vsel %vm320, %v2622, 0
      %v2646 = vsel %vm320, %v2623, 0
      %2648 = vmatprep.subr.bf16.mxu0 0
      %2649 = vmatpush1.bf16.msra.mxu0 %v2625
      %2650 = vmatprep.subr.bf16.mxu0 0
      %2651 = vmatpush1.bf16.msra.mxu0 %v2627
      %2652 = vmatprep.subr.bf16.mxu0 0
      %2653 = vmatpush1.bf16.msra.mxu0 %v2629
      %2654 = vmatprep.subr.bf16.mxu0 0
      %2655 = vmatpush1.bf16.msra.mxu0 %v2631
      %2656 = vmatprep.subr.bf16.mxu0 0
      %2657 = vmatpush1.bf16.msra.mxu0 0
      %2658 = vmatprep.subr.bf16.mxu0 0
      %2659 = vmatpush1.bf16.msra.mxu0 0
      %2660 = vmatprep.subr.bf16.mxu0 0
      %2661 = vmatpush1.bf16.msra.mxu0 0
      %2662 = vmatprep.subr.bf16.mxu0 0
      %2663 = vmatpush1.bf16.msra.mxu0 0
      %2664 = vmatprep.subr.bf16.mxu0 0
      %2665 = vmatpush1.bf16.msra.mxu0 0
      %2666 = vmatprep.subr.bf16.mxu0 0
      %2667 = vmatpush1.bf16.msra.mxu0 0
      %2668 = vmatprep.subr.bf16.mxu0 0
      %2669 = vmatpush1.bf16.msra.mxu0 0
      %2670 = vmatprep.subr.bf16.mxu0 0
      %2671 = vmatpush1.bf16.msra.mxu0 0
      %2672 = vmatprep.subr.bf16.mxu0 0
      %2673 = vmatpush1.bf16.msra.mxu0 0
      %2674 = vmatprep.subr.bf16.mxu0 0
      %2675 = vmatpush1.bf16.msra.mxu0 0
      %2676 = vmatprep.subr.bf16.mxu0 0
      %2677 = vmatpush1.bf16.msra.mxu0 0
      %2678 = vmatprep.subr.bf16.mxu0 0
      %2679 = vmatpush1.bf16.msra.mxu0 0
      %2680 = vmatprep.mubr.bf16.mxu0 0
      %2681 = vmatmul.mubr.bf16.gmra.mrb[0].mxu0 %v2637
      %v2682 = vpop.f32.mrb[0].mxu0
      %v2683 = vadd.f32 0.0, %v2682
      %v2684 = vpop.f32.mrb[0].mxu0
      %v2685 = vpop.f32.mrb[0].mxu0
      %v2686 = vadd.f32 0.0, %v2685
      %v2687 = vpop.f32.mrb[0].mxu0
      %2688 = vmatprep.mubr.bf16.mxu0 0
      %2689 = vmatmul.mubr.bf16.gmra.mrb[0].mxu0 %v2640
      %v2690 = vpop.f32.mrb[0].mxu0
      %v2691 = vadd.f32 0.0, %v2690
      %v2692 = vpop.f32.mrb[0].mxu0
      %v2693 = vpop.f32.mrb[0].mxu0
      %v2694 = vadd.f32 0.0, %v2693
      %v2695 = vpop.f32.mrb[0].mxu0
      %2696 = vmatprep.mubr.bf16.mxu0 0
      %2697 = vmatmul.mubr.bf16.gmra.mrb[0].mxu0 %v2643
      %v2698 = vpop.f32.mrb[0].mxu0
      %v2699 = vadd.f32 0.0, %v2698
      %v2700 = vpop.f32.mrb[0].mxu0
      %v2701 = vpop.f32.mrb[0].mxu0
      %v2702 = vadd.f32 0.0, %v2701
      %v2703 = vpop.f32.mrb[0].mxu0
      %2704 = vmatprep.mubr.bf16.mxu0 0
      %2705 = vmatmul.mubr.bf16.gmra.mrb[0].mxu0 %v2646
      %v2706 = vpop.f32.mrb[0].mxu0
      %v2707 = vadd.f32 0.0, %v2706
      %v2708 = vpop.f32.mrb[0].mxu0
      %v2709 = vpop.f32.mrb[0].mxu0
      %v2710 = vadd.f32 0.0, %v2709
      %v2711 = vpop.f32.mrb[0].mxu0
      %2712 = vdwg.mxu0
      %v2713 = vrcp.pop %v2598
      %v2714 = vrcp.pop %v2601
      %v2715 = vrcp.pop %v2604
      %v2716 = vrcp.pop %v2607
      %v2717 = vrcp.pop %v2610
      %v2718 = vrcp.pop %v2613
      %v2719 = vrcp.pop %v2616
      %v2720 = vrcp.pop %v2619
      %v2721 = vmul.f32 %v2683, %v2713
      %v2722 = vmul.f32 %v2686, %v2714
      %v2723 = vmul.f32 %v2691, %v2715
      %v2724 = vmul.f32 %v2694, %v2716
      %v2725 = vmul.f32 %v2699, %v2717
      %v2726 = vmul.f32 %v2702, %v2718
      %v2727 = vmul.f32 %v2707, %v2719
      %v2728 = vmul.f32 %v2710, %v2720
      %2737 = vrot.lane.b32.xlu0 %v897, 64
      %v2738 = vpop.permute.xlu0 %2737
      %2739 = vrot.lane.b32.xlu0 %v898, 64
      %v2740 = vpop.permute.xlu0 %2739
      %2741 = vrot.lane.b32.xlu0 %v899, 64
      %v2742 = vpop.permute.xlu0 %2741
      %2743 = vrot.lane.b32.xlu0 %v900, 64
      %v2744 = vpop.permute.xlu0 %2743
      %2745 = vrot.lane.b32.xlu0 %v901, 64
      %v2746 = vpop.permute.xlu0 %2745
      %2747 = vrot.lane.b32.xlu0 %v902, 64
      %v2748 = vpop.permute.xlu0 %2747
      %2749 = vrot.lane.b32.xlu0 %v903, 64
      %v2750 = vpop.permute.xlu0 %2749
      %2751 = vrot.lane.b32.xlu0 %v904, 64
      %v2752 = vpop.permute.xlu0 %2751
      %2769 = vrot.lane.b32.xlu0 %v1497, 64
      %v2770 = vpop.permute.xlu0 %2769
      %2771 = vrot.lane.b32.xlu0 %v1498, 64
      %v2772 = vpop.permute.xlu0 %2771
      %2773 = vrot.lane.b32.xlu0 %v1499, 64
      %v2774 = vpop.permute.xlu0 %2773
      %2775 = vrot.lane.b32.xlu0 %v1500, 64
      %v2776 = vpop.permute.xlu0 %2775
      %2777 = vrot.lane.b32.xlu0 %v1501, 64
      %v2778 = vpop.permute.xlu0 %2777
      %2779 = vrot.lane.b32.xlu0 %v1502, 64
      %v2780 = vpop.permute.xlu0 %2779
      %2781 = vrot.lane.b32.xlu0 %v1503, 64
      %v2782 = vpop.permute.xlu0 %2781
      %2783 = vrot.lane.b32.xlu0 %v1504, 64
      %v2784 = vpop.permute.xlu0 %2783
      %2801 = vrot.lane.b32.xlu0 %v2121, 64
      %v2802 = vpop.permute.xlu0 %2801
      %2803 = vrot.lane.b32.xlu0 %v2122, 64
      %v2804 = vpop.permute.xlu0 %2803
      %2805 = vrot.lane.b32.xlu0 %v2123, 64
      %v2806 = vpop.permute.xlu0 %2805
      %2807 = vrot.lane.b32.xlu0 %v2124, 64
      %v2808 = vpop.permute.xlu0 %2807
      %2809 = vrot.lane.b32.xlu0 %v2125, 64
      %v2810 = vpop.permute.xlu0 %2809
      %2811 = vrot.lane.b32.xlu0 %v2126, 64
      %v2812 = vpop.permute.xlu0 %2811
      %2813 = vrot.lane.b32.xlu0 %v2127, 64
      %v2814 = vpop.permute.xlu0 %2813
      %2815 = vrot.lane.b32.xlu0 %v2128, 64
      %v2816 = vpop.permute.xlu0 %2815
      %2833 = vrot.lane.b32.xlu0 %v2721, 64
      %v2834 = vpop.permute.xlu0 %2833
      %2835 = vrot.lane.b32.xlu0 %v2722, 64
      %v2836 = vpop.permute.xlu0 %2835
      %2837 = vrot.lane.b32.xlu0 %v2723, 64
      %v2838 = vpop.permute.xlu0 %2837
      %2839 = vrot.lane.b32.xlu0 %v2724, 64
      %v2840 = vpop.permute.xlu0 %2839
      %2841 = vrot.lane.b32.xlu0 %v2725, 64
      %v2842 = vpop.permute.xlu0 %2841
      %2843 = vrot.lane.b32.xlu0 %v2726, 64
      %v2844 = vpop.permute.xlu0 %2843
      %2845 = vrot.lane.b32.xlu0 %v2727, 64
      %v2846 = vpop.permute.xlu0 %2845
      %2847 = vrot.lane.b32.xlu0 %v2728, 64
      %v2848 = vpop.permute.xlu0 %2847
      %v2857 = vsel %vm320, %v603, %v2738
      %v2858 = vsel %vm320, %v604, %v2740
      %v2859 = vsel %vm320, %v605, %v2742
      %v2860 = vsel %vm320, %v606, %v2744
      %v2861 = vsel %vm320, %v607, %v2746
      %v2862 = vsel %vm320, %v608, %v2748
      %v2863 = vsel %vm320, %v609, %v2750
      %v2864 = vsel %vm320, %v610, %v2752
      %v2865 = vsel %vm320, %v1203, %v2770
      %v2866 = vsel %vm320, %v1204, %v2772
      %v2867 = vsel %vm320, %v1205, %v2774
      %v2868 = vsel %vm320, %v1206, %v2776
      %v2869 = vsel %vm320, %v1207, %v2778
      %v2870 = vsel %vm320, %v1208, %v2780
      %v2871 = vsel %vm320, %v1209, %v2782
      %v2872 = vsel %vm320, %v1210, %v2784
      %v2873 = vsel %vm320, %v1827, %v2802
      %v2874 = vsel %vm320, %v1828, %v2804
      %v2875 = vsel %vm320, %v1829, %v2806
      %v2876 = vsel %vm320, %v1830, %v2808
      %v2877 = vsel %vm320, %v1831, %v2810
      %v2878 = vsel %vm320, %v1832, %v2812
      %v2879 = vsel %vm320, %v1833, %v2814
      %v2880 = vsel %vm320, %v1834, %v2816
      %v2881 = vsel %vm320, %v2427, %v2834
      %v2882 = vsel %vm320, %v2428, %v2836
      %v2883 = vsel %vm320, %v2429, %v2838
      %v2884 = vsel %vm320, %v2430, %v2840
      %v2885 = vsel %vm320, %v2431, %v2842
      %v2886 = vsel %vm320, %v2432, %v2844
      %v2887 = vsel %vm320, %v2433, %v2846
      %v2888 = vsel %vm320, %v2434, %v2848
      %v2889 = vpack.c.bf16 %v2858, %v2857
      %v2890 = vpack.c.bf16 %v2866, %v2865
      %v2891 = vpack.c.bf16 %v2874, %v2873
      %v2892 = vpack.c.bf16 %v2882, %v2881
      %v2893 = vpack.c.bf16 %v2860, %v2859
      %v2894 = vpack.c.bf16 %v2868, %v2867
      %v2895 = vpack.c.bf16 %v2876, %v2875
      %v2896 = vpack.c.bf16 %v2884, %v2883
      %v2897 = vpack.c.bf16 %v2862, %v2861
      %v2898 = vpack.c.bf16 %v2870, %v2869
      %v2899 = vpack.c.bf16 %v2878, %v2877
      %v2900 = vpack.c.bf16 %v2886, %v2885
      %v2901 = vpack.c.bf16 %v2864, %v2863
      %v2902 = vpack.c.bf16 %v2872, %v2871
      %v2903 = vpack.c.bf16 %v2880, %v2879
      %v2904 = vpack.c.bf16 %v2888, %v2887
      %v2905 = vld [vmem:[%s1] sm:$0xff]
      %v2906 = vld [vmem:[%s1 + $0x8] sm:$0xff]
      %v2907 = vld [vmem:[%s1 + $0x10] sm:$0xff]
      %v2908 = vld [vmem:[%s1 + $0x18] sm:$0xff]
      %v2909 = vld [vmem:[%s1 + $0x20] sm:$0xff]
      %v2910 = vld [vmem:[%s1 + $0x28] sm:$0xff]
      %v2911 = vld [vmem:[%s1 + $0x30] sm:$0xff]
      %v2912 = vld [vmem:[%s1 + $0x38] sm:$0xff]
      %v2913 = vld [vmem:[%s1 + $0x40] sm:$0xff]
      %v2914 = vld [vmem:[%s1 + $0x48] sm:$0xff]
      %v2915 = vld [vmem:[%s1 + $0x50] sm:$0xff]
      %v2916 = vld [vmem:[%s1 + $0x58] sm:$0xff]
      %v2917 = vld [vmem:[%s1 + $0x60] sm:$0xff]
      %v2918 = vld [vmem:[%s1 + $0x68] sm:$0xff]
      %v2919 = vld [vmem:[%s1 + $0x70] sm:$0xff]
      %v2920 = vld [vmem:[%s1 + $0x78] sm:$0xff]
      %v2921 = vld [vmem:[%s1 + $0x80] sm:$0xff]
      %v2922 = vld [vmem:[%s1 + $0x88] sm:$0xff]
      %v2923 = vld [vmem:[%s1 + $0x90] sm:$0xff]
      %v2924 = vld [vmem:[%s1 + $0x98] sm:$0xff]
      %v2925 = vld [vmem:[%s1 + $0xa0] sm:$0xff]
      %v2926 = vld [vmem:[%s1 + $0xa8] sm:$0xff]
      %v2927 = vld [vmem:[%s1 + $0xb0] sm:$0xff]
      %v2928 = vld [vmem:[%s1 + $0xb8] sm:$0xff]
      %v2929 = vld [vmem:[%s1 + $0xc0] sm:$0xff]
      %v2930 = vld [vmem:[%s1 + $0xc8] sm:$0xff]
      %v2931 = vld [vmem:[%s1 + $0xd0] sm:$0xff]
      %v2932 = vld [vmem:[%s1 + $0xd8] sm:$0xff]
      %v2933 = vld [vmem:[%s1 + $0xe0] sm:$0xff]
      %v2934 = vld [vmem:[%s1 + $0xe8] sm:$0xff]
      %v2935 = vld [vmem:[%s1 + $0xf0] sm:$0xff]
      %v2936 = vld [vmem:[%s1 + $0xf8] sm:$0xff]
      %v2937 = vld [vmem:[%s1 + $0x100] sm:$0xff]
      %v2938 = vld [vmem:[%s1 + $0x108] sm:$0xff]
      %v2939 = vld [vmem:[%s1 + $0x110] sm:$0xff]
      %v2940 = vld [vmem:[%s1 + $0x118] sm:$0xff]
      %v2941 = vld [vmem:[%s1 + $0x120] sm:$0xff]
      %v2942 = vld [vmem:[%s1 + $0x128] sm:$0xff]
      %v2943 = vld [vmem:[%s1 + $0x130] sm:$0xff]
      %v2944 = vld [vmem:[%s1 + $0x138] sm:$0xff]
      %v2945 = vld [vmem:[%s1 + $0x140] sm:$0xff]
      %v2946 = vld [vmem:[%s1 + $0x148] sm:$0xff]
      %v2947 = vld [vmem:[%s1 + $0x150] sm:$0xff]
      %v2948 = vld [vmem:[%s1 + $0x158] sm:$0xff]
      %v2949 = vld [vmem:[%s1 + $0x160] sm:$0xff]
      %v2950 = vld [vmem:[%s1 + $0x168] sm:$0xff]
      %v2951 = vld [vmem:[%s1 + $0x170] sm:$0xff]
      %v2952 = vld [vmem:[%s1 + $0x178] sm:$0xff]
      %v2953 = vld [vmem:[%s1 + $0x180] sm:$0xff]
      %v2954 = vld [vmem:[%s1 + $0x188] sm:$0xff]
      %v2955 = vld [vmem:[%s1 + $0x190] sm:$0xff]
      %v2956 = vld [vmem:[%s1 + $0x198] sm:$0xff]
      %v2957 = vld [vmem:[%s1 + $0x1a0] sm:$0xff]
      %v2958 = vld [vmem:[%s1 + $0x1a8] sm:$0xff]
      %v2959 = vld [vmem:[%s1 + $0x1b0] sm:$0xff]
      %v2960 = vld [vmem:[%s1 + $0x1b8] sm:$0xff]
      %v2961 = vld [vmem:[%s1 + $0x1c0] sm:$0xff]
      %v2962 = vld [vmem:[%s1 + $0x1c8] sm:$0xff]
      %v2963 = vld [vmem:[%s1 + $0x1d0] sm:$0xff]
      %v2964 = vld [vmem:[%s1 + $0x1d8] sm:$0xff]
      %v2965 = vld [vmem:[%s1 + $0x1e0] sm:$0xff]
      %v2966 = vld [vmem:[%s1 + $0x1e8] sm:$0xff]
      %v2967 = vld [vmem:[%s1 + $0x1f0] sm:$0xff]
      %v2968 = vld [vmem:[%s1 + $0x1f8] sm:$0xff]
      %v2969 = vld [vmem:[%s2] sm:$0x3]
      %v2971 = vlaneseq
      %v2972 = vshrl.u32 %v2971, 7
      %v2973 = vsub.s32 0, %v2972
      %v2974 = vrot.slane %v2969, %v2973
      %v2975 = vlaneseq
      %v2976 = vshrl.u32 %v2975, 7
      %v2977 = vsub.s32 1, %v2976
      %v2978 = vrot.slane %v2969, %v2977
      %v3045 = vunpack.c.l.b16 %v2905
      %v3046 = vunpack.c.h.b16 %v2905
      %v3047 = vunpack.c.l.b16 %v2906
      %v3048 = vunpack.c.h.b16 %v2906
      %v3049 = vunpack.c.l.b16 %v2907
      %v3050 = vunpack.c.h.b16 %v2907
      %v3051 = vunpack.c.l.b16 %v2908
      %v3052 = vunpack.c.h.b16 %v2908
      %v3053 = vunpack.c.l.b16 %v2909
      %v3054 = vunpack.c.h.b16 %v2909
      %v3055 = vunpack.c.l.b16 %v2910
      %v3056 = vunpack.c.h.b16 %v2910
      %v3057 = vunpack.c.l.b16 %v2911
      %v3058 = vunpack.c.h.b16 %v2911
      %v3059 = vunpack.c.l.b16 %v2912
      %v3060 = vunpack.c.h.b16 %v2912
      %v3061 = vunpack.c.l.b16 %v2913
      %v3062 = vunpack.c.h.b16 %v2913
      %v3063 = vunpack.c.l.b16 %v2914
      %v3064 = vunpack.c.h.b16 %v2914
      %v3065 = vunpack.c.l.b16 %v2915
      %v3066 = vunpack.c.h.b16 %v2915
      %v3067 = vunpack.c.l.b16 %v2916
      %v3068 = vunpack.c.h.b16 %v2916
      %v3069 = vunpack.c.l.b16 %v2917
      %v3070 = vunpack.c.h.b16 %v2917
      %v3071 = vunpack.c.l.b16 %v2918
      %v3072 = vunpack.c.h.b16 %v2918
      %v3073 = vunpack.c.l.b16 %v2919
      %v3074 = vunpack.c.h.b16 %v2919
      %v3075 = vunpack.c.l.b16 %v2920
      %v3076 = vunpack.c.h.b16 %v2920
      %v3077 = vunpack.c.l.b16 %v2921
      %v3078 = vunpack.c.h.b16 %v2921
      %v3079 = vunpack.c.l.b16 %v2922
      %v3080 = vunpack.c.h.b16 %v2922
      %v3081 = vunpack.c.l.b16 %v2923
      %v3082 = vunpack.c.h.b16 %v2923
      %v3083 = vunpack.c.l.b16 %v2924
      %v3084 = vunpack.c.h.b16 %v2924
      %v3085 = vunpack.c.l.b16 %v2925
      %v3086 = vunpack.c.h.b16 %v2925
      %v3087 = vunpack.c.l.b16 %v2926
      %v3088 = vunpack.c.h.b16 %v2926
      %v3089 = vunpack.c.l.b16 %v2927
      %v3090 = vunpack.c.h.b16 %v2927
      %v3091 = vunpack.c.l.b16 %v2928
      %v3092 = vunpack.c.h.b16 %v2928
      %v3093 = vunpack.c.l.b16 %v2929
      %v3094 = vunpack.c.h.b16 %v2929
      %v3095 = vunpack.c.l.b16 %v2930
      %v3096 = vunpack.c.h.b16 %v2930
      %v3097 = vunpack.c.l.b16 %v2931
      %v3098 = vunpack.c.h.b16 %v2931
      %v3099 = vunpack.c.l.b16 %v2932
      %v3100 = vunpack.c.h.b16 %v2932
      %v3101 = vunpack.c.l.b16 %v2933
      %v3102 = vunpack.c.h.b16 %v2933
      %v3103 = vunpack.c.l.b16 %v2934
      %v3104 = vunpack.c.h.b16 %v2934
      %v3105 = vunpack.c.l.b16 %v2935
      %v3106 = vunpack.c.h.b16 %v2935
      %v3107 = vunpack.c.l.b16 %v2936
      %v3108 = vunpack.c.h.b16 %v2936
      %v3109 = vunpack.c.l.b16 %v2937
      %v3110 = vunpack.c.h.b16 %v2937
      %v3111 = vunpack.c.l.b16 %v2938
      %v3112 = vunpack.c.h.b16 %v2938
      %v3113 = vunpack.c.l.b16 %v2939
      %v3114 = vunpack.c.h.b16 %v2939
      %v3115 = vunpack.c.l.b16 %v2940
      %v3116 = vunpack.c.h.b16 %v2940
      %v3117 = vunpack.c.l.b16 %v2941
      %v3118 = vunpack.c.h.b16 %v2941
      %v3119 = vunpack.c.l.b16 %v2942
      %v3120 = vunpack.c.h.b16 %v2942
      %v3121 = vunpack.c.l.b16 %v2943
      %v3122 = vunpack.c.h.b16 %v2943
      %v3123 = vunpack.c.l.b16 %v2944
      %v3124 = vunpack.c.h.b16 %v2944
      %v3125 = vunpack.c.l.b16 %v2945
      %v3126 = vunpack.c.h.b16 %v2945
      %v3127 = vunpack.c.l.b16 %v2946
      %v3128 = vunpack.c.h.b16 %v2946
      %v3129 = vunpack.c.l.b16 %v2947
      %v3130 = vunpack.c.h.b16 %v2947
      %v3131 = vunpack.c.l.b16 %v2948
      %v3132 = vunpack.c.h.b16 %v2948
      %v3133 = vunpack.c.l.b16 %v2949
      %v3134 = vunpack.c.h.b16 %v2949
      %v3135 = vunpack.c.l.b16 %v2950
      %v3136 = vunpack.c.h.b16 %v2950
      %v3137 = vunpack.c.l.b16 %v2951
      %v3138 = vunpack.c.h.b16 %v2951
      %v3139 = vunpack.c.l.b16 %v2952
      %v3140 = vunpack.c.h.b16 %v2952
      %v3141 = vunpack.c.l.b16 %v2953
      %v3142 = vunpack.c.h.b16 %v2953
      %v3143 = vunpack.c.l.b16 %v2954
      %v3144 = vunpack.c.h.b16 %v2954
      %v3145 = vunpack.c.l.b16 %v2955
      %v3146 = vunpack.c.h.b16 %v2955
      %v3147 = vunpack.c.l.b16 %v2956
      %v3148 = vunpack.c.h.b16 %v2956
      %v3149 = vunpack.c.l.b16 %v2957
      %v3150 = vunpack.c.h.b16 %v2957
      %v3151 = vunpack.c.l.b16 %v2958
      %v3152 = vunpack.c.h.b16 %v2958
      %v3153 = vunpack.c.l.b16 %v2959
      %v3154 = vunpack.c.h.b16 %v2959
      %v3155 = vunpack.c.l.b16 %v2960
      %v3156 = vunpack.c.h.b16 %v2960
      %v3157 = vunpack.c.l.b16 %v2961
      %v3158 = vunpack.c.h.b16 %v2961
      %v3159 = vunpack.c.l.b16 %v2962
      %v3160 = vunpack.c.h.b16 %v2962
      %v3161 = vunpack.c.l.b16 %v2963
      %v3162 = vunpack.c.h.b16 %v2963
      %v3163 = vunpack.c.l.b16 %v2964
      %v3164 = vunpack.c.h.b16 %v2964
      %v3165 = vunpack.c.l.b16 %v2965
      %v3166 = vunpack.c.h.b16 %v2965
      %v3167 = vunpack.c.l.b16 %v2966
      %v3168 = vunpack.c.h.b16 %v2966
      %v3169 = vunpack.c.l.b16 %v2967
      %v3170 = vunpack.c.h.b16 %v2967
      %v3171 = vunpack.c.l.b16 %v2968
      %v3172 = vunpack.c.h.b16 %v2968
      %v3173 = vpack.c.b16 %v3047, %v3045
      %v3174 = vpack.c.b16 %v3048, %v3046
      %v3175 = vpack.c.b16 %v3051, %v3049
      %v3176 = vpack.c.b16 %v3052, %v3050
      %v3177 = vpack.c.b16 %v3055, %v3053
      %v3178 = vpack.c.b16 %v3056, %v3054
      %v3179 = vpack.c.b16 %v3059, %v3057
      %v3180 = vpack.c.b16 %v3060, %v3058
      %v3181 = vpack.c.b16 %v3063, %v3061
      %v3182 = vpack.c.b16 %v3064, %v3062
      %v3183 = vpack.c.b16 %v3067, %v3065
      %v3184 = vpack.c.b16 %v3068, %v3066
      %v3185 = vpack.c.b16 %v3071, %v3069
      %v3186 = vpack.c.b16 %v3072, %v3070
      %v3187 = vpack.c.b16 %v3075, %v3073
      %v3188 = vpack.c.b16 %v3076, %v3074
      %v3189 = vpack.c.b16 %v3079, %v3077
      %v3190 = vpack.c.b16 %v3080, %v3078
      %v3191 = vpack.c.b16 %v3083, %v3081
      %v3192 = vpack.c.b16 %v3084, %v3082
      %v3193 = vpack.c.b16 %v3087, %v3085
      %v3194 = vpack.c.b16 %v3088, %v3086
      %v3195 = vpack.c.b16 %v3091, %v3089
      %v3196 = vpack.c.b16 %v3092, %v3090
      %v3197 = vpack.c.b16 %v3095, %v3093
      %v3198 = vpack.c.b16 %v3096, %v3094
      %v3199 = vpack.c.b16 %v3099, %v3097
      %v3200 = vpack.c.b16 %v3100, %v3098
      %v3201 = vpack.c.b16 %v3103, %v3101
      %v3202 = vpack.c.b16 %v3104, %v3102
      %v3203 = vpack.c.b16 %v3107, %v3105
      %v3204 = vpack.c.b16 %v3108, %v3106
      %v3205 = vpack.c.b16 %v3111, %v3109
      %v3206 = vpack.c.b16 %v3112, %v3110
      %v3207 = vpack.c.b16 %v3115, %v3113
      %v3208 = vpack.c.b16 %v3116, %v3114
      %v3209 = vpack.c.b16 %v3119, %v3117
      %v3210 = vpack.c.b16 %v3120, %v3118
      %v3211 = vpack.c.b16 %v3123, %v3121
      %v3212 = vpack.c.b16 %v3124, %v3122
      %v3213 = vpack.c.b16 %v3127, %v3125
      %v3214 = vpack.c.b16 %v3128, %v3126
      %v3215 = vpack.c.b16 %v3131, %v3129
      %v3216 = vpack.c.b16 %v3132, %v3130
      %v3217 = vpack.c.b16 %v3135, %v3133
      %v3218 = vpack.c.b16 %v3136, %v3134
      %v3219 = vpack.c.b16 %v3139, %v3137
      %v3220 = vpack.c.b16 %v3140, %v3138
      %v3221 = vpack.c.b16 %v3143, %v3141
      %v3222 = vpack.c.b16 %v3144, %v3142
      %v3223 = vpack.c.b16 %v3147, %v3145
      %v3224 = vpack.c.b16 %v3148, %v3146
      %v3225 = vpack.c.b16 %v3151, %v3149
      %v3226 = vpack.c.b16 %v3152, %v3150
      %v3227 = vpack.c.b16 %v3155, %v3153
      %v3228 = vpack.c.b16 %v3156, %v3154
      %v3229 = vpack.c.b16 %v3159, %v3157
      %v3230 = vpack.c.b16 %v3160, %v3158
      %v3231 = vpack.c.b16 %v3163, %v3161
      %v3232 = vpack.c.b16 %v3164, %v3162
      %v3233 = vpack.c.b16 %v3167, %v3165
      %v3234 = vpack.c.b16 %v3168, %v3166
      %v3235 = vpack.c.b16 %v3171, %v3169
      %v3236 = vpack.c.b16 %v3172, %v3170
      %3301 = vmatprep.subr.bf16.mxu0 %v3174
      %3302 = vmatpush1.bf16.msra.mxu0 %v3173
      %3303 = vmatprep.subr.bf16.mxu0 %v3176
      %3304 = vmatpush1.bf16.msra.mxu0 %v3175
      %3305 = vmatprep.subr.bf16.mxu0 %v3178
      %3306 = vmatpush1.bf16.msra.mxu0 %v3177
      %3307 = vmatprep.subr.bf16.mxu0 %v3180
      %3308 = vmatpush1.bf16.msra.mxu0 %v3179
      %3309 = vmatprep.subr.bf16.mxu0 %v3182
      %3310 = vmatpush1.bf16.msra.mxu0 %v3181
      %3311 = vmatprep.subr.bf16.mxu0 %v3184
      %3312 = vmatpush1.bf16.msra.mxu0 %v3183
      %3313 = vmatprep.subr.bf16.mxu0 %v3186
      %3314 = vmatpush1.bf16.msra.mxu0 %v3185
      %3315 = vmatprep.subr.bf16.mxu0 %v3188
      %3316 = vmatpush1.bf16.msra.mxu0 %v3187
      %3317 = vmatprep.subr.bf16.mxu0 %v3190
      %3318 = vmatpush1.bf16.msra.mxu0 %v3189
      %3319 = vmatprep.subr.bf16.mxu0 %v3192
      %3320 = vmatpush1.bf16.msra.mxu0 %v3191
      %3321 = vmatprep.subr.bf16.mxu0 %v3194
      %3322 = vmatpush1.bf16.msra.mxu0 %v3193
      %3323 = vmatprep.subr.bf16.mxu0 %v3196
      %3324 = vmatpush1.bf16.msra.mxu0 %v3195
      %3325 = vmatprep.subr.bf16.mxu0 %v3198
      %3326 = vmatpush1.bf16.msra.mxu0 %v3197
      %3327 = vmatprep.subr.bf16.mxu0 %v3200
      %3328 = vmatpush1.bf16.msra.mxu0 %v3199
      %3329 = vmatprep.subr.bf16.mxu0 %v3202
      %3330 = vmatpush1.bf16.msra.mxu0 %v3201
      %3331 = vmatprep.subr.bf16.mxu0 %v3204
      %3332 = vmatpush1.bf16.msra.mxu0 %v3203
      %3333 = vmatprep.mubr.bf16.mxu0 %v2890
      %3334 = vmatmul.mubr.bf16.gmra.mrb[0].mxu0 %v2889
      %v3335 = vpop.f32.mrb[0].mxu0
      %v3336 = vadd.f32 %v2974, %v3335
      %v3337 = vpop.f32.mrb[0].mxu0
      %v3338 = vadd.f32 %v2978, %v3337
      %v3339 = vpop.f32.mrb[0].mxu0
      %v3340 = vadd.f32 %v2974, %v3339
      %v3341 = vpop.f32.mrb[0].mxu0
      %v3342 = vadd.f32 %v2978, %v3341
      %3343 = vmatprep.mubr.bf16.mxu0 %v2894
      %3344 = vmatmul.mubr.bf16.gmra.mrb[0].mxu0 %v2893
      %v3345 = vpop.f32.mrb[0].mxu0
      %v3346 = vadd.f32 %v2974, %v3345
      %v3347 = vpop.f32.mrb[0].mxu0
      %v3348 = vadd.f32 %v2978, %v3347
      %v3349 = vpop.f32.mrb[0].mxu0
      %v3350 = vadd.f32 %v2974, %v3349
      %v3351 = vpop.f32.mrb[0].mxu0
      %v3352 = vadd.f32 %v2978, %v3351
      %3353 = vmatprep.mubr.bf16.mxu0 %v2898
      %3354 = vmatmul.mubr.bf16.gmra.mrb[0].mxu0 %v2897
      %v3355 = vpop.f32.mrb[0].mxu0
      %v3356 = vadd.f32 %v2974, %v3355
      %v3357 = vpop.f32.mrb[0].mxu0
      %v3358 = vadd.f32 %v2978, %v3357
      %v3359 = vpop.f32.mrb[0].mxu0
      %v3360 = vadd.f32 %v2974, %v3359
      %v3361 = vpop.f32.mrb[0].mxu0
      %v3362 = vadd.f32 %v2978, %v3361
      %3363 = vmatprep.mubr.bf16.mxu0 %v2902
      %3364 = vmatmul.mubr.bf16.gmra.mrb[0].mxu0 %v2901
      %v3365 = vpop.f32.mrb[0].mxu0
      %v3366 = vadd.f32 %v2974, %v3365
      %v3367 = vpop.f32.mrb[0].mxu0
      %v3368 = vadd.f32 %v2978, %v3367
      %v3369 = vpop.f32.mrb[0].mxu0
      %v3370 = vadd.f32 %v2974, %v3369
      %v3371 = vpop.f32.mrb[0].mxu0
      %v3372 = vadd.f32 %v2978, %v3371
      %3373 = vdwg.mxu0
      %3374 = vmatprep.subr.bf16.mxu0 %v3206
      %3375 = vmatpush1.bf16.msra.mxu0 %v3205
      %3376 = vmatprep.subr.bf16.mxu0 %v3208
      %3377 = vmatpush1.bf16.msra.mxu0 %v3207
      %3378 = vmatprep.subr.bf16.mxu0 %v3210
      %3379 = vmatpush1.bf16.msra.mxu0 %v3209
      %3380 = vmatprep.subr.bf16.mxu0 %v3212
      %3381 = vmatpush1.bf16.msra.mxu0 %v3211
      %3382 = vmatprep.subr.bf16.mxu0 %v3214
      %3383 = vmatpush1.bf16.msra.mxu0 %v3213
      %3384 = vmatprep.subr.bf16.mxu0 %v3216
      %3385 = vmatpush1.bf16.msra.mxu0 %v3215
      %3386 = vmatprep.subr.bf16.mxu0 %v3218
      %3387 = vmatpush1.bf16.msra.mxu0 %v3217
      %3388 = vmatprep.subr.bf16.mxu0 %v3220
      %3389 = vmatpush1.bf16.msra.mxu0 %v3219
      %3390 = vmatprep.subr.bf16.mxu0 %v3222
      %3391 = vmatpush1.bf16.msra.mxu0 %v3221
      %3392 = vmatprep.subr.bf16.mxu0 %v3224
      %3393 = vmatpush1.bf16.msra.mxu0 %v3223
      %3394 = vmatprep.subr.bf16.mxu0 %v3226
      %3395 = vmatpush1.bf16.msra.mxu0 %v3225
      %3396 = vmatprep.subr.bf16.mxu0 %v3228
      %3397 = vmatpush1.bf16.msra.mxu0 %v3227
      %3398 = vmatprep.subr.bf16.mxu0 %v3230
      %3399 = vmatpush1.bf16.msra.mxu0 %v3229
      %3400 = vmatprep.subr.bf16.mxu0 %v3232
      %3401 = vmatpush1.bf16.msra.mxu0 %v3231
      %3402 = vmatprep.subr.bf16.mxu0 %v3234
      %3403 = vmatpush1.bf16.msra.mxu0 %v3233
      %3404 = vmatprep.subr.bf16.mxu0 %v3236
      %3405 = vmatpush1.bf16.msra.mxu0 %v3235
      %3406 = vmatprep.mubr.bf16.mxu0 %v2892
      %3407 = vmatmul.mubr.bf16.gmra.mrb[0].mxu0 %v2891
      %v3408 = vpop.f32.mrb[0].mxu0
      %v3409 = vadd.f32 %v3336, %v3408
      %v3410 = vpop.f32.mrb[0].mxu0
      %v3411 = vadd.f32 %v3338, %v3410
      %v3412 = vpop.f32.mrb[0].mxu0
      %v3413 = vadd.f32 %v3340, %v3412
      %v3414 = vpop.f32.mrb[0].mxu0
      %v3415 = vadd.f32 %v3342, %v3414
      %3416 = vmatprep.mubr.bf16.mxu0 %v2896
      %3417 = vmatmul.mubr.bf16.gmra.mrb[0].mxu0 %v2895
      %v3418 = vpop.f32.mrb[0].mxu0
      %v3419 = vadd.f32 %v3346, %v3418
      %v3420 = vpop.f32.mrb[0].mxu0
      %v3421 = vadd.f32 %v3348, %v3420
      %v3422 = vpop.f32.mrb[0].mxu0
      %v3423 = vadd.f32 %v3350, %v3422
      %v3424 = vpop.f32.mrb[0].mxu0
      %v3425 = vadd.f32 %v3352, %v3424
      %3426 = vmatprep.mubr.bf16.mxu0 %v2900
      %3427 = vmatmul.mubr.bf16.gmra.mrb[0].mxu0 %v2899
      %v3428 = vpop.f32.mrb[0].mxu0
      %v3429 = vadd.f32 %v3356, %v3428
      %v3430 = vpop.f32.mrb[0].mxu0
      %v3431 = vadd.f32 %v3358, %v3430
      %v3432 = vpop.f32.mrb[0].mxu0
      %v3433 = vadd.f32 %v3360, %v3432
      %v3434 = vpop.f32.mrb[0].mxu0
      %v3435 = vadd.f32 %v3362, %v3434
      %3436 = vmatprep.mubr.bf16.mxu0 %v2904
      %3437 = vmatmul.mubr.bf16.gmra.mrb[0].mxu0 %v2903
      %v3438 = vpop.f32.mrb[0].mxu0
      %v3439 = vadd.f32 %v3366, %v3438
      %v3440 = vpop.f32.mrb[0].mxu0
      %v3441 = vadd.f32 %v3368, %v3440
      %v3442 = vpop.f32.mrb[0].mxu0
      %v3443 = vadd.f32 %v3370, %v3442
      %v3444 = vpop.f32.mrb[0].mxu0
      %v3445 = vadd.f32 %v3372, %v3444
      %3446 = vdwg.mxu0
      %v3447 = vld [vmem:[%s222] sm:$0xff]
      %v3448 = vld [vmem:[%s222 + $0x8] sm:$0xff]
      %v3449 = vld [vmem:[%s222 + $0x10] sm:$0xff]
      %v3450 = vld [vmem:[%s222 + $0x18] sm:$0xff]
      %v3451 = vld [vmem:[%s222 + $0x20] sm:$0xff]
      %v3452 = vld [vmem:[%s222 + $0x28] sm:$0xff]
      %v3453 = vld [vmem:[%s222 + $0x30] sm:$0xff]
      %v3454 = vld [vmem:[%s222 + $0x38] sm:$0xff]
      %v3455 = vunpack.c.l.bf16 %v3447
      %v3456 = vunpack.c.h.bf16 %v3447
      %v3457 = vunpack.c.l.bf16 %v3448
      %v3458 = vunpack.c.h.bf16 %v3448
      %v3459 = vunpack.c.l.bf16 %v3449
      %v3460 = vunpack.c.h.bf16 %v3449
      %v3461 = vunpack.c.l.bf16 %v3450
      %v3462 = vunpack.c.h.bf16 %v3450
      %v3463 = vunpack.c.l.bf16 %v3451
      %v3464 = vunpack.c.h.bf16 %v3451
      %v3465 = vunpack.c.l.bf16 %v3452
      %v3466 = vunpack.c.h.bf16 %v3452
      %v3467 = vunpack.c.l.bf16 %v3453
      %v3468 = vunpack.c.h.bf16 %v3453
      %v3469 = vunpack.c.l.bf16 %v3454
      %v3470 = vunpack.c.h.bf16 %v3454
      %v3471 = vadd.f32 %v3409, %v3455
      %v3472 = vadd.f32 %v3411, %v3456
      %v3473 = vadd.f32 %v3413, %v3457
      %v3474 = vadd.f32 %v3415, %v3458
      %v3475 = vadd.f32 %v3419, %v3459
      %v3476 = vadd.f32 %v3421, %v3460
      %v3477 = vadd.f32 %v3423, %v3461
      %v3478 = vadd.f32 %v3425, %v3462
      %v3479 = vadd.f32 %v3429, %v3463
      %v3480 = vadd.f32 %v3431, %v3464
      %v3481 = vadd.f32 %v3433, %v3465
      %v3482 = vadd.f32 %v3435, %v3466
      %v3483 = vadd.f32 %v3439, %v3467
      %v3484 = vadd.f32 %v3441, %v3468
      %v3485 = vadd.f32 %v3443, %v3469
      %v3486 = vadd.f32 %v3445, %v3470
      %v3487 = vpack.c.bf16 %v3473, %v3471
      %v3488 = vpack.c.bf16 %v3474, %v3472
      %v3489 = vpack.c.bf16 %v3477, %v3475
      %v3490 = vpack.c.bf16 %v3478, %v3476
      %v3491 = vpack.c.bf16 %v3481, %v3479
      %v3492 = vpack.c.bf16 %v3482, %v3480
      %v3493 = vpack.c.bf16 %v3485, %v3483
      %v3494 = vpack.c.bf16 %v3486, %v3484
      %v3503 = vunpack.c.l.b16 %v3487
      %v3504 = vunpack.c.l.b16 %v3488
      %v3505 = vunpack.c.h.b16 %v3487
      %v3506 = vunpack.c.h.b16 %v3488
      %v3507 = vunpack.c.l.b16 %v3489
      %v3508 = vunpack.c.l.b16 %v3490
      %v3509 = vunpack.c.h.b16 %v3489
      %v3510 = vunpack.c.h.b16 %v3490
      %v3511 = vunpack.c.l.b16 %v3491
      %v3512 = vunpack.c.l.b16 %v3492
      %v3513 = vunpack.c.h.b16 %v3491
      %v3514 = vunpack.c.h.b16 %v3492
      %v3515 = vunpack.c.l.b16 %v3493
      %v3516 = vunpack.c.l.b16 %v3494
      %v3517 = vunpack.c.h.b16 %v3493
      %v3518 = vunpack.c.h.b16 %v3494
      %v3519 = vpack.c.b16 %v3504, %v3503
      %v3520 = vpack.c.b16 %v3506, %v3505
      %v3521 = vpack.c.b16 %v3508, %v3507
      %v3522 = vpack.c.b16 %v3510, %v3509
      %v3523 = vpack.c.b16 %v3512, %v3511
      %v3524 = vpack.c.b16 %v3514, %v3513
      %v3525 = vpack.c.b16 %v3516, %v3515
      %v3526 = vpack.c.b16 %v3518, %v3517
      %3535 = vst [vmem:[%s229] sm:$0xff] %v3519
      %3536 = vst [vmem:[%s229 + $0x8] sm:$0xff] %v3520
      %3537 = vst [vmem:[%s229 + $0x10] sm:$0xff] %v3521
      %3538 = vst [vmem:[%s229 + $0x18] sm:$0xff] %v3522
      %3539 = vst [vmem:[%s229 + $0x20] sm:$0xff] %v3523
      %3540 = vst [vmem:[%s229 + $0x28] sm:$0xff] %v3524
      %3541 = vst [vmem:[%s229 + $0x30] sm:$0xff] %v3525
      %3542 = vst [vmem:[%s229 + $0x38] sm:$0xff] %v3526
      %s3543 = smul.u32 8, %s15
      %p3544 = scmp.lt.s32.totalorder %s3543, 15
      %s3545 = scalar_select %p3544, %s3543, 15
      %s3546 = smul.addr %s3545, 2
      %s3547 = smul.addr %s3546, 4
      %s3548 = scalar_lea.vmem %s4, %s3547
      // Predicated region
      $region37: #{bert_embedder_forward.9} parent=35 // pred_check
        %p3549 = pneg %p127
      $region38: #{bert_embedder_forward.9} parent=35 // pred_check_branch
        %3551 = sbr.rel (%p3549) target = $region40
      $region39: #{bert_embedder_forward.9} parent=35 // pred_region
        %s3552 = smul.u32 8, %s15
      $region40: #{bert_embedder_forward.9} parent=35 // pred_fallthru
        _
    $region36: #{bert_embedder_forward.9} parent=5 // pred_fallthru
      _
    %p3553 = scmp.le.s32.totalorder 2, %s10
    // Predicated region
    $region41: #{bert_embedder_forward.9} parent=5 // pred_check
      %p3554 = pneg %p3553
    $region42: #{bert_embedder_forward.9} parent=5 // pred_check_branch
      %3556 = sbr.rel (%p3554) target = $region44
    $region43: #{bert_embedder_forward.9} parent=5 // pred_region
      %s3557 = ssub.s32 %s10, 2
      // Predicated region
      $region45: #{bert_embedder_forward.9} parent=43 // pred_check
        %p3558 = pneg %p133
      $region46: #{bert_embedder_forward.9} parent=43 // pred_check_branch
        %3560 = sbr.rel (%p3558) target = $region48
      $region47: #{bert_embedder_forward.9} parent=43 // pred_region
        %s3561 = smul.u32 8, %s16
        %p3562 = scmp.lt.s32.totalorder %s3561, 15
        %s3563 = scalar_select %p3562, %s3561, 15
        %s3564 = smul.addr %s3563, 2
        %s3565 = smul.addr %s3564, 4
        %s3566 = scalar_lea.vmem %s4, %s3565
      $region48: #{bert_embedder_forward.9} parent=43 // pred_fallthru
        _
    $region44: #{bert_embedder_forward.9} parent=5 // pred_fallthru
      _
  $region6: #{bert_embedder_forward.9} parent=0 // loop_footer
    %s14 = sadd.s32 1, %s10
  $region7: #{bert_embedder_forward.9} parent=0 // loop_footer_branch
    %9 = sbr.rel target = $region3
  $region8: #{bert_embedder_forward.9} parent=0 // loop_exit
    _

// kernel: bert_embedder_forward.15
$region0: #{bert_embedder_forward.15}
  #allocation0 [shape = 'u32[]', space=smem, size = 0x4, offset = 0x4, fixed_abs, tag = 'smem constant byte address 0x4 - core index']
  #allocation1 [shape = 'u32[144,128]{1,0:T(1,128)}', space=vmem, size = 0x12000, scoped, tag = 'internal scratch']
  %s0 = inlined_call_operand.vmem [shape: bf16[128,1024], index: 0, kind: input, shape index: {}]
  %s1 = inlined_call_operand.vmem [shape: bf16[1024,256], index: 1, kind: input, shape index: {}]
  %s2 = inlined_call_operand.vmem [shape: f32[1,256], index: 2, kind: input, shape index: {}]
  %s3 = inlined_call_operand.vmem [shape: bf16[128,256], index: 3, kind: input, shape index: {}]
  %s4 = inlined_call_operand.vmem [shape: f32[1,256], index: 4, kind: input, shape index: {}]
  %s5 = inlined_call_operand.vmem [shape: f32[1,256], index: 5, kind: input, shape index: {}]
  %s6 = inlined_call_operand.hbm [shape: f32[128,256], index: 6, kind: output, shape index: {}]
  %s7 = sld [smem:[#allocation0]]
  $region34: #{bert_embedder_forward.15} parent=0
    _
  %s9 = ssub.s32 1, %s7
  %s10 = scalar_select 0, %s9, %s7
  $region1: #{bert_embedder_forward.15} parent=0
    #allocation2 [shape = 'u8[131072]{0}', space=vmem, size = 0x20000, scoped, tag = 'output window, operand 0, single buffered']
    #allocation3 [shape = 's32[1]{0}', space=sflag, size = 0x4, scoped, tag = 'scoped memory for bert_embedder_forward.15']
    %11 = vsyncpa [#allocation3], 0
    // Predicated region
    $region2: #{bert_embedder_forward.15} parent=1 // pred_check
      _
    $region3: #{bert_embedder_forward.15} parent=1 // pred_check_branch
      %13 = sbr.rel (0) target = $region5
    $region4: #{bert_embedder_forward.15} parent=1 // pred_region
      _
    $region5: #{bert_embedder_forward.15} parent=1 // pred_fallthru
      _
    // Predicated region
    $region6: #{bert_embedder_forward.15} parent=1 // pred_check
      _
    $region7: #{bert_embedder_forward.15} parent=1 // pred_check_branch
      %15 = sbr.rel (0) target = $region9
    $region8: #{bert_embedder_forward.15} parent=1 // pred_region
      _
    $region9: #{bert_embedder_forward.15} parent=1 // pred_fallthru
      _
    // Predicated region
    $region10: #{bert_embedder_forward.15} parent=1 // pred_check
      _
    $region11: #{bert_embedder_forward.15} parent=1 // pred_check_branch
      %17 = sbr.rel (0) target = $region13
    $region12: #{bert_embedder_forward.15} parent=1 // pred_region
      _
    $region13: #{bert_embedder_forward.15} parent=1 // pred_fallthru
      _
    // Predicated region
    $region14: #{bert_embedder_forward.15} parent=1 // pred_check
      _
    $region15: #{bert_embedder_forward.15} parent=1 // pred_check_branch
      %19 = sbr.rel (0) target = $region17
    $region16: #{bert_embedder_forward.15} parent=1 // pred_region
      _
    $region17: #{bert_embedder_forward.15} parent=1 // pred_fallthru
      _
    // Predicated region
    $region18: #{bert_embedder_forward.15} parent=1 // pred_check
      _
    $region19: #{bert_embedder_forward.15} parent=1 // pred_check_branch
      %21 = sbr.rel (0) target = $region21
    $region20: #{bert_embedder_forward.15} parent=1 // pred_region
      _
    $region21: #{bert_embedder_forward.15} parent=1 // pred_fallthru
      _
    // Predicated region
    $region22: #{bert_embedder_forward.15} parent=1 // pred_check
      _
    $region23: #{bert_embedder_forward.15} parent=1 // pred_check_branch
      %23 = sbr.rel (0) target = $region25
    $region24: #{bert_embedder_forward.15} parent=1 // pred_region
      _
    $region25: #{bert_embedder_forward.15} parent=1 // pred_fallthru
      _
    %v24 = vld [vmem:[%s0] sm:$0xff]
    %v25 = vld [vmem:[%s0 + $0x8] sm:$0xff]
    %v26 = vld [vmem:[%s0 + $0x10] sm:$0xff]
    %v27 = vld [vmem:[%s0 + $0x18] sm:$0xff]
    %v28 = vld [vmem:[%s0 + $0x20] sm:$0xff]
    %v29 = vld [vmem:[%s0 + $0x28] sm:$0xff]
    %v30 = vld [vmem:[%s0 + $0x30] sm:$0xff]
    %v31 = vld [vmem:[%s0 + $0x38] sm:$0xff]
    %v32 = vld [vmem:[%s0 + $0x40] sm:$0xff]
    %v33 = vld [vmem:[%s0 + $0x48] sm:$0xff]
    %v34 = vld [vmem:[%s0 + $0x50] sm:$0xff]
    %v35 = vld [vmem:[%s0 + $0x58] sm:$0xff]
    %v36 = vld [vmem:[%s0 + $0x60] sm:$0xff]
    %v37 = vld [vmem:[%s0 + $0x68] sm:$0xff]
    %v38 = vld [vmem:[%s0 + $0x70] sm:$0xff]
    %v39 = vld [vmem:[%s0 + $0x78] sm:$0xff]
    %v40 = vld [vmem:[%s0 + $0x80] sm:$0xff]
    %v41 = vld [vmem:[%s0 + $0x88] sm:$0xff]
    %v42 = vld [vmem:[%s0 + $0x90] sm:$0xff]
    %v43 = vld [vmem:[%s0 + $0x98] sm:$0xff]
    %v44 = vld [vmem:[%s0 + $0xa0] sm:$0xff]
    %v45 = vld [vmem:[%s0 + $0xa8] sm:$0xff]
    %v46 = vld [vmem:[%s0 + $0xb0] sm:$0xff]
    %v47 = vld [vmem:[%s0 + $0xb8] sm:$0xff]
    %v48 = vld [vmem:[%s0 + $0xc0] sm:$0xff]
    %v49 = vld [vmem:[%s0 + $0xc8] sm:$0xff]
    %v50 = vld [vmem:[%s0 + $0xd0] sm:$0xff]
    %v51 = vld [vmem:[%s0 + $0xd8] sm:$0xff]
    %v52 = vld [vmem:[%s0 + $0xe0] sm:$0xff]
    %v53 = vld [vmem:[%s0 + $0xe8] sm:$0xff]
    %v54 = vld [vmem:[%s0 + $0xf0] sm:$0xff]
    %v55 = vld [vmem:[%s0 + $0xf8] sm:$0xff]
    %v56 = vld [vmem:[%s0 + $0x100] sm:$0xff]
    %v57 = vld [vmem:[%s0 + $0x108] sm:$0xff]
    %v58 = vld [vmem:[%s0 + $0x110] sm:$0xff]
    %v59 = vld [vmem:[%s0 + $0x118] sm:$0xff]
    %v60 = vld [vmem:[%s0 + $0x120] sm:$0xff]
    %v61 = vld [vmem:[%s0 + $0x128] sm:$0xff]
    %v62 = vld [vmem:[%s0 + $0x130] sm:$0xff]
    %v63 = vld [vmem:[%s0 + $0x138] sm:$0xff]
    %v64 = vld [vmem:[%s0 + $0x140] sm:$0xff]
    %v65 = vld [vmem:[%s0 + $0x148] sm:$0xff]
    %v66 = vld [vmem:[%s0 + $0x150] sm:$0xff]
    %v67 = vld [vmem:[%s0 + $0x158] sm:$0xff]
    %v68 = vld [vmem:[%s0 + $0x160] sm:$0xff]
    %v69 = vld [vmem:[%s0 + $0x168] sm:$0xff]
    %v70 = vld [vmem:[%s0 + $0x170] sm:$0xff]
    %v71 = vld [vmem:[%s0 + $0x178] sm:$0xff]
    %v72 = vld [vmem:[%s0 + $0x180] sm:$0xff]
    %v73 = vld [vmem:[%s0 + $0x188] sm:$0xff]
    %v74 = vld [vmem:[%s0 + $0x190] sm:$0xff]
    %v75 = vld [vmem:[%s0 + $0x198] sm:$0xff]
    %v76 = vld [vmem:[%s0 + $0x1a0] sm:$0xff]
    %v77 = vld [vmem:[%s0 + $0x1a8] sm:$0xff]
    %v78 = vld [vmem:[%s0 + $0x1b0] sm:$0xff]
    %v79 = vld [vmem:[%s0 + $0x1b8] sm:$0xff]
    %v80 = vld [vmem:[%s0 + $0x1c0] sm:$0xff]
    %v81 = vld [vmem:[%s0 + $0x1c8] sm:$0xff]
    %v82 = vld [vmem:[%s0 + $0x1d0] sm:$0xff]
    %v83 = vld [vmem:[%s0 + $0x1d8] sm:$0xff]
    %v84 = vld [vmem:[%s0 + $0x1e0] sm:$0xff]
    %v85 = vld [vmem:[%s0 + $0x1e8] sm:$0xff]
    %v86 = vld [vmem:[%s0 + $0x1f0] sm:$0xff]
    %v87 = vld [vmem:[%s0 + $0x1f8] sm:$0xff]
    %v88 = vld [vmem:[%s1] sm:$0xff]
    %v89 = vld [vmem:[%s1 + $0x8] sm:$0xff]
    %v90 = vld [vmem:[%s1 + $0x10] sm:$0xff]
    %v91 = vld [vmem:[%s1 + $0x18] sm:$0xff]
    %v92 = vld [vmem:[%s1 + $0x20] sm:$0xff]
    %v93 = vld [vmem:[%s1 + $0x28] sm:$0xff]
    %v94 = vld [vmem:[%s1 + $0x30] sm:$0xff]
    %v95 = vld [vmem:[%s1 + $0x38] sm:$0xff]
    %v96 = vld [vmem:[%s1 + $0x40] sm:$0xff]
    %v97 = vld [vmem:[%s1 + $0x48] sm:$0xff]
    %v98 = vld [vmem:[%s1 + $0x50] sm:$0xff]
    %v99 = vld [vmem:[%s1 + $0x58] sm:$0xff]
    %v100 = vld [vmem:[%s1 + $0x60] sm:$0xff]
    %v101 = vld [vmem:[%s1 + $0x68] sm:$0xff]
    %v102 = vld [vmem:[%s1 + $0x70] sm:$0xff]
    %v103 = vld [vmem:[%s1 + $0x78] sm:$0xff]
    %v104 = vld [vmem:[%s1 + $0x80] sm:$0xff]
    %v105 = vld [vmem:[%s1 + $0x88] sm:$0xff]
    %v106 = vld [vmem:[%s1 + $0x90] sm:$0xff]
    %v107 = vld [vmem:[%s1 + $0x98] sm:$0xff]
    %v108 = vld [vmem:[%s1 + $0xa0] sm:$0xff]
    %v109 = vld [vmem:[%s1 + $0xa8] sm:$0xff]
    %v110 = vld [vmem:[%s1 + $0xb0] sm:$0xff]
    %v111 = vld [vmem:[%s1 + $0xb8] sm:$0xff]
    %v112 = vld [vmem:[%s1 + $0xc0] sm:$0xff]
    %v113 = vld [vmem:[%s1 + $0xc8] sm:$0xff]
    %v114 = vld [vmem:[%s1 + $0xd0] sm:$0xff]
    %v115 = vld [vmem:[%s1 + $0xd8] sm:$0xff]
    %v116 = vld [vmem:[%s1 + $0xe0] sm:$0xff]
    %v117 = vld [vmem:[%s1 + $0xe8] sm:$0xff]
    %v118 = vld [vmem:[%s1 + $0xf0] sm:$0xff]
    %v119 = vld [vmem:[%s1 + $0xf8] sm:$0xff]
    %v120 = vld [vmem:[%s1 + $0x100] sm:$0xff]
    %v121 = vld [vmem:[%s1 + $0x108] sm:$0xff]
    %v122 = vld [vmem:[%s1 + $0x110] sm:$0xff]
    %v123 = vld [vmem:[%s1 + $0x118] sm:$0xff]
    %v124 = vld [vmem:[%s1 + $0x120] sm:$0xff]
    %v125 = vld [vmem:[%s1 + $0x128] sm:$0xff]
    %v126 = vld [vmem:[%s1 + $0x130] sm:$0xff]
    %v127 = vld [vmem:[%s1 + $0x138] sm:$0xff]
    %v128 = vld [vmem:[%s1 + $0x140] sm:$0xff]
    %v129 = vld [vmem:[%s1 + $0x148] sm:$0xff]
    %v130 = vld [vmem:[%s1 + $0x150] sm:$0xff]
    %v131 = vld [vmem:[%s1 + $0x158] sm:$0xff]
    %v132 = vld [vmem:[%s1 + $0x160] sm:$0xff]
    %v133 = vld [vmem:[%s1 + $0x168] sm:$0xff]
    %v134 = vld [vmem:[%s1 + $0x170] sm:$0xff]
    %v135 = vld [vmem:[%s1 + $0x178] sm:$0xff]
    %v136 = vld [vmem:[%s1 + $0x180] sm:$0xff]
    %v137 = vld [vmem:[%s1 + $0x188] sm:$0xff]
    %v138 = vld [vmem:[%s1 + $0x190] sm:$0xff]
    %v139 = vld [vmem:[%s1 + $0x198] sm:$0xff]
    %v140 = vld [vmem:[%s1 + $0x1a0] sm:$0xff]
    %v141 = vld [vmem:[%s1 + $0x1a8] sm:$0xff]
    %v142 = vld [vmem:[%s1 + $0x1b0] sm:$0xff]
    %v143 = vld [vmem:[%s1 + $0x1b8] sm:$0xff]
    %v144 = vld [vmem:[%s1 + $0x1c0] sm:$0xff]
    %v145 = vld [vmem:[%s1 + $0x1c8] sm:$0xff]
    %v146 = vld [vmem:[%s1 + $0x1d0] sm:$0xff]
    %v147 = vld [vmem:[%s1 + $0x1d8] sm:$0xff]
    %v148 = vld [vmem:[%s1 + $0x1e0] sm:$0xff]
    %v149 = vld [vmem:[%s1 + $0x1e8] sm:$0xff]
    %v150 = vld [vmem:[%s1 + $0x1f0] sm:$0xff]
    %v151 = vld [vmem:[%s1 + $0x1f8] sm:$0xff]
    %v152 = vld [vmem:[%s1 + $0x200] sm:$0xff]
    %v153 = vld [vmem:[%s1 + $0x208] sm:$0xff]
    %v154 = vld [vmem:[%s1 + $0x210] sm:$0xff]
    %v155 = vld [vmem:[%s1 + $0x218] sm:$0xff]
    %v156 = vld [vmem:[%s1 + $0x220] sm:$0xff]
    %v157 = vld [vmem:[%s1 + $0x228] sm:$0xff]
    %v158 = vld [vmem:[%s1 + $0x230] sm:$0xff]
    %v159 = vld [vmem:[%s1 + $0x238] sm:$0xff]
    %v160 = vld [vmem:[%s1 + $0x240] sm:$0xff]
    %v161 = vld [vmem:[%s1 + $0x248] sm:$0xff]
    %v162 = vld [vmem:[%s1 + $0x250] sm:$0xff]
    %v163 = vld [vmem:[%s1 + $0x258] sm:$0xff]
    %v164 = vld [vmem:[%s1 + $0x260] sm:$0xff]
    %v165 = vld [vmem:[%s1 + $0x268] sm:$0xff]
    %v166 = vld [vmem:[%s1 + $0x270] sm:$0xff]
    %v167 = vld [vmem:[%s1 + $0x278] sm:$0xff]
    %v168 = vld [vmem:[%s1 + $0x280] sm:$0xff]
    %v169 = vld [vmem:[%s1 + $0x288] sm:$0xff]
    %v170 = vld [vmem:[%s1 + $0x290] sm:$0xff]
    %v171 = vld [vmem:[%s1 + $0x298] sm:$0xff]
    %v172 = vld [vmem:[%s1 + $0x2a0] sm:$0xff]
    %v173 = vld [vmem:[%s1 + $0x2a8] sm:$0xff]
    %v174 = vld [vmem:[%s1 + $0x2b0] sm:$0xff]
    %v175 = vld [vmem:[%s1 + $0x2b8] sm:$0xff]
    %v176 = vld [vmem:[%s1 + $0x2c0] sm:$0xff]
    %v177 = vld [vmem:[%s1 + $0x2c8] sm:$0xff]
    %v178 = vld [vmem:[%s1 + $0x2d0] sm:$0xff]
    %v179 = vld [vmem:[%s1 + $0x2d8] sm:$0xff]
    %v180 = vld [vmem:[%s1 + $0x2e0] sm:$0xff]
    %v181 = vld [vmem:[%s1 + $0x2e8] sm:$0xff]
    %v182 = vld [vmem:[%s1 + $0x2f0] sm:$0xff]
    %v183 = vld [vmem:[%s1 + $0x2f8] sm:$0xff]
    %v184 = vld [vmem:[%s1 + $0x300] sm:$0xff]
    %v185 = vld [vmem:[%s1 + $0x308] sm:$0xff]
    %v186 = vld [vmem:[%s1 + $0x310] sm:$0xff]
    %v187 = vld [vmem:[%s1 + $0x318] sm:$0xff]
    %v188 = vld [vmem:[%s1 + $0x320] sm:$0xff]
    %v189 = vld [vmem:[%s1 + $0x328] sm:$0xff]
    %v190 = vld [vmem:[%s1 + $0x330] sm:$0xff]
    %v191 = vld [vmem:[%s1 + $0x338] sm:$0xff]
    %v192 = vld [vmem:[%s1 + $0x340] sm:$0xff]
    %v193 = vld [vmem:[%s1 + $0x348] sm:$0xff]
    %v194 = vld [vmem:[%s1 + $0x350] sm:$0xff]
    %v195 = vld [vmem:[%s1 + $0x358] sm:$0xff]
    %v196 = vld [vmem:[%s1 + $0x360] sm:$0xff]
    %v197 = vld [vmem:[%s1 + $0x368] sm:$0xff]
    %v198 = vld [vmem:[%s1 + $0x370] sm:$0xff]
    %v199 = vld [vmem:[%s1 + $0x378] sm:$0xff]
    %v200 = vld [vmem:[%s1 + $0x380] sm:$0xff]
    %v201 = vld [vmem:[%s1 + $0x388] sm:$0xff]
    %v202 = vld [vmem:[%s1 + $0x390] sm:$0xff]
    %v203 = vld [vmem:[%s1 + $0x398] sm:$0xff]
    %v204 = vld [vmem:[%s1 + $0x3a0] sm:$0xff]
    %v205 = vld [vmem:[%s1 + $0x3a8] sm:$0xff]
    %v206 = vld [vmem:[%s1 + $0x3b0] sm:$0xff]
    %v207 = vld [vmem:[%s1 + $0x3b8] sm:$0xff]
    %v208 = vld [vmem:[%s1 + $0x3c0] sm:$0xff]
    %v209 = vld [vmem:[%s1 + $0x3c8] sm:$0xff]
    %v210 = vld [vmem:[%s1 + $0x3d0] sm:$0xff]
    %v211 = vld [vmem:[%s1 + $0x3d8] sm:$0xff]
    %v212 = vld [vmem:[%s1 + $0x3e0] sm:$0xff]
    %v213 = vld [vmem:[%s1 + $0x3e8] sm:$0xff]
    %v214 = vld [vmem:[%s1 + $0x3f0] sm:$0xff]
    %v215 = vld [vmem:[%s1 + $0x3f8] sm:$0xff]
    %v216 = vld [vmem:[%s2] sm:$0x3]
    %v218 = vlaneseq
    %v219 = vshrl.u32 %v218, 7
    %v220 = vsub.s32 0, %v219
    %v221 = vrot.slane %v216, %v220
    %v222 = vlaneseq
    %v223 = vshrl.u32 %v222, 7
    %v224 = vsub.s32 1, %v223
    %v225 = vrot.slane %v216, %v224
    %v292 = vunpack.c.l.b16 %v24
    %v293 = vunpack.c.h.b16 %v24
    %v294 = vunpack.c.l.b16 %v25
    %v295 = vunpack.c.h.b16 %v25
    %v296 = vunpack.c.l.b16 %v26
    %v297 = vunpack.c.h.b16 %v26
    %v298 = vunpack.c.l.b16 %v27
    %v299 = vunpack.c.h.b16 %v27
    %v300 = vunpack.c.l.b16 %v28
    %v301 = vunpack.c.h.b16 %v28
    %v302 = vunpack.c.l.b16 %v29
    %v303 = vunpack.c.h.b16 %v29
    %v304 = vunpack.c.l.b16 %v30
    %v305 = vunpack.c.h.b16 %v30
    %v306 = vunpack.c.l.b16 %v31
    %v307 = vunpack.c.h.b16 %v31
    %v308 = vunpack.c.l.b16 %v32
    %v309 = vunpack.c.h.b16 %v32
    %v310 = vunpack.c.l.b16 %v33
    %v311 = vunpack.c.h.b16 %v33
    %v312 = vunpack.c.l.b16 %v34
    %v313 = vunpack.c.h.b16 %v34
    %v314 = vunpack.c.l.b16 %v35
    %v315 = vunpack.c.h.b16 %v35
    %v316 = vunpack.c.l.b16 %v36
    %v317 = vunpack.c.h.b16 %v36
    %v318 = vunpack.c.l.b16 %v37
    %v319 = vunpack.c.h.b16 %v37
    %v320 = vunpack.c.l.b16 %v38
    %v321 = vunpack.c.h.b16 %v38
    %v322 = vunpack.c.l.b16 %v39
    %v323 = vunpack.c.h.b16 %v39
    %v324 = vunpack.c.l.b16 %v40
    %v325 = vunpack.c.h.b16 %v40
    %v326 = vunpack.c.l.b16 %v41
    %v327 = vunpack.c.h.b16 %v41
    %v328 = vunpack.c.l.b16 %v42
    %v329 = vunpack.c.h.b16 %v42
    %v330 = vunpack.c.l.b16 %v43
    %v331 = vunpack.c.h.b16 %v43
    %v332 = vunpack.c.l.b16 %v44
    %v333 = vunpack.c.h.b16 %v44
    %v334 = vunpack.c.l.b16 %v45
    %v335 = vunpack.c.h.b16 %v45
    %v336 = vunpack.c.l.b16 %v46
    %v337 = vunpack.c.h.b16 %v46
    %v338 = vunpack.c.l.b16 %v47
    %v339 = vunpack.c.h.b16 %v47
    %v340 = vunpack.c.l.b16 %v48
    %v341 = vunpack.c.h.b16 %v48
    %v342 = vunpack.c.l.b16 %v49
    %v343 = vunpack.c.h.b16 %v49
    %v344 = vunpack.c.l.b16 %v50
    %v345 = vunpack.c.h.b16 %v50
    %v346 = vunpack.c.l.b16 %v51
    %v347 = vunpack.c.h.b16 %v51
    %v348 = vunpack.c.l.b16 %v52
    %v349 = vunpack.c.h.b16 %v52
    %v350 = vunpack.c.l.b16 %v53
    %v351 = vunpack.c.h.b16 %v53
    %v352 = vunpack.c.l.b16 %v54
    %v353 = vunpack.c.h.b16 %v54
    %v354 = vunpack.c.l.b16 %v55
    %v355 = vunpack.c.h.b16 %v55
    %v356 = vunpack.c.l.b16 %v56
    %v357 = vunpack.c.h.b16 %v56
    %v358 = vunpack.c.l.b16 %v57
    %v359 = vunpack.c.h.b16 %v57
    %v360 = vunpack.c.l.b16 %v58
    %v361 = vunpack.c.h.b16 %v58
    %v362 = vunpack.c.l.b16 %v59
    %v363 = vunpack.c.h.b16 %v59
    %v364 = vunpack.c.l.b16 %v60
    %v365 = vunpack.c.h.b16 %v60
    %v366 = vunpack.c.l.b16 %v61
    %v367 = vunpack.c.h.b16 %v61
    %v368 = vunpack.c.l.b16 %v62
    %v369 = vunpack.c.h.b16 %v62
    %v370 = vunpack.c.l.b16 %v63
    %v371 = vunpack.c.h.b16 %v63
    %v372 = vunpack.c.l.b16 %v64
    %v373 = vunpack.c.h.b16 %v64
    %v374 = vunpack.c.l.b16 %v65
    %v375 = vunpack.c.h.b16 %v65
    %v376 = vunpack.c.l.b16 %v66
    %v377 = vunpack.c.h.b16 %v66
    %v378 = vunpack.c.l.b16 %v67
    %v379 = vunpack.c.h.b16 %v67
    %v380 = vunpack.c.l.b16 %v68
    %v381 = vunpack.c.h.b16 %v68
    %v382 = vunpack.c.l.b16 %v69
    %v383 = vunpack.c.h.b16 %v69
    %v384 = vunpack.c.l.b16 %v70
    %v385 = vunpack.c.h.b16 %v70
    %v386 = vunpack.c.l.b16 %v71
    %v387 = vunpack.c.h.b16 %v71
    %v388 = vunpack.c.l.b16 %v72
    %v389 = vunpack.c.h.b16 %v72
    %v390 = vunpack.c.l.b16 %v73
    %v391 = vunpack.c.h.b16 %v73
    %v392 = vunpack.c.l.b16 %v74
    %v393 = vunpack.c.h.b16 %v74
    %v394 = vunpack.c.l.b16 %v75
    %v395 = vunpack.c.h.b16 %v75
    %v396 = vunpack.c.l.b16 %v76
    %v397 = vunpack.c.h.b16 %v76
    %v398 = vunpack.c.l.b16 %v77
    %v399 = vunpack.c.h.b16 %v77
    %v400 = vunpack.c.l.b16 %v78
    %v401 = vunpack.c.h.b16 %v78
    %v402 = vunpack.c.l.b16 %v79
    %v403 = vunpack.c.h.b16 %v79
    %v404 = vunpack.c.l.b16 %v80
    %v405 = vunpack.c.h.b16 %v80
    %v406 = vunpack.c.l.b16 %v81
    %v407 = vunpack.c.h.b16 %v81
    %v408 = vunpack.c.l.b16 %v82
    %v409 = vunpack.c.h.b16 %v82
    %v410 = vunpack.c.l.b16 %v83
    %v411 = vunpack.c.h.b16 %v83
    %v412 = vunpack.c.l.b16 %v84
    %v413 = vunpack.c.h.b16 %v84
    %v414 = vunpack.c.l.b16 %v85
    %v415 = vunpack.c.h.b16 %v85
    %v416 = vunpack.c.l.b16 %v86
    %v417 = vunpack.c.h.b16 %v86
    %v418 = vunpack.c.l.b16 %v87
    %v419 = vunpack.c.h.b16 %v87
    %v420 = vpack.c.b16 %v300, %v292
    %v421 = vpack.c.b16 %v301, %v293
    %v422 = vpack.c.b16 %v302, %v294
    %v423 = vpack.c.b16 %v303, %v295
    %v424 = vpack.c.b16 %v304, %v296
    %v425 = vpack.c.b16 %v305, %v297
    %v426 = vpack.c.b16 %v306, %v298
    %v427 = vpack.c.b16 %v307, %v299
    %v428 = vpack.c.b16 %v316, %v308
    %v429 = vpack.c.b16 %v317, %v309
    %v430 = vpack.c.b16 %v318, %v310
    %v431 = vpack.c.b16 %v319, %v311
    %v432 = vpack.c.b16 %v320, %v312
    %v433 = vpack.c.b16 %v321, %v313
    %v434 = vpack.c.b16 %v322, %v314
    %v435 = vpack.c.b16 %v323, %v315
    %v436 = vpack.c.b16 %v332, %v324
    %v437 = vpack.c.b16 %v333, %v325
    %v438 = vpack.c.b16 %v334, %v326
    %v439 = vpack.c.b16 %v335, %v327
    %v440 = vpack.c.b16 %v336, %v328
    %v441 = vpack.c.b16 %v337, %v329
    %v442 = vpack.c.b16 %v338, %v330
    %v443 = vpack.c.b16 %v339, %v331
    %v444 = vpack.c.b16 %v348, %v340
    %v445 = vpack.c.b16 %v349, %v341
    %v446 = vpack.c.b16 %v350, %v342
    %v447 = vpack.c.b16 %v351, %v343
    %v448 = vpack.c.b16 %v352, %v344
    %v449 = vpack.c.b16 %v353, %v345
    %v450 = vpack.c.b16 %v354, %v346
    %v451 = vpack.c.b16 %v355, %v347
    %v452 = vpack.c.b16 %v364, %v356
    %v453 = vpack.c.b16 %v365, %v357
    %v454 = vpack.c.b16 %v366, %v358
    %v455 = vpack.c.b16 %v367, %v359
    %v456 = vpack.c.b16 %v368, %v360
    %v457 = vpack.c.b16 %v369, %v361
    %v458 = vpack.c.b16 %v370, %v362
    %v459 = vpack.c.b16 %v371, %v363
    %v460 = vpack.c.b16 %v380, %v372
    %v461 = vpack.c.b16 %v381, %v373
    %v462 = vpack.c.b16 %v382, %v374
    %v463 = vpack.c.b16 %v383, %v375
    %v464 = vpack.c.b16 %v384, %v376
    %v465 = vpack.c.b16 %v385, %v377
    %v466 = vpack.c.b16 %v386, %v378
    %v467 = vpack.c.b16 %v387, %v379
    %v468 = vpack.c.b16 %v396, %v388
    %v469 = vpack.c.b16 %v397, %v389
    %v470 = vpack.c.b16 %v398, %v390
    %v471 = vpack.c.b16 %v399, %v391
    %v472 = vpack.c.b16 %v400, %v392
    %v473 = vpack.c.b16 %v401, %v393
    %v474 = vpack.c.b16 %v402, %v394
    %v475 = vpack.c.b16 %v403, %v395
    %v476 = vpack.c.b16 %v412, %v404
    %v477 = vpack.c.b16 %v413, %v405
    %v478 = vpack.c.b16 %v414, %v406
    %v479 = vpack.c.b16 %v415, %v407
    %v480 = vpack.c.b16 %v416, %v408
    %v481 = vpack.c.b16 %v417, %v409
    %v482 = vpack.c.b16 %v418, %v410
    %v483 = vpack.c.b16 %v419, %v411
    %v676 = vunpack.c.l.b16 %v88
    %v677 = vunpack.c.h.b16 %v88
    %v678 = vunpack.c.l.b16 %v89
    %v679 = vunpack.c.h.b16 %v89
    %v680 = vunpack.c.l.b16 %v90
    %v681 = vunpack.c.h.b16 %v90
    %v682 = vunpack.c.l.b16 %v91
    %v683 = vunpack.c.h.b16 %v91
    %v684 = vunpack.c.l.b16 %v92
    %v685 = vunpack.c.h.b16 %v92
    %v686 = vunpack.c.l.b16 %v93
    %v687 = vunpack.c.h.b16 %v93
    %v688 = vunpack.c.l.b16 %v94
    %v689 = vunpack.c.h.b16 %v94
    %v690 = vunpack.c.l.b16 %v95
    %v691 = vunpack.c.h.b16 %v95
    %v692 = vunpack.c.l.b16 %v96
    %v693 = vunpack.c.h.b16 %v96
    %v694 = vunpack.c.l.b16 %v97
    %v695 = vunpack.c.h.b16 %v97
    %v696 = vunpack.c.l.b16 %v98
    %v697 = vunpack.c.h.b16 %v98
    %v698 = vunpack.c.l.b16 %v99
    %v699 = vunpack.c.h.b16 %v99
    %v700 = vunpack.c.l.b16 %v100
    %v701 = vunpack.c.h.b16 %v100
    %v702 = vunpack.c.l.b16 %v101
    %v703 = vunpack.c.h.b16 %v101
    %v704 = vunpack.c.l.b16 %v102
    %v705 = vunpack.c.h.b16 %v102
    %v706 = vunpack.c.l.b16 %v103
    %v707 = vunpack.c.h.b16 %v103
    %v708 = vunpack.c.l.b16 %v104
    %v709 = vunpack.c.h.b16 %v104
    %v710 = vunpack.c.l.b16 %v105
    %v711 = vunpack.c.h.b16 %v105
    %v712 = vunpack.c.l.b16 %v106
    %v713 = vunpack.c.h.b16 %v106
    %v714 = vunpack.c.l.b16 %v107
    %v715 = vunpack.c.h.b16 %v107
    %v716 = vunpack.c.l.b16 %v108
    %v717 = vunpack.c.h.b16 %v108
    %v718 = vunpack.c.l.b16 %v109
    %v719 = vunpack.c.h.b16 %v109
    %v720 = vunpack.c.l.b16 %v110
    %v721 = vunpack.c.h.b16 %v110
    %v722 = vunpack.c.l.b16 %v111
    %v723 = vunpack.c.h.b16 %v111
    %v724 = vunpack.c.l.b16 %v112
    %v725 = vunpack.c.h.b16 %v112
    %v726 = vunpack.c.l.b16 %v113
    %v727 = vunpack.c.h.b16 %v113
    %v728 = vunpack.c.l.b16 %v114
    %v729 = vunpack.c.h.b16 %v114
    %v730 = vunpack.c.l.b16 %v115
    %v731 = vunpack.c.h.b16 %v115
    %v732 = vunpack.c.l.b16 %v116
    %v733 = vunpack.c.h.b16 %v116
    %v734 = vunpack.c.l.b16 %v117
    %v735 = vunpack.c.h.b16 %v117
    %v736 = vunpack.c.l.b16 %v118
    %v737 = vunpack.c.h.b16 %v118
    %v738 = vunpack.c.l.b16 %v119
    %v739 = vunpack.c.h.b16 %v119
    %v740 = vunpack.c.l.b16 %v120
    %v741 = vunpack.c.h.b16 %v120
    %v742 = vunpack.c.l.b16 %v121
    %v743 = vunpack.c.h.b16 %v121
    %v744 = vunpack.c.l.b16 %v122
    %v745 = vunpack.c.h.b16 %v122
    %v746 = vunpack.c.l.b16 %v123
    %v747 = vunpack.c.h.b16 %v123
    %v748 = vunpack.c.l.b16 %v124
    %v749 = vunpack.c.h.b16 %v124
    %v750 = vunpack.c.l.b16 %v125
    %v751 = vunpack.c.h.b16 %v125
    %v752 = vunpack.c.l.b16 %v126
    %v753 = vunpack.c.h.b16 %v126
    %v754 = vunpack.c.l.b16 %v127
    %v755 = vunpack.c.h.b16 %v127
    %v756 = vunpack.c.l.b16 %v128
    %v757 = vunpack.c.h.b16 %v128
    %v758 = vunpack.c.l.b16 %v129
    %v759 = vunpack.c.h.b16 %v129
    %v760 = vunpack.c.l.b16 %v130
    %v761 = vunpack.c.h.b16 %v130
    %v762 = vunpack.c.l.b16 %v131
    %v763 = vunpack.c.h.b16 %v131
    %v764 = vunpack.c.l.b16 %v132
    %v765 = vunpack.c.h.b16 %v132
    %v766 = vunpack.c.l.b16 %v133
    %v767 = vunpack.c.h.b16 %v133
    %v768 = vunpack.c.l.b16 %v134
    %v769 = vunpack.c.h.b16 %v134
    %v770 = vunpack.c.l.b16 %v135
    %v771 = vunpack.c.h.b16 %v135
    %v772 = vunpack.c.l.b16 %v136
    %v773 = vunpack.c.h.b16 %v136
    %v774 = vunpack.c.l.b16 %v137
    %v775 = vunpack.c.h.b16 %v137
    %v776 = vunpack.c.l.b16 %v138
    %v777 = vunpack.c.h.b16 %v138
    %v778 = vunpack.c.l.b16 %v139
    %v779 = vunpack.c.h.b16 %v139
    %v780 = vunpack.c.l.b16 %v140
    %v781 = vunpack.c.h.b16 %v140
    %v782 = vunpack.c.l.b16 %v141
    %v783 = vunpack.c.h.b16 %v141
    %v784 = vunpack.c.l.b16 %v142
    %v785 = vunpack.c.h.b16 %v142
    %v786 = vunpack.c.l.b16 %v143
    %v787 = vunpack.c.h.b16 %v143
    %v788 = vunpack.c.l.b16 %v144
    %v789 = vunpack.c.h.b16 %v144
    %v790 = vunpack.c.l.b16 %v145
    %v791 = vunpack.c.h.b16 %v145
    %v792 = vunpack.c.l.b16 %v146
    %v793 = vunpack.c.h.b16 %v146
    %v794 = vunpack.c.l.b16 %v147
    %v795 = vunpack.c.h.b16 %v147
    %v796 = vunpack.c.l.b16 %v148
    %v797 = vunpack.c.h.b16 %v148
    %v798 = vunpack.c.l.b16 %v149
    %v799 = vunpack.c.h.b16 %v149
    %v800 = vunpack.c.l.b16 %v150
    %v801 = vunpack.c.h.b16 %v150
    %v802 = vunpack.c.l.b16 %v151
    %v803 = vunpack.c.h.b16 %v151
    %v804 = vunpack.c.l.b16 %v152
    %v805 = vunpack.c.h.b16 %v152
    %v806 = vunpack.c.l.b16 %v153
    %v807 = vunpack.c.h.b16 %v153
    %v808 = vunpack.c.l.b16 %v154
    %v809 = vunpack.c.h.b16 %v154
    %v810 = vunpack.c.l.b16 %v155
    %v811 = vunpack.c.h.b16 %v155
    %v812 = vunpack.c.l.b16 %v156
    %v813 = vunpack.c.h.b16 %v156
    %v814 = vunpack.c.l.b16 %v157
    %v815 = vunpack.c.h.b16 %v157
    %v816 = vunpack.c.l.b16 %v158
    %v817 = vunpack.c.h.b16 %v158
    %v818 = vunpack.c.l.b16 %v159
    %v819 = vunpack.c.h.b16 %v159
    %v820 = vunpack.c.l.b16 %v160
    %v821 = vunpack.c.h.b16 %v160
    %v822 = vunpack.c.l.b16 %v161
    %v823 = vunpack.c.h.b16 %v161
    %v824 = vunpack.c.l.b16 %v162
    %v825 = vunpack.c.h.b16 %v162
    %v826 = vunpack.c.l.b16 %v163
    %v827 = vunpack.c.h.b16 %v163
    %v828 = vunpack.c.l.b16 %v164
    %v829 = vunpack.c.h.b16 %v164
    %v830 = vunpack.c.l.b16 %v165
    %v831 = vunpack.c.h.b16 %v165
    %v832 = vunpack.c.l.b16 %v166
    %v833 = vunpack.c.h.b16 %v166
    %v834 = vunpack.c.l.b16 %v167
    %v835 = vunpack.c.h.b16 %v167
    %v836 = vunpack.c.l.b16 %v168
    %v837 = vunpack.c.h.b16 %v168
    %v838 = vunpack.c.l.b16 %v169
    %v839 = vunpack.c.h.b16 %v169
    %v840 = vunpack.c.l.b16 %v170
    %v841 = vunpack.c.h.b16 %v170
    %v842 = vunpack.c.l.b16 %v171
    %v843 = vunpack.c.h.b16 %v171
    %v844 = vunpack.c.l.b16 %v172
    %v845 = vunpack.c.h.b16 %v172
    %v846 = vunpack.c.l.b16 %v173
    %v847 = vunpack.c.h.b16 %v173
    %v848 = vunpack.c.l.b16 %v174
    %v849 = vunpack.c.h.b16 %v174
    %v850 = vunpack.c.l.b16 %v175
    %v851 = vunpack.c.h.b16 %v175
    %v852 = vunpack.c.l.b16 %v176
    %v853 = vunpack.c.h.b16 %v176
    %v854 = vunpack.c.l.b16 %v177
    %v855 = vunpack.c.h.b16 %v177
    %v856 = vunpack.c.l.b16 %v178
    %v857 = vunpack.c.h.b16 %v178
    %v858 = vunpack.c.l.b16 %v179
    %v859 = vunpack.c.h.b16 %v179
    %v860 = vunpack.c.l.b16 %v180
    %v861 = vunpack.c.h.b16 %v180
    %v862 = vunpack.c.l.b16 %v181
    %v863 = vunpack.c.h.b16 %v181
    %v864 = vunpack.c.l.b16 %v182
    %v865 = vunpack.c.h.b16 %v182
    %v866 = vunpack.c.l.b16 %v183
    %v867 = vunpack.c.h.b16 %v183
    %v868 = vunpack.c.l.b16 %v184
    %v869 = vunpack.c.h.b16 %v184
    %v870 = vunpack.c.l.b16 %v185
    %v871 = vunpack.c.h.b16 %v185
    %v872 = vunpack.c.l.b16 %v186
    %v873 = vunpack.c.h.b16 %v186
    %v874 = vunpack.c.l.b16 %v187
    %v875 = vunpack.c.h.b16 %v187
    %v876 = vunpack.c.l.b16 %v188
    %v877 = vunpack.c.h.b16 %v188
    %v878 = vunpack.c.l.b16 %v189
    %v879 = vunpack.c.h.b16 %v189
    %v880 = vunpack.c.l.b16 %v190
    %v881 = vunpack.c.h.b16 %v190
    %v882 = vunpack.c.l.b16 %v191
    %v883 = vunpack.c.h.b16 %v191
    %v884 = vunpack.c.l.b16 %v192
    %v885 = vunpack.c.h.b16 %v192
    %v886 = vunpack.c.l.b16 %v193
    %v887 = vunpack.c.h.b16 %v193
    %v888 = vunpack.c.l.b16 %v194
    %v889 = vunpack.c.h.b16 %v194
    %v890 = vunpack.c.l.b16 %v195
    %v891 = vunpack.c.h.b16 %v195
    %v892 = vunpack.c.l.b16 %v196
    %v893 = vunpack.c.h.b16 %v196
    %v894 = vunpack.c.l.b16 %v197
    %v895 = vunpack.c.h.b16 %v197
    %v896 = vunpack.c.l.b16 %v198
    %v897 = vunpack.c.h.b16 %v198
    %v898 = vunpack.c.l.b16 %v199
    %v899 = vunpack.c.h.b16 %v199
    %v900 = vunpack.c.l.b16 %v200
    %v901 = vunpack.c.h.b16 %v200
    %v902 = vunpack.c.l.b16 %v201
    %v903 = vunpack.c.h.b16 %v201
    %v904 = vunpack.c.l.b16 %v202
    %v905 = vunpack.c.h.b16 %v202
    %v906 = vunpack.c.l.b16 %v203
    %v907 = vunpack.c.h.b16 %v203
    %v908 = vunpack.c.l.b16 %v204
    %v909 = vunpack.c.h.b16 %v204
    %v910 = vunpack.c.l.b16 %v205
    %v911 = vunpack.c.h.b16 %v205
    %v912 = vunpack.c.l.b16 %v206
    %v913 = vunpack.c.h.b16 %v206
    %v914 = vunpack.c.l.b16 %v207
    %v915 = vunpack.c.h.b16 %v207
    %v916 = vunpack.c.l.b16 %v208
    %v917 = vunpack.c.h.b16 %v208
    %v918 = vunpack.c.l.b16 %v209
    %v919 = vunpack.c.h.b16 %v209
    %v920 = vunpack.c.l.b16 %v210
    %v921 = vunpack.c.h.b16 %v210
    %v922 = vunpack.c.l.b16 %v211
    %v923 = vunpack.c.h.b16 %v211
    %v924 = vunpack.c.l.b16 %v212
    %v925 = vunpack.c.h.b16 %v212
    %v926 = vunpack.c.l.b16 %v213
    %v927 = vunpack.c.h.b16 %v213
    %v928 = vunpack.c.l.b16 %v214
    %v929 = vunpack.c.h.b16 %v214
    %v930 = vunpack.c.l.b16 %v215
    %v931 = vunpack.c.h.b16 %v215
    %v932 = vpack.c.b16 %v678, %v676
    %v933 = vpack.c.b16 %v679, %v677
    %v934 = vpack.c.b16 %v682, %v680
    %v935 = vpack.c.b16 %v683, %v681
    %v936 = vpack.c.b16 %v686, %v684
    %v937 = vpack.c.b16 %v687, %v685
    %v938 = vpack.c.b16 %v690, %v688
    %v939 = vpack.c.b16 %v691, %v689
    %v940 = vpack.c.b16 %v694, %v692
    %v941 = vpack.c.b16 %v695, %v693
    %v942 = vpack.c.b16 %v698, %v696
    %v943 = vpack.c.b16 %v699, %v697
    %v944 = vpack.c.b16 %v702, %v700
    %v945 = vpack.c.b16 %v703, %v701
    %v946 = vpack.c.b16 %v706, %v704
    %v947 = vpack.c.b16 %v707, %v705
    %v948 = vpack.c.b16 %v710, %v708
    %v949 = vpack.c.b16 %v711, %v709
    %v950 = vpack.c.b16 %v714, %v712
    %v951 = vpack.c.b16 %v715, %v713
    %v952 = vpack.c.b16 %v718, %v716
    %v953 = vpack.c.b16 %v719, %v717
    %v954 = vpack.c.b16 %v722, %v720
    %v955 = vpack.c.b16 %v723, %v721
    %v956 = vpack.c.b16 %v726, %v724
    %v957 = vpack.c.b16 %v727, %v725
    %v958 = vpack.c.b16 %v730, %v728
    %v959 = vpack.c.b16 %v731, %v729
    %v960 = vpack.c.b16 %v734, %v732
    %v961 = vpack.c.b16 %v735, %v733
    %v962 = vpack.c.b16 %v738, %v736
    %v963 = vpack.c.b16 %v739, %v737
    %v964 = vpack.c.b16 %v742, %v740
    %v965 = vpack.c.b16 %v743, %v741
    %v966 = vpack.c.b16 %v746, %v744
    %v967 = vpack.c.b16 %v747, %v745
    %v968 = vpack.c.b16 %v750, %v748
    %v969 = vpack.c.b16 %v751, %v749
    %v970 = vpack.c.b16 %v754, %v752
    %v971 = vpack.c.b16 %v755, %v753
    %v972 = vpack.c.b16 %v758, %v756
    %v973 = vpack.c.b16 %v759, %v757
    %v974 = vpack.c.b16 %v762, %v760
    %v975 = vpack.c.b16 %v763, %v761
    %v976 = vpack.c.b16 %v766, %v764
    %v977 = vpack.c.b16 %v767, %v765
    %v978 = vpack.c.b16 %v770, %v768
    %v979 = vpack.c.b16 %v771, %v769
    %v980 = vpack.c.b16 %v774, %v772
    %v981 = vpack.c.b16 %v775, %v773
    %v982 = vpack.c.b16 %v778, %v776
    %v983 = vpack.c.b16 %v779, %v777
    %v984 = vpack.c.b16 %v782, %v780
    %v985 = vpack.c.b16 %v783, %v781
    %v986 = vpack.c.b16 %v786, %v784
    %v987 = vpack.c.b16 %v787, %v785
    %v988 = vpack.c.b16 %v790, %v788
    %v989 = vpack.c.b16 %v791, %v789
    %v990 = vpack.c.b16 %v794, %v792
    %v991 = vpack.c.b16 %v795, %v793
    %v992 = vpack.c.b16 %v798, %v796
    %v993 = vpack.c.b16 %v799, %v797
    %v994 = vpack.c.b16 %v802, %v800
    %v995 = vpack.c.b16 %v803, %v801
    %v996 = vpack.c.b16 %v806, %v804
    %v997 = vpack.c.b16 %v807, %v805
    %v998 = vpack.c.b16 %v810, %v808
    %v999 = vpack.c.b16 %v811, %v809
    %v1000 = vpack.c.b16 %v814, %v812
    %v1001 = vpack.c.b16 %v815, %v813
    %v1002 = vpack.c.b16 %v818, %v816
    %v1003 = vpack.c.b16 %v819, %v817
    %v1004 = vpack.c.b16 %v822, %v820
    %v1005 = vpack.c.b16 %v823, %v821
    %v1006 = vpack.c.b16 %v826, %v824
    %v1007 = vpack.c.b16 %v827, %v825
    %v1008 = vpack.c.b16 %v830, %v828
    %v1009 = vpack.c.b16 %v831, %v829
    %v1010 = vpack.c.b16 %v834, %v832
    %v1011 = vpack.c.b16 %v835, %v833
    %v1012 = vpack.c.b16 %v838, %v836
    %v1013 = vpack.c.b16 %v839, %v837
    %v1014 = vpack.c.b16 %v842, %v840
    %v1015 = vpack.c.b16 %v843, %v841
    %v1016 = vpack.c.b16 %v846, %v844
    %v1017 = vpack.c.b16 %v847, %v845
    %v1018 = vpack.c.b16 %v850, %v848
    %v1019 = vpack.c.b16 %v851, %v849
    %v1020 = vpack.c.b16 %v854, %v852
    %v1021 = vpack.c.b16 %v855, %v853
    %v1022 = vpack.c.b16 %v858, %v856
    %v1023 = vpack.c.b16 %v859, %v857
    %v1024 = vpack.c.b16 %v862, %v860
    %v1025 = vpack.c.b16 %v863, %v861
    %v1026 = vpack.c.b16 %v866, %v864
    %v1027 = vpack.c.b16 %v867, %v865
    %v1028 = vpack.c.b16 %v870, %v868
    %v1029 = vpack.c.b16 %v871, %v869
    %v1030 = vpack.c.b16 %v874, %v872
    %v1031 = vpack.c.b16 %v875, %v873
    %v1032 = vpack.c.b16 %v878, %v876
    %v1033 = vpack.c.b16 %v879, %v877
    %v1034 = vpack.c.b16 %v882, %v880
    %v1035 = vpack.c.b16 %v883, %v881
    %v1036 = vpack.c.b16 %v886, %v884
    %v1037 = vpack.c.b16 %v887, %v885
    %v1038 = vpack.c.b16 %v890, %v888
    %v1039 = vpack.c.b16 %v891, %v889
    %v1040 = vpack.c.b16 %v894, %v892
    %v1041 = vpack.c.b16 %v895, %v893
    %v1042 = vpack.c.b16 %v898, %v896
    %v1043 = vpack.c.b16 %v899, %v897
    %v1044 = vpack.c.b16 %v902, %v900
    %v1045 = vpack.c.b16 %v903, %v901
    %v1046 = vpack.c.b16 %v906, %v904
    %v1047 = vpack.c.b16 %v907, %v905
    %v1048 = vpack.c.b16 %v910, %v908
    %v1049 = vpack.c.b16 %v911, %v909
    %v1050 = vpack.c.b16 %v914, %v912
    %v1051 = vpack.c.b16 %v915, %v913
    %v1052 = vpack.c.b16 %v918, %v916
    %v1053 = vpack.c.b16 %v919, %v917
    %v1054 = vpack.c.b16 %v922, %v920
    %v1055 = vpack.c.b16 %v923, %v921
    %v1056 = vpack.c.b16 %v926, %v924
    %v1057 = vpack.c.b16 %v927, %v925
    %v1058 = vpack.c.b16 %v930, %v928
    %v1059 = vpack.c.b16 %v931, %v929
    %1188 = vmatprep.subr.bf16.mxu0 %v933
    %1189 = vmatpush1.bf16.msra.mxu0 %v932
    %1190 = vmatprep.subr.bf16.mxu0 %v935
    %1191 = vmatpush1.bf16.msra.mxu0 %v934
    %1192 = vmatprep.subr.bf16.mxu0 %v937
    %1193 = vmatpush1.bf16.msra.mxu0 %v936
    %1194 = vmatprep.subr.bf16.mxu0 %v939
    %1195 = vmatpush1.bf16.msra.mxu0 %v938
    %1196 = vmatprep.subr.bf16.mxu0 %v941
    %1197 = vmatpush1.bf16.msra.mxu0 %v940
    %1198 = vmatprep.subr.bf16.mxu0 %v943
    %1199 = vmatpush1.bf16.msra.mxu0 %v942
    %1200 = vmatprep.subr.bf16.mxu0 %v945
    %1201 = vmatpush1.bf16.msra.mxu0 %v944
    %1202 = vmatprep.subr.bf16.mxu0 %v947
    %1203 = vmatpush1.bf16.msra.mxu0 %v946
    %1204 = vmatprep.subr.bf16.mxu0 %v949
    %1205 = vmatpush1.bf16.msra.mxu0 %v948
    %1206 = vmatprep.subr.bf16.mxu0 %v951
    %1207 = vmatpush1.bf16.msra.mxu0 %v950
    %1208 = vmatprep.subr.bf16.mxu0 %v953
    %1209 = vmatpush1.bf16.msra.mxu0 %v952
    %1210 = vmatprep.subr.bf16.mxu0 %v955
    %1211 = vmatpush1.bf16.msra.mxu0 %v954
    %1212 = vmatprep.subr.bf16.mxu0 %v957
    %1213 = vmatpush1.bf16.msra.mxu0 %v956
    %1214 = vmatprep.subr.bf16.mxu0 %v959
    %1215 = vmatpush1.bf16.msra.mxu0 %v958
    %1216 = vmatprep.subr.bf16.mxu0 %v961
    %1217 = vmatpush1.bf16.msra.mxu0 %v960
    %1218 = vmatprep.subr.bf16.mxu0 %v963
    %1219 = vmatpush1.bf16.msra.mxu0 %v962
    %1220 = vmatprep.mubr.bf16.mxu0 %v421
    %1221 = vmatmul.mubr.bf16.gmra.mrb[0].mxu0 %v420
    %v1222 = vpop.f32.mrb[0].mxu0
    %v1223 = vadd.f32 %v221, %v1222
    %v1224 = vpop.f32.mrb[0].mxu0
    %v1225 = vadd.f32 %v225, %v1224
    %v1226 = vpop.f32.mrb[0].mxu0
    %v1227 = vadd.f32 %v221, %v1226
    %v1228 = vpop.f32.mrb[0].mxu0
    %v1229 = vadd.f32 %v225, %v1228
    %1230 = vmatprep.mubr.bf16.mxu0 %v429
    %1231 = vmatmul.mubr.bf16.gmra.mrb[0].mxu0 %v428
    %v1232 = vpop.f32.mrb[0].mxu0
    %v1233 = vadd.f32 %v221, %v1232
    %v1234 = vpop.f32.mrb[0].mxu0
    %v1235 = vadd.f32 %v225, %v1234
    %v1236 = vpop.f32.mrb[0].mxu0
    %v1237 = vadd.f32 %v221, %v1236
    %v1238 = vpop.f32.mrb[0].mxu0
    %v1239 = vadd.f32 %v225, %v1238
    %1240 = vmatprep.mubr.bf16.mxu0 %v437
    %1241 = vmatmul.mubr.bf16.gmra.mrb[0].mxu0 %v436
    %v1242 = vpop.f32.mrb[0].mxu0
    %v1243 = vadd.f32 %v221, %v1242
    %v1244 = vpop.f32.mrb[0].mxu0
    %v1245 = vadd.f32 %v225, %v1244
    %v1246 = vpop.f32.mrb[0].mxu0
    %v1247 = vadd.f32 %v221, %v1246
    %v1248 = vpop.f32.mrb[0].mxu0
    %v1249 = vadd.f32 %v225, %v1248
    %1250 = vmatprep.mubr.bf16.mxu0 %v445
    %1251 = vmatmul.mubr.bf16.gmra.mrb[0].mxu0 %v444
    %v1252 = vpop.f32.mrb[0].mxu0
    %v1253 = vadd.f32 %v221, %v1252
    %v1254 = vpop.f32.mrb[0].mxu0
    %v1255 = vadd.f32 %v225, %v1254
    %v1256 = vpop.f32.mrb[0].mxu0
    %v1257 = vadd.f32 %v221, %v1256
    %v1258 = vpop.f32.mrb[0].mxu0
    %v1259 = vadd.f32 %v225, %v1258
    %1260 = vmatprep.mubr.bf16.mxu0 %v453
    %1261 = vmatmul.mubr.bf16.gmra.mrb[0].mxu0 %v452
    %v1262 = vpop.f32.mrb[0].mxu0
    %v1263 = vadd.f32 %v221, %v1262
    %v1264 = vpop.f32.mrb[0].mxu0
    %v1265 = vadd.f32 %v225, %v1264
    %v1266 = vpop.f32.mrb[0].mxu0
    %v1267 = vadd.f32 %v221, %v1266
    %v1268 = vpop.f32.mrb[0].mxu0
    %v1269 = vadd.f32 %v225, %v1268
    %1270 = vmatprep.mubr.bf16.mxu0 %v461
    %1271 = vmatmul.mubr.bf16.gmra.mrb[0].mxu0 %v460
    %v1272 = vpop.f32.mrb[0].mxu0
    %v1273 = vadd.f32 %v221, %v1272
    %v1274 = vpop.f32.mrb[0].mxu0
    %v1275 = vadd.f32 %v225, %v1274
    %v1276 = vpop.f32.mrb[0].mxu0
    %v1277 = vadd.f32 %v221, %v1276
    %v1278 = vpop.f32.mrb[0].mxu0
    %v1279 = vadd.f32 %v225, %v1278
    %1280 = vmatprep.mubr.bf16.mxu0 %v469
    %1281 = vmatmul.mubr.bf16.gmra.mrb[0].mxu0 %v468
    %v1282 = vpop.f32.mrb[0].mxu0
    %v1283 = vadd.f32 %v221, %v1282
    %v1284 = vpop.f32.mrb[0].mxu0
    %v1285 = vadd.f32 %v225, %v1284
    %v1286 = vpop.f32.mrb[0].mxu0
    %v1287 = vadd.f32 %v221, %v1286
    %v1288 = vpop.f32.mrb[0].mxu0
    %v1289 = vadd.f32 %v225, %v1288
    %1290 = vmatprep.mubr.bf16.mxu0 %v477
    %1291 = vmatmul.mubr.bf16.gmra.mrb[0].mxu0 %v476
    %v1292 = vpop.f32.mrb[0].mxu0
    %v1293 = vadd.f32 %v221, %v1292
    %v1294 = vpop.f32.mrb[0].mxu0
    %v1295 = vadd.f32 %v225, %v1294
    %v1296 = vpop.f32.mrb[0].mxu0
    %v1297 = vadd.f32 %v221, %v1296
    %v1298 = vpop.f32.mrb[0].mxu0
    %v1299 = vadd.f32 %v225, %v1298
    %1300 = vdwg.mxu0
    %1301 = vmatprep.subr.bf16.mxu0 %v965
    %1302 = vmatpush1.bf16.msra.mxu0 %v964
    %1303 = vmatprep.subr.bf16.mxu0 %v967
    %1304 = vmatpush1.bf16.msra.mxu0 %v966
    %1305 = vmatprep.subr.bf16.mxu0 %v969
    %1306 = vmatpush1.bf16.msra.mxu0 %v968
    %1307 = vmatprep.subr.bf16.mxu0 %v971
    %1308 = vmatpush1.bf16.msra.mxu0 %v970
    %1309 = vmatprep.subr.bf16.mxu0 %v973
    %1310 = vmatpush1.bf16.msra.mxu0 %v972
    %1311 = vmatprep.subr.bf16.mxu0 %v975
    %1312 = vmatpush1.bf16.msra.mxu0 %v974
    %1313 = vmatprep.subr.bf16.mxu0 %v977
    %1314 = vmatpush1.bf16.msra.mxu0 %v976
    %1315 = vmatprep.subr.bf16.mxu0 %v979
    %1316 = vmatpush1.bf16.msra.mxu0 %v978
    %1317 = vmatprep.subr.bf16.mxu0 %v981
    %1318 = vmatpush1.bf16.msra.mxu0 %v980
    %1319 = vmatprep.subr.bf16.mxu0 %v983
    %1320 = vmatpush1.bf16.msra.mxu0 %v982
    %1321 = vmatprep.subr.bf16.mxu0 %v985
    %1322 = vmatpush1.bf16.msra.mxu0 %v984
    %1323 = vmatprep.subr.bf16.mxu0 %v987
    %1324 = vmatpush1.bf16.msra.mxu0 %v986
    %1325 = vmatprep.subr.bf16.mxu0 %v989
    %1326 = vmatpush1.bf16.msra.mxu0 %v988
    %1327 = vmatprep.subr.bf16.mxu0 %v991
    %1328 = vmatpush1.bf16.msra.mxu0 %v990
    %1329 = vmatprep.subr.bf16.mxu0 %v993
    %1330 = vmatpush1.bf16.msra.mxu0 %v992
    %1331 = vmatprep.subr.bf16.mxu0 %v995
    %1332 = vmatpush1.bf16.msra.mxu0 %v994
    %1333 = vmatprep.mubr.bf16.mxu0 %v423
    %1334 = vmatmul.mubr.bf16.gmra.mrb[0].mxu0 %v422
    %v1335 = vpop.f32.mrb[0].mxu0
    %v1336 = vadd.f32 %v1223, %v1335
    %v1337 = vpop.f32.mrb[0].mxu0
    %v1338 = vadd.f32 %v1225, %v1337
    %v1339 = vpop.f32.mrb[0].mxu0
    %v1340 = vadd.f32 %v1227, %v1339
    %v1341 = vpop.f32.mrb[0].mxu0
    %v1342 = vadd.f32 %v1229, %v1341
    %1343 = vmatprep.mubr.bf16.mxu0 %v431
    %1344 = vmatmul.mubr.bf16.gmra.mrb[0].mxu0 %v430
    %v1345 = vpop.f32.mrb[0].mxu0
    %v1346 = vadd.f32 %v1233, %v1345
    %v1347 = vpop.f32.mrb[0].mxu0
    %v1348 = vadd.f32 %v1235, %v1347
    %v1349 = vpop.f32.mrb[0].mxu0
    %v1350 = vadd.f32 %v1237, %v1349
    %v1351 = vpop.f32.mrb[0].mxu0
    %v1352 = vadd.f32 %v1239, %v1351
    %1353 = vmatprep.mubr.bf16.mxu0 %v439
    %1354 = vmatmul.mubr.bf16.gmra.mrb[0].mxu0 %v438
    %v1355 = vpop.f32.mrb[0].mxu0
    %v1356 = vadd.f32 %v1243, %v1355
    %v1357 = vpop.f32.mrb[0].mxu0
    %v1358 = vadd.f32 %v1245, %v1357
    %v1359 = vpop.f32.mrb[0].mxu0
    %v1360 = vadd.f32 %v1247, %v1359
    %v1361 = vpop.f32.mrb[0].mxu0
    %v1362 = vadd.f32 %v1249, %v1361
    %1363 = vmatprep.mubr.bf16.mxu0 %v447
    %1364 = vmatmul.mubr.bf16.gmra.mrb[0].mxu0 %v446
    %v1365 = vpop.f32.mrb[0].mxu0
    %v1366 = vadd.f32 %v1253, %v1365
    %v1367 = vpop.f32.mrb[0].mxu0
    %v1368 = vadd.f32 %v1255, %v1367
    %v1369 = vpop.f32.mrb[0].mxu0
    %v1370 = vadd.f32 %v1257, %v1369
    %v1371 = vpop.f32.mrb[0].mxu0
    %v1372 = vadd.f32 %v1259, %v1371
    %1373 = vmatprep.mubr.bf16.mxu0 %v455
    %1374 = vmatmul.mubr.bf16.gmra.mrb[0].mxu0 %v454
    %v1375 = vpop.f32.mrb[0].mxu0
    %v1376 = vadd.f32 %v1263, %v1375
    %v1377 = vpop.f32.mrb[0].mxu0
    %v1378 = vadd.f32 %v1265, %v1377
    %v1379 = vpop.f32.mrb[0].mxu0
    %v1380 = vadd.f32 %v1267, %v1379
    %v1381 = vpop.f32.mrb[0].mxu0
    %v1382 = vadd.f32 %v1269, %v1381
    %1383 = vmatprep.mubr.bf16.mxu0 %v463
    %1384 = vmatmul.mubr.bf16.gmra.mrb[0].mxu0 %v462
    %v1385 = vpop.f32.mrb[0].mxu0
    %v1386 = vadd.f32 %v1273, %v1385
    %v1387 = vpop.f32.mrb[0].mxu0
    %v1388 = vadd.f32 %v1275, %v1387
    %v1389 = vpop.f32.mrb[0].mxu0
    %v1390 = vadd.f32 %v1277, %v1389
    %v1391 = vpop.f32.mrb[0].mxu0
    %v1392 = vadd.f32 %v1279, %v1391
    %1393 = vmatprep.mubr.bf16.mxu0 %v471
    %1394 = vmatmul.mubr.bf16.gmra.mrb[0].mxu0 %v470
    %v1395 = vpop.f32.mrb[0].mxu0
    %v1396 = vadd.f32 %v1283, %v1395
    %v1397 = vpop.f32.mrb[0].mxu0
    %v1398 = vadd.f32 %v1285, %v1397
    %v1399 = vpop.f32.mrb[0].mxu0
    %v1400 = vadd.f32 %v1287, %v1399
    %v1401 = vpop.f32.mrb[0].mxu0
    %v1402 = vadd.f32 %v1289, %v1401
    %1403 = vmatprep.mubr.bf16.mxu0 %v479
    %1404 = vmatmul.mubr.bf16.gmra.mrb[0].mxu0 %v478
    %v1405 = vpop.f32.mrb[0].mxu0
    %v1406 = vadd.f32 %v1293, %v1405
    %v1407 = vpop.f32.mrb[0].mxu0
    %v1408 = vadd.f32 %v1295, %v1407
    %v1409 = vpop.f32.mrb[0].mxu0
    %v1410 = vadd.f32 %v1297, %v1409
    %v1411 = vpop.f32.mrb[0].mxu0
    %v1412 = vadd.f32 %v1299, %v1411
    %1413 = vdwg.mxu0
    %1414 = vmatprep.subr.bf16.mxu0 %v997
    %1415 = vmatpush1.bf16.msra.mxu0 %v996
    %1416 = vmatprep.subr.bf16.mxu0 %v999
    %1417 = vmatpush1.bf16.msra.mxu0 %v998
    %1418 = vmatprep.subr.bf16.mxu0 %v1001
    %1419 = vmatpush1.bf16.msra.mxu0 %v1000
    %1420 = vmatprep.subr.bf16.mxu0 %v1003
    %1421 = vmatpush1.bf16.msra.mxu0 %v1002
    %1422 = vmatprep.subr.bf16.mxu0 %v1005
    %1423 = vmatpush1.bf16.msra.mxu0 %v1004
    %1424 = vmatprep.subr.bf16.mxu0 %v1007
    %1425 = vmatpush1.bf16.msra.mxu0 %v1006
    %1426 = vmatprep.subr.bf16.mxu0 %v1009
    %1427 = vmatpush1.bf16.msra.mxu0 %v1008
    %1428 = vmatprep.subr.bf16.mxu0 %v1011
    %1429 = vmatpush1.bf16.msra.mxu0 %v1010
    %1430 = vmatprep.subr.bf16.mxu0 %v1013
    %1431 = vmatpush1.bf16.msra.mxu0 %v1012
    %1432 = vmatprep.subr.bf16.mxu0 %v1015
    %1433 = vmatpush1.bf16.msra.mxu0 %v1014
    %1434 = vmatprep.subr.bf16.mxu0 %v1017
    %1435 = vmatpush1.bf16.msra.mxu0 %v1016
    %1436 = vmatprep.subr.bf16.mxu0 %v1019
    %1437 = vmatpush1.bf16.msra.mxu0 %v1018
    %1438 = vmatprep.subr.bf16.mxu0 %v1021
    %1439 = vmatpush1.bf16.msra.mxu0 %v1020
    %1440 = vmatprep.subr.bf16.mxu0 %v1023
    %1441 = vmatpush1.bf16.msra.mxu0 %v1022
    %1442 = vmatprep.subr.bf16.mxu0 %v1025
    %1443 = vmatpush1.bf16.msra.mxu0 %v1024
    %1444 = vmatprep.subr.bf16.mxu0 %v1027
    %1445 = vmatpush1.bf16.msra.mxu0 %v1026
    %1446 = vmatprep.mubr.bf16.mxu0 %v425
    %1447 = vmatmul.mubr.bf16.gmra.mrb[0].mxu0 %v424
    %v1448 = vpop.f32.mrb[0].mxu0
    %v1449 = vadd.f32 %v1336, %v1448
    %v1450 = vpop.f32.mrb[0].mxu0
    %v1451 = vadd.f32 %v1338, %v1450
    %v1452 = vpop.f32.mrb[0].mxu0
    %v1453 = vadd.f32 %v1340, %v1452
    %v1454 = vpop.f32.mrb[0].mxu0
    %v1455 = vadd.f32 %v1342, %v1454
    %1456 = vmatprep.mubr.bf16.mxu0 %v433
    %1457 = vmatmul.mubr.bf16.gmra.mrb[0].mxu0 %v432
    %v1458 = vpop.f32.mrb[0].mxu0
    %v1459 = vadd.f32 %v1346, %v1458
    %v1460 = vpop.f32.mrb[0].mxu0
    %v1461 = vadd.f32 %v1348, %v1460
    %v1462 = vpop.f32.mrb[0].mxu0
    %v1463 = vadd.f32 %v1350, %v1462
    %v1464 = vpop.f32.mrb[0].mxu0
    %v1465 = vadd.f32 %v1352, %v1464
    %1466 = vmatprep.mubr.bf16.mxu0 %v441
    %1467 = vmatmul.mubr.bf16.gmra.mrb[0].mxu0 %v440
    %v1468 = vpop.f32.mrb[0].mxu0
    %v1469 = vadd.f32 %v1356, %v1468
    %v1470 = vpop.f32.mrb[0].mxu0
    %v1471 = vadd.f32 %v1358, %v1470
    %v1472 = vpop.f32.mrb[0].mxu0
    %v1473 = vadd.f32 %v1360, %v1472
    %v1474 = vpop.f32.mrb[0].mxu0
    %v1475 = vadd.f32 %v1362, %v1474
    %1476 = vmatprep.mubr.bf16.mxu0 %v449
    %1477 = vmatmul.mubr.bf16.gmra.mrb[0].mxu0 %v448
    %v1478 = vpop.f32.mrb[0].mxu0
    %v1479 = vadd.f32 %v1366, %v1478
    %v1480 = vpop.f32.mrb[0].mxu0
    %v1481 = vadd.f32 %v1368, %v1480
    %v1482 = vpop.f32.mrb[0].mxu0
    %v1483 = vadd.f32 %v1370, %v1482
    %v1484 = vpop.f32.mrb[0].mxu0
    %v1485 = vadd.f32 %v1372, %v1484
    %1486 = vmatprep.mubr.bf16.mxu0 %v457
    %1487 = vmatmul.mubr.bf16.gmra.mrb[0].mxu0 %v456
    %v1488 = vpop.f32.mrb[0].mxu0
    %v1489 = vadd.f32 %v1376, %v1488
    %v1490 = vpop.f32.mrb[0].mxu0
    %v1491 = vadd.f32 %v1378, %v1490
    %v1492 = vpop.f32.mrb[0].mxu0
    %v1493 = vadd.f32 %v1380, %v1492
    %v1494 = vpop.f32.mrb[0].mxu0
    %v1495 = vadd.f32 %v1382, %v1494
    %1496 = vmatprep.mubr.bf16.mxu0 %v465
    %1497 = vmatmul.mubr.bf16.gmra.mrb[0].mxu0 %v464
    %v1498 = vpop.f32.mrb[0].mxu0
    %v1499 = vadd.f32 %v1386, %v1498
    %v1500 = vpop.f32.mrb[0].mxu0
    %v1501 = vadd.f32 %v1388, %v1500
    %v1502 = vpop.f32.mrb[0].mxu0
    %v1503 = vadd.f32 %v1390, %v1502
    %v1504 = vpop.f32.mrb[0].mxu0
    %v1505 = vadd.f32 %v1392, %v1504
    %1506 = vmatprep.mubr.bf16.mxu0 %v473
    %1507 = vmatmul.mubr.bf16.gmra.mrb[0].mxu0 %v472
    %v1508 = vpop.f32.mrb[0].mxu0
    %v1509 = vadd.f32 %v1396, %v1508
    %v1510 = vpop.f32.mrb[0].mxu0
    %v1511 = vadd.f32 %v1398, %v1510
    %v1512 = vpop.f32.mrb[0].mxu0
    %v1513 = vadd.f32 %v1400, %v1512
    %v1514 = vpop.f32.mrb[0].mxu0
    %v1515 = vadd.f32 %v1402, %v1514
    %1516 = vmatprep.mubr.bf16.mxu0 %v481
    %1517 = vmatmul.mubr.bf16.gmra.mrb[0].mxu0 %v480
    %v1518 = vpop.f32.mrb[0].mxu0
    %v1519 = vadd.f32 %v1406, %v1518
    %v1520 = vpop.f32.mrb[0].mxu0
    %v1521 = vadd.f32 %v1408, %v1520
    %v1522 = vpop.f32.mrb[0].mxu0
    %v1523 = vadd.f32 %v1410, %v1522
    %v1524 = vpop.f32.mrb[0].mxu0
    %v1525 = vadd.f32 %v1412, %v1524
    %1526 = vdwg.mxu0
    %1527 = vmatprep.subr.bf16.mxu0 %v1029
    %1528 = vmatpush1.bf16.msra.mxu0 %v1028
    %1529 = vmatprep.subr.bf16.mxu0 %v1031
    %1530 = vmatpush1.bf16.msra.mxu0 %v1030
    %1531 = vmatprep.subr.bf16.mxu0 %v1033
    %1532 = vmatpush1.bf16.msra.mxu0 %v1032
    %1533 = vmatprep.subr.bf16.mxu0 %v1035
    %1534 = vmatpush1.bf16.msra.mxu0 %v1034
    %1535 = vmatprep.subr.bf16.mxu0 %v1037
    %1536 = vmatpush1.bf16.msra.mxu0 %v1036
    %1537 = vmatprep.subr.bf16.mxu0 %v1039
    %1538 = vmatpush1.bf16.msra.mxu0 %v1038
    %1539 = vmatprep.subr.bf16.mxu0 %v1041
    %1540 = vmatpush1.bf16.msra.mxu0 %v1040
    %1541 = vmatprep.subr.bf16.mxu0 %v1043
    %1542 = vmatpush1.bf16.msra.mxu0 %v1042
    %1543 = vmatprep.subr.bf16.mxu0 %v1045
    %1544 = vmatpush1.bf16.msra.mxu0 %v1044
    %1545 = vmatprep.subr.bf16.mxu0 %v1047
    %1546 = vmatpush1.bf16.msra.mxu0 %v1046
    %1547 = vmatprep.subr.bf16.mxu0 %v1049
    %1548 = vmatpush1.bf16.msra.mxu0 %v1048
    %1549 = vmatprep.subr.bf16.mxu0 %v1051
    %1550 = vmatpush1.bf16.msra.mxu0 %v1050
    %1551 = vmatprep.subr.bf16.mxu0 %v1053
    %1552 = vmatpush1.bf16.msra.mxu0 %v1052
    %1553 = vmatprep.subr.bf16.mxu0 %v1055
    %1554 = vmatpush1.bf16.msra.mxu0 %v1054
    %1555 = vmatprep.subr.bf16.mxu0 %v1057
    %1556 = vmatpush1.bf16.msra.mxu0 %v1056
    %1557 = vmatprep.subr.bf16.mxu0 %v1059
    %1558 = vmatpush1.bf16.msra.mxu0 %v1058
    %1559 = vmatprep.mubr.bf16.mxu0 %v427
    %1560 = vmatmul.mubr.bf16.gmra.mrb[0].mxu0 %v426
    %v1561 = vpop.f32.mrb[0].mxu0
    %v1562 = vadd.f32 %v1449, %v1561
    %v1563 = vpop.f32.mrb[0].mxu0
    %v1564 = vadd.f32 %v1451, %v1563
    %v1565 = vpop.f32.mrb[0].mxu0
    %v1566 = vadd.f32 %v1453, %v1565
    %v1567 = vpop.f32.mrb[0].mxu0
    %v1568 = vadd.f32 %v1455, %v1567
    %1569 = vmatprep.mubr.bf16.mxu0 %v435
    %1570 = vmatmul.mubr.bf16.gmra.mrb[0].mxu0 %v434
    %v1571 = vpop.f32.mrb[0].mxu0
    %v1572 = vadd.f32 %v1459, %v1571
    %v1573 = vpop.f32.mrb[0].mxu0
    %v1574 = vadd.f32 %v1461, %v1573
    %v1575 = vpop.f32.mrb[0].mxu0
    %v1576 = vadd.f32 %v1463, %v1575
    %v1577 = vpop.f32.mrb[0].mxu0
    %v1578 = vadd.f32 %v1465, %v1577
    %1579 = vmatprep.mubr.bf16.mxu0 %v443
    %1580 = vmatmul.mubr.bf16.gmra.mrb[0].mxu0 %v442
    %v1581 = vpop.f32.mrb[0].mxu0
    %v1582 = vadd.f32 %v1469, %v1581
    %v1583 = vpop.f32.mrb[0].mxu0
    %v1584 = vadd.f32 %v1471, %v1583
    %v1585 = vpop.f32.mrb[0].mxu0
    %v1586 = vadd.f32 %v1473, %v1585
    %v1587 = vpop.f32.mrb[0].mxu0
    %v1588 = vadd.f32 %v1475, %v1587
    %1589 = vmatprep.mubr.bf16.mxu0 %v451
    %1590 = vmatmul.mubr.bf16.gmra.mrb[0].mxu0 %v450
    %v1591 = vpop.f32.mrb[0].mxu0
    %v1592 = vadd.f32 %v1479, %v1591
    %v1593 = vpop.f32.mrb[0].mxu0
    %v1594 = vadd.f32 %v1481, %v1593
    %v1595 = vpop.f32.mrb[0].mxu0
    %v1596 = vadd.f32 %v1483, %v1595
    %v1597 = vpop.f32.mrb[0].mxu0
    %v1598 = vadd.f32 %v1485, %v1597
    %1599 = vmatprep.mubr.bf16.mxu0 %v459
    %1600 = vmatmul.mubr.bf16.gmra.mrb[0].mxu0 %v458
    %v1601 = vpop.f32.mrb[0].mxu0
    %v1602 = vadd.f32 %v1489, %v1601
    %v1603 = vpop.f32.mrb[0].mxu0
    %v1604 = vadd.f32 %v1491, %v1603
    %v1605 = vpop.f32.mrb[0].mxu0
    %v1606 = vadd.f32 %v1493, %v1605
    %v1607 = vpop.f32.mrb[0].mxu0
    %v1608 = vadd.f32 %v1495, %v1607
    %1609 = vmatprep.mubr.bf16.mxu0 %v467
    %1610 = vmatmul.mubr.bf16.gmra.mrb[0].mxu0 %v466
    %v1611 = vpop.f32.mrb[0].mxu0
    %v1612 = vadd.f32 %v1499, %v1611
    %v1613 = vpop.f32.mrb[0].mxu0
    %v1614 = vadd.f32 %v1501, %v1613
    %v1615 = vpop.f32.mrb[0].mxu0
    %v1616 = vadd.f32 %v1503, %v1615
    %v1617 = vpop.f32.mrb[0].mxu0
    %v1618 = vadd.f32 %v1505, %v1617
    %1619 = vmatprep.mubr.bf16.mxu0 %v475
    %1620 = vmatmul.mubr.bf16.gmra.mrb[0].mxu0 %v474
    %v1621 = vpop.f32.mrb[0].mxu0
    %v1622 = vadd.f32 %v1509, %v1621
    %v1623 = vpop.f32.mrb[0].mxu0
    %v1624 = vadd.f32 %v1511, %v1623
    %v1625 = vpop.f32.mrb[0].mxu0
    %v1626 = vadd.f32 %v1513, %v1625
    %v1627 = vpop.f32.mrb[0].mxu0
    %v1628 = vadd.f32 %v1515, %v1627
    %1629 = vmatprep.mubr.bf16.mxu0 %v483
    %1630 = vmatmul.mubr.bf16.gmra.mrb[0].mxu0 %v482
    %v1631 = vpop.f32.mrb[0].mxu0
    %v1632 = vadd.f32 %v1519, %v1631
    %v1633 = vpop.f32.mrb[0].mxu0
    %v1634 = vadd.f32 %v1521, %v1633
    %v1635 = vpop.f32.mrb[0].mxu0
    %v1636 = vadd.f32 %v1523, %v1635
    %v1637 = vpop.f32.mrb[0].mxu0
    %v1638 = vadd.f32 %v1525, %v1637
    %1639 = vdwg.mxu0
    %v1640 = vld [vmem:[%s3] sm:$0xff]
    %v1641 = vld [vmem:[%s3 + $0x8] sm:$0xff]
    %v1642 = vld [vmem:[%s3 + $0x10] sm:$0xff]
    %v1643 = vld [vmem:[%s3 + $0x18] sm:$0xff]
    %v1644 = vld [vmem:[%s3 + $0x20] sm:$0xff]
    %v1645 = vld [vmem:[%s3 + $0x28] sm:$0xff]
    %v1646 = vld [vmem:[%s3 + $0x30] sm:$0xff]
    %v1647 = vld [vmem:[%s3 + $0x38] sm:$0xff]
    %v1648 = vld [vmem:[%s3 + $0x40] sm:$0xff]
    %v1649 = vld [vmem:[%s3 + $0x48] sm:$0xff]
    %v1650 = vld [vmem:[%s3 + $0x50] sm:$0xff]
    %v1651 = vld [vmem:[%s3 + $0x58] sm:$0xff]
    %v1652 = vld [vmem:[%s3 + $0x60] sm:$0xff]
    %v1653 = vld [vmem:[%s3 + $0x68] sm:$0xff]
    %v1654 = vld [vmem:[%s3 + $0x70] sm:$0xff]
    %v1655 = vld [vmem:[%s3 + $0x78] sm:$0xff]
    %v1656 = vunpack.c.l.bf16 %v1640
    %v1657 = vunpack.c.h.bf16 %v1640
    %v1658 = vunpack.c.l.bf16 %v1641
    %v1659 = vunpack.c.h.bf16 %v1641
    %v1660 = vunpack.c.l.bf16 %v1642
    %v1661 = vunpack.c.h.bf16 %v1642
    %v1662 = vunpack.c.l.bf16 %v1643
    %v1663 = vunpack.c.h.bf16 %v1643
    %v1664 = vunpack.c.l.bf16 %v1644
    %v1665 = vunpack.c.h.bf16 %v1644
    %v1666 = vunpack.c.l.bf16 %v1645
    %v1667 = vunpack.c.h.bf16 %v1645
    %v1668 = vunpack.c.l.bf16 %v1646
    %v1669 = vunpack.c.h.bf16 %v1646
    %v1670 = vunpack.c.l.bf16 %v1647
    %v1671 = vunpack.c.h.bf16 %v1647
    %v1672 = vunpack.c.l.bf16 %v1648
    %v1673 = vunpack.c.h.bf16 %v1648
    %v1674 = vunpack.c.l.bf16 %v1649
    %v1675 = vunpack.c.h.bf16 %v1649
    %v1676 = vunpack.c.l.bf16 %v1650
    %v1677 = vunpack.c.h.bf16 %v1650
    %v1678 = vunpack.c.l.bf16 %v1651
    %v1679 = vunpack.c.h.bf16 %v1651
    %v1680 = vunpack.c.l.bf16 %v1652
    %v1681 = vunpack.c.h.bf16 %v1652
    %v1682 = vunpack.c.l.bf16 %v1653
    %v1683 = vunpack.c.h.bf16 %v1653
    %v1684 = vunpack.c.l.bf16 %v1654
    %v1685 = vunpack.c.h.bf16 %v1654
    %v1686 = vunpack.c.l.bf16 %v1655
    %v1687 = vunpack.c.h.bf16 %v1655
    %v1688 = vadd.f32 %v1562, %v1656
    %v1689 = vadd.f32 %v1564, %v1657
    %v1690 = vadd.f32 %v1566, %v1658
    %v1691 = vadd.f32 %v1568, %v1659
    %v1692 = vadd.f32 %v1572, %v1660
    %v1693 = vadd.f32 %v1574, %v1661
    %v1694 = vadd.f32 %v1576, %v1662
    %v1695 = vadd.f32 %v1578, %v1663
    %v1696 = vadd.f32 %v1582, %v1664
    %v1697 = vadd.f32 %v1584, %v1665
    %v1698 = vadd.f32 %v1586, %v1666
    %v1699 = vadd.f32 %v1588, %v1667
    %v1700 = vadd.f32 %v1592, %v1668
    %v1701 = vadd.f32 %v1594, %v1669
    %v1702 = vadd.f32 %v1596, %v1670
    %v1703 = vadd.f32 %v1598, %v1671
    %v1704 = vadd.f32 %v1602, %v1672
    %v1705 = vadd.f32 %v1604, %v1673
    %v1706 = vadd.f32 %v1606, %v1674
    %v1707 = vadd.f32 %v1608, %v1675
    %v1708 = vadd.f32 %v1612, %v1676
    %v1709 = vadd.f32 %v1614, %v1677
    %v1710 = vadd.f32 %v1616, %v1678
    %v1711 = vadd.f32 %v1618, %v1679
    %v1712 = vadd.f32 %v1622, %v1680
    %v1713 = vadd.f32 %v1624, %v1681
    %v1714 = vadd.f32 %v1626, %v1682
    %v1715 = vadd.f32 %v1628, %v1683
    %v1716 = vadd.f32 %v1632, %v1684
    %v1717 = vadd.f32 %v1634, %v1685
    %v1718 = vadd.f32 %v1636, %v1686
    %v1719 = vadd.f32 %v1638, %v1687
    %v1720 = vadd.f32 %v1688, %v1689
    %1721 = vadd.xlane.f32.xlu0 %v1720
    %v1722 = vpop.xlane.xlu0 %1721
    %v1723 = vadd.f32 %v1690, %v1691
    %1724 = vadd.xlane.f32.xlu0 %v1723
    %v1725 = vpop.xlane.xlu0 %1724
    %v1726 = vadd.f32 %v1692, %v1693
    %1727 = vadd.xlane.f32.xlu0 %v1726
    %v1728 = vpop.xlane.xlu0 %1727
    %v1729 = vadd.f32 %v1694, %v1695
    %1730 = vadd.xlane.f32.xlu0 %v1729
    %v1731 = vpop.xlane.xlu0 %1730
    %v1732 = vadd.f32 %v1696, %v1697
    %1733 = vadd.xlane.f32.xlu0 %v1732
    %v1734 = vpop.xlane.xlu0 %1733
    %v1735 = vadd.f32 %v1698, %v1699
    %1736 = vadd.xlane.f32.xlu0 %v1735
    %v1737 = vpop.xlane.xlu0 %1736
    %v1738 = vadd.f32 %v1700, %v1701
    %1739 = vadd.xlane.f32.xlu0 %v1738
    %v1740 = vpop.xlane.xlu0 %1739
    %v1741 = vadd.f32 %v1702, %v1703
    %1742 = vadd.xlane.f32.xlu0 %v1741
    %v1743 = vpop.xlane.xlu0 %1742
    %v1744 = vadd.f32 %v1704, %v1705
    %1745 = vadd.xlane.f32.xlu0 %v1744
    %v1746 = vpop.xlane.xlu0 %1745
    %v1747 = vadd.f32 %v1706, %v1707
    %1748 = vadd.xlane.f32.xlu0 %v1747
    %v1749 = vpop.xlane.xlu0 %1748
    %v1750 = vadd.f32 %v1708, %v1709
    %1751 = vadd.xlane.f32.xlu0 %v1750
    %v1752 = vpop.xlane.xlu0 %1751
    %v1753 = vadd.f32 %v1710, %v1711
    %1754 = vadd.xlane.f32.xlu0 %v1753
    %v1755 = vpop.xlane.xlu0 %1754
    %v1756 = vadd.f32 %v1712, %v1713
    %1757 = vadd.xlane.f32.xlu0 %v1756
    %v1758 = vpop.xlane.xlu0 %1757
    %v1759 = vadd.f32 %v1714, %v1715
    %1760 = vadd.xlane.f32.xlu0 %v1759
    %v1761 = vpop.xlane.xlu0 %1760
    %v1762 = vadd.f32 %v1716, %v1717
    %1763 = vadd.xlane.f32.xlu0 %v1762
    %v1764 = vpop.xlane.xlu0 %1763
    %v1765 = vadd.f32 %v1718, %v1719
    %1766 = vadd.xlane.f32.xlu0 %v1765
    %v1767 = vpop.xlane.xlu0 %1766
    %v1768 = vrcp.pop 256.0
    %v1769 = vmul.f32 %v1722, %v1768
    %v1770 = vmul.f32 %v1725, %v1768
    %v1771 = vmul.f32 %v1728, %v1768
    %v1772 = vmul.f32 %v1731, %v1768
    %v1773 = vmul.f32 %v1734, %v1768
    %v1774 = vmul.f32 %v1737, %v1768
    %v1775 = vmul.f32 %v1740, %v1768
    %v1776 = vmul.f32 %v1743, %v1768
    %v1777 = vmul.f32 %v1746, %v1768
    %v1778 = vmul.f32 %v1749, %v1768
    %v1779 = vmul.f32 %v1752, %v1768
    %v1780 = vmul.f32 %v1755, %v1768
    %v1781 = vmul.f32 %v1758, %v1768
    %v1782 = vmul.f32 %v1761, %v1768
    %v1783 = vmul.f32 %v1764, %v1768
    %v1784 = vmul.f32 %v1767, %v1768
    %v1785 = vsub.f32 %v1688, %v1769
    %v1786 = vsub.f32 %v1689, %v1769
    %v1787 = vsub.f32 %v1690, %v1770
    %v1788 = vsub.f32 %v1691, %v1770
    %v1789 = vsub.f32 %v1692, %v1771
    %v1790 = vsub.f32 %v1693, %v1771
    %v1791 = vsub.f32 %v1694, %v1772
    %v1792 = vsub.f32 %v1695, %v1772
    %v1793 = vsub.f32 %v1696, %v1773
    %v1794 = vsub.f32 %v1697, %v1773
    %v1795 = vsub.f32 %v1698, %v1774
    %v1796 = vsub.f32 %v1699, %v1774
    %v1797 = vsub.f32 %v1700, %v1775
    %v1798 = vsub.f32 %v1701, %v1775
    %v1799 = vsub.f32 %v1702, %v1776
    %v1800 = vsub.f32 %v1703, %v1776
    %v1801 = vsub.f32 %v1704, %v1777
    %v1802 = vsub.f32 %v1705, %v1777
    %v1803 = vsub.f32 %v1706, %v1778
    %v1804 = vsub.f32 %v1707, %v1778
    %v1805 = vsub.f32 %v1708, %v1779
    %v1806 = vsub.f32 %v1709, %v1779
    %v1807 = vsub.f32 %v1710, %v1780
    %v1808 = vsub.f32 %v1711, %v1780
    %v1809 = vsub.f32 %v1712, %v1781
    %v1810 = vsub.f32 %v1713, %v1781
    %v1811 = vsub.f32 %v1714, %v1782
    %v1812 = vsub.f32 %v1715, %v1782
    %v1813 = vsub.f32 %v1716, %v1783
    %v1814 = vsub.f32 %v1717, %v1783
    %v1815 = vsub.f32 %v1718, %v1784
    %v1816 = vsub.f32 %v1719, %v1784
    %v1817 = vmul.f32 %v1785, %v1785
    %v1818 = vmul.f32 %v1786, %v1786
    %v1819 = vmul.f32 %v1787, %v1787
    %v1820 = vmul.f32 %v1788, %v1788
    %v1821 = vmul.f32 %v1789, %v1789
    %v1822 = vmul.f32 %v1790, %v1790
    %v1823 = vmul.f32 %v1791, %v1791
    %v1824 = vmul.f32 %v1792, %v1792
    %v1825 = vmul.f32 %v1793, %v1793
    %v1826 = vmul.f32 %v1794, %v1794
    %v1827 = vmul.f32 %v1795, %v1795
    %v1828 = vmul.f32 %v1796, %v1796
    %v1829 = vmul.f32 %v1797, %v1797
    %v1830 = vmul.f32 %v1798, %v1798
    %v1831 = vmul.f32 %v1799, %v1799
    %v1832 = vmul.f32 %v1800, %v1800
    %v1833 = vmul.f32 %v1801, %v1801
    %v1834 = vmul.f32 %v1802, %v1802
    %v1835 = vmul.f32 %v1803, %v1803
    %v1836 = vmul.f32 %v1804, %v1804
    %v1837 = vmul.f32 %v1805, %v1805
    %v1838 = vmul.f32 %v1806, %v1806
    %v1839 = vmul.f32 %v1807, %v1807
    %v1840 = vmul.f32 %v1808, %v1808
    %v1841 = vmul.f32 %v1809, %v1809
    %v1842 = vmul.f32 %v1810, %v1810
    %v1843 = vmul.f32 %v1811, %v1811
    %v1844 = vmul.f32 %v1812, %v1812
    %v1845 = vmul.f32 %v1813, %v1813
    %v1846 = vmul.f32 %v1814, %v1814
    %v1847 = vmul.f32 %v1815, %v1815
    %v1848 = vmul.f32 %v1816, %v1816
    %v1849 = vadd.f32 %v1817, %v1818
    %1850 = vadd.xlane.f32.xlu0 %v1849
    %v1851 = vpop.xlane.xlu0 %1850
    %v1852 = vadd.f32 %v1819, %v1820
    %1853 = vadd.xlane.f32.xlu0 %v1852
    %v1854 = vpop.xlane.xlu0 %1853
    %v1855 = vadd.f32 %v1821, %v1822
    %1856 = vadd.xlane.f32.xlu0 %v1855
    %v1857 = vpop.xlane.xlu0 %1856
    %v1858 = vadd.f32 %v1823, %v1824
    %1859 = vadd.xlane.f32.xlu0 %v1858
    %v1860 = vpop.xlane.xlu0 %1859
    %v1861 = vadd.f32 %v1825, %v1826
    %1862 = vadd.xlane.f32.xlu0 %v1861
    %v1863 = vpop.xlane.xlu0 %1862
    %v1864 = vadd.f32 %v1827, %v1828
    %1865 = vadd.xlane.f32.xlu0 %v1864
    %v1866 = vpop.xlane.xlu0 %1865
    %v1867 = vadd.f32 %v1829, %v1830
    %1868 = vadd.xlane.f32.xlu0 %v1867
    %v1869 = vpop.xlane.xlu0 %1868
    %v1870 = vadd.f32 %v1831, %v1832
    %1871 = vadd.xlane.f32.xlu0 %v1870
    %v1872 = vpop.xlane.xlu0 %1871
    %v1873 = vadd.f32 %v1833, %v1834
    %1874 = vadd.xlane.f32.xlu0 %v1873
    %v1875 = vpop.xlane.xlu0 %1874
    %v1876 = vadd.f32 %v1835, %v1836
    %1877 = vadd.xlane.f32.xlu0 %v1876
    %v1878 = vpop.xlane.xlu0 %1877
    %v1879 = vadd.f32 %v1837, %v1838
    %1880 = vadd.xlane.f32.xlu0 %v1879
    %v1881 = vpop.xlane.xlu0 %1880
    %v1882 = vadd.f32 %v1839, %v1840
    %1883 = vadd.xlane.f32.xlu0 %v1882
    %v1884 = vpop.xlane.xlu0 %1883
    %v1885 = vadd.f32 %v1841, %v1842
    %1886 = vadd.xlane.f32.xlu0 %v1885
    %v1887 = vpop.xlane.xlu0 %1886
    %v1888 = vadd.f32 %v1843, %v1844
    %1889 = vadd.xlane.f32.xlu0 %v1888
    %v1890 = vpop.xlane.xlu0 %1889
    %v1891 = vadd.f32 %v1845, %v1846
    %1892 = vadd.xlane.f32.xlu0 %v1891
    %v1893 = vpop.xlane.xlu0 %1892
    %v1894 = vadd.f32 %v1847, %v1848
    %1895 = vadd.xlane.f32.xlu0 %v1894
    %v1896 = vpop.xlane.xlu0 %1895
    %v1897 = vmul.f32 %v1851, %v1768
    %v1898 = vmul.f32 %v1854, %v1768
    %v1899 = vmul.f32 %v1857, %v1768
    %v1900 = vmul.f32 %v1860, %v1768
    %v1901 = vmul.f32 %v1863, %v1768
    %v1902 = vmul.f32 %v1866, %v1768
    %v1903 = vmul.f32 %v1869, %v1768
    %v1904 = vmul.f32 %v1872, %v1768
    %v1905 = vmul.f32 %v1875, %v1768
    %v1906 = vmul.f32 %v1878, %v1768
    %v1907 = vmul.f32 %v1881, %v1768
    %v1908 = vmul.f32 %v1884, %v1768
    %v1909 = vmul.f32 %v1887, %v1768
    %v1910 = vmul.f32 %v1890, %v1768
    %v1911 = vmul.f32 %v1893, %v1768
    %v1912 = vmul.f32 %v1896, %v1768
    %v1913 = vadd.f32 %v1897, 1e-05
    %v1914 = vadd.f32 %v1898, 1e-05
    %v1915 = vadd.f32 %v1899, 1e-05
    %v1916 = vadd.f32 %v1900, 1e-05
    %v1917 = vadd.f32 %v1901, 1e-05
    %v1918 = vadd.f32 %v1902, 1e-05
    %v1919 = vadd.f32 %v1903, 1e-05
    %v1920 = vadd.f32 %v1904, 1e-05
    %v1921 = vadd.f32 %v1905, 1e-05
    %v1922 = vadd.f32 %v1906, 1e-05
    %v1923 = vadd.f32 %v1907, 1e-05
    %v1924 = vadd.f32 %v1908, 1e-05
    %v1925 = vadd.f32 %v1909, 1e-05
    %v1926 = vadd.f32 %v1910, 1e-05
    %v1927 = vadd.f32 %v1911, 1e-05
    %v1928 = vadd.f32 %v1912, 1e-05
    %v1929 = vrsqrt.pop %v1913
    %v1930 = vrsqrt.pop %v1914
    %v1931 = vrsqrt.pop %v1915
    %v1932 = vrsqrt.pop %v1916
    %v1933 = vrsqrt.pop %v1917
    %v1934 = vrsqrt.pop %v1918
    %v1935 = vrsqrt.pop %v1919
    %v1936 = vrsqrt.pop %v1920
    %v1937 = vrsqrt.pop %v1921
    %v1938 = vrsqrt.pop %v1922
    %v1939 = vrsqrt.pop %v1923
    %v1940 = vrsqrt.pop %v1924
    %v1941 = vrsqrt.pop %v1925
    %v1942 = vrsqrt.pop %v1926
    %v1943 = vrsqrt.pop %v1927
    %v1944 = vrsqrt.pop %v1928
    %v1945 = vmul.f32 %v1785, %v1929
    %v1946 = vmul.f32 %v1786, %v1929
    %v1947 = vmul.f32 %v1787, %v1930
    %v1948 = vmul.f32 %v1788, %v1930
    %v1949 = vmul.f32 %v1789, %v1931
    %v1950 = vmul.f32 %v1790, %v1931
    %v1951 = vmul.f32 %v1791, %v1932
    %v1952 = vmul.f32 %v1792, %v1932
    %v1953 = vmul.f32 %v1793, %v1933
    %v1954 = vmul.f32 %v1794, %v1933
    %v1955 = vmul.f32 %v1795, %v1934
    %v1956 = vmul.f32 %v1796, %v1934
    %v1957 = vmul.f32 %v1797, %v1935
    %v1958 = vmul.f32 %v1798, %v1935
    %v1959 = vmul.f32 %v1799, %v1936
    %v1960 = vmul.f32 %v1800, %v1936
    %v1961 = vmul.f32 %v1801, %v1937
    %v1962 = vmul.f32 %v1802, %v1937
    %v1963 = vmul.f32 %v1803, %v1938
    %v1964 = vmul.f32 %v1804, %v1938
    %v1965 = vmul.f32 %v1805, %v1939
    %v1966 = vmul.f32 %v1806, %v1939
    %v1967 = vmul.f32 %v1807, %v1940
    %v1968 = vmul.f32 %v1808, %v1940
    %v1969 = vmul.f32 %v1809, %v1941
    %v1970 = vmul.f32 %v1810, %v1941
    %v1971 = vmul.f32 %v1811, %v1942
    %v1972 = vmul.f32 %v1812, %v1942
    %v1973 = vmul.f32 %v1813, %v1943
    %v1974 = vmul.f32 %v1814, %v1943
    %v1975 = vmul.f32 %v1815, %v1944
    %v1976 = vmul.f32 %v1816, %v1944
    %v1977 = vld [vmem:[%s4] sm:$0x3]
    %v1979 = vlaneseq
    %v1980 = vshrl.u32 %v1979, 7
    %v1981 = vsub.s32 0, %v1980
    %v1982 = vrot.slane %v1977, %v1981
    %v1983 = vlaneseq
    %v1984 = vshrl.u32 %v1983, 7
    %v1985 = vsub.s32 1, %v1984
    %v1986 = vrot.slane %v1977, %v1985
    %v1989 = vmul.f32 %v1945, %v1982
    %v1990 = vmul.f32 %v1946, %v1986
    %v1991 = vmul.f32 %v1947, %v1982
    %v1992 = vmul.f32 %v1948, %v1986
    %v1993 = vmul.f32 %v1949, %v1982
    %v1994 = vmul.f32 %v1950, %v1986
    %v1995 = vmul.f32 %v1951, %v1982
    %v1996 = vmul.f32 %v1952, %v1986
    %v1997 = vmul.f32 %v1953, %v1982
    %v1998 = vmul.f32 %v1954, %v1986
    %v1999 = vmul.f32 %v1955, %v1982
    %v2000 = vmul.f32 %v1956, %v1986
    %v2001 = vmul.f32 %v1957, %v1982
    %v2002 = vmul.f32 %v1958, %v1986
    %v2003 = vmul.f32 %v1959, %v1982
    %v2004 = vmul.f32 %v1960, %v1986
    %v2005 = vmul.f32 %v1961, %v1982
    %v2006 = vmul.f32 %v1962, %v1986
    %v2007 = vmul.f32 %v1963, %v1982
    %v2008 = vmul.f32 %v1964, %v1986
    %v2009 = vmul.f32 %v1965, %v1982
    %v2010 = vmul.f32 %v1966, %v1986
    %v2011 = vmul.f32 %v1967, %v1982
    %v2012 = vmul.f32 %v1968, %v1986
    %v2013 = vmul.f32 %v1969, %v1982
    %v2014 = vmul.f32 %v1970, %v1986
    %v2015 = vmul.f32 %v1971, %v1982
    %v2016 = vmul.f32 %v1972, %v1986
    %v2017 = vmul.f32 %v1973, %v1982
    %v2018 = vmul.f32 %v1974, %v1986
    %v2019 = vmul.f32 %v1975, %v1982
    %v2020 = vmul.f32 %v1976, %v1986
    %v2021 = vld [vmem:[%s5] sm:$0x3]
    %v2023 = vlaneseq
    %v2024 = vshrl.u32 %v2023, 7
    %v2025 = vsub.s32 0, %v2024
    %v2026 = vrot.slane %v2021, %v2025
    %v2027 = vlaneseq
    %v2028 = vshrl.u32 %v2027, 7
    %v2029 = vsub.s32 1, %v2028
    %v2030 = vrot.slane %v2021, %v2029
    %v2033 = vadd.f32 %v1989, %v2026
    %v2034 = vadd.f32 %v1990, %v2030
    %v2035 = vadd.f32 %v1991, %v2026
    %v2036 = vadd.f32 %v1992, %v2030
    %v2037 = vadd.f32 %v1993, %v2026
    %v2038 = vadd.f32 %v1994, %v2030
    %v2039 = vadd.f32 %v1995, %v2026
    %v2040 = vadd.f32 %v1996, %v2030
    %v2041 = vadd.f32 %v1997, %v2026
    %v2042 = vadd.f32 %v1998, %v2030
    %v2043 = vadd.f32 %v1999, %v2026
    %v2044 = vadd.f32 %v2000, %v2030
    %v2045 = vadd.f32 %v2001, %v2026
    %v2046 = vadd.f32 %v2002, %v2030
    %v2047 = vadd.f32 %v2003, %v2026
    %v2048 = vadd.f32 %v2004, %v2030
    %v2049 = vadd.f32 %v2005, %v2026
    %v2050 = vadd.f32 %v2006, %v2030
    %v2051 = vadd.f32 %v2007, %v2026
    %v2052 = vadd.f32 %v2008, %v2030
    %v2053 = vadd.f32 %v2009, %v2026
    %v2054 = vadd.f32 %v2010, %v2030
    %v2055 = vadd.f32 %v2011, %v2026
    %v2056 = vadd.f32 %v2012, %v2030
    %v2057 = vadd.f32 %v2013, %v2026
    %v2058 = vadd.f32 %v2014, %v2030
    %v2059 = vadd.f32 %v2015, %v2026
    %v2060 = vadd.f32 %v2016, %v2030
    %v2061 = vadd.f32 %v2017, %v2026
    %v2062 = vadd.f32 %v2018, %v2030
    %v2063 = vadd.f32 %v2019, %v2026
    %v2064 = vadd.f32 %v2020, %v2030
    %2065 = vst [vmem:[#allocation2] sm:$0xff] %v2033
    %2066 = vst [vmem:[#allocation2 + $0x8] sm:$0xff] %v2034
    %2067 = vst [vmem:[#allocation2 + $0x10] sm:$0xff] %v2035
    %2068 = vst [vmem:[#allocation2 + $0x18] sm:$0xff] %v2036
    %2069 = vst [vmem:[#allocation2 + $0x20] sm:$0xff] %v2037
    %2070 = vst [vmem:[#allocation2 + $0x28] sm:$0xff] %v2038
    %2071 = vst [vmem:[#allocation2 + $0x30] sm:$0xff] %v2039
    %2072 = vst [vmem:[#allocation2 + $0x38] sm:$0xff] %v2040
    %2073 = vst [vmem:[#allocation2 + $0x40] sm:$0xff] %v2041
    %2074 = vst [vmem:[#allocation2 + $0x48] sm:$0xff] %v2042
    %2075 = vst [vmem:[#allocation2 + $0x50] sm:$0xff] %v2043
    %2076 = vst [vmem:[#allocation2 + $0x58] sm:$0xff] %v2044
    %2077 = vst [vmem:[#allocation2 + $0x60] sm:$0xff] %v2045
    %2078 = vst [vmem:[#allocation2 + $0x68] sm:$0xff] %v2046
    %2079 = vst [vmem:[#allocation2 + $0x70] sm:$0xff] %v2047
    %2080 = vst [vmem:[#allocation2 + $0x78] sm:$0xff] %v2048
    %2081 = vst [vmem:[#allocation2 + $0x80] sm:$0xff] %v2049
    %2082 = vst [vmem:[#allocation2 + $0x88] sm:$0xff] %v2050
    %2083 = vst [vmem:[#allocation2 + $0x90] sm:$0xff] %v2051
    %2084 = vst [vmem:[#allocation2 + $0x98] sm:$0xff] %v2052
    %2085 = vst [vmem:[#allocation2 + $0xa0] sm:$0xff] %v2053
    %2086 = vst [vmem:[#allocation2 + $0xa8] sm:$0xff] %v2054
    %2087 = vst [vmem:[#allocation2 + $0xb0] sm:$0xff] %v2055
    %2088 = vst [vmem:[#allocation2 + $0xb8] sm:$0xff] %v2056
    %2089 = vst [vmem:[#allocation2 + $0xc0] sm:$0xff] %v2057
    %2090 = vst [vmem:[#allocation2 + $0xc8] sm:$0xff] %v2058
    %2091 = vst [vmem:[#allocation2 + $0xd0] sm:$0xff] %v2059
    %2092 = vst [vmem:[#allocation2 + $0xd8] sm:$0xff] %v2060
    %2093 = vst [vmem:[#allocation2 + $0xe0] sm:$0xff] %v2061
    %2094 = vst [vmem:[#allocation2 + $0xe8] sm:$0xff] %v2062
    %2095 = vst [vmem:[#allocation2 + $0xf0] sm:$0xff] %v2063
    %2096 = vst [vmem:[#allocation2 + $0xf8] sm:$0xff] %v2064
    // Predicated region
    $region26: #{bert_embedder_forward.15} parent=1 // pred_check
      _
    $region27: #{bert_embedder_forward.15} parent=1 // pred_check_branch
      %2098 = sbr.rel (0) target = $region29
    $region28: #{bert_embedder_forward.15} parent=1 // pred_region
      %s2100 = ssub.s32 4096, 4096
      %2101 = vsyncadd [#allocation3], %s2100
      %s2102 = sshll.u32 [#allocation2], 4
      %s2103 = int_to_ptr.vmem [resolvable:$true] %s2102
      %2108 = dma.vmem_to_hbm [thread:$0]  %s2103, 4096, %s6, [#allocation3], 256, 256, 16
    $region29: #{bert_embedder_forward.15} parent=1 // pred_fallthru
      _
    // Predicated region
    $region30: #{bert_embedder_forward.15} parent=1 // pred_check
      _
    $region31: #{bert_embedder_forward.15} parent=1 // pred_check_branch
      %2110 = sbr.rel (0) target = $region33
    $region32: #{bert_embedder_forward.15} parent=1 // pred_region
      %2111 = dma.done [#allocation3], 4096
    $region33: #{bert_embedder_forward.15} parent=1 // pred_fallthru
      _
    %2112 = vsyncpa [#allocation3], 1

</llo_original>
